<compile_context>
chip_gen: v7x
topology: tpu7x:2x2x1
jax: 0.10.0
libtpu: 0.0.40
codegen_flags: <defaults>
</compile_context>

<pallas_src>
import math

import jax
import jax.numpy as jnp
import numpy as np
from jax import lax
from jax.experimental import pallas as pl
from jax.experimental.pallas import tpu as pltpu

# Small synthetic GPT-2 configuration (6 layers = "first half" of 12).
VOCAB = 128
B = 2
S = 8
BS = B * S
H = 32
NH = 4
HD = H // NH
N_LAYERS = 6
EPS = 1e-5
NEG_BIG = -1e30

# bf16 weights / bf16 MXU inputs, f32 accumulation & f32 elementwise math.
MATMUL_DTYPE = jnp.bfloat16


def _layer_norm(x, g, b):
    mu = jnp.mean(x, axis=-1, keepdims=True)
    var = jnp.mean((x - mu) ** 2, axis=-1, keepdims=True)
    return (x - mu) * lax.rsqrt(var + EPS) * g + b


def _gelu_new(x):
    # GPT-2 "gelu_new" (tanh approximation)
    return 0.5 * x * (1.0 + jnp.tanh(0.7978845608028654 * (x + 0.044715 * x * x * x)))


def _mm(a, w):
    # Shared matmul precision policy (kernel AND reference): bf16 MXU inputs, f32 accumulate.
    return jnp.dot(a.astype(MATMUL_DTYPE), w.astype(MATMUL_DTYPE),
                   preferred_element_type=jnp.float32)


# ---------------------------------------------------------------------------
# Single fused Pallas kernel: embedding gather + 6 transformer blocks
# ---------------------------------------------------------------------------
def gpt2_node1_kernel(ids_ref, wte_ref, bias_ref,
                      g1_ref, b1_ref, wqkv_ref, bqkv_ref, wo_ref, bo_ref,
                      g2_ref, b2_ref, wfc_ref, bfc_ref, wmp_ref, bmp_ref,
                      y_ref, x0_ref, omerge_ref):
    # ---- token embedding: true row gather (ids are SMEM scalars) ------------
    for n in range(BS):
        tok = ids_ref[n]                                   # i32 scalar from SMEM
        x0_ref[pl.ds(n, 1), :] = wte_ref[pl.ds(tok, 1), :]
    x = x0_ref[...]                                        # (BS, H) f32

    scale = 1.0 / math.sqrt(HD)
    bias = bias_ref[...]                                   # (BS, BS) 2-D, broadcast at use

    # Unrolled over 6 layers; x stays in VMEM/vregs the whole time.
    for i in range(N_LAYERS):
        # ---- attention branch ------------------------------------------------
        h1 = _layer_norm(x, g1_ref[i], b1_ref[i])          # (BS, H) f32
        # One flat (BS,H)@(H,3H) matmul (review #1).
        qkv = _mm(h1, wqkv_ref[i]) + bqkv_ref[i]           # (BS, 3H) f32

        # Head split: static lane slices stacked on a new leading head axis.
        q = jnp.stack([qkv[:, h * HD:(h + 1) * HD] for h in range(NH)])            # (NH,BS,HD)
        k = jnp.stack([qkv[:, H + h * HD:H + (h + 1) * HD] for h in range(NH)])
        v = jnp.stack([qkv[:, 2 * H + h * HD:2 * H + (h + 1) * HD] for h in range(NH)])

        # Batched attention over heads; cross-batch keys killed by the additive bias.
        s = jnp.einsum('hqd,hkd->hqk', q, k,
                       preferred_element_type=jnp.float32) * scale + bias[None]     # (NH,BS,BS)
        s = s - jnp.max(s, axis=-1, keepdims=True)
        p = jnp.exp(s)
        p = p / jnp.sum(p, axis=-1, keepdims=True)          # exact division (f32)
        o = jnp.einsum('hqk,hkd->hqd', p, v,
                       preferred_element_type=jnp.float32)  # (NH, BS, HD)

        # Merge heads -> (BS, H) through VMEM scratch, then ONE (BS,H)@(H,H) matmul (review #2).
        for h in range(NH):
            omerge_ref[:, h * HD:(h + 1) * HD] = o[h]
        o_flat = omerge_ref[...]
        x = x + _mm(o_flat, wo_ref[i]) + bo_ref[i]

        # ---- MLP branch --------------------------------------------------------
        h2 = _layer_norm(x, g2_ref[i], b2_ref[i])
        ff = _mm(h2, wfc_ref[i]) + bfc_ref[i]
        ff = _gelu_new(ff)
        x = x + _mm(ff, wmp_ref[i]) + bmp_ref[i]

    y_ref[...] = x                                          # (16, 32) f32


# ---------------------------------------------------------------------------
# Wrappers
# ---------------------------------------------------------------------------
def stack_params(layers):
    """Stack per-layer GPT-2 weights on a leading axis of 6, keeping the original
    HF (Conv1D) layouts; big matmul weights are cast to MATMUL_DTYPE."""
    g1 = jnp.stack([p[0] for p in layers])                          # (L, 1, H)
    b1 = jnp.stack([p[1] for p in layers])                          # (L, 1, H)
    wqkv = jnp.stack([p[2] for p in layers]).astype(MATMUL_DTYPE)   # (L, H, 3H)
    bqkv = jnp.stack([p[3] for p in layers])                        # (L, 1, 3H)
    wo = jnp.stack([p[4] for p in layers]).astype(MATMUL_DTYPE)     # (L, H, H)
    bo = jnp.stack([p[5] for p in layers])                          # (L, 1, H)
    g2 = jnp.stack([p[6] for p in layers])
    b2 = jnp.stack([p[7] for p in layers])
    wfc = jnp.stack([p[8] for p in layers]).astype(MATMUL_DTYPE)    # (L, H, 4H)
    bfc = jnp.stack([p[9] for p in layers])                         # (L, 1, 4H)
    wmp = jnp.stack([p[10] for p in layers]).astype(MATMUL_DTYPE)   # (L, 4H, H)
    bmp = jnp.stack([p[11] for p in layers])                        # (L, 1, H)
    return (g1, b1, wqkv, bqkv, wo, bo, g2, b2, wfc, bfc, wmp, bmp)


def gpt2_node1_forward(input_ids, wte, stacked):
    ids = input_ids.reshape(-1).astype(jnp.int32)           # (BS,) -> SMEM

    # Additive attention bias: causal within each sequence, -inf across batches
    # (lets all batches share one (BS, BS) score tensor inside the kernel).
    qi = np.arange(BS)[:, None]
    ki = np.arange(BS)[None, :]
    allowed = (qi // S == ki // S) & (qi % S >= ki % S)
    attn_bias = jnp.asarray(np.where(allowed, 0.0, NEG_BIG), dtype=jnp.float32)

    smem = pl.BlockSpec(memory_space=pltpu.MemorySpace.SMEM)
    vmem = pl.BlockSpec(memory_space=pltpu.MemorySpace.VMEM)

    out = pl.pallas_call(
        gpt2_node1_kernel,
        out_shape=jax.ShapeDtypeStruct((BS, H), jnp.float32),
        in_specs=[smem] + [vmem] * (2 + len(stacked)),
        out_specs=vmem,
        scratch_shapes=[pltpu.VMEM((BS, H), jnp.float32),    # embedding gather buffer
                        pltpu.VMEM((BS, H), jnp.float32)],   # per-layer head-merge buffer
    )(ids, wte, attn_bias, *stacked)
    return out.reshape(B, S, H)


# ---------------------------------------------------------------------------
# Deterministic parameter init (GPT-2-style: normal(0, 0.02) weights, LN = (1, 0))
# ---------------------------------------------------------------------------
def init_params(key):
    keys = jax.random.split(key, 1 + 4 * N_LAYERS)
    wte = jax.random.normal(keys[0], (VOCAB, H), jnp.float32) * 0.02
    layers = []
    for i in range(N_LAYERS):
        k1, k2, k3, k4 = keys[1 + 4 * i: 1 + 4 * i + 4]
        layers.append((
            jnp.ones((1, H), jnp.float32),                          # ln1 gamma
            jnp.zeros((1, H), jnp.float32),                         # ln1 beta
            jax.random.normal(k1, (H, 3 * H), jnp.float32) * 0.02,  # c_attn W
            jnp.zeros((1, 3 * H), jnp.float32),                     # c_attn b
            jax.random.normal(k2, (H, H), jnp.float32) * 0.02,      # attn c_proj W
            jnp.zeros((1, H), jnp.float32),                         # attn c_proj b
            jnp.ones((1, H), jnp.float32),                          # ln2 gamma
            jnp.zeros((1, H), jnp.float32),                         # ln2 beta
            jax.random.normal(k3, (H, 4 * H), jnp.float32) * 0.02,  # c_fc W
            jnp.zeros((1, 4 * H), jnp.float32),                     # c_fc b
            jax.random.normal(k4, (4 * H, H), jnp.float32) * 0.02,  # mlp c_proj W
            jnp.zeros((1, H), jnp.float32),                         # mlp c_proj b
        ))
    return wte, layers


# ---------------------------------------------------------------------------
# Pure-JAX reference at matched precision policy (same bf16 weights / bf16 MXU
# inputs via _mm, f32 elementwise), standard per-batch per-head attention.
# ---------------------------------------------------------------------------
def reference_forward(input_ids, wte, stacked):
    g1, b1, wqkv, bqkv, wo, bo, g2, b2, wfc, bfc, wmp, bmp = stacked
    x = wte[input_ids.reshape(-1)]                            # (BS, H) f32
    causal = jnp.tril(jnp.ones((S, S), bool))
    for i in range(N_LAYERS):
        h1 = _layer_norm(x, g1[i], b1[i])
        qkv = _mm(h1, wqkv[i]) + bqkv[i]
        q, k, v = qkv[:, :H], qkv[:, H:2 * H], qkv[:, 2 * H:]
        q = q.reshape(B, S, NH, HD).transpose(0, 2, 1, 3)
        k = k.reshape(B, S, NH, HD).transpose(0, 2, 1, 3)
        v = v.reshape(B, S, NH, HD).transpose(0, 2, 1, 3)
        sc = jnp.einsum('bhqd,bhkd->bhqk', q, k) / math.sqrt(HD)
        sc = jnp.where(causal, sc, jnp.finfo(jnp.float32).min)
        p = jax.nn.softmax(sc, axis=-1)
        a = jnp.einsum('bhqk,bhkd->bhqd', p, v).transpose(0, 2, 1, 3).reshape(BS, H)
        x = x + _mm(a, wo[i]) + bo[i]
        h2 = _layer_norm(x, g2[i], b2[i])
        ff = _gelu_new(_mm(h2, wfc[i]) + bfc[i])
        x = x + _mm(ff, wmp[i]) + bmp[i]
    return x.reshape(B, S, H)


if __name__ == "__main__":
    key = jax.random.PRNGKey(0)
    k_param, k_ids = jax.random.split(key)
    wte, layers = init_params(k_param)
    stacked = stack_params(layers)
    input_ids = jax.random.randint(k_ids, (B, S), 0, VOCAB, dtype=jnp.int32)

    out = jax.block_until_ready(gpt2_node1_forward(input_ids, wte, stacked))
    ref = jax.block_until_ready(reference_forward(input_ids, wte, stacked))
    np.testing.assert_allclose(np.asarray(out), np.asarray(ref), rtol=1e-3, atol=2e-3)

    print("KERNEL_OK")
</pallas_src>

<mosaic_0001>
module attributes {stable_mosaic.version = 11 : i64} {
  func.func @gpt2_node1_kernel(%arg0: memref<16xi32, #tpu.memory_space<smem>>, %arg1: memref<128x32xf32, #tpu.memory_space<vmem>>, %arg2: memref<16x16xf32, #tpu.memory_space<vmem>>, %arg3: memref<6x1x32xf32, #tpu.memory_space<vmem>>, %arg4: memref<6x1x32xf32, #tpu.memory_space<vmem>>, %arg5: memref<6x32x96xbf16, #tpu.memory_space<vmem>>, %arg6: memref<6x1x96xf32, #tpu.memory_space<vmem>>, %arg7: memref<6x32x32xbf16, #tpu.memory_space<vmem>>, %arg8: memref<6x1x32xf32, #tpu.memory_space<vmem>>, %arg9: memref<6x1x32xf32, #tpu.memory_space<vmem>>, %arg10: memref<6x1x32xf32, #tpu.memory_space<vmem>>, %arg11: memref<6x32x128xbf16, #tpu.memory_space<vmem>>, %arg12: memref<6x1x128xf32, #tpu.memory_space<vmem>>, %arg13: memref<6x128x32xbf16, #tpu.memory_space<vmem>>, %arg14: memref<6x1x32xf32, #tpu.memory_space<vmem>>, %arg15: memref<16x32xf32, #tpu.memory_space<vmem>>, %arg16: memref<16x32xf32, #tpu.memory_space<vmem>>, %arg17: memref<16x32xf32, #tpu.memory_space<vmem>>) attributes {dimension_semantics = [], scalar_prefetch = 0 : i64, scratch_operands = 2 : i64, tpu.core_type = #tpu.core_type<tc>} {
    %c0 = arith.constant 0 : index
    %0 = memref.load %arg0[%c0] : memref<16xi32, #tpu.memory_space<smem>>
    %1 = arith.index_cast %0 : i32 to index
    %c0_0 = arith.constant 0 : index
    %2 = vector.load %arg1[%1, %c0_0] : memref<128x32xf32, #tpu.memory_space<vmem>>, vector<1x32xf32>
    %c0_1 = arith.constant 0 : index
    %c0_2 = arith.constant 0 : index
    %3 = vector.load %arg16[%c0_1, %c0_2] : memref<16x32xf32, #tpu.memory_space<vmem>>, vector<1x32xf32>
    tpu.vector_store %arg16[%c0_1, %c0_2], %2 {strides = array<i32>} : memref<16x32xf32, #tpu.memory_space<vmem>>, vector<1x32xf32>,
    %c1 = arith.constant 1 : index
    %4 = memref.load %arg0[%c1] : memref<16xi32, #tpu.memory_space<smem>>
    %5 = arith.index_cast %4 : i32 to index
    %c0_3 = arith.constant 0 : index
    %6 = vector.load %arg1[%5, %c0_3] : memref<128x32xf32, #tpu.memory_space<vmem>>, vector<1x32xf32>
    %c1_4 = arith.constant 1 : index
    %c0_5 = arith.constant 0 : index
    %7 = vector.load %arg16[%c1_4, %c0_5] : memref<16x32xf32, #tpu.memory_space<vmem>>, vector<1x32xf32>
    tpu.vector_store %arg16[%c1_4, %c0_5], %6 {strides = array<i32>} : memref<16x32xf32, #tpu.memory_space<vmem>>, vector<1x32xf32>,
    %c2 = arith.constant 2 : index
    %8 = memref.load %arg0[%c2] : memref<16xi32, #tpu.memory_space<smem>>
    %9 = arith.index_cast %8 : i32 to index
    %c0_6 = arith.constant 0 : index
    %10 = vector.load %arg1[%9, %c0_6] : memref<128x32xf32, #tpu.memory_space<vmem>>, vector<1x32xf32>
    %c2_7 = arith.constant 2 : index
    %c0_8 = arith.constant 0 : index
    %11 = vector.load %arg16[%c2_7, %c0_8] : memref<16x32xf32, #tpu.memory_space<vmem>>, vector<1x32xf32>
    tpu.vector_store %arg16[%c2_7, %c0_8], %10 {strides = array<i32>} : memref<16x32xf32, #tpu.memory_space<vmem>>, vector<1x32xf32>,
    %c3 = arith.constant 3 : index
    %12 = memref.load %arg0[%c3] : memref<16xi32, #tpu.memory_space<smem>>
    %13 = arith.index_cast %12 : i32 to index
    %c0_9 = arith.constant 0 : index
    %14 = vector.load %arg1[%13, %c0_9] : memref<128x32xf32, #tpu.memory_space<vmem>>, vector<1x32xf32>
    %c3_10 = arith.constant 3 : index
    %c0_11 = arith.constant 0 : index
    %15 = vector.load %arg16[%c3_10, %c0_11] : memref<16x32xf32, #tpu.memory_space<vmem>>, vector<1x32xf32>
    tpu.vector_store %arg16[%c3_10, %c0_11], %14 {strides = array<i32>} : memref<16x32xf32, #tpu.memory_space<vmem>>, vector<1x32xf32>,
    %c4 = arith.constant 4 : index
    %16 = memref.load %arg0[%c4] : memref<16xi32, #tpu.memory_space<smem>>
    %17 = arith.index_cast %16 : i32 to index
    %c0_12 = arith.constant 0 : index
    %18 = vector.load %arg1[%17, %c0_12] : memref<128x32xf32, #tpu.memory_space<vmem>>, vector<1x32xf32>
    %c4_13 = arith.constant 4 : index
    %c0_14 = arith.constant 0 : index
    %19 = vector.load %arg16[%c4_13, %c0_14] : memref<16x32xf32, #tpu.memory_space<vmem>>, vector<1x32xf32>
    tpu.vector_store %arg16[%c4_13, %c0_14], %18 {strides = array<i32>} : memref<16x32xf32, #tpu.memory_space<vmem>>, vector<1x32xf32>,
    %c5 = arith.constant 5 : index
    %20 = memref.load %arg0[%c5] : memref<16xi32, #tpu.memory_space<smem>>
    %21 = arith.index_cast %20 : i32 to index
    %c0_15 = arith.constant 0 : index
    %22 = vector.load %arg1[%21, %c0_15] : memref<128x32xf32, #tpu.memory_space<vmem>>, vector<1x32xf32>
    %c5_16 = arith.constant 5 : index
    %c0_17 = arith.constant 0 : index
    %23 = vector.load %arg16[%c5_16, %c0_17] : memref<16x32xf32, #tpu.memory_space<vmem>>, vector<1x32xf32>
    tpu.vector_store %arg16[%c5_16, %c0_17], %22 {strides = array<i32>} : memref<16x32xf32, #tpu.memory_space<vmem>>, vector<1x32xf32>,
    %c6 = arith.constant 6 : index
    %24 = memref.load %arg0[%c6] : memref<16xi32, #tpu.memory_space<smem>>
    %25 = arith.index_cast %24 : i32 to index
    %c0_18 = arith.constant 0 : index
    %26 = vector.load %arg1[%25, %c0_18] : memref<128x32xf32, #tpu.memory_space<vmem>>, vector<1x32xf32>
    %c6_19 = arith.constant 6 : index
    %c0_20 = arith.constant 0 : index
    %27 = vector.load %arg16[%c6_19, %c0_20] : memref<16x32xf32, #tpu.memory_space<vmem>>, vector<1x32xf32>
    tpu.vector_store %arg16[%c6_19, %c0_20], %26 {strides = array<i32>} : memref<16x32xf32, #tpu.memory_space<vmem>>, vector<1x32xf32>,
    %c7 = arith.constant 7 : index
    %28 = memref.load %arg0[%c7] : memref<16xi32, #tpu.memory_space<smem>>
    %29 = arith.index_cast %28 : i32 to index
    %c0_21 = arith.constant 0 : index
    %30 = vector.load %arg1[%29, %c0_21] : memref<128x32xf32, #tpu.memory_space<vmem>>, vector<1x32xf32>
    %c7_22 = arith.constant 7 : index
    %c0_23 = arith.constant 0 : index
    %31 = vector.load %arg16[%c7_22, %c0_23] : memref<16x32xf32, #tpu.memory_space<vmem>>, vector<1x32xf32>
    tpu.vector_store %arg16[%c7_22, %c0_23], %30 {strides = array<i32>} : memref<16x32xf32, #tpu.memory_space<vmem>>, vector<1x32xf32>,
    %c8 = arith.constant 8 : index
    %32 = memref.load %arg0[%c8] : memref<16xi32, #tpu.memory_space<smem>>
    %33 = arith.index_cast %32 : i32 to index
    %c0_24 = arith.constant 0 : index
    %34 = vector.load %arg1[%33, %c0_24] : memref<128x32xf32, #tpu.memory_space<vmem>>, vector<1x32xf32>
    %c8_25 = arith.constant 8 : index
    %c0_26 = arith.constant 0 : index
    %35 = vector.load %arg16[%c8_25, %c0_26] : memref<16x32xf32, #tpu.memory_space<vmem>>, vector<1x32xf32>
    tpu.vector_store %arg16[%c8_25, %c0_26], %34 {strides = array<i32>} : memref<16x32xf32, #tpu.memory_space<vmem>>, vector<1x32xf32>,
    %c9 = arith.constant 9 : index
    %36 = memref.load %arg0[%c9] : memref<16xi32, #tpu.memory_space<smem>>
    %37 = arith.index_cast %36 : i32 to index
    %c0_27 = arith.constant 0 : index
    %38 = vector.load %arg1[%37, %c0_27] : memref<128x32xf32, #tpu.memory_space<vmem>>, vector<1x32xf32>
    %c9_28 = arith.constant 9 : index
    %c0_29 = arith.constant 0 : index
    %39 = vector.load %arg16[%c9_28, %c0_29] : memref<16x32xf32, #tpu.memory_space<vmem>>, vector<1x32xf32>
    tpu.vector_store %arg16[%c9_28, %c0_29], %38 {strides = array<i32>} : memref<16x32xf32, #tpu.memory_space<vmem>>, vector<1x32xf32>,
    %c10 = arith.constant 10 : index
    %40 = memref.load %arg0[%c10] : memref<16xi32, #tpu.memory_space<smem>>
    %41 = arith.index_cast %40 : i32 to index
    %c0_30 = arith.constant 0 : index
    %42 = vector.load %arg1[%41, %c0_30] : memref<128x32xf32, #tpu.memory_space<vmem>>, vector<1x32xf32>
    %c10_31 = arith.constant 10 : index
    %c0_32 = arith.constant 0 : index
    %43 = vector.load %arg16[%c10_31, %c0_32] : memref<16x32xf32, #tpu.memory_space<vmem>>, vector<1x32xf32>
    tpu.vector_store %arg16[%c10_31, %c0_32], %42 {strides = array<i32>} : memref<16x32xf32, #tpu.memory_space<vmem>>, vector<1x32xf32>,
    %c11 = arith.constant 11 : index
    %44 = memref.load %arg0[%c11] : memref<16xi32, #tpu.memory_space<smem>>
    %45 = arith.index_cast %44 : i32 to index
    %c0_33 = arith.constant 0 : index
    %46 = vector.load %arg1[%45, %c0_33] : memref<128x32xf32, #tpu.memory_space<vmem>>, vector<1x32xf32>
    %c11_34 = arith.constant 11 : index
    %c0_35 = arith.constant 0 : index
    %47 = vector.load %arg16[%c11_34, %c0_35] : memref<16x32xf32, #tpu.memory_space<vmem>>, vector<1x32xf32>
    tpu.vector_store %arg16[%c11_34, %c0_35], %46 {strides = array<i32>} : memref<16x32xf32, #tpu.memory_space<vmem>>, vector<1x32xf32>,
    %c12 = arith.constant 12 : index
    %48 = memref.load %arg0[%c12] : memref<16xi32, #tpu.memory_space<smem>>
    %49 = arith.index_cast %48 : i32 to index
    %c0_36 = arith.constant 0 : index
    %50 = vector.load %arg1[%49, %c0_36] : memref<128x32xf32, #tpu.memory_space<vmem>>, vector<1x32xf32>
    %c12_37 = arith.constant 12 : index
    %c0_38 = arith.constant 0 : index
    %51 = vector.load %arg16[%c12_37, %c0_38] : memref<16x32xf32, #tpu.memory_space<vmem>>, vector<1x32xf32>
    tpu.vector_store %arg16[%c12_37, %c0_38], %50 {strides = array<i32>} : memref<16x32xf32, #tpu.memory_space<vmem>>, vector<1x32xf32>,
    %c13 = arith.constant 13 : index
    %52 = memref.load %arg0[%c13] : memref<16xi32, #tpu.memory_space<smem>>
    %53 = arith.index_cast %52 : i32 to index
    %c0_39 = arith.constant 0 : index
    %54 = vector.load %arg1[%53, %c0_39] : memref<128x32xf32, #tpu.memory_space<vmem>>, vector<1x32xf32>
    %c13_40 = arith.constant 13 : index
    %c0_41 = arith.constant 0 : index
    %55 = vector.load %arg16[%c13_40, %c0_41] : memref<16x32xf32, #tpu.memory_space<vmem>>, vector<1x32xf32>
    tpu.vector_store %arg16[%c13_40, %c0_41], %54 {strides = array<i32>} : memref<16x32xf32, #tpu.memory_space<vmem>>, vector<1x32xf32>,
    %c14 = arith.constant 14 : index
    %56 = memref.load %arg0[%c14] : memref<16xi32, #tpu.memory_space<smem>>
    %57 = arith.index_cast %56 : i32 to index
    %c0_42 = arith.constant 0 : index
    %58 = vector.load %arg1[%57, %c0_42] : memref<128x32xf32, #tpu.memory_space<vmem>>, vector<1x32xf32>
    %c14_43 = arith.constant 14 : index
    %c0_44 = arith.constant 0 : index
    %59 = vector.load %arg16[%c14_43, %c0_44] : memref<16x32xf32, #tpu.memory_space<vmem>>, vector<1x32xf32>
    tpu.vector_store %arg16[%c14_43, %c0_44], %58 {strides = array<i32>} : memref<16x32xf32, #tpu.memory_space<vmem>>, vector<1x32xf32>,
    %c15 = arith.constant 15 : index
    %60 = memref.load %arg0[%c15] : memref<16xi32, #tpu.memory_space<smem>>
    %61 = arith.index_cast %60 : i32 to index
    %c0_45 = arith.constant 0 : index
    %62 = vector.load %arg1[%61, %c0_45] : memref<128x32xf32, #tpu.memory_space<vmem>>, vector<1x32xf32>
    %c15_46 = arith.constant 15 : index
    %c0_47 = arith.constant 0 : index
    %63 = vector.load %arg16[%c15_46, %c0_47] : memref<16x32xf32, #tpu.memory_space<vmem>>, vector<1x32xf32>
    tpu.vector_store %arg16[%c15_46, %c0_47], %62 {strides = array<i32>} : memref<16x32xf32, #tpu.memory_space<vmem>>, vector<1x32xf32>,
    %c0_48 = arith.constant 0 : index
    %c0_49 = arith.constant 0 : index
    %64 = vector.load %arg16[%c0_48, %c0_49] : memref<16x32xf32, #tpu.memory_space<vmem>>, vector<16x32xf32>
    %c0_50 = arith.constant 0 : index
    %c0_51 = arith.constant 0 : index
    %65 = vector.load %arg2[%c0_50, %c0_51] : memref<16x16xf32, #tpu.memory_space<vmem>>, vector<16x16xf32>
    %c0_52 = arith.constant 0 : index
    %c0_53 = arith.constant 0 : index
    %c0_54 = arith.constant 0 : index
    %66 = vector.load %arg3[%c0_52, %c0_53, %c0_54] : memref<6x1x32xf32, #tpu.memory_space<vmem>>, vector<1x1x32xf32>
    %67 = vector.shape_cast %66 : vector<1x1x32xf32> to vector<1x32xf32>
    %c0_55 = arith.constant 0 : index
    %c0_56 = arith.constant 0 : index
    %c0_57 = arith.constant 0 : index
    %68 = vector.load %arg4[%c0_55, %c0_56, %c0_57] : memref<6x1x32xf32, #tpu.memory_space<vmem>>, vector<1x1x32xf32>
    %69 = vector.shape_cast %68 : vector<1x1x32xf32> to vector<1x32xf32>
    %cst = arith.constant dense<0.000000e+00> : vector<16xf32>
    %70 = vector.multi_reduction <add>, %64, %cst [1] : vector<16x32xf32> to vector<16xf32>
    %71 = vector.shape_cast %70 : vector<16xf32> to vector<16x1xf32>
    %cst_58 = arith.constant 3.200000e+01 : f32
    %72 = vector.broadcast %cst_58 : f32 to vector<16x1xf32>
    %73 = arith.divf %71, %72 : vector<16x1xf32>
    %74 = vector.broadcast %73 : vector<16x1xf32> to vector<16x32xf32>
    %75 = arith.subf %64, %74 : vector<16x32xf32>
    %76 = arith.mulf %75, %75 : vector<16x32xf32>
    %cst_59 = arith.constant dense<0.000000e+00> : vector<16xf32>
    %77 = vector.multi_reduction <add>, %76, %cst_59 [1] : vector<16x32xf32> to vector<16xf32>
    %78 = vector.shape_cast %77 : vector<16xf32> to vector<16x1xf32>
    %cst_60 = arith.constant 3.200000e+01 : f32
    %79 = vector.broadcast %cst_60 : f32 to vector<16x1xf32>
    %80 = arith.divf %78, %79 : vector<16x1xf32>
    %81 = vector.broadcast %73 : vector<16x1xf32> to vector<16x32xf32>
    %82 = arith.subf %64, %81 : vector<16x32xf32>
    %cst_61 = arith.constant 9.99999974E-6 : f32
    %83 = vector.broadcast %cst_61 : f32 to vector<16x1xf32>
    %84 = arith.addf %80, %83 : vector<16x1xf32>
    %85 = math.rsqrt %84 : vector<16x1xf32>
    %86 = vector.broadcast %85 : vector<16x1xf32> to vector<16x32xf32>
    %87 = arith.mulf %82, %86 : vector<16x32xf32>
    %88 = vector.broadcast %67 : vector<1x32xf32> to vector<16x32xf32>
    %89 = arith.mulf %87, %88 : vector<16x32xf32>
    %90 = vector.broadcast %69 : vector<1x32xf32> to vector<16x32xf32>
    %91 = arith.addf %89, %90 : vector<16x32xf32>
    %c0_62 = arith.constant 0 : index
    %c0_63 = arith.constant 0 : index
    %c0_64 = arith.constant 0 : index
    %92 = vector.load %arg5[%c0_62, %c0_63, %c0_64] : memref<6x32x96xbf16, #tpu.memory_space<vmem>>, vector<1x32x96xbf16>
    %93 = vector.shape_cast %92 : vector<1x32x96xbf16> to vector<32x96xbf16>
    %94 = arith.truncf %91 : vector<16x32xf32> to vector<16x32xbf16>
    %cst_65 = arith.constant dense<0.000000e+00> : vector<16x96xf32>
    %95 = tpu.matmul %94, %93, %cst_65 {dimension_numbers = #tpu.dot_dimension_numbers<[1], [0], [0], [1], [0, 0, 1, 1], [], []>} : vector<16x32xbf16>, vector<32x96xbf16>, vector<16x96xf32> -> vector<16x96xf32>
    %c0_66 = arith.constant 0 : index
    %c0_67 = arith.constant 0 : index
    %c0_68 = arith.constant 0 : index
    %96 = vector.load %arg6[%c0_66, %c0_67, %c0_68] : memref<6x1x96xf32, #tpu.memory_space<vmem>>, vector<1x1x96xf32>
    %97 = vector.shape_cast %96 : vector<1x1x96xf32> to vector<1x96xf32>
    %98 = vector.broadcast %97 : vector<1x96xf32> to vector<16x96xf32>
    %99 = arith.addf %95, %98 : vector<16x96xf32>
    %100 = vector.extract_strided_slice %99 {offsets = [0, 0], sizes = [16, 8], strides = [1, 1]} : vector<16x96xf32> to vector<16x8xf32>
    %101 = vector.extract_strided_slice %99 {offsets = [0, 8], sizes = [16, 8], strides = [1, 1]} : vector<16x96xf32> to vector<16x8xf32>
    %102 = vector.extract_strided_slice %99 {offsets = [0, 16], sizes = [16, 8], strides = [1, 1]} : vector<16x96xf32> to vector<16x8xf32>
    %103 = vector.extract_strided_slice %99 {offsets = [0, 24], sizes = [16, 8], strides = [1, 1]} : vector<16x96xf32> to vector<16x8xf32>
    %104 = vector.shape_cast %100 : vector<16x8xf32> to vector<1x16x8xf32>
    %105 = vector.shape_cast %101 : vector<16x8xf32> to vector<1x16x8xf32>
    %106 = vector.shape_cast %102 : vector<16x8xf32> to vector<1x16x8xf32>
    %107 = vector.shape_cast %103 : vector<16x8xf32> to vector<1x16x8xf32>
    %108 = tpu.concatenate %104, %105, %106, %107 in 0 : vector<1x16x8xf32>, vector<1x16x8xf32>, vector<1x16x8xf32>, vector<1x16x8xf32> -> vector<4x16x8xf32>
    %109 = vector.extract_strided_slice %99 {offsets = [0, 32], sizes = [16, 8], strides = [1, 1]} : vector<16x96xf32> to vector<16x8xf32>
    %110 = vector.extract_strided_slice %99 {offsets = [0, 40], sizes = [16, 8], strides = [1, 1]} : vector<16x96xf32> to vector<16x8xf32>
    %111 = vector.extract_strided_slice %99 {offsets = [0, 48], sizes = [16, 8], strides = [1, 1]} : vector<16x96xf32> to vector<16x8xf32>
    %112 = vector.extract_strided_slice %99 {offsets = [0, 56], sizes = [16, 8], strides = [1, 1]} : vector<16x96xf32> to vector<16x8xf32>
    %113 = vector.shape_cast %109 : vector<16x8xf32> to vector<1x16x8xf32>
    %114 = vector.shape_cast %110 : vector<16x8xf32> to vector<1x16x8xf32>
    %115 = vector.shape_cast %111 : vector<16x8xf32> to vector<1x16x8xf32>
    %116 = vector.shape_cast %112 : vector<16x8xf32> to vector<1x16x8xf32>
    %117 = tpu.concatenate %113, %114, %115, %116 in 0 : vector<1x16x8xf32>, vector<1x16x8xf32>, vector<1x16x8xf32>, vector<1x16x8xf32> -> vector<4x16x8xf32>
    %118 = vector.extract_strided_slice %99 {offsets = [0, 64], sizes = [16, 8], strides = [1, 1]} : vector<16x96xf32> to vector<16x8xf32>
    %119 = vector.extract_strided_slice %99 {offsets = [0, 72], sizes = [16, 8], strides = [1, 1]} : vector<16x96xf32> to vector<16x8xf32>
    %120 = vector.extract_strided_slice %99 {offsets = [0, 80], sizes = [16, 8], strides = [1, 1]} : vector<16x96xf32> to vector<16x8xf32>
    %121 = vector.extract_strided_slice %99 {offsets = [0, 88], sizes = [16, 8], strides = [1, 1]} : vector<16x96xf32> to vector<16x8xf32>
    %122 = vector.shape_cast %118 : vector<16x8xf32> to vector<1x16x8xf32>
    %123 = vector.shape_cast %119 : vector<16x8xf32> to vector<1x16x8xf32>
    %124 = vector.shape_cast %120 : vector<16x8xf32> to vector<1x16x8xf32>
    %125 = vector.shape_cast %121 : vector<16x8xf32> to vector<1x16x8xf32>
    %126 = tpu.concatenate %122, %123, %124, %125 in 0 : vector<1x16x8xf32>, vector<1x16x8xf32>, vector<1x16x8xf32>, vector<1x16x8xf32> -> vector<4x16x8xf32>
    "tpu.trace_start"() <{level = 10 : i32, message = "hqd,hkd->hqk"}> : () -> ()
    %cst_69 = arith.constant dense<0.000000e+00> : vector<4x16x16xf32>
    %127 = tpu.matmul %108, %117, %cst_69 {dimension_numbers = #tpu.dot_dimension_numbers<[2], [2], [1], [1], [0, 0, 0, 1, 1, 1], [0], [0]>} : vector<4x16x8xf32>, vector<4x16x8xf32>, vector<4x16x16xf32> -> vector<4x16x16xf32>
    "tpu.trace_stop"() : () -> ()
    %cst_70 = arith.constant 0.353553385 : f32
    %128 = vector.broadcast %cst_70 : f32 to vector<4x16x16xf32>
    %129 = arith.mulf %127, %128 : vector<4x16x16xf32>
    %130 = vector.shape_cast %65 : vector<16x16xf32> to vector<1x16x16xf32>
    %131 = vector.broadcast %130 : vector<1x16x16xf32> to vector<4x16x16xf32>
    %132 = arith.addf %129, %131 : vector<4x16x16xf32>
    %cst_71 = arith.constant dense<0xFF800000> : vector<4x16xf32>
    %133 = vector.multi_reduction <maximumf>, %132, %cst_71 [2] : vector<4x16x16xf32> to vector<4x16xf32>
    %134 = vector.shape_cast %133 : vector<4x16xf32> to vector<4x16x1xf32>
    %135 = vector.broadcast %134 : vector<4x16x1xf32> to vector<4x16x16xf32>
    %136 = arith.subf %132, %135 : vector<4x16x16xf32>
    %137 = math.exp %136 : vector<4x16x16xf32>
    %cst_72 = arith.constant dense<0.000000e+00> : vector<4x16xf32>
    %138 = vector.multi_reduction <add>, %137, %cst_72 [2] : vector<4x16x16xf32> to vector<4x16xf32>
    %139 = vector.shape_cast %138 : vector<4x16xf32> to vector<4x16x1xf32>
    %140 = vector.broadcast %139 : vector<4x16x1xf32> to vector<4x16x16xf32>
    %141 = arith.divf %137, %140 : vector<4x16x16xf32>
    "tpu.trace_start"() <{level = 10 : i32, message = "hqk,hkd->hqd"}> : () -> ()
    %cst_73 = arith.constant dense<0.000000e+00> : vector<4x16x8xf32>
    %142 = tpu.matmul %141, %126, %cst_73 {dimension_numbers = #tpu.dot_dimension_numbers<[2], [1], [1], [2], [0, 0, 0, 1, 1, 2], [0], [0]>} : vector<4x16x16xf32>, vector<4x16x8xf32>, vector<4x16x8xf32> -> vector<4x16x8xf32>
    "tpu.trace_stop"() : () -> ()
    %143 = vector.extract_strided_slice %142 {offsets = [0, 0, 0], sizes = [1, 16, 8], strides = [1, 1, 1]} : vector<4x16x8xf32> to vector<1x16x8xf32>
    %144 = vector.shape_cast %143 : vector<1x16x8xf32> to vector<16x8xf32>
    %c0_74 = arith.constant 0 : index
    %c0_75 = arith.constant 0 : index
    %145 = vector.load %arg17[%c0_74, %c0_75] : memref<16x32xf32, #tpu.memory_space<vmem>>, vector<16x8xf32>
    tpu.vector_store %arg17[%c0_74, %c0_75], %144 {strides = array<i32>} : memref<16x32xf32, #tpu.memory_space<vmem>>, vector<16x8xf32>,
    %146 = vector.extract_strided_slice %142 {offsets = [1, 0, 0], sizes = [1, 16, 8], strides = [1, 1, 1]} : vector<4x16x8xf32> to vector<1x16x8xf32>
    %147 = vector.shape_cast %146 : vector<1x16x8xf32> to vector<16x8xf32>
    %c0_76 = arith.constant 0 : index
    %c8_77 = arith.constant 8 : index
    %148 = vector.load %arg17[%c0_76, %c8_77] : memref<16x32xf32, #tpu.memory_space<vmem>>, vector<16x8xf32>
    tpu.vector_store %arg17[%c0_76, %c8_77], %147 {strides = array<i32>} : memref<16x32xf32, #tpu.memory_space<vmem>>, vector<16x8xf32>,
    %149 = vector.extract_strided_slice %142 {offsets = [2, 0, 0], sizes = [1, 16, 8], strides = [1, 1, 1]} : vector<4x16x8xf32> to vector<1x16x8xf32>
    %150 = vector.shape_cast %149 : vector<1x16x8xf32> to vector<16x8xf32>
    %c0_78 = arith.constant 0 : index
    %c16 = arith.constant 16 : index
    %151 = vector.load %arg17[%c0_78, %c16] : memref<16x32xf32, #tpu.memory_space<vmem>>, vector<16x8xf32>
    tpu.vector_store %arg17[%c0_78, %c16], %150 {strides = array<i32>} : memref<16x32xf32, #tpu.memory_space<vmem>>, vector<16x8xf32>,
    %152 = vector.extract_strided_slice %142 {offsets = [3, 0, 0], sizes = [1, 16, 8], strides = [1, 1, 1]} : vector<4x16x8xf32> to vector<1x16x8xf32>
    %153 = vector.shape_cast %152 : vector<1x16x8xf32> to vector<16x8xf32>
    %c0_79 = arith.constant 0 : index
    %c24 = arith.constant 24 : index
    %154 = vector.load %arg17[%c0_79, %c24] : memref<16x32xf32, #tpu.memory_space<vmem>>, vector<16x8xf32>
    tpu.vector_store %arg17[%c0_79, %c24], %153 {strides = array<i32>} : memref<16x32xf32, #tpu.memory_space<vmem>>, vector<16x8xf32>,
    %c0_80 = arith.constant 0 : index
    %c0_81 = arith.constant 0 : index
    %155 = vector.load %arg17[%c0_80, %c0_81] : memref<16x32xf32, #tpu.memory_space<vmem>>, vector<16x32xf32>
    %c0_82 = arith.constant 0 : index
    %c0_83 = arith.constant 0 : index
    %c0_84 = arith.constant 0 : index
    %156 = vector.load %arg7[%c0_82, %c0_83, %c0_84] : memref<6x32x32xbf16, #tpu.memory_space<vmem>>, vector<1x32x32xbf16>
    %157 = vector.shape_cast %156 : vector<1x32x32xbf16> to vector<32x32xbf16>
    %158 = arith.truncf %155 : vector<16x32xf32> to vector<16x32xbf16>
    %cst_85 = arith.constant dense<0.000000e+00> : vector<16x32xf32>
    %159 = tpu.matmul %158, %157, %cst_85 {dimension_numbers = #tpu.dot_dimension_numbers<[1], [0], [0], [1], [0, 0, 1, 1], [], []>} : vector<16x32xbf16>, vector<32x32xbf16>, vector<16x32xf32> -> vector<16x32xf32>
    %160 = arith.addf %64, %159 : vector<16x32xf32>
    %c0_86 = arith.constant 0 : index
    %c0_87 = arith.constant 0 : index
    %c0_88 = arith.constant 0 : index
    %161 = vector.load %arg8[%c0_86, %c0_87, %c0_88] : memref<6x1x32xf32, #tpu.memory_space<vmem>>, vector<1x1x32xf32>
    %162 = vector.shape_cast %161 : vector<1x1x32xf32> to vector<1x32xf32>
    %163 = vector.broadcast %162 : vector<1x32xf32> to vector<16x32xf32>
    %164 = arith.addf %160, %163 : vector<16x32xf32>
    %c0_89 = arith.constant 0 : index
    %c0_90 = arith.constant 0 : index
    %c0_91 = arith.constant 0 : index
    %165 = vector.load %arg9[%c0_89, %c0_90, %c0_91] : memref<6x1x32xf32, #tpu.memory_space<vmem>>, vector<1x1x32xf32>
    %166 = vector.shape_cast %165 : vector<1x1x32xf32> to vector<1x32xf32>
    %c0_92 = arith.constant 0 : index
    %c0_93 = arith.constant 0 : index
    %c0_94 = arith.constant 0 : index
    %167 = vector.load %arg10[%c0_92, %c0_93, %c0_94] : memref<6x1x32xf32, #tpu.memory_space<vmem>>, vector<1x1x32xf32>
    %168 = vector.shape_cast %167 : vector<1x1x32xf32> to vector<1x32xf32>
    %cst_95 = arith.constant dense<0.000000e+00> : vector<16xf32>
    %169 = vector.multi_reduction <add>, %164, %cst_95 [1] : vector<16x32xf32> to vector<16xf32>
    %170 = vector.shape_cast %169 : vector<16xf32> to vector<16x1xf32>
    %cst_96 = arith.constant 3.200000e+01 : f32
    %171 = vector.broadcast %cst_96 : f32 to vector<16x1xf32>
    %172 = arith.divf %170, %171 : vector<16x1xf32>
    %173 = vector.broadcast %172 : vector<16x1xf32> to vector<16x32xf32>
    %174 = arith.subf %164, %173 : vector<16x32xf32>
    %175 = arith.mulf %174, %174 : vector<16x32xf32>
    %cst_97 = arith.constant dense<0.000000e+00> : vector<16xf32>
    %176 = vector.multi_reduction <add>, %175, %cst_97 [1] : vector<16x32xf32> to vector<16xf32>
    %177 = vector.shape_cast %176 : vector<16xf32> to vector<16x1xf32>
    %cst_98 = arith.constant 3.200000e+01 : f32
    %178 = vector.broadcast %cst_98 : f32 to vector<16x1xf32>
    %179 = arith.divf %177, %178 : vector<16x1xf32>
    %180 = vector.broadcast %172 : vector<16x1xf32> to vector<16x32xf32>
    %181 = arith.subf %164, %180 : vector<16x32xf32>
    %cst_99 = arith.constant 9.99999974E-6 : f32
    %182 = vector.broadcast %cst_99 : f32 to vector<16x1xf32>
    %183 = arith.addf %179, %182 : vector<16x1xf32>
    %184 = math.rsqrt %183 : vector<16x1xf32>
    %185 = vector.broadcast %184 : vector<16x1xf32> to vector<16x32xf32>
    %186 = arith.mulf %181, %185 : vector<16x32xf32>
    %187 = vector.broadcast %166 : vector<1x32xf32> to vector<16x32xf32>
    %188 = arith.mulf %186, %187 : vector<16x32xf32>
    %189 = vector.broadcast %168 : vector<1x32xf32> to vector<16x32xf32>
    %190 = arith.addf %188, %189 : vector<16x32xf32>
    %c0_100 = arith.constant 0 : index
    %c0_101 = arith.constant 0 : index
    %c0_102 = arith.constant 0 : index
    %191 = vector.load %arg11[%c0_100, %c0_101, %c0_102] : memref<6x32x128xbf16, #tpu.memory_space<vmem>>, vector<1x32x128xbf16>
    %192 = vector.shape_cast %191 : vector<1x32x128xbf16> to vector<32x128xbf16>
    %193 = arith.truncf %190 : vector<16x32xf32> to vector<16x32xbf16>
    %cst_103 = arith.constant dense<0.000000e+00> : vector<16x128xf32>
    %194 = tpu.matmul %193, %192, %cst_103 {dimension_numbers = #tpu.dot_dimension_numbers<[1], [0], [0], [1], [0, 0, 1, 1], [], []>} : vector<16x32xbf16>, vector<32x128xbf16>, vector<16x128xf32> -> vector<16x128xf32>
    %c0_104 = arith.constant 0 : index
    %c0_105 = arith.constant 0 : index
    %c0_106 = arith.constant 0 : index
    %195 = vector.load %arg12[%c0_104, %c0_105, %c0_106] : memref<6x1x128xf32, #tpu.memory_space<vmem>>, vector<1x1x128xf32>
    %196 = vector.shape_cast %195 : vector<1x1x128xf32> to vector<1x128xf32>
    %197 = vector.broadcast %196 : vector<1x128xf32> to vector<16x128xf32>
    %198 = arith.addf %194, %197 : vector<16x128xf32>
    %cst_107 = arith.constant 5.000000e-01 : f32
    %199 = vector.broadcast %cst_107 : f32 to vector<16x128xf32>
    %200 = arith.mulf %199, %198 : vector<16x128xf32>
    %cst_108 = arith.constant 4.471500e-02 : f32
    %201 = vector.broadcast %cst_108 : f32 to vector<16x128xf32>
    %202 = arith.mulf %201, %198 : vector<16x128xf32>
    %203 = arith.mulf %202, %198 : vector<16x128xf32>
    %204 = arith.mulf %203, %198 : vector<16x128xf32>
    %205 = arith.addf %198, %204 : vector<16x128xf32>
    %cst_109 = arith.constant 0.797884583 : f32
    %206 = vector.broadcast %cst_109 : f32 to vector<16x128xf32>
    %207 = arith.mulf %206, %205 : vector<16x128xf32>
    %208 = math.tanh %207 : vector<16x128xf32>
    %cst_110 = arith.constant 1.000000e+00 : f32
    %209 = vector.broadcast %cst_110 : f32 to vector<16x128xf32>
    %210 = arith.addf %209, %208 : vector<16x128xf32>
    %211 = arith.mulf %200, %210 : vector<16x128xf32>
    %c0_111 = arith.constant 0 : index
    %c0_112 = arith.constant 0 : index
    %c0_113 = arith.constant 0 : index
    %212 = vector.load %arg13[%c0_111, %c0_112, %c0_113] : memref<6x128x32xbf16, #tpu.memory_space<vmem>>, vector<1x128x32xbf16>
    %213 = vector.shape_cast %212 : vector<1x128x32xbf16> to vector<128x32xbf16>
    %214 = arith.truncf %211 : vector<16x128xf32> to vector<16x128xbf16>
    %cst_114 = arith.constant dense<0.000000e+00> : vector<16x32xf32>
    %215 = tpu.matmul %214, %213, %cst_114 {dimension_numbers = #tpu.dot_dimension_numbers<[1], [0], [0], [1], [0, 0, 1, 1], [], []>} : vector<16x128xbf16>, vector<128x32xbf16>, vector<16x32xf32> -> vector<16x32xf32>
    %216 = arith.addf %164, %215 : vector<16x32xf32>
    %c0_115 = arith.constant 0 : index
    %c0_116 = arith.constant 0 : index
    %c0_117 = arith.constant 0 : index
    %217 = vector.load %arg14[%c0_115, %c0_116, %c0_117] : memref<6x1x32xf32, #tpu.memory_space<vmem>>, vector<1x1x32xf32>
    %218 = vector.shape_cast %217 : vector<1x1x32xf32> to vector<1x32xf32>
    %219 = vector.broadcast %218 : vector<1x32xf32> to vector<16x32xf32>
    %220 = arith.addf %216, %219 : vector<16x32xf32>
    %c1_118 = arith.constant 1 : index
    %c0_119 = arith.constant 0 : index
    %c0_120 = arith.constant 0 : index
    %221 = vector.load %arg3[%c1_118, %c0_119, %c0_120] : memref<6x1x32xf32, #tpu.memory_space<vmem>>, vector<1x1x32xf32>
    %222 = vector.shape_cast %221 : vector<1x1x32xf32> to vector<1x32xf32>
    %c1_121 = arith.constant 1 : index
    %c0_122 = arith.constant 0 : index
    %c0_123 = arith.constant 0 : index
    %223 = vector.load %arg4[%c1_121, %c0_122, %c0_123] : memref<6x1x32xf32, #tpu.memory_space<vmem>>, vector<1x1x32xf32>
    %224 = vector.shape_cast %223 : vector<1x1x32xf32> to vector<1x32xf32>
    %cst_124 = arith.constant dense<0.000000e+00> : vector<16xf32>
    %225 = vector.multi_reduction <add>, %220, %cst_124 [1] : vector<16x32xf32> to vector<16xf32>
    %226 = vector.shape_cast %225 : vector<16xf32> to vector<16x1xf32>
    %cst_125 = arith.constant 3.200000e+01 : f32
    %227 = vector.broadcast %cst_125 : f32 to vector<16x1xf32>
    %228 = arith.divf %226, %227 : vector<16x1xf32>
    %229 = vector.broadcast %228 : vector<16x1xf32> to vector<16x32xf32>
    %230 = arith.subf %220, %229 : vector<16x32xf32>
    %231 = arith.mulf %230, %230 : vector<16x32xf32>
    %cst_126 = arith.constant dense<0.000000e+00> : vector<16xf32>
    %232 = vector.multi_reduction <add>, %231, %cst_126 [1] : vector<16x32xf32> to vector<16xf32>
    %233 = vector.shape_cast %232 : vector<16xf32> to vector<16x1xf32>
    %cst_127 = arith.constant 3.200000e+01 : f32
    %234 = vector.broadcast %cst_127 : f32 to vector<16x1xf32>
    %235 = arith.divf %233, %234 : vector<16x1xf32>
    %236 = vector.broadcast %228 : vector<16x1xf32> to vector<16x32xf32>
    %237 = arith.subf %220, %236 : vector<16x32xf32>
    %cst_128 = arith.constant 9.99999974E-6 : f32
    %238 = vector.broadcast %cst_128 : f32 to vector<16x1xf32>
    %239 = arith.addf %235, %238 : vector<16x1xf32>
    %240 = math.rsqrt %239 : vector<16x1xf32>
    %241 = vector.broadcast %240 : vector<16x1xf32> to vector<16x32xf32>
    %242 = arith.mulf %237, %241 : vector<16x32xf32>
    %243 = vector.broadcast %222 : vector<1x32xf32> to vector<16x32xf32>
    %244 = arith.mulf %242, %243 : vector<16x32xf32>
    %245 = vector.broadcast %224 : vector<1x32xf32> to vector<16x32xf32>
    %246 = arith.addf %244, %245 : vector<16x32xf32>
    %c1_129 = arith.constant 1 : index
    %c0_130 = arith.constant 0 : index
    %c0_131 = arith.constant 0 : index
    %247 = vector.load %arg5[%c1_129, %c0_130, %c0_131] : memref<6x32x96xbf16, #tpu.memory_space<vmem>>, vector<1x32x96xbf16>
    %248 = vector.shape_cast %247 : vector<1x32x96xbf16> to vector<32x96xbf16>
    %249 = arith.truncf %246 : vector<16x32xf32> to vector<16x32xbf16>
    %cst_132 = arith.constant dense<0.000000e+00> : vector<16x96xf32>
    %250 = tpu.matmul %249, %248, %cst_132 {dimension_numbers = #tpu.dot_dimension_numbers<[1], [0], [0], [1], [0, 0, 1, 1], [], []>} : vector<16x32xbf16>, vector<32x96xbf16>, vector<16x96xf32> -> vector<16x96xf32>
    %c1_133 = arith.constant 1 : index
    %c0_134 = arith.constant 0 : index
    %c0_135 = arith.constant 0 : index
    %251 = vector.load %arg6[%c1_133, %c0_134, %c0_135] : memref<6x1x96xf32, #tpu.memory_space<vmem>>, vector<1x1x96xf32>
    %252 = vector.shape_cast %251 : vector<1x1x96xf32> to vector<1x96xf32>
    %253 = vector.broadcast %252 : vector<1x96xf32> to vector<16x96xf32>
    %254 = arith.addf %250, %253 : vector<16x96xf32>
    %255 = vector.extract_strided_slice %254 {offsets = [0, 0], sizes = [16, 8], strides = [1, 1]} : vector<16x96xf32> to vector<16x8xf32>
    %256 = vector.extract_strided_slice %254 {offsets = [0, 8], sizes = [16, 8], strides = [1, 1]} : vector<16x96xf32> to vector<16x8xf32>
    %257 = vector.extract_strided_slice %254 {offsets = [0, 16], sizes = [16, 8], strides = [1, 1]} : vector<16x96xf32> to vector<16x8xf32>
    %258 = vector.extract_strided_slice %254 {offsets = [0, 24], sizes = [16, 8], strides = [1, 1]} : vector<16x96xf32> to vector<16x8xf32>
    %259 = vector.shape_cast %255 : vector<16x8xf32> to vector<1x16x8xf32>
    %260 = vector.shape_cast %256 : vector<16x8xf32> to vector<1x16x8xf32>
    %261 = vector.shape_cast %257 : vector<16x8xf32> to vector<1x16x8xf32>
    %262 = vector.shape_cast %258 : vector<16x8xf32> to vector<1x16x8xf32>
    %263 = tpu.concatenate %259, %260, %261, %262 in 0 : vector<1x16x8xf32>, vector<1x16x8xf32>, vector<1x16x8xf32>, vector<1x16x8xf32> -> vector<4x16x8xf32>
    %264 = vector.extract_strided_slice %254 {offsets = [0, 32], sizes = [16, 8], strides = [1, 1]} : vector<16x96xf32> to vector<16x8xf32>
    %265 = vector.extract_strided_slice %254 {offsets = [0, 40], sizes = [16, 8], strides = [1, 1]} : vector<16x96xf32> to vector<16x8xf32>
    %266 = vector.extract_strided_slice %254 {offsets = [0, 48], sizes = [16, 8], strides = [1, 1]} : vector<16x96xf32> to vector<16x8xf32>
    %267 = vector.extract_strided_slice %254 {offsets = [0, 56], sizes = [16, 8], strides = [1, 1]} : vector<16x96xf32> to vector<16x8xf32>
    %268 = vector.shape_cast %264 : vector<16x8xf32> to vector<1x16x8xf32>
    %269 = vector.shape_cast %265 : vector<16x8xf32> to vector<1x16x8xf32>
    %270 = vector.shape_cast %266 : vector<16x8xf32> to vector<1x16x8xf32>
    %271 = vector.shape_cast %267 : vector<16x8xf32> to vector<1x16x8xf32>
    %272 = tpu.concatenate %268, %269, %270, %271 in 0 : vector<1x16x8xf32>, vector<1x16x8xf32>, vector<1x16x8xf32>, vector<1x16x8xf32> -> vector<4x16x8xf32>
    %273 = vector.extract_strided_slice %254 {offsets = [0, 64], sizes = [16, 8], strides = [1, 1]} : vector<16x96xf32> to vector<16x8xf32>
    %274 = vector.extract_strided_slice %254 {offsets = [0, 72], sizes = [16, 8], strides = [1, 1]} : vector<16x96xf32> to vector<16x8xf32>
    %275 = vector.extract_strided_slice %254 {offsets = [0, 80], sizes = [16, 8], strides = [1, 1]} : vector<16x96xf32> to vector<16x8xf32>
    %276 = vector.extract_strided_slice %254 {offsets = [0, 88], sizes = [16, 8], strides = [1, 1]} : vector<16x96xf32> to vector<16x8xf32>
    %277 = vector.shape_cast %273 : vector<16x8xf32> to vector<1x16x8xf32>
    %278 = vector.shape_cast %274 : vector<16x8xf32> to vector<1x16x8xf32>
    %279 = vector.shape_cast %275 : vector<16x8xf32> to vector<1x16x8xf32>
    %280 = vector.shape_cast %276 : vector<16x8xf32> to vector<1x16x8xf32>
    %281 = tpu.concatenate %277, %278, %279, %280 in 0 : vector<1x16x8xf32>, vector<1x16x8xf32>, vector<1x16x8xf32>, vector<1x16x8xf32> -> vector<4x16x8xf32>
    "tpu.trace_start"() <{level = 10 : i32, message = "hqd,hkd->hqk"}> : () -> ()
    %cst_136 = arith.constant dense<0.000000e+00> : vector<4x16x16xf32>
    %282 = tpu.matmul %263, %272, %cst_136 {dimension_numbers = #tpu.dot_dimension_numbers<[2], [2], [1], [1], [0, 0, 0, 1, 1, 1], [0], [0]>} : vector<4x16x8xf32>, vector<4x16x8xf32>, vector<4x16x16xf32> -> vector<4x16x16xf32>
    "tpu.trace_stop"() : () -> ()
    %cst_137 = arith.constant 0.353553385 : f32
    %283 = vector.broadcast %cst_137 : f32 to vector<4x16x16xf32>
    %284 = arith.mulf %282, %283 : vector<4x16x16xf32>
    %285 = vector.shape_cast %65 : vector<16x16xf32> to vector<1x16x16xf32>
    %286 = vector.broadcast %285 : vector<1x16x16xf32> to vector<4x16x16xf32>
    %287 = arith.addf %284, %286 : vector<4x16x16xf32>
    %cst_138 = arith.constant dense<0xFF800000> : vector<4x16xf32>
    %288 = vector.multi_reduction <maximumf>, %287, %cst_138 [2] : vector<4x16x16xf32> to vector<4x16xf32>
    %289 = vector.shape_cast %288 : vector<4x16xf32> to vector<4x16x1xf32>
    %290 = vector.broadcast %289 : vector<4x16x1xf32> to vector<4x16x16xf32>
    %291 = arith.subf %287, %290 : vector<4x16x16xf32>
    %292 = math.exp %291 : vector<4x16x16xf32>
    %cst_139 = arith.constant dense<0.000000e+00> : vector<4x16xf32>
    %293 = vector.multi_reduction <add>, %292, %cst_139 [2] : vector<4x16x16xf32> to vector<4x16xf32>
    %294 = vector.shape_cast %293 : vector<4x16xf32> to vector<4x16x1xf32>
    %295 = vector.broadcast %294 : vector<4x16x1xf32> to vector<4x16x16xf32>
    %296 = arith.divf %292, %295 : vector<4x16x16xf32>
    "tpu.trace_start"() <{level = 10 : i32, message = "hqk,hkd->hqd"}> : () -> ()
    %cst_140 = arith.constant dense<0.000000e+00> : vector<4x16x8xf32>
    %297 = tpu.matmul %296, %281, %cst_140 {dimension_numbers = #tpu.dot_dimension_numbers<[2], [1], [1], [2], [0, 0, 0, 1, 1, 2], [0], [0]>} : vector<4x16x16xf32>, vector<4x16x8xf32>, vector<4x16x8xf32> -> vector<4x16x8xf32>
    "tpu.trace_stop"() : () -> ()
    %298 = vector.extract_strided_slice %297 {offsets = [0, 0, 0], sizes = [1, 16, 8], strides = [1, 1, 1]} : vector<4x16x8xf32> to vector<1x16x8xf32>
    %299 = vector.shape_cast %298 : vector<1x16x8xf32> to vector<16x8xf32>
    %c0_141 = arith.constant 0 : index
    %c0_142 = arith.constant 0 : index
    %300 = vector.load %arg17[%c0_141, %c0_142] : memref<16x32xf32, #tpu.memory_space<vmem>>, vector<16x8xf32>
    tpu.vector_store %arg17[%c0_141, %c0_142], %299 {strides = array<i32>} : memref<16x32xf32, #tpu.memory_space<vmem>>, vector<16x8xf32>,
    %301 = vector.extract_strided_slice %297 {offsets = [1, 0, 0], sizes = [1, 16, 8], strides = [1, 1, 1]} : vector<4x16x8xf32> to vector<1x16x8xf32>
    %302 = vector.shape_cast %301 : vector<1x16x8xf32> to vector<16x8xf32>
    %c0_143 = arith.constant 0 : index
    %c8_144 = arith.constant 8 : index
    %303 = vector.load %arg17[%c0_143, %c8_144] : memref<16x32xf32, #tpu.memory_space<vmem>>, vector<16x8xf32>
    tpu.vector_store %arg17[%c0_143, %c8_144], %302 {strides = array<i32>} : memref<16x32xf32, #tpu.memory_space<vmem>>, vector<16x8xf32>,
    %304 = vector.extract_strided_slice %297 {offsets = [2, 0, 0], sizes = [1, 16, 8], strides = [1, 1, 1]} : vector<4x16x8xf32> to vector<1x16x8xf32>
    %305 = vector.shape_cast %304 : vector<1x16x8xf32> to vector<16x8xf32>
    %c0_145 = arith.constant 0 : index
    %c16_146 = arith.constant 16 : index
    %306 = vector.load %arg17[%c0_145, %c16_146] : memref<16x32xf32, #tpu.memory_space<vmem>>, vector<16x8xf32>
    tpu.vector_store %arg17[%c0_145, %c16_146], %305 {strides = array<i32>} : memref<16x32xf32, #tpu.memory_space<vmem>>, vector<16x8xf32>,
    %307 = vector.extract_strided_slice %297 {offsets = [3, 0, 0], sizes = [1, 16, 8], strides = [1, 1, 1]} : vector<4x16x8xf32> to vector<1x16x8xf32>
    %308 = vector.shape_cast %307 : vector<1x16x8xf32> to vector<16x8xf32>
    %c0_147 = arith.constant 0 : index
    %c24_148 = arith.constant 24 : index
    %309 = vector.load %arg17[%c0_147, %c24_148] : memref<16x32xf32, #tpu.memory_space<vmem>>, vector<16x8xf32>
    tpu.vector_store %arg17[%c0_147, %c24_148], %308 {strides = array<i32>} : memref<16x32xf32, #tpu.memory_space<vmem>>, vector<16x8xf32>,
    %c0_149 = arith.constant 0 : index
    %c0_150 = arith.constant 0 : index
    %310 = vector.load %arg17[%c0_149, %c0_150] : memref<16x32xf32, #tpu.memory_space<vmem>>, vector<16x32xf32>
    %c1_151 = arith.constant 1 : index
    %c0_152 = arith.constant 0 : index
    %c0_153 = arith.constant 0 : index
    %311 = vector.load %arg7[%c1_151, %c0_152, %c0_153] : memref<6x32x32xbf16, #tpu.memory_space<vmem>>, vector<1x32x32xbf16>
    %312 = vector.shape_cast %311 : vector<1x32x32xbf16> to vector<32x32xbf16>
    %313 = arith.truncf %310 : vector<16x32xf32> to vector<16x32xbf16>
    %cst_154 = arith.constant dense<0.000000e+00> : vector<16x32xf32>
    %314 = tpu.matmul %313, %312, %cst_154 {dimension_numbers = #tpu.dot_dimension_numbers<[1], [0], [0], [1], [0, 0, 1, 1], [], []>} : vector<16x32xbf16>, vector<32x32xbf16>, vector<16x32xf32> -> vector<16x32xf32>
    %315 = arith.addf %220, %314 : vector<16x32xf32>
    %c1_155 = arith.constant 1 : index
    %c0_156 = arith.constant 0 : index
    %c0_157 = arith.constant 0 : index
    %316 = vector.load %arg8[%c1_155, %c0_156, %c0_157] : memref<6x1x32xf32, #tpu.memory_space<vmem>>, vector<1x1x32xf32>
    %317 = vector.shape_cast %316 : vector<1x1x32xf32> to vector<1x32xf32>
    %318 = vector.broadcast %317 : vector<1x32xf32> to vector<16x32xf32>
    %319 = arith.addf %315, %318 : vector<16x32xf32>
    %c1_158 = arith.constant 1 : index
    %c0_159 = arith.constant 0 : index
    %c0_160 = arith.constant 0 : index
    %320 = vector.load %arg9[%c1_158, %c0_159, %c0_160] : memref<6x1x32xf32, #tpu.memory_space<vmem>>, vector<1x1x32xf32>
    %321 = vector.shape_cast %320 : vector<1x1x32xf32> to vector<1x32xf32>
    %c1_161 = arith.constant 1 : index
    %c0_162 = arith.constant 0 : index
    %c0_163 = arith.constant 0 : index
    %322 = vector.load %arg10[%c1_161, %c0_162, %c0_163] : memref<6x1x32xf32, #tpu.memory_space<vmem>>, vector<1x1x32xf32>
    %323 = vector.shape_cast %322 : vector<1x1x32xf32> to vector<1x32xf32>
    %cst_164 = arith.constant dense<0.000000e+00> : vector<16xf32>
    %324 = vector.multi_reduction <add>, %319, %cst_164 [1] : vector<16x32xf32> to vector<16xf32>
    %325 = vector.shape_cast %324 : vector<16xf32> to vector<16x1xf32>
    %cst_165 = arith.constant 3.200000e+01 : f32
    %326 = vector.broadcast %cst_165 : f32 to vector<16x1xf32>
    %327 = arith.divf %325, %326 : vector<16x1xf32>
    %328 = vector.broadcast %327 : vector<16x1xf32> to vector<16x32xf32>
    %329 = arith.subf %319, %328 : vector<16x32xf32>
    %330 = arith.mulf %329, %329 : vector<16x32xf32>
    %cst_166 = arith.constant dense<0.000000e+00> : vector<16xf32>
    %331 = vector.multi_reduction <add>, %330, %cst_166 [1] : vector<16x32xf32> to vector<16xf32>
    %332 = vector.shape_cast %331 : vector<16xf32> to vector<16x1xf32>
    %cst_167 = arith.constant 3.200000e+01 : f32
    %333 = vector.broadcast %cst_167 : f32 to vector<16x1xf32>
    %334 = arith.divf %332, %333 : vector<16x1xf32>
    %335 = vector.broadcast %327 : vector<16x1xf32> to vector<16x32xf32>
    %336 = arith.subf %319, %335 : vector<16x32xf32>
    %cst_168 = arith.constant 9.99999974E-6 : f32
    %337 = vector.broadcast %cst_168 : f32 to vector<16x1xf32>
    %338 = arith.addf %334, %337 : vector<16x1xf32>
    %339 = math.rsqrt %338 : vector<16x1xf32>
    %340 = vector.broadcast %339 : vector<16x1xf32> to vector<16x32xf32>
    %341 = arith.mulf %336, %340 : vector<16x32xf32>
    %342 = vector.broadcast %321 : vector<1x32xf32> to vector<16x32xf32>
    %343 = arith.mulf %341, %342 : vector<16x32xf32>
    %344 = vector.broadcast %323 : vector<1x32xf32> to vector<16x32xf32>
    %345 = arith.addf %343, %344 : vector<16x32xf32>
    %c1_169 = arith.constant 1 : index
    %c0_170 = arith.constant 0 : index
    %c0_171 = arith.constant 0 : index
    %346 = vector.load %arg11[%c1_169, %c0_170, %c0_171] : memref<6x32x128xbf16, #tpu.memory_space<vmem>>, vector<1x32x128xbf16>
    %347 = vector.shape_cast %346 : vector<1x32x128xbf16> to vector<32x128xbf16>
    %348 = arith.truncf %345 : vector<16x32xf32> to vector<16x32xbf16>
    %cst_172 = arith.constant dense<0.000000e+00> : vector<16x128xf32>
    %349 = tpu.matmul %348, %347, %cst_172 {dimension_numbers = #tpu.dot_dimension_numbers<[1], [0], [0], [1], [0, 0, 1, 1], [], []>} : vector<16x32xbf16>, vector<32x128xbf16>, vector<16x128xf32> -> vector<16x128xf32>
    %c1_173 = arith.constant 1 : index
    %c0_174 = arith.constant 0 : index
    %c0_175 = arith.constant 0 : index
    %350 = vector.load %arg12[%c1_173, %c0_174, %c0_175] : memref<6x1x128xf32, #tpu.memory_space<vmem>>, vector<1x1x128xf32>
    %351 = vector.shape_cast %350 : vector<1x1x128xf32> to vector<1x128xf32>
    %352 = vector.broadcast %351 : vector<1x128xf32> to vector<16x128xf32>
    %353 = arith.addf %349, %352 : vector<16x128xf32>
    %cst_176 = arith.constant 5.000000e-01 : f32
    %354 = vector.broadcast %cst_176 : f32 to vector<16x128xf32>
    %355 = arith.mulf %354, %353 : vector<16x128xf32>
    %cst_177 = arith.constant 4.471500e-02 : f32
    %356 = vector.broadcast %cst_177 : f32 to vector<16x128xf32>
    %357 = arith.mulf %356, %353 : vector<16x128xf32>
    %358 = arith.mulf %357, %353 : vector<16x128xf32>
    %359 = arith.mulf %358, %353 : vector<16x128xf32>
    %360 = arith.addf %353, %359 : vector<16x128xf32>
    %cst_178 = arith.constant 0.797884583 : f32
    %361 = vector.broadcast %cst_178 : f32 to vector<16x128xf32>
    %362 = arith.mulf %361, %360 : vector<16x128xf32>
    %363 = math.tanh %362 : vector<16x128xf32>
    %cst_179 = arith.constant 1.000000e+00 : f32
    %364 = vector.broadcast %cst_179 : f32 to vector<16x128xf32>
    %365 = arith.addf %364, %363 : vector<16x128xf32>
    %366 = arith.mulf %355, %365 : vector<16x128xf32>
    %c1_180 = arith.constant 1 : index
    %c0_181 = arith.constant 0 : index
    %c0_182 = arith.constant 0 : index
    %367 = vector.load %arg13[%c1_180, %c0_181, %c0_182] : memref<6x128x32xbf16, #tpu.memory_space<vmem>>, vector<1x128x32xbf16>
    %368 = vector.shape_cast %367 : vector<1x128x32xbf16> to vector<128x32xbf16>
    %369 = arith.truncf %366 : vector<16x128xf32> to vector<16x128xbf16>
    %cst_183 = arith.constant dense<0.000000e+00> : vector<16x32xf32>
    %370 = tpu.matmul %369, %368, %cst_183 {dimension_numbers = #tpu.dot_dimension_numbers<[1], [0], [0], [1], [0, 0, 1, 1], [], []>} : vector<16x128xbf16>, vector<128x32xbf16>, vector<16x32xf32> -> vector<16x32xf32>
    %371 = arith.addf %319, %370 : vector<16x32xf32>
    %c1_184 = arith.constant 1 : index
    %c0_185 = arith.constant 0 : index
    %c0_186 = arith.constant 0 : index
    %372 = vector.load %arg14[%c1_184, %c0_185, %c0_186] : memref<6x1x32xf32, #tpu.memory_space<vmem>>, vector<1x1x32xf32>
    %373 = vector.shape_cast %372 : vector<1x1x32xf32> to vector<1x32xf32>
    %374 = vector.broadcast %373 : vector<1x32xf32> to vector<16x32xf32>
    %375 = arith.addf %371, %374 : vector<16x32xf32>
    %c2_187 = arith.constant 2 : index
    %c0_188 = arith.constant 0 : index
    %c0_189 = arith.constant 0 : index
    %376 = vector.load %arg3[%c2_187, %c0_188, %c0_189] : memref<6x1x32xf32, #tpu.memory_space<vmem>>, vector<1x1x32xf32>
    %377 = vector.shape_cast %376 : vector<1x1x32xf32> to vector<1x32xf32>
    %c2_190 = arith.constant 2 : index
    %c0_191 = arith.constant 0 : index
    %c0_192 = arith.constant 0 : index
    %378 = vector.load %arg4[%c2_190, %c0_191, %c0_192] : memref<6x1x32xf32, #tpu.memory_space<vmem>>, vector<1x1x32xf32>
    %379 = vector.shape_cast %378 : vector<1x1x32xf32> to vector<1x32xf32>
    %cst_193 = arith.constant dense<0.000000e+00> : vector<16xf32>
    %380 = vector.multi_reduction <add>, %375, %cst_193 [1] : vector<16x32xf32> to vector<16xf32>
    %381 = vector.shape_cast %380 : vector<16xf32> to vector<16x1xf32>
    %cst_194 = arith.constant 3.200000e+01 : f32
    %382 = vector.broadcast %cst_194 : f32 to vector<16x1xf32>
    %383 = arith.divf %381, %382 : vector<16x1xf32>
    %384 = vector.broadcast %383 : vector<16x1xf32> to vector<16x32xf32>
    %385 = arith.subf %375, %384 : vector<16x32xf32>
    %386 = arith.mulf %385, %385 : vector<16x32xf32>
    %cst_195 = arith.constant dense<0.000000e+00> : vector<16xf32>
    %387 = vector.multi_reduction <add>, %386, %cst_195 [1] : vector<16x32xf32> to vector<16xf32>
    %388 = vector.shape_cast %387 : vector<16xf32> to vector<16x1xf32>
    %cst_196 = arith.constant 3.200000e+01 : f32
    %389 = vector.broadcast %cst_196 : f32 to vector<16x1xf32>
    %390 = arith.divf %388, %389 : vector<16x1xf32>
    %391 = vector.broadcast %383 : vector<16x1xf32> to vector<16x32xf32>
    %392 = arith.subf %375, %391 : vector<16x32xf32>
    %cst_197 = arith.constant 9.99999974E-6 : f32
    %393 = vector.broadcast %cst_197 : f32 to vector<16x1xf32>
    %394 = arith.addf %390, %393 : vector<16x1xf32>
    %395 = math.rsqrt %394 : vector<16x1xf32>
    %396 = vector.broadcast %395 : vector<16x1xf32> to vector<16x32xf32>
    %397 = arith.mulf %392, %396 : vector<16x32xf32>
    %398 = vector.broadcast %377 : vector<1x32xf32> to vector<16x32xf32>
    %399 = arith.mulf %397, %398 : vector<16x32xf32>
    %400 = vector.broadcast %379 : vector<1x32xf32> to vector<16x32xf32>
    %401 = arith.addf %399, %400 : vector<16x32xf32>
    %c2_198 = arith.constant 2 : index
    %c0_199 = arith.constant 0 : index
    %c0_200 = arith.constant 0 : index
    %402 = vector.load %arg5[%c2_198, %c0_199, %c0_200] : memref<6x32x96xbf16, #tpu.memory_space<vmem>>, vector<1x32x96xbf16>
    %403 = vector.shape_cast %402 : vector<1x32x96xbf16> to vector<32x96xbf16>
    %404 = arith.truncf %401 : vector<16x32xf32> to vector<16x32xbf16>
    %cst_201 = arith.constant dense<0.000000e+00> : vector<16x96xf32>
    %405 = tpu.matmul %404, %403, %cst_201 {dimension_numbers = #tpu.dot_dimension_numbers<[1], [0], [0], [1], [0, 0, 1, 1], [], []>} : vector<16x32xbf16>, vector<32x96xbf16>, vector<16x96xf32> -> vector<16x96xf32>
    %c2_202 = arith.constant 2 : index
    %c0_203 = arith.constant 0 : index
    %c0_204 = arith.constant 0 : index
    %406 = vector.load %arg6[%c2_202, %c0_203, %c0_204] : memref<6x1x96xf32, #tpu.memory_space<vmem>>, vector<1x1x96xf32>
    %407 = vector.shape_cast %406 : vector<1x1x96xf32> to vector<1x96xf32>
    %408 = vector.broadcast %407 : vector<1x96xf32> to vector<16x96xf32>
    %409 = arith.addf %405, %408 : vector<16x96xf32>
    %410 = vector.extract_strided_slice %409 {offsets = [0, 0], sizes = [16, 8], strides = [1, 1]} : vector<16x96xf32> to vector<16x8xf32>
    %411 = vector.extract_strided_slice %409 {offsets = [0, 8], sizes = [16, 8], strides = [1, 1]} : vector<16x96xf32> to vector<16x8xf32>
    %412 = vector.extract_strided_slice %409 {offsets = [0, 16], sizes = [16, 8], strides = [1, 1]} : vector<16x96xf32> to vector<16x8xf32>
    %413 = vector.extract_strided_slice %409 {offsets = [0, 24], sizes = [16, 8], strides = [1, 1]} : vector<16x96xf32> to vector<16x8xf32>
    %414 = vector.shape_cast %410 : vector<16x8xf32> to vector<1x16x8xf32>
    %415 = vector.shape_cast %411 : vector<16x8xf32> to vector<1x16x8xf32>
    %416 = vector.shape_cast %412 : vector<16x8xf32> to vector<1x16x8xf32>
    %417 = vector.shape_cast %413 : vector<16x8xf32> to vector<1x16x8xf32>
    %418 = tpu.concatenate %414, %415, %416, %417 in 0 : vector<1x16x8xf32>, vector<1x16x8xf32>, vector<1x16x8xf32>, vector<1x16x8xf32> -> vector<4x16x8xf32>
    %419 = vector.extract_strided_slice %409 {offsets = [0, 32], sizes = [16, 8], strides = [1, 1]} : vector<16x96xf32> to vector<16x8xf32>
    %420 = vector.extract_strided_slice %409 {offsets = [0, 40], sizes = [16, 8], strides = [1, 1]} : vector<16x96xf32> to vector<16x8xf32>
    %421 = vector.extract_strided_slice %409 {offsets = [0, 48], sizes = [16, 8], strides = [1, 1]} : vector<16x96xf32> to vector<16x8xf32>
    %422 = vector.extract_strided_slice %409 {offsets = [0, 56], sizes = [16, 8], strides = [1, 1]} : vector<16x96xf32> to vector<16x8xf32>
    %423 = vector.shape_cast %419 : vector<16x8xf32> to vector<1x16x8xf32>
    %424 = vector.shape_cast %420 : vector<16x8xf32> to vector<1x16x8xf32>
    %425 = vector.shape_cast %421 : vector<16x8xf32> to vector<1x16x8xf32>
    %426 = vector.shape_cast %422 : vector<16x8xf32> to vector<1x16x8xf32>
    %427 = tpu.concatenate %423, %424, %425, %426 in 0 : vector<1x16x8xf32>, vector<1x16x8xf32>, vector<1x16x8xf32>, vector<1x16x8xf32> -> vector<4x16x8xf32>
    %428 = vector.extract_strided_slice %409 {offsets = [0, 64], sizes = [16, 8], strides = [1, 1]} : vector<16x96xf32> to vector<16x8xf32>
    %429 = vector.extract_strided_slice %409 {offsets = [0, 72], sizes = [16, 8], strides = [1, 1]} : vector<16x96xf32> to vector<16x8xf32>
    %430 = vector.extract_strided_slice %409 {offsets = [0, 80], sizes = [16, 8], strides = [1, 1]} : vector<16x96xf32> to vector<16x8xf32>
    %431 = vector.extract_strided_slice %409 {offsets = [0, 88], sizes = [16, 8], strides = [1, 1]} : vector<16x96xf32> to vector<16x8xf32>
    %432 = vector.shape_cast %428 : vector<16x8xf32> to vector<1x16x8xf32>
    %433 = vector.shape_cast %429 : vector<16x8xf32> to vector<1x16x8xf32>
    %434 = vector.shape_cast %430 : vector<16x8xf32> to vector<1x16x8xf32>
    %435 = vector.shape_cast %431 : vector<16x8xf32> to vector<1x16x8xf32>
    %436 = tpu.concatenate %432, %433, %434, %435 in 0 : vector<1x16x8xf32>, vector<1x16x8xf32>, vector<1x16x8xf32>, vector<1x16x8xf32> -> vector<4x16x8xf32>
    "tpu.trace_start"() <{level = 10 : i32, message = "hqd,hkd->hqk"}> : () -> ()
    %cst_205 = arith.constant dense<0.000000e+00> : vector<4x16x16xf32>
    %437 = tpu.matmul %418, %427, %cst_205 {dimension_numbers = #tpu.dot_dimension_numbers<[2], [2], [1], [1], [0, 0, 0, 1, 1, 1], [0], [0]>} : vector<4x16x8xf32>, vector<4x16x8xf32>, vector<4x16x16xf32> -> vector<4x16x16xf32>
    "tpu.trace_stop"() : () -> ()
    %cst_206 = arith.constant 0.353553385 : f32
    %438 = vector.broadcast %cst_206 : f32 to vector<4x16x16xf32>
    %439 = arith.mulf %437, %438 : vector<4x16x16xf32>
    %440 = vector.shape_cast %65 : vector<16x16xf32> to vector<1x16x16xf32>
    %441 = vector.broadcast %440 : vector<1x16x16xf32> to vector<4x16x16xf32>
    %442 = arith.addf %439, %441 : vector<4x16x16xf32>
    %cst_207 = arith.constant dense<0xFF800000> : vector<4x16xf32>
    %443 = vector.multi_reduction <maximumf>, %442, %cst_207 [2] : vector<4x16x16xf32> to vector<4x16xf32>
    %444 = vector.shape_cast %443 : vector<4x16xf32> to vector<4x16x1xf32>
    %445 = vector.broadcast %444 : vector<4x16x1xf32> to vector<4x16x16xf32>
    %446 = arith.subf %442, %445 : vector<4x16x16xf32>
    %447 = math.exp %446 : vector<4x16x16xf32>
    %cst_208 = arith.constant dense<0.000000e+00> : vector<4x16xf32>
    %448 = vector.multi_reduction <add>, %447, %cst_208 [2] : vector<4x16x16xf32> to vector<4x16xf32>
    %449 = vector.shape_cast %448 : vector<4x16xf32> to vector<4x16x1xf32>
    %450 = vector.broadcast %449 : vector<4x16x1xf32> to vector<4x16x16xf32>
    %451 = arith.divf %447, %450 : vector<4x16x16xf32>
    "tpu.trace_start"() <{level = 10 : i32, message = "hqk,hkd->hqd"}> : () -> ()
    %cst_209 = arith.constant dense<0.000000e+00> : vector<4x16x8xf32>
    %452 = tpu.matmul %451, %436, %cst_209 {dimension_numbers = #tpu.dot_dimension_numbers<[2], [1], [1], [2], [0, 0, 0, 1, 1, 2], [0], [0]>} : vector<4x16x16xf32>, vector<4x16x8xf32>, vector<4x16x8xf32> -> vector<4x16x8xf32>
    "tpu.trace_stop"() : () -> ()
    %453 = vector.extract_strided_slice %452 {offsets = [0, 0, 0], sizes = [1, 16, 8], strides = [1, 1, 1]} : vector<4x16x8xf32> to vector<1x16x8xf32>
    %454 = vector.shape_cast %453 : vector<1x16x8xf32> to vector<16x8xf32>
    %c0_210 = arith.constant 0 : index
    %c0_211 = arith.constant 0 : index
    %455 = vector.load %arg17[%c0_210, %c0_211] : memref<16x32xf32, #tpu.memory_space<vmem>>, vector<16x8xf32>
    tpu.vector_store %arg17[%c0_210, %c0_211], %454 {strides = array<i32>} : memref<16x32xf32, #tpu.memory_space<vmem>>, vector<16x8xf32>,
    %456 = vector.extract_strided_slice %452 {offsets = [1, 0, 0], sizes = [1, 16, 8], strides = [1, 1, 1]} : vector<4x16x8xf32> to vector<1x16x8xf32>
    %457 = vector.shape_cast %456 : vector<1x16x8xf32> to vector<16x8xf32>
    %c0_212 = arith.constant 0 : index
    %c8_213 = arith.constant 8 : index
    %458 = vector.load %arg17[%c0_212, %c8_213] : memref<16x32xf32, #tpu.memory_space<vmem>>, vector<16x8xf32>
    tpu.vector_store %arg17[%c0_212, %c8_213], %457 {strides = array<i32>} : memref<16x32xf32, #tpu.memory_space<vmem>>, vector<16x8xf32>,
    %459 = vector.extract_strided_slice %452 {offsets = [2, 0, 0], sizes = [1, 16, 8], strides = [1, 1, 1]} : vector<4x16x8xf32> to vector<1x16x8xf32>
    %460 = vector.shape_cast %459 : vector<1x16x8xf32> to vector<16x8xf32>
    %c0_214 = arith.constant 0 : index
    %c16_215 = arith.constant 16 : index
    %461 = vector.load %arg17[%c0_214, %c16_215] : memref<16x32xf32, #tpu.memory_space<vmem>>, vector<16x8xf32>
    tpu.vector_store %arg17[%c0_214, %c16_215], %460 {strides = array<i32>} : memref<16x32xf32, #tpu.memory_space<vmem>>, vector<16x8xf32>,
    %462 = vector.extract_strided_slice %452 {offsets = [3, 0, 0], sizes = [1, 16, 8], strides = [1, 1, 1]} : vector<4x16x8xf32> to vector<1x16x8xf32>
    %463 = vector.shape_cast %462 : vector<1x16x8xf32> to vector<16x8xf32>
    %c0_216 = arith.constant 0 : index
    %c24_217 = arith.constant 24 : index
    %464 = vector.load %arg17[%c0_216, %c24_217] : memref<16x32xf32, #tpu.memory_space<vmem>>, vector<16x8xf32>
    tpu.vector_store %arg17[%c0_216, %c24_217], %463 {strides = array<i32>} : memref<16x32xf32, #tpu.memory_space<vmem>>, vector<16x8xf32>,
    %c0_218 = arith.constant 0 : index
    %c0_219 = arith.constant 0 : index
    %465 = vector.load %arg17[%c0_218, %c0_219] : memref<16x32xf32, #tpu.memory_space<vmem>>, vector<16x32xf32>
    %c2_220 = arith.constant 2 : index
    %c0_221 = arith.constant 0 : index
    %c0_222 = arith.constant 0 : index
    %466 = vector.load %arg7[%c2_220, %c0_221, %c0_222] : memref<6x32x32xbf16, #tpu.memory_space<vmem>>, vector<1x32x32xbf16>
    %467 = vector.shape_cast %466 : vector<1x32x32xbf16> to vector<32x32xbf16>
    %468 = arith.truncf %465 : vector<16x32xf32> to vector<16x32xbf16>
    %cst_223 = arith.constant dense<0.000000e+00> : vector<16x32xf32>
    %469 = tpu.matmul %468, %467, %cst_223 {dimension_numbers = #tpu.dot_dimension_numbers<[1], [0], [0], [1], [0, 0, 1, 1], [], []>} : vector<16x32xbf16>, vector<32x32xbf16>, vector<16x32xf32> -> vector<16x32xf32>
    %470 = arith.addf %375, %469 : vector<16x32xf32>
    %c2_224 = arith.constant 2 : index
    %c0_225 = arith.constant 0 : index
    %c0_226 = arith.constant 0 : index
    %471 = vector.load %arg8[%c2_224, %c0_225, %c0_226] : memref<6x1x32xf32, #tpu.memory_space<vmem>>, vector<1x1x32xf32>
    %472 = vector.shape_cast %471 : vector<1x1x32xf32> to vector<1x32xf32>
    %473 = vector.broadcast %472 : vector<1x32xf32> to vector<16x32xf32>
    %474 = arith.addf %470, %473 : vector<16x32xf32>
    %c2_227 = arith.constant 2 : index
    %c0_228 = arith.constant 0 : index
    %c0_229 = arith.constant 0 : index
    %475 = vector.load %arg9[%c2_227, %c0_228, %c0_229] : memref<6x1x32xf32, #tpu.memory_space<vmem>>, vector<1x1x32xf32>
    %476 = vector.shape_cast %475 : vector<1x1x32xf32> to vector<1x32xf32>
    %c2_230 = arith.constant 2 : index
    %c0_231 = arith.constant 0 : index
    %c0_232 = arith.constant 0 : index
    %477 = vector.load %arg10[%c2_230, %c0_231, %c0_232] : memref<6x1x32xf32, #tpu.memory_space<vmem>>, vector<1x1x32xf32>
    %478 = vector.shape_cast %477 : vector<1x1x32xf32> to vector<1x32xf32>
    %cst_233 = arith.constant dense<0.000000e+00> : vector<16xf32>
    %479 = vector.multi_reduction <add>, %474, %cst_233 [1] : vector<16x32xf32> to vector<16xf32>
    %480 = vector.shape_cast %479 : vector<16xf32> to vector<16x1xf32>
    %cst_234 = arith.constant 3.200000e+01 : f32
    %481 = vector.broadcast %cst_234 : f32 to vector<16x1xf32>
    %482 = arith.divf %480, %481 : vector<16x1xf32>
    %483 = vector.broadcast %482 : vector<16x1xf32> to vector<16x32xf32>
    %484 = arith.subf %474, %483 : vector<16x32xf32>
    %485 = arith.mulf %484, %484 : vector<16x32xf32>
    %cst_235 = arith.constant dense<0.000000e+00> : vector<16xf32>
    %486 = vector.multi_reduction <add>, %485, %cst_235 [1] : vector<16x32xf32> to vector<16xf32>
    %487 = vector.shape_cast %486 : vector<16xf32> to vector<16x1xf32>
    %cst_236 = arith.constant 3.200000e+01 : f32
    %488 = vector.broadcast %cst_236 : f32 to vector<16x1xf32>
    %489 = arith.divf %487, %488 : vector<16x1xf32>
    %490 = vector.broadcast %482 : vector<16x1xf32> to vector<16x32xf32>
    %491 = arith.subf %474, %490 : vector<16x32xf32>
    %cst_237 = arith.constant 9.99999974E-6 : f32
    %492 = vector.broadcast %cst_237 : f32 to vector<16x1xf32>
    %493 = arith.addf %489, %492 : vector<16x1xf32>
    %494 = math.rsqrt %493 : vector<16x1xf32>
    %495 = vector.broadcast %494 : vector<16x1xf32> to vector<16x32xf32>
    %496 = arith.mulf %491, %495 : vector<16x32xf32>
    %497 = vector.broadcast %476 : vector<1x32xf32> to vector<16x32xf32>
    %498 = arith.mulf %496, %497 : vector<16x32xf32>
    %499 = vector.broadcast %478 : vector<1x32xf32> to vector<16x32xf32>
    %500 = arith.addf %498, %499 : vector<16x32xf32>
    %c2_238 = arith.constant 2 : index
    %c0_239 = arith.constant 0 : index
    %c0_240 = arith.constant 0 : index
    %501 = vector.load %arg11[%c2_238, %c0_239, %c0_240] : memref<6x32x128xbf16, #tpu.memory_space<vmem>>, vector<1x32x128xbf16>
    %502 = vector.shape_cast %501 : vector<1x32x128xbf16> to vector<32x128xbf16>
    %503 = arith.truncf %500 : vector<16x32xf32> to vector<16x32xbf16>
    %cst_241 = arith.constant dense<0.000000e+00> : vector<16x128xf32>
    %504 = tpu.matmul %503, %502, %cst_241 {dimension_numbers = #tpu.dot_dimension_numbers<[1], [0], [0], [1], [0, 0, 1, 1], [], []>} : vector<16x32xbf16>, vector<32x128xbf16>, vector<16x128xf32> -> vector<16x128xf32>
    %c2_242 = arith.constant 2 : index
    %c0_243 = arith.constant 0 : index
    %c0_244 = arith.constant 0 : index
    %505 = vector.load %arg12[%c2_242, %c0_243, %c0_244] : memref<6x1x128xf32, #tpu.memory_space<vmem>>, vector<1x1x128xf32>
    %506 = vector.shape_cast %505 : vector<1x1x128xf32> to vector<1x128xf32>
    %507 = vector.broadcast %506 : vector<1x128xf32> to vector<16x128xf32>
    %508 = arith.addf %504, %507 : vector<16x128xf32>
    %cst_245 = arith.constant 5.000000e-01 : f32
    %509 = vector.broadcast %cst_245 : f32 to vector<16x128xf32>
    %510 = arith.mulf %509, %508 : vector<16x128xf32>
    %cst_246 = arith.constant 4.471500e-02 : f32
    %511 = vector.broadcast %cst_246 : f32 to vector<16x128xf32>
    %512 = arith.mulf %511, %508 : vector<16x128xf32>
    %513 = arith.mulf %512, %508 : vector<16x128xf32>
    %514 = arith.mulf %513, %508 : vector<16x128xf32>
    %515 = arith.addf %508, %514 : vector<16x128xf32>
    %cst_247 = arith.constant 0.797884583 : f32
    %516 = vector.broadcast %cst_247 : f32 to vector<16x128xf32>
    %517 = arith.mulf %516, %515 : vector<16x128xf32>
    %518 = math.tanh %517 : vector<16x128xf32>
    %cst_248 = arith.constant 1.000000e+00 : f32
    %519 = vector.broadcast %cst_248 : f32 to vector<16x128xf32>
    %520 = arith.addf %519, %518 : vector<16x128xf32>
    %521 = arith.mulf %510, %520 : vector<16x128xf32>
    %c2_249 = arith.constant 2 : index
    %c0_250 = arith.constant 0 : index
    %c0_251 = arith.constant 0 : index
    %522 = vector.load %arg13[%c2_249, %c0_250, %c0_251] : memref<6x128x32xbf16, #tpu.memory_space<vmem>>, vector<1x128x32xbf16>
    %523 = vector.shape_cast %522 : vector<1x128x32xbf16> to vector<128x32xbf16>
    %524 = arith.truncf %521 : vector<16x128xf32> to vector<16x128xbf16>
    %cst_252 = arith.constant dense<0.000000e+00> : vector<16x32xf32>
    %525 = tpu.matmul %524, %523, %cst_252 {dimension_numbers = #tpu.dot_dimension_numbers<[1], [0], [0], [1], [0, 0, 1, 1], [], []>} : vector<16x128xbf16>, vector<128x32xbf16>, vector<16x32xf32> -> vector<16x32xf32>
    %526 = arith.addf %474, %525 : vector<16x32xf32>
    %c2_253 = arith.constant 2 : index
    %c0_254 = arith.constant 0 : index
    %c0_255 = arith.constant 0 : index
    %527 = vector.load %arg14[%c2_253, %c0_254, %c0_255] : memref<6x1x32xf32, #tpu.memory_space<vmem>>, vector<1x1x32xf32>
    %528 = vector.shape_cast %527 : vector<1x1x32xf32> to vector<1x32xf32>
    %529 = vector.broadcast %528 : vector<1x32xf32> to vector<16x32xf32>
    %530 = arith.addf %526, %529 : vector<16x32xf32>
    %c3_256 = arith.constant 3 : index
    %c0_257 = arith.constant 0 : index
    %c0_258 = arith.constant 0 : index
    %531 = vector.load %arg3[%c3_256, %c0_257, %c0_258] : memref<6x1x32xf32, #tpu.memory_space<vmem>>, vector<1x1x32xf32>
    %532 = vector.shape_cast %531 : vector<1x1x32xf32> to vector<1x32xf32>
    %c3_259 = arith.constant 3 : index
    %c0_260 = arith.constant 0 : index
    %c0_261 = arith.constant 0 : index
    %533 = vector.load %arg4[%c3_259, %c0_260, %c0_261] : memref<6x1x32xf32, #tpu.memory_space<vmem>>, vector<1x1x32xf32>
    %534 = vector.shape_cast %533 : vector<1x1x32xf32> to vector<1x32xf32>
    %cst_262 = arith.constant dense<0.000000e+00> : vector<16xf32>
    %535 = vector.multi_reduction <add>, %530, %cst_262 [1] : vector<16x32xf32> to vector<16xf32>
    %536 = vector.shape_cast %535 : vector<16xf32> to vector<16x1xf32>
    %cst_263 = arith.constant 3.200000e+01 : f32
    %537 = vector.broadcast %cst_263 : f32 to vector<16x1xf32>
    %538 = arith.divf %536, %537 : vector<16x1xf32>
    %539 = vector.broadcast %538 : vector<16x1xf32> to vector<16x32xf32>
    %540 = arith.subf %530, %539 : vector<16x32xf32>
    %541 = arith.mulf %540, %540 : vector<16x32xf32>
    %cst_264 = arith.constant dense<0.000000e+00> : vector<16xf32>
    %542 = vector.multi_reduction <add>, %541, %cst_264 [1] : vector<16x32xf32> to vector<16xf32>
    %543 = vector.shape_cast %542 : vector<16xf32> to vector<16x1xf32>
    %cst_265 = arith.constant 3.200000e+01 : f32
    %544 = vector.broadcast %cst_265 : f32 to vector<16x1xf32>
    %545 = arith.divf %543, %544 : vector<16x1xf32>
    %546 = vector.broadcast %538 : vector<16x1xf32> to vector<16x32xf32>
    %547 = arith.subf %530, %546 : vector<16x32xf32>
    %cst_266 = arith.constant 9.99999974E-6 : f32
    %548 = vector.broadcast %cst_266 : f32 to vector<16x1xf32>
    %549 = arith.addf %545, %548 : vector<16x1xf32>
    %550 = math.rsqrt %549 : vector<16x1xf32>
    %551 = vector.broadcast %550 : vector<16x1xf32> to vector<16x32xf32>
    %552 = arith.mulf %547, %551 : vector<16x32xf32>
    %553 = vector.broadcast %532 : vector<1x32xf32> to vector<16x32xf32>
    %554 = arith.mulf %552, %553 : vector<16x32xf32>
    %555 = vector.broadcast %534 : vector<1x32xf32> to vector<16x32xf32>
    %556 = arith.addf %554, %555 : vector<16x32xf32>
    %c3_267 = arith.constant 3 : index
    %c0_268 = arith.constant 0 : index
    %c0_269 = arith.constant 0 : index
    %557 = vector.load %arg5[%c3_267, %c0_268, %c0_269] : memref<6x32x96xbf16, #tpu.memory_space<vmem>>, vector<1x32x96xbf16>
    %558 = vector.shape_cast %557 : vector<1x32x96xbf16> to vector<32x96xbf16>
    %559 = arith.truncf %556 : vector<16x32xf32> to vector<16x32xbf16>
    %cst_270 = arith.constant dense<0.000000e+00> : vector<16x96xf32>
    %560 = tpu.matmul %559, %558, %cst_270 {dimension_numbers = #tpu.dot_dimension_numbers<[1], [0], [0], [1], [0, 0, 1, 1], [], []>} : vector<16x32xbf16>, vector<32x96xbf16>, vector<16x96xf32> -> vector<16x96xf32>
    %c3_271 = arith.constant 3 : index
    %c0_272 = arith.constant 0 : index
    %c0_273 = arith.constant 0 : index
    %561 = vector.load %arg6[%c3_271, %c0_272, %c0_273] : memref<6x1x96xf32, #tpu.memory_space<vmem>>, vector<1x1x96xf32>
    %562 = vector.shape_cast %561 : vector<1x1x96xf32> to vector<1x96xf32>
    %563 = vector.broadcast %562 : vector<1x96xf32> to vector<16x96xf32>
    %564 = arith.addf %560, %563 : vector<16x96xf32>
    %565 = vector.extract_strided_slice %564 {offsets = [0, 0], sizes = [16, 8], strides = [1, 1]} : vector<16x96xf32> to vector<16x8xf32>
    %566 = vector.extract_strided_slice %564 {offsets = [0, 8], sizes = [16, 8], strides = [1, 1]} : vector<16x96xf32> to vector<16x8xf32>
    %567 = vector.extract_strided_slice %564 {offsets = [0, 16], sizes = [16, 8], strides = [1, 1]} : vector<16x96xf32> to vector<16x8xf32>
    %568 = vector.extract_strided_slice %564 {offsets = [0, 24], sizes = [16, 8], strides = [1, 1]} : vector<16x96xf32> to vector<16x8xf32>
    %569 = vector.shape_cast %565 : vector<16x8xf32> to vector<1x16x8xf32>
    %570 = vector.shape_cast %566 : vector<16x8xf32> to vector<1x16x8xf32>
    %571 = vector.shape_cast %567 : vector<16x8xf32> to vector<1x16x8xf32>
    %572 = vector.shape_cast %568 : vector<16x8xf32> to vector<1x16x8xf32>
    %573 = tpu.concatenate %569, %570, %571, %572 in 0 : vector<1x16x8xf32>, vector<1x16x8xf32>, vector<1x16x8xf32>, vector<1x16x8xf32> -> vector<4x16x8xf32>
    %574 = vector.extract_strided_slice %564 {offsets = [0, 32], sizes = [16, 8], strides = [1, 1]} : vector<16x96xf32> to vector<16x8xf32>
    %575 = vector.extract_strided_slice %564 {offsets = [0, 40], sizes = [16, 8], strides = [1, 1]} : vector<16x96xf32> to vector<16x8xf32>
    %576 = vector.extract_strided_slice %564 {offsets = [0, 48], sizes = [16, 8], strides = [1, 1]} : vector<16x96xf32> to vector<16x8xf32>
    %577 = vector.extract_strided_slice %564 {offsets = [0, 56], sizes = [16, 8], strides = [1, 1]} : vector<16x96xf32> to vector<16x8xf32>
    %578 = vector.shape_cast %574 : vector<16x8xf32> to vector<1x16x8xf32>
    %579 = vector.shape_cast %575 : vector<16x8xf32> to vector<1x16x8xf32>
    %580 = vector.shape_cast %576 : vector<16x8xf32> to vector<1x16x8xf32>
    %581 = vector.shape_cast %577 : vector<16x8xf32> to vector<1x16x8xf32>
    %582 = tpu.concatenate %578, %579, %580, %581 in 0 : vector<1x16x8xf32>, vector<1x16x8xf32>, vector<1x16x8xf32>, vector<1x16x8xf32> -> vector<4x16x8xf32>
    %583 = vector.extract_strided_slice %564 {offsets = [0, 64], sizes = [16, 8], strides = [1, 1]} : vector<16x96xf32> to vector<16x8xf32>
    %584 = vector.extract_strided_slice %564 {offsets = [0, 72], sizes = [16, 8], strides = [1, 1]} : vector<16x96xf32> to vector<16x8xf32>
    %585 = vector.extract_strided_slice %564 {offsets = [0, 80], sizes = [16, 8], strides = [1, 1]} : vector<16x96xf32> to vector<16x8xf32>
    %586 = vector.extract_strided_slice %564 {offsets = [0, 88], sizes = [16, 8], strides = [1, 1]} : vector<16x96xf32> to vector<16x8xf32>
    %587 = vector.shape_cast %583 : vector<16x8xf32> to vector<1x16x8xf32>
    %588 = vector.shape_cast %584 : vector<16x8xf32> to vector<1x16x8xf32>
    %589 = vector.shape_cast %585 : vector<16x8xf32> to vector<1x16x8xf32>
    %590 = vector.shape_cast %586 : vector<16x8xf32> to vector<1x16x8xf32>
    %591 = tpu.concatenate %587, %588, %589, %590 in 0 : vector<1x16x8xf32>, vector<1x16x8xf32>, vector<1x16x8xf32>, vector<1x16x8xf32> -> vector<4x16x8xf32>
    "tpu.trace_start"() <{level = 10 : i32, message = "hqd,hkd->hqk"}> : () -> ()
    %cst_274 = arith.constant dense<0.000000e+00> : vector<4x16x16xf32>
    %592 = tpu.matmul %573, %582, %cst_274 {dimension_numbers = #tpu.dot_dimension_numbers<[2], [2], [1], [1], [0, 0, 0, 1, 1, 1], [0], [0]>} : vector<4x16x8xf32>, vector<4x16x8xf32>, vector<4x16x16xf32> -> vector<4x16x16xf32>
    "tpu.trace_stop"() : () -> ()
    %cst_275 = arith.constant 0.353553385 : f32
    %593 = vector.broadcast %cst_275 : f32 to vector<4x16x16xf32>
    %594 = arith.mulf %592, %593 : vector<4x16x16xf32>
    %595 = vector.shape_cast %65 : vector<16x16xf32> to vector<1x16x16xf32>
    %596 = vector.broadcast %595 : vector<1x16x16xf32> to vector<4x16x16xf32>
    %597 = arith.addf %594, %596 : vector<4x16x16xf32>
    %cst_276 = arith.constant dense<0xFF800000> : vector<4x16xf32>
    %598 = vector.multi_reduction <maximumf>, %597, %cst_276 [2] : vector<4x16x16xf32> to vector<4x16xf32>
    %599 = vector.shape_cast %598 : vector<4x16xf32> to vector<4x16x1xf32>
    %600 = vector.broadcast %599 : vector<4x16x1xf32> to vector<4x16x16xf32>
    %601 = arith.subf %597, %600 : vector<4x16x16xf32>
    %602 = math.exp %601 : vector<4x16x16xf32>
    %cst_277 = arith.constant dense<0.000000e+00> : vector<4x16xf32>
    %603 = vector.multi_reduction <add>, %602, %cst_277 [2] : vector<4x16x16xf32> to vector<4x16xf32>
    %604 = vector.shape_cast %603 : vector<4x16xf32> to vector<4x16x1xf32>
    %605 = vector.broadcast %604 : vector<4x16x1xf32> to vector<4x16x16xf32>
    %606 = arith.divf %602, %605 : vector<4x16x16xf32>
    "tpu.trace_start"() <{level = 10 : i32, message = "hqk,hkd->hqd"}> : () -> ()
    %cst_278 = arith.constant dense<0.000000e+00> : vector<4x16x8xf32>
    %607 = tpu.matmul %606, %591, %cst_278 {dimension_numbers = #tpu.dot_dimension_numbers<[2], [1], [1], [2], [0, 0, 0, 1, 1, 2], [0], [0]>} : vector<4x16x16xf32>, vector<4x16x8xf32>, vector<4x16x8xf32> -> vector<4x16x8xf32>
    "tpu.trace_stop"() : () -> ()
    %608 = vector.extract_strided_slice %607 {offsets = [0, 0, 0], sizes = [1, 16, 8], strides = [1, 1, 1]} : vector<4x16x8xf32> to vector<1x16x8xf32>
    %609 = vector.shape_cast %608 : vector<1x16x8xf32> to vector<16x8xf32>
    %c0_279 = arith.constant 0 : index
    %c0_280 = arith.constant 0 : index
    %610 = vector.load %arg17[%c0_279, %c0_280] : memref<16x32xf32, #tpu.memory_space<vmem>>, vector<16x8xf32>
    tpu.vector_store %arg17[%c0_279, %c0_280], %609 {strides = array<i32>} : memref<16x32xf32, #tpu.memory_space<vmem>>, vector<16x8xf32>,
    %611 = vector.extract_strided_slice %607 {offsets = [1, 0, 0], sizes = [1, 16, 8], strides = [1, 1, 1]} : vector<4x16x8xf32> to vector<1x16x8xf32>
    %612 = vector.shape_cast %611 : vector<1x16x8xf32> to vector<16x8xf32>
    %c0_281 = arith.constant 0 : index
    %c8_282 = arith.constant 8 : index
    %613 = vector.load %arg17[%c0_281, %c8_282] : memref<16x32xf32, #tpu.memory_space<vmem>>, vector<16x8xf32>
    tpu.vector_store %arg17[%c0_281, %c8_282], %612 {strides = array<i32>} : memref<16x32xf32, #tpu.memory_space<vmem>>, vector<16x8xf32>,
    %614 = vector.extract_strided_slice %607 {offsets = [2, 0, 0], sizes = [1, 16, 8], strides = [1, 1, 1]} : vector<4x16x8xf32> to vector<1x16x8xf32>
    %615 = vector.shape_cast %614 : vector<1x16x8xf32> to vector<16x8xf32>
    %c0_283 = arith.constant 0 : index
    %c16_284 = arith.constant 16 : index
    %616 = vector.load %arg17[%c0_283, %c16_284] : memref<16x32xf32, #tpu.memory_space<vmem>>, vector<16x8xf32>
    tpu.vector_store %arg17[%c0_283, %c16_284], %615 {strides = array<i32>} : memref<16x32xf32, #tpu.memory_space<vmem>>, vector<16x8xf32>,
    %617 = vector.extract_strided_slice %607 {offsets = [3, 0, 0], sizes = [1, 16, 8], strides = [1, 1, 1]} : vector<4x16x8xf32> to vector<1x16x8xf32>
    %618 = vector.shape_cast %617 : vector<1x16x8xf32> to vector<16x8xf32>
    %c0_285 = arith.constant 0 : index
    %c24_286 = arith.constant 24 : index
    %619 = vector.load %arg17[%c0_285, %c24_286] : memref<16x32xf32, #tpu.memory_space<vmem>>, vector<16x8xf32>
    tpu.vector_store %arg17[%c0_285, %c24_286], %618 {strides = array<i32>} : memref<16x32xf32, #tpu.memory_space<vmem>>, vector<16x8xf32>,
    %c0_287 = arith.constant 0 : index
    %c0_288 = arith.constant 0 : index
    %620 = vector.load %arg17[%c0_287, %c0_288] : memref<16x32xf32, #tpu.memory_space<vmem>>, vector<16x32xf32>
    %c3_289 = arith.constant 3 : index
    %c0_290 = arith.constant 0 : index
    %c0_291 = arith.constant 0 : index
    %621 = vector.load %arg7[%c3_289, %c0_290, %c0_291] : memref<6x32x32xbf16, #tpu.memory_space<vmem>>, vector<1x32x32xbf16>
    %622 = vector.shape_cast %621 : vector<1x32x32xbf16> to vector<32x32xbf16>
    %623 = arith.truncf %620 : vector<16x32xf32> to vector<16x32xbf16>
    %cst_292 = arith.constant dense<0.000000e+00> : vector<16x32xf32>
    %624 = tpu.matmul %623, %622, %cst_292 {dimension_numbers = #tpu.dot_dimension_numbers<[1], [0], [0], [1], [0, 0, 1, 1], [], []>} : vector<16x32xbf16>, vector<32x32xbf16>, vector<16x32xf32> -> vector<16x32xf32>
    %625 = arith.addf %530, %624 : vector<16x32xf32>
    %c3_293 = arith.constant 3 : index
    %c0_294 = arith.constant 0 : index
    %c0_295 = arith.constant 0 : index
    %626 = vector.load %arg8[%c3_293, %c0_294, %c0_295] : memref<6x1x32xf32, #tpu.memory_space<vmem>>, vector<1x1x32xf32>
    %627 = vector.shape_cast %626 : vector<1x1x32xf32> to vector<1x32xf32>
    %628 = vector.broadcast %627 : vector<1x32xf32> to vector<16x32xf32>
    %629 = arith.addf %625, %628 : vector<16x32xf32>
    %c3_296 = arith.constant 3 : index
    %c0_297 = arith.constant 0 : index
    %c0_298 = arith.constant 0 : index
    %630 = vector.load %arg9[%c3_296, %c0_297, %c0_298] : memref<6x1x32xf32, #tpu.memory_space<vmem>>, vector<1x1x32xf32>
    %631 = vector.shape_cast %630 : vector<1x1x32xf32> to vector<1x32xf32>
    %c3_299 = arith.constant 3 : index
    %c0_300 = arith.constant 0 : index
    %c0_301 = arith.constant 0 : index
    %632 = vector.load %arg10[%c3_299, %c0_300, %c0_301] : memref<6x1x32xf32, #tpu.memory_space<vmem>>, vector<1x1x32xf32>
    %633 = vector.shape_cast %632 : vector<1x1x32xf32> to vector<1x32xf32>
    %cst_302 = arith.constant dense<0.000000e+00> : vector<16xf32>
    %634 = vector.multi_reduction <add>, %629, %cst_302 [1] : vector<16x32xf32> to vector<16xf32>
    %635 = vector.shape_cast %634 : vector<16xf32> to vector<16x1xf32>
    %cst_303 = arith.constant 3.200000e+01 : f32
    %636 = vector.broadcast %cst_303 : f32 to vector<16x1xf32>
    %637 = arith.divf %635, %636 : vector<16x1xf32>
    %638 = vector.broadcast %637 : vector<16x1xf32> to vector<16x32xf32>
    %639 = arith.subf %629, %638 : vector<16x32xf32>
    %640 = arith.mulf %639, %639 : vector<16x32xf32>
    %cst_304 = arith.constant dense<0.000000e+00> : vector<16xf32>
    %641 = vector.multi_reduction <add>, %640, %cst_304 [1] : vector<16x32xf32> to vector<16xf32>
    %642 = vector.shape_cast %641 : vector<16xf32> to vector<16x1xf32>
    %cst_305 = arith.constant 3.200000e+01 : f32
    %643 = vector.broadcast %cst_305 : f32 to vector<16x1xf32>
    %644 = arith.divf %642, %643 : vector<16x1xf32>
    %645 = vector.broadcast %637 : vector<16x1xf32> to vector<16x32xf32>
    %646 = arith.subf %629, %645 : vector<16x32xf32>
    %cst_306 = arith.constant 9.99999974E-6 : f32
    %647 = vector.broadcast %cst_306 : f32 to vector<16x1xf32>
    %648 = arith.addf %644, %647 : vector<16x1xf32>
    %649 = math.rsqrt %648 : vector<16x1xf32>
    %650 = vector.broadcast %649 : vector<16x1xf32> to vector<16x32xf32>
    %651 = arith.mulf %646, %650 : vector<16x32xf32>
    %652 = vector.broadcast %631 : vector<1x32xf32> to vector<16x32xf32>
    %653 = arith.mulf %651, %652 : vector<16x32xf32>
    %654 = vector.broadcast %633 : vector<1x32xf32> to vector<16x32xf32>
    %655 = arith.addf %653, %654 : vector<16x32xf32>
    %c3_307 = arith.constant 3 : index
    %c0_308 = arith.constant 0 : index
    %c0_309 = arith.constant 0 : index
    %656 = vector.load %arg11[%c3_307, %c0_308, %c0_309] : memref<6x32x128xbf16, #tpu.memory_space<vmem>>, vector<1x32x128xbf16>
    %657 = vector.shape_cast %656 : vector<1x32x128xbf16> to vector<32x128xbf16>
    %658 = arith.truncf %655 : vector<16x32xf32> to vector<16x32xbf16>
    %cst_310 = arith.constant dense<0.000000e+00> : vector<16x128xf32>
    %659 = tpu.matmul %658, %657, %cst_310 {dimension_numbers = #tpu.dot_dimension_numbers<[1], [0], [0], [1], [0, 0, 1, 1], [], []>} : vector<16x32xbf16>, vector<32x128xbf16>, vector<16x128xf32> -> vector<16x128xf32>
    %c3_311 = arith.constant 3 : index
    %c0_312 = arith.constant 0 : index
    %c0_313 = arith.constant 0 : index
    %660 = vector.load %arg12[%c3_311, %c0_312, %c0_313] : memref<6x1x128xf32, #tpu.memory_space<vmem>>, vector<1x1x128xf32>
    %661 = vector.shape_cast %660 : vector<1x1x128xf32> to vector<1x128xf32>
    %662 = vector.broadcast %661 : vector<1x128xf32> to vector<16x128xf32>
    %663 = arith.addf %659, %662 : vector<16x128xf32>
    %cst_314 = arith.constant 5.000000e-01 : f32
    %664 = vector.broadcast %cst_314 : f32 to vector<16x128xf32>
    %665 = arith.mulf %664, %663 : vector<16x128xf32>
    %cst_315 = arith.constant 4.471500e-02 : f32
    %666 = vector.broadcast %cst_315 : f32 to vector<16x128xf32>
    %667 = arith.mulf %666, %663 : vector<16x128xf32>
    %668 = arith.mulf %667, %663 : vector<16x128xf32>
    %669 = arith.mulf %668, %663 : vector<16x128xf32>
    %670 = arith.addf %663, %669 : vector<16x128xf32>
    %cst_316 = arith.constant 0.797884583 : f32
    %671 = vector.broadcast %cst_316 : f32 to vector<16x128xf32>
    %672 = arith.mulf %671, %670 : vector<16x128xf32>
    %673 = math.tanh %672 : vector<16x128xf32>
    %cst_317 = arith.constant 1.000000e+00 : f32
    %674 = vector.broadcast %cst_317 : f32 to vector<16x128xf32>
    %675 = arith.addf %674, %673 : vector<16x128xf32>
    %676 = arith.mulf %665, %675 : vector<16x128xf32>
    %c3_318 = arith.constant 3 : index
    %c0_319 = arith.constant 0 : index
    %c0_320 = arith.constant 0 : index
    %677 = vector.load %arg13[%c3_318, %c0_319, %c0_320] : memref<6x128x32xbf16, #tpu.memory_space<vmem>>, vector<1x128x32xbf16>
    %678 = vector.shape_cast %677 : vector<1x128x32xbf16> to vector<128x32xbf16>
    %679 = arith.truncf %676 : vector<16x128xf32> to vector<16x128xbf16>
    %cst_321 = arith.constant dense<0.000000e+00> : vector<16x32xf32>
    %680 = tpu.matmul %679, %678, %cst_321 {dimension_numbers = #tpu.dot_dimension_numbers<[1], [0], [0], [1], [0, 0, 1, 1], [], []>} : vector<16x128xbf16>, vector<128x32xbf16>, vector<16x32xf32> -> vector<16x32xf32>
    %681 = arith.addf %629, %680 : vector<16x32xf32>
    %c3_322 = arith.constant 3 : index
    %c0_323 = arith.constant 0 : index
    %c0_324 = arith.constant 0 : index
    %682 = vector.load %arg14[%c3_322, %c0_323, %c0_324] : memref<6x1x32xf32, #tpu.memory_space<vmem>>, vector<1x1x32xf32>
    %683 = vector.shape_cast %682 : vector<1x1x32xf32> to vector<1x32xf32>
    %684 = vector.broadcast %683 : vector<1x32xf32> to vector<16x32xf32>
    %685 = arith.addf %681, %684 : vector<16x32xf32>
    %c4_325 = arith.constant 4 : index
    %c0_326 = arith.constant 0 : index
    %c0_327 = arith.constant 0 : index
    %686 = vector.load %arg3[%c4_325, %c0_326, %c0_327] : memref<6x1x32xf32, #tpu.memory_space<vmem>>, vector<1x1x32xf32>
    %687 = vector.shape_cast %686 : vector<1x1x32xf32> to vector<1x32xf32>
    %c4_328 = arith.constant 4 : index
    %c0_329 = arith.constant 0 : index
    %c0_330 = arith.constant 0 : index
    %688 = vector.load %arg4[%c4_328, %c0_329, %c0_330] : memref<6x1x32xf32, #tpu.memory_space<vmem>>, vector<1x1x32xf32>
    %689 = vector.shape_cast %688 : vector<1x1x32xf32> to vector<1x32xf32>
    %cst_331 = arith.constant dense<0.000000e+00> : vector<16xf32>
    %690 = vector.multi_reduction <add>, %685, %cst_331 [1] : vector<16x32xf32> to vector<16xf32>
    %691 = vector.shape_cast %690 : vector<16xf32> to vector<16x1xf32>
    %cst_332 = arith.constant 3.200000e+01 : f32
    %692 = vector.broadcast %cst_332 : f32 to vector<16x1xf32>
    %693 = arith.divf %691, %692 : vector<16x1xf32>
    %694 = vector.broadcast %693 : vector<16x1xf32> to vector<16x32xf32>
    %695 = arith.subf %685, %694 : vector<16x32xf32>
    %696 = arith.mulf %695, %695 : vector<16x32xf32>
    %cst_333 = arith.constant dense<0.000000e+00> : vector<16xf32>
    %697 = vector.multi_reduction <add>, %696, %cst_333 [1] : vector<16x32xf32> to vector<16xf32>
    %698 = vector.shape_cast %697 : vector<16xf32> to vector<16x1xf32>
    %cst_334 = arith.constant 3.200000e+01 : f32
    %699 = vector.broadcast %cst_334 : f32 to vector<16x1xf32>
    %700 = arith.divf %698, %699 : vector<16x1xf32>
    %701 = vector.broadcast %693 : vector<16x1xf32> to vector<16x32xf32>
    %702 = arith.subf %685, %701 : vector<16x32xf32>
    %cst_335 = arith.constant 9.99999974E-6 : f32
    %703 = vector.broadcast %cst_335 : f32 to vector<16x1xf32>
    %704 = arith.addf %700, %703 : vector<16x1xf32>
    %705 = math.rsqrt %704 : vector<16x1xf32>
    %706 = vector.broadcast %705 : vector<16x1xf32> to vector<16x32xf32>
    %707 = arith.mulf %702, %706 : vector<16x32xf32>
    %708 = vector.broadcast %687 : vector<1x32xf32> to vector<16x32xf32>
    %709 = arith.mulf %707, %708 : vector<16x32xf32>
    %710 = vector.broadcast %689 : vector<1x32xf32> to vector<16x32xf32>
    %711 = arith.addf %709, %710 : vector<16x32xf32>
    %c4_336 = arith.constant 4 : index
    %c0_337 = arith.constant 0 : index
    %c0_338 = arith.constant 0 : index
    %712 = vector.load %arg5[%c4_336, %c0_337, %c0_338] : memref<6x32x96xbf16, #tpu.memory_space<vmem>>, vector<1x32x96xbf16>
    %713 = vector.shape_cast %712 : vector<1x32x96xbf16> to vector<32x96xbf16>
    %714 = arith.truncf %711 : vector<16x32xf32> to vector<16x32xbf16>
    %cst_339 = arith.constant dense<0.000000e+00> : vector<16x96xf32>
    %715 = tpu.matmul %714, %713, %cst_339 {dimension_numbers = #tpu.dot_dimension_numbers<[1], [0], [0], [1], [0, 0, 1, 1], [], []>} : vector<16x32xbf16>, vector<32x96xbf16>, vector<16x96xf32> -> vector<16x96xf32>
    %c4_340 = arith.constant 4 : index
    %c0_341 = arith.constant 0 : index
    %c0_342 = arith.constant 0 : index
    %716 = vector.load %arg6[%c4_340, %c0_341, %c0_342] : memref<6x1x96xf32, #tpu.memory_space<vmem>>, vector<1x1x96xf32>
    %717 = vector.shape_cast %716 : vector<1x1x96xf32> to vector<1x96xf32>
    %718 = vector.broadcast %717 : vector<1x96xf32> to vector<16x96xf32>
    %719 = arith.addf %715, %718 : vector<16x96xf32>
    %720 = vector.extract_strided_slice %719 {offsets = [0, 0], sizes = [16, 8], strides = [1, 1]} : vector<16x96xf32> to vector<16x8xf32>
    %721 = vector.extract_strided_slice %719 {offsets = [0, 8], sizes = [16, 8], strides = [1, 1]} : vector<16x96xf32> to vector<16x8xf32>
    %722 = vector.extract_strided_slice %719 {offsets = [0, 16], sizes = [16, 8], strides = [1, 1]} : vector<16x96xf32> to vector<16x8xf32>
    %723 = vector.extract_strided_slice %719 {offsets = [0, 24], sizes = [16, 8], strides = [1, 1]} : vector<16x96xf32> to vector<16x8xf32>
    %724 = vector.shape_cast %720 : vector<16x8xf32> to vector<1x16x8xf32>
    %725 = vector.shape_cast %721 : vector<16x8xf32> to vector<1x16x8xf32>
    %726 = vector.shape_cast %722 : vector<16x8xf32> to vector<1x16x8xf32>
    %727 = vector.shape_cast %723 : vector<16x8xf32> to vector<1x16x8xf32>
    %728 = tpu.concatenate %724, %725, %726, %727 in 0 : vector<1x16x8xf32>, vector<1x16x8xf32>, vector<1x16x8xf32>, vector<1x16x8xf32> -> vector<4x16x8xf32>
    %729 = vector.extract_strided_slice %719 {offsets = [0, 32], sizes = [16, 8], strides = [1, 1]} : vector<16x96xf32> to vector<16x8xf32>
    %730 = vector.extract_strided_slice %719 {offsets = [0, 40], sizes = [16, 8], strides = [1, 1]} : vector<16x96xf32> to vector<16x8xf32>
    %731 = vector.extract_strided_slice %719 {offsets = [0, 48], sizes = [16, 8], strides = [1, 1]} : vector<16x96xf32> to vector<16x8xf32>
    %732 = vector.extract_strided_slice %719 {offsets = [0, 56], sizes = [16, 8], strides = [1, 1]} : vector<16x96xf32> to vector<16x8xf32>
    %733 = vector.shape_cast %729 : vector<16x8xf32> to vector<1x16x8xf32>
    %734 = vector.shape_cast %730 : vector<16x8xf32> to vector<1x16x8xf32>
    %735 = vector.shape_cast %731 : vector<16x8xf32> to vector<1x16x8xf32>
    %736 = vector.shape_cast %732 : vector<16x8xf32> to vector<1x16x8xf32>
    %737 = tpu.concatenate %733, %734, %735, %736 in 0 : vector<1x16x8xf32>, vector<1x16x8xf32>, vector<1x16x8xf32>, vector<1x16x8xf32> -> vector<4x16x8xf32>
    %738 = vector.extract_strided_slice %719 {offsets = [0, 64], sizes = [16, 8], strides = [1, 1]} : vector<16x96xf32> to vector<16x8xf32>
    %739 = vector.extract_strided_slice %719 {offsets = [0, 72], sizes = [16, 8], strides = [1, 1]} : vector<16x96xf32> to vector<16x8xf32>
    %740 = vector.extract_strided_slice %719 {offsets = [0, 80], sizes = [16, 8], strides = [1, 1]} : vector<16x96xf32> to vector<16x8xf32>
    %741 = vector.extract_strided_slice %719 {offsets = [0, 88], sizes = [16, 8], strides = [1, 1]} : vector<16x96xf32> to vector<16x8xf32>
    %742 = vector.shape_cast %738 : vector<16x8xf32> to vector<1x16x8xf32>
    %743 = vector.shape_cast %739 : vector<16x8xf32> to vector<1x16x8xf32>
    %744 = vector.shape_cast %740 : vector<16x8xf32> to vector<1x16x8xf32>
    %745 = vector.shape_cast %741 : vector<16x8xf32> to vector<1x16x8xf32>
    %746 = tpu.concatenate %742, %743, %744, %745 in 0 : vector<1x16x8xf32>, vector<1x16x8xf32>, vector<1x16x8xf32>, vector<1x16x8xf32> -> vector<4x16x8xf32>
    "tpu.trace_start"() <{level = 10 : i32, message = "hqd,hkd->hqk"}> : () -> ()
    %cst_343 = arith.constant dense<0.000000e+00> : vector<4x16x16xf32>
    %747 = tpu.matmul %728, %737, %cst_343 {dimension_numbers = #tpu.dot_dimension_numbers<[2], [2], [1], [1], [0, 0, 0, 1, 1, 1], [0], [0]>} : vector<4x16x8xf32>, vector<4x16x8xf32>, vector<4x16x16xf32> -> vector<4x16x16xf32>
    "tpu.trace_stop"() : () -> ()
    %cst_344 = arith.constant 0.353553385 : f32
    %748 = vector.broadcast %cst_344 : f32 to vector<4x16x16xf32>
    %749 = arith.mulf %747, %748 : vector<4x16x16xf32>
    %750 = vector.shape_cast %65 : vector<16x16xf32> to vector<1x16x16xf32>
    %751 = vector.broadcast %750 : vector<1x16x16xf32> to vector<4x16x16xf32>
    %752 = arith.addf %749, %751 : vector<4x16x16xf32>
    %cst_345 = arith.constant dense<0xFF800000> : vector<4x16xf32>
    %753 = vector.multi_reduction <maximumf>, %752, %cst_345 [2] : vector<4x16x16xf32> to vector<4x16xf32>
    %754 = vector.shape_cast %753 : vector<4x16xf32> to vector<4x16x1xf32>
    %755 = vector.broadcast %754 : vector<4x16x1xf32> to vector<4x16x16xf32>
    %756 = arith.subf %752, %755 : vector<4x16x16xf32>
    %757 = math.exp %756 : vector<4x16x16xf32>
    %cst_346 = arith.constant dense<0.000000e+00> : vector<4x16xf32>
    %758 = vector.multi_reduction <add>, %757, %cst_346 [2] : vector<4x16x16xf32> to vector<4x16xf32>
    %759 = vector.shape_cast %758 : vector<4x16xf32> to vector<4x16x1xf32>
    %760 = vector.broadcast %759 : vector<4x16x1xf32> to vector<4x16x16xf32>
    %761 = arith.divf %757, %760 : vector<4x16x16xf32>
    "tpu.trace_start"() <{level = 10 : i32, message = "hqk,hkd->hqd"}> : () -> ()
    %cst_347 = arith.constant dense<0.000000e+00> : vector<4x16x8xf32>
    %762 = tpu.matmul %761, %746, %cst_347 {dimension_numbers = #tpu.dot_dimension_numbers<[2], [1], [1], [2], [0, 0, 0, 1, 1, 2], [0], [0]>} : vector<4x16x16xf32>, vector<4x16x8xf32>, vector<4x16x8xf32> -> vector<4x16x8xf32>
    "tpu.trace_stop"() : () -> ()
    %763 = vector.extract_strided_slice %762 {offsets = [0, 0, 0], sizes = [1, 16, 8], strides = [1, 1, 1]} : vector<4x16x8xf32> to vector<1x16x8xf32>
    %764 = vector.shape_cast %763 : vector<1x16x8xf32> to vector<16x8xf32>
    %c0_348 = arith.constant 0 : index
    %c0_349 = arith.constant 0 : index
    %765 = vector.load %arg17[%c0_348, %c0_349] : memref<16x32xf32, #tpu.memory_space<vmem>>, vector<16x8xf32>
    tpu.vector_store %arg17[%c0_348, %c0_349], %764 {strides = array<i32>} : memref<16x32xf32, #tpu.memory_space<vmem>>, vector<16x8xf32>,
    %766 = vector.extract_strided_slice %762 {offsets = [1, 0, 0], sizes = [1, 16, 8], strides = [1, 1, 1]} : vector<4x16x8xf32> to vector<1x16x8xf32>
    %767 = vector.shape_cast %766 : vector<1x16x8xf32> to vector<16x8xf32>
    %c0_350 = arith.constant 0 : index
    %c8_351 = arith.constant 8 : index
    %768 = vector.load %arg17[%c0_350, %c8_351] : memref<16x32xf32, #tpu.memory_space<vmem>>, vector<16x8xf32>
    tpu.vector_store %arg17[%c0_350, %c8_351], %767 {strides = array<i32>} : memref<16x32xf32, #tpu.memory_space<vmem>>, vector<16x8xf32>,
    %769 = vector.extract_strided_slice %762 {offsets = [2, 0, 0], sizes = [1, 16, 8], strides = [1, 1, 1]} : vector<4x16x8xf32> to vector<1x16x8xf32>
    %770 = vector.shape_cast %769 : vector<1x16x8xf32> to vector<16x8xf32>
    %c0_352 = arith.constant 0 : index
    %c16_353 = arith.constant 16 : index
    %771 = vector.load %arg17[%c0_352, %c16_353] : memref<16x32xf32, #tpu.memory_space<vmem>>, vector<16x8xf32>
    tpu.vector_store %arg17[%c0_352, %c16_353], %770 {strides = array<i32>} : memref<16x32xf32, #tpu.memory_space<vmem>>, vector<16x8xf32>,
    %772 = vector.extract_strided_slice %762 {offsets = [3, 0, 0], sizes = [1, 16, 8], strides = [1, 1, 1]} : vector<4x16x8xf32> to vector<1x16x8xf32>
    %773 = vector.shape_cast %772 : vector<1x16x8xf32> to vector<16x8xf32>
    %c0_354 = arith.constant 0 : index
    %c24_355 = arith.constant 24 : index
    %774 = vector.load %arg17[%c0_354, %c24_355] : memref<16x32xf32, #tpu.memory_space<vmem>>, vector<16x8xf32>
    tpu.vector_store %arg17[%c0_354, %c24_355], %773 {strides = array<i32>} : memref<16x32xf32, #tpu.memory_space<vmem>>, vector<16x8xf32>,
    %c0_356 = arith.constant 0 : index
    %c0_357 = arith.constant 0 : index
    %775 = vector.load %arg17[%c0_356, %c0_357] : memref<16x32xf32, #tpu.memory_space<vmem>>, vector<16x32xf32>
    %c4_358 = arith.constant 4 : index
    %c0_359 = arith.constant 0 : index
    %c0_360 = arith.constant 0 : index
    %776 = vector.load %arg7[%c4_358, %c0_359, %c0_360] : memref<6x32x32xbf16, #tpu.memory_space<vmem>>, vector<1x32x32xbf16>
    %777 = vector.shape_cast %776 : vector<1x32x32xbf16> to vector<32x32xbf16>
    %778 = arith.truncf %775 : vector<16x32xf32> to vector<16x32xbf16>
    %cst_361 = arith.constant dense<0.000000e+00> : vector<16x32xf32>
    %779 = tpu.matmul %778, %777, %cst_361 {dimension_numbers = #tpu.dot_dimension_numbers<[1], [0], [0], [1], [0, 0, 1, 1], [], []>} : vector<16x32xbf16>, vector<32x32xbf16>, vector<16x32xf32> -> vector<16x32xf32>
    %780 = arith.addf %685, %779 : vector<16x32xf32>
    %c4_362 = arith.constant 4 : index
    %c0_363 = arith.constant 0 : index
    %c0_364 = arith.constant 0 : index
    %781 = vector.load %arg8[%c4_362, %c0_363, %c0_364] : memref<6x1x32xf32, #tpu.memory_space<vmem>>, vector<1x1x32xf32>
    %782 = vector.shape_cast %781 : vector<1x1x32xf32> to vector<1x32xf32>
    %783 = vector.broadcast %782 : vector<1x32xf32> to vector<16x32xf32>
    %784 = arith.addf %780, %783 : vector<16x32xf32>
    %c4_365 = arith.constant 4 : index
    %c0_366 = arith.constant 0 : index
    %c0_367 = arith.constant 0 : index
    %785 = vector.load %arg9[%c4_365, %c0_366, %c0_367] : memref<6x1x32xf32, #tpu.memory_space<vmem>>, vector<1x1x32xf32>
    %786 = vector.shape_cast %785 : vector<1x1x32xf32> to vector<1x32xf32>
    %c4_368 = arith.constant 4 : index
    %c0_369 = arith.constant 0 : index
    %c0_370 = arith.constant 0 : index
    %787 = vector.load %arg10[%c4_368, %c0_369, %c0_370] : memref<6x1x32xf32, #tpu.memory_space<vmem>>, vector<1x1x32xf32>
    %788 = vector.shape_cast %787 : vector<1x1x32xf32> to vector<1x32xf32>
    %cst_371 = arith.constant dense<0.000000e+00> : vector<16xf32>
    %789 = vector.multi_reduction <add>, %784, %cst_371 [1] : vector<16x32xf32> to vector<16xf32>
    %790 = vector.shape_cast %789 : vector<16xf32> to vector<16x1xf32>
    %cst_372 = arith.constant 3.200000e+01 : f32
    %791 = vector.broadcast %cst_372 : f32 to vector<16x1xf32>
    %792 = arith.divf %790, %791 : vector<16x1xf32>
    %793 = vector.broadcast %792 : vector<16x1xf32> to vector<16x32xf32>
    %794 = arith.subf %784, %793 : vector<16x32xf32>
    %795 = arith.mulf %794, %794 : vector<16x32xf32>
    %cst_373 = arith.constant dense<0.000000e+00> : vector<16xf32>
    %796 = vector.multi_reduction <add>, %795, %cst_373 [1] : vector<16x32xf32> to vector<16xf32>
    %797 = vector.shape_cast %796 : vector<16xf32> to vector<16x1xf32>
    %cst_374 = arith.constant 3.200000e+01 : f32
    %798 = vector.broadcast %cst_374 : f32 to vector<16x1xf32>
    %799 = arith.divf %797, %798 : vector<16x1xf32>
    %800 = vector.broadcast %792 : vector<16x1xf32> to vector<16x32xf32>
    %801 = arith.subf %784, %800 : vector<16x32xf32>
    %cst_375 = arith.constant 9.99999974E-6 : f32
    %802 = vector.broadcast %cst_375 : f32 to vector<16x1xf32>
    %803 = arith.addf %799, %802 : vector<16x1xf32>
    %804 = math.rsqrt %803 : vector<16x1xf32>
    %805 = vector.broadcast %804 : vector<16x1xf32> to vector<16x32xf32>
    %806 = arith.mulf %801, %805 : vector<16x32xf32>
    %807 = vector.broadcast %786 : vector<1x32xf32> to vector<16x32xf32>
    %808 = arith.mulf %806, %807 : vector<16x32xf32>
    %809 = vector.broadcast %788 : vector<1x32xf32> to vector<16x32xf32>
    %810 = arith.addf %808, %809 : vector<16x32xf32>
    %c4_376 = arith.constant 4 : index
    %c0_377 = arith.constant 0 : index
    %c0_378 = arith.constant 0 : index
    %811 = vector.load %arg11[%c4_376, %c0_377, %c0_378] : memref<6x32x128xbf16, #tpu.memory_space<vmem>>, vector<1x32x128xbf16>
    %812 = vector.shape_cast %811 : vector<1x32x128xbf16> to vector<32x128xbf16>
    %813 = arith.truncf %810 : vector<16x32xf32> to vector<16x32xbf16>
    %cst_379 = arith.constant dense<0.000000e+00> : vector<16x128xf32>
    %814 = tpu.matmul %813, %812, %cst_379 {dimension_numbers = #tpu.dot_dimension_numbers<[1], [0], [0], [1], [0, 0, 1, 1], [], []>} : vector<16x32xbf16>, vector<32x128xbf16>, vector<16x128xf32> -> vector<16x128xf32>
    %c4_380 = arith.constant 4 : index
    %c0_381 = arith.constant 0 : index
    %c0_382 = arith.constant 0 : index
    %815 = vector.load %arg12[%c4_380, %c0_381, %c0_382] : memref<6x1x128xf32, #tpu.memory_space<vmem>>, vector<1x1x128xf32>
    %816 = vector.shape_cast %815 : vector<1x1x128xf32> to vector<1x128xf32>
    %817 = vector.broadcast %816 : vector<1x128xf32> to vector<16x128xf32>
    %818 = arith.addf %814, %817 : vector<16x128xf32>
    %cst_383 = arith.constant 5.000000e-01 : f32
    %819 = vector.broadcast %cst_383 : f32 to vector<16x128xf32>
    %820 = arith.mulf %819, %818 : vector<16x128xf32>
    %cst_384 = arith.constant 4.471500e-02 : f32
    %821 = vector.broadcast %cst_384 : f32 to vector<16x128xf32>
    %822 = arith.mulf %821, %818 : vector<16x128xf32>
    %823 = arith.mulf %822, %818 : vector<16x128xf32>
    %824 = arith.mulf %823, %818 : vector<16x128xf32>
    %825 = arith.addf %818, %824 : vector<16x128xf32>
    %cst_385 = arith.constant 0.797884583 : f32
    %826 = vector.broadcast %cst_385 : f32 to vector<16x128xf32>
    %827 = arith.mulf %826, %825 : vector<16x128xf32>
    %828 = math.tanh %827 : vector<16x128xf32>
    %cst_386 = arith.constant 1.000000e+00 : f32
    %829 = vector.broadcast %cst_386 : f32 to vector<16x128xf32>
    %830 = arith.addf %829, %828 : vector<16x128xf32>
    %831 = arith.mulf %820, %830 : vector<16x128xf32>
    %c4_387 = arith.constant 4 : index
    %c0_388 = arith.constant 0 : index
    %c0_389 = arith.constant 0 : index
    %832 = vector.load %arg13[%c4_387, %c0_388, %c0_389] : memref<6x128x32xbf16, #tpu.memory_space<vmem>>, vector<1x128x32xbf16>
    %833 = vector.shape_cast %832 : vector<1x128x32xbf16> to vector<128x32xbf16>
    %834 = arith.truncf %831 : vector<16x128xf32> to vector<16x128xbf16>
    %cst_390 = arith.constant dense<0.000000e+00> : vector<16x32xf32>
    %835 = tpu.matmul %834, %833, %cst_390 {dimension_numbers = #tpu.dot_dimension_numbers<[1], [0], [0], [1], [0, 0, 1, 1], [], []>} : vector<16x128xbf16>, vector<128x32xbf16>, vector<16x32xf32> -> vector<16x32xf32>
    %836 = arith.addf %784, %835 : vector<16x32xf32>
    %c4_391 = arith.constant 4 : index
    %c0_392 = arith.constant 0 : index
    %c0_393 = arith.constant 0 : index
    %837 = vector.load %arg14[%c4_391, %c0_392, %c0_393] : memref<6x1x32xf32, #tpu.memory_space<vmem>>, vector<1x1x32xf32>
    %838 = vector.shape_cast %837 : vector<1x1x32xf32> to vector<1x32xf32>
    %839 = vector.broadcast %838 : vector<1x32xf32> to vector<16x32xf32>
    %840 = arith.addf %836, %839 : vector<16x32xf32>
    %c5_394 = arith.constant 5 : index
    %c0_395 = arith.constant 0 : index
    %c0_396 = arith.constant 0 : index
    %841 = vector.load %arg3[%c5_394, %c0_395, %c0_396] : memref<6x1x32xf32, #tpu.memory_space<vmem>>, vector<1x1x32xf32>
    %842 = vector.shape_cast %841 : vector<1x1x32xf32> to vector<1x32xf32>
    %c5_397 = arith.constant 5 : index
    %c0_398 = arith.constant 0 : index
    %c0_399 = arith.constant 0 : index
    %843 = vector.load %arg4[%c5_397, %c0_398, %c0_399] : memref<6x1x32xf32, #tpu.memory_space<vmem>>, vector<1x1x32xf32>
    %844 = vector.shape_cast %843 : vector<1x1x32xf32> to vector<1x32xf32>
    %cst_400 = arith.constant dense<0.000000e+00> : vector<16xf32>
    %845 = vector.multi_reduction <add>, %840, %cst_400 [1] : vector<16x32xf32> to vector<16xf32>
    %846 = vector.shape_cast %845 : vector<16xf32> to vector<16x1xf32>
    %cst_401 = arith.constant 3.200000e+01 : f32
    %847 = vector.broadcast %cst_401 : f32 to vector<16x1xf32>
    %848 = arith.divf %846, %847 : vector<16x1xf32>
    %849 = vector.broadcast %848 : vector<16x1xf32> to vector<16x32xf32>
    %850 = arith.subf %840, %849 : vector<16x32xf32>
    %851 = arith.mulf %850, %850 : vector<16x32xf32>
    %cst_402 = arith.constant dense<0.000000e+00> : vector<16xf32>
    %852 = vector.multi_reduction <add>, %851, %cst_402 [1] : vector<16x32xf32> to vector<16xf32>
    %853 = vector.shape_cast %852 : vector<16xf32> to vector<16x1xf32>
    %cst_403 = arith.constant 3.200000e+01 : f32
    %854 = vector.broadcast %cst_403 : f32 to vector<16x1xf32>
    %855 = arith.divf %853, %854 : vector<16x1xf32>
    %856 = vector.broadcast %848 : vector<16x1xf32> to vector<16x32xf32>
    %857 = arith.subf %840, %856 : vector<16x32xf32>
    %cst_404 = arith.constant 9.99999974E-6 : f32
    %858 = vector.broadcast %cst_404 : f32 to vector<16x1xf32>
    %859 = arith.addf %855, %858 : vector<16x1xf32>
    %860 = math.rsqrt %859 : vector<16x1xf32>
    %861 = vector.broadcast %860 : vector<16x1xf32> to vector<16x32xf32>
    %862 = arith.mulf %857, %861 : vector<16x32xf32>
    %863 = vector.broadcast %842 : vector<1x32xf32> to vector<16x32xf32>
    %864 = arith.mulf %862, %863 : vector<16x32xf32>
    %865 = vector.broadcast %844 : vector<1x32xf32> to vector<16x32xf32>
    %866 = arith.addf %864, %865 : vector<16x32xf32>
    %c5_405 = arith.constant 5 : index
    %c0_406 = arith.constant 0 : index
    %c0_407 = arith.constant 0 : index
    %867 = vector.load %arg5[%c5_405, %c0_406, %c0_407] : memref<6x32x96xbf16, #tpu.memory_space<vmem>>, vector<1x32x96xbf16>
    %868 = vector.shape_cast %867 : vector<1x32x96xbf16> to vector<32x96xbf16>
    %869 = arith.truncf %866 : vector<16x32xf32> to vector<16x32xbf16>
    %cst_408 = arith.constant dense<0.000000e+00> : vector<16x96xf32>
    %870 = tpu.matmul %869, %868, %cst_408 {dimension_numbers = #tpu.dot_dimension_numbers<[1], [0], [0], [1], [0, 0, 1, 1], [], []>} : vector<16x32xbf16>, vector<32x96xbf16>, vector<16x96xf32> -> vector<16x96xf32>
    %c5_409 = arith.constant 5 : index
    %c0_410 = arith.constant 0 : index
    %c0_411 = arith.constant 0 : index
    %871 = vector.load %arg6[%c5_409, %c0_410, %c0_411] : memref<6x1x96xf32, #tpu.memory_space<vmem>>, vector<1x1x96xf32>
    %872 = vector.shape_cast %871 : vector<1x1x96xf32> to vector<1x96xf32>
    %873 = vector.broadcast %872 : vector<1x96xf32> to vector<16x96xf32>
    %874 = arith.addf %870, %873 : vector<16x96xf32>
    %875 = vector.extract_strided_slice %874 {offsets = [0, 0], sizes = [16, 8], strides = [1, 1]} : vector<16x96xf32> to vector<16x8xf32>
    %876 = vector.extract_strided_slice %874 {offsets = [0, 8], sizes = [16, 8], strides = [1, 1]} : vector<16x96xf32> to vector<16x8xf32>
    %877 = vector.extract_strided_slice %874 {offsets = [0, 16], sizes = [16, 8], strides = [1, 1]} : vector<16x96xf32> to vector<16x8xf32>
    %878 = vector.extract_strided_slice %874 {offsets = [0, 24], sizes = [16, 8], strides = [1, 1]} : vector<16x96xf32> to vector<16x8xf32>
    %879 = vector.shape_cast %875 : vector<16x8xf32> to vector<1x16x8xf32>
    %880 = vector.shape_cast %876 : vector<16x8xf32> to vector<1x16x8xf32>
    %881 = vector.shape_cast %877 : vector<16x8xf32> to vector<1x16x8xf32>
    %882 = vector.shape_cast %878 : vector<16x8xf32> to vector<1x16x8xf32>
    %883 = tpu.concatenate %879, %880, %881, %882 in 0 : vector<1x16x8xf32>, vector<1x16x8xf32>, vector<1x16x8xf32>, vector<1x16x8xf32> -> vector<4x16x8xf32>
    %884 = vector.extract_strided_slice %874 {offsets = [0, 32], sizes = [16, 8], strides = [1, 1]} : vector<16x96xf32> to vector<16x8xf32>
    %885 = vector.extract_strided_slice %874 {offsets = [0, 40], sizes = [16, 8], strides = [1, 1]} : vector<16x96xf32> to vector<16x8xf32>
    %886 = vector.extract_strided_slice %874 {offsets = [0, 48], sizes = [16, 8], strides = [1, 1]} : vector<16x96xf32> to vector<16x8xf32>
    %887 = vector.extract_strided_slice %874 {offsets = [0, 56], sizes = [16, 8], strides = [1, 1]} : vector<16x96xf32> to vector<16x8xf32>
    %888 = vector.shape_cast %884 : vector<16x8xf32> to vector<1x16x8xf32>
    %889 = vector.shape_cast %885 : vector<16x8xf32> to vector<1x16x8xf32>
    %890 = vector.shape_cast %886 : vector<16x8xf32> to vector<1x16x8xf32>
    %891 = vector.shape_cast %887 : vector<16x8xf32> to vector<1x16x8xf32>
    %892 = tpu.concatenate %888, %889, %890, %891 in 0 : vector<1x16x8xf32>, vector<1x16x8xf32>, vector<1x16x8xf32>, vector<1x16x8xf32> -> vector<4x16x8xf32>
    %893 = vector.extract_strided_slice %874 {offsets = [0, 64], sizes = [16, 8], strides = [1, 1]} : vector<16x96xf32> to vector<16x8xf32>
    %894 = vector.extract_strided_slice %874 {offsets = [0, 72], sizes = [16, 8], strides = [1, 1]} : vector<16x96xf32> to vector<16x8xf32>
    %895 = vector.extract_strided_slice %874 {offsets = [0, 80], sizes = [16, 8], strides = [1, 1]} : vector<16x96xf32> to vector<16x8xf32>
    %896 = vector.extract_strided_slice %874 {offsets = [0, 88], sizes = [16, 8], strides = [1, 1]} : vector<16x96xf32> to vector<16x8xf32>
    %897 = vector.shape_cast %893 : vector<16x8xf32> to vector<1x16x8xf32>
    %898 = vector.shape_cast %894 : vector<16x8xf32> to vector<1x16x8xf32>
    %899 = vector.shape_cast %895 : vector<16x8xf32> to vector<1x16x8xf32>
    %900 = vector.shape_cast %896 : vector<16x8xf32> to vector<1x16x8xf32>
    %901 = tpu.concatenate %897, %898, %899, %900 in 0 : vector<1x16x8xf32>, vector<1x16x8xf32>, vector<1x16x8xf32>, vector<1x16x8xf32> -> vector<4x16x8xf32>
    "tpu.trace_start"() <{level = 10 : i32, message = "hqd,hkd->hqk"}> : () -> ()
    %cst_412 = arith.constant dense<0.000000e+00> : vector<4x16x16xf32>
    %902 = tpu.matmul %883, %892, %cst_412 {dimension_numbers = #tpu.dot_dimension_numbers<[2], [2], [1], [1], [0, 0, 0, 1, 1, 1], [0], [0]>} : vector<4x16x8xf32>, vector<4x16x8xf32>, vector<4x16x16xf32> -> vector<4x16x16xf32>
    "tpu.trace_stop"() : () -> ()
    %cst_413 = arith.constant 0.353553385 : f32
    %903 = vector.broadcast %cst_413 : f32 to vector<4x16x16xf32>
    %904 = arith.mulf %902, %903 : vector<4x16x16xf32>
    %905 = vector.shape_cast %65 : vector<16x16xf32> to vector<1x16x16xf32>
    %906 = vector.broadcast %905 : vector<1x16x16xf32> to vector<4x16x16xf32>
    %907 = arith.addf %904, %906 : vector<4x16x16xf32>
    %cst_414 = arith.constant dense<0xFF800000> : vector<4x16xf32>
    %908 = vector.multi_reduction <maximumf>, %907, %cst_414 [2] : vector<4x16x16xf32> to vector<4x16xf32>
    %909 = vector.shape_cast %908 : vector<4x16xf32> to vector<4x16x1xf32>
    %910 = vector.broadcast %909 : vector<4x16x1xf32> to vector<4x16x16xf32>
    %911 = arith.subf %907, %910 : vector<4x16x16xf32>
    %912 = math.exp %911 : vector<4x16x16xf32>
    %cst_415 = arith.constant dense<0.000000e+00> : vector<4x16xf32>
    %913 = vector.multi_reduction <add>, %912, %cst_415 [2] : vector<4x16x16xf32> to vector<4x16xf32>
    %914 = vector.shape_cast %913 : vector<4x16xf32> to vector<4x16x1xf32>
    %915 = vector.broadcast %914 : vector<4x16x1xf32> to vector<4x16x16xf32>
    %916 = arith.divf %912, %915 : vector<4x16x16xf32>
    "tpu.trace_start"() <{level = 10 : i32, message = "hqk,hkd->hqd"}> : () -> ()
    %cst_416 = arith.constant dense<0.000000e+00> : vector<4x16x8xf32>
    %917 = tpu.matmul %916, %901, %cst_416 {dimension_numbers = #tpu.dot_dimension_numbers<[2], [1], [1], [2], [0, 0, 0, 1, 1, 2], [0], [0]>} : vector<4x16x16xf32>, vector<4x16x8xf32>, vector<4x16x8xf32> -> vector<4x16x8xf32>
    "tpu.trace_stop"() : () -> ()
    %918 = vector.extract_strided_slice %917 {offsets = [0, 0, 0], sizes = [1, 16, 8], strides = [1, 1, 1]} : vector<4x16x8xf32> to vector<1x16x8xf32>
    %919 = vector.shape_cast %918 : vector<1x16x8xf32> to vector<16x8xf32>
    %c0_417 = arith.constant 0 : index
    %c0_418 = arith.constant 0 : index
    %920 = vector.load %arg17[%c0_417, %c0_418] : memref<16x32xf32, #tpu.memory_space<vmem>>, vector<16x8xf32>
    tpu.vector_store %arg17[%c0_417, %c0_418], %919 {strides = array<i32>} : memref<16x32xf32, #tpu.memory_space<vmem>>, vector<16x8xf32>,
    %921 = vector.extract_strided_slice %917 {offsets = [1, 0, 0], sizes = [1, 16, 8], strides = [1, 1, 1]} : vector<4x16x8xf32> to vector<1x16x8xf32>
    %922 = vector.shape_cast %921 : vector<1x16x8xf32> to vector<16x8xf32>
    %c0_419 = arith.constant 0 : index
    %c8_420 = arith.constant 8 : index
    %923 = vector.load %arg17[%c0_419, %c8_420] : memref<16x32xf32, #tpu.memory_space<vmem>>, vector<16x8xf32>
    tpu.vector_store %arg17[%c0_419, %c8_420], %922 {strides = array<i32>} : memref<16x32xf32, #tpu.memory_space<vmem>>, vector<16x8xf32>,
    %924 = vector.extract_strided_slice %917 {offsets = [2, 0, 0], sizes = [1, 16, 8], strides = [1, 1, 1]} : vector<4x16x8xf32> to vector<1x16x8xf32>
    %925 = vector.shape_cast %924 : vector<1x16x8xf32> to vector<16x8xf32>
    %c0_421 = arith.constant 0 : index
    %c16_422 = arith.constant 16 : index
    %926 = vector.load %arg17[%c0_421, %c16_422] : memref<16x32xf32, #tpu.memory_space<vmem>>, vector<16x8xf32>
    tpu.vector_store %arg17[%c0_421, %c16_422], %925 {strides = array<i32>} : memref<16x32xf32, #tpu.memory_space<vmem>>, vector<16x8xf32>,
    %927 = vector.extract_strided_slice %917 {offsets = [3, 0, 0], sizes = [1, 16, 8], strides = [1, 1, 1]} : vector<4x16x8xf32> to vector<1x16x8xf32>
    %928 = vector.shape_cast %927 : vector<1x16x8xf32> to vector<16x8xf32>
    %c0_423 = arith.constant 0 : index
    %c24_424 = arith.constant 24 : index
    %929 = vector.load %arg17[%c0_423, %c24_424] : memref<16x32xf32, #tpu.memory_space<vmem>>, vector<16x8xf32>
    tpu.vector_store %arg17[%c0_423, %c24_424], %928 {strides = array<i32>} : memref<16x32xf32, #tpu.memory_space<vmem>>, vector<16x8xf32>,
    %c0_425 = arith.constant 0 : index
    %c0_426 = arith.constant 0 : index
    %930 = vector.load %arg17[%c0_425, %c0_426] : memref<16x32xf32, #tpu.memory_space<vmem>>, vector<16x32xf32>
    %c5_427 = arith.constant 5 : index
    %c0_428 = arith.constant 0 : index
    %c0_429 = arith.constant 0 : index
    %931 = vector.load %arg7[%c5_427, %c0_428, %c0_429] : memref<6x32x32xbf16, #tpu.memory_space<vmem>>, vector<1x32x32xbf16>
    %932 = vector.shape_cast %931 : vector<1x32x32xbf16> to vector<32x32xbf16>
    %933 = arith.truncf %930 : vector<16x32xf32> to vector<16x32xbf16>
    %cst_430 = arith.constant dense<0.000000e+00> : vector<16x32xf32>
    %934 = tpu.matmul %933, %932, %cst_430 {dimension_numbers = #tpu.dot_dimension_numbers<[1], [0], [0], [1], [0, 0, 1, 1], [], []>} : vector<16x32xbf16>, vector<32x32xbf16>, vector<16x32xf32> -> vector<16x32xf32>
    %935 = arith.addf %840, %934 : vector<16x32xf32>
    %c5_431 = arith.constant 5 : index
    %c0_432 = arith.constant 0 : index
    %c0_433 = arith.constant 0 : index
    %936 = vector.load %arg8[%c5_431, %c0_432, %c0_433] : memref<6x1x32xf32, #tpu.memory_space<vmem>>, vector<1x1x32xf32>
    %937 = vector.shape_cast %936 : vector<1x1x32xf32> to vector<1x32xf32>
    %938 = vector.broadcast %937 : vector<1x32xf32> to vector<16x32xf32>
    %939 = arith.addf %935, %938 : vector<16x32xf32>
    %c5_434 = arith.constant 5 : index
    %c0_435 = arith.constant 0 : index
    %c0_436 = arith.constant 0 : index
    %940 = vector.load %arg9[%c5_434, %c0_435, %c0_436] : memref<6x1x32xf32, #tpu.memory_space<vmem>>, vector<1x1x32xf32>
    %941 = vector.shape_cast %940 : vector<1x1x32xf32> to vector<1x32xf32>
    %c5_437 = arith.constant 5 : index
    %c0_438 = arith.constant 0 : index
    %c0_439 = arith.constant 0 : index
    %942 = vector.load %arg10[%c5_437, %c0_438, %c0_439] : memref<6x1x32xf32, #tpu.memory_space<vmem>>, vector<1x1x32xf32>
    %943 = vector.shape_cast %942 : vector<1x1x32xf32> to vector<1x32xf32>
    %cst_440 = arith.constant dense<0.000000e+00> : vector<16xf32>
    %944 = vector.multi_reduction <add>, %939, %cst_440 [1] : vector<16x32xf32> to vector<16xf32>
    %945 = vector.shape_cast %944 : vector<16xf32> to vector<16x1xf32>
    %cst_441 = arith.constant 3.200000e+01 : f32
    %946 = vector.broadcast %cst_441 : f32 to vector<16x1xf32>
    %947 = arith.divf %945, %946 : vector<16x1xf32>
    %948 = vector.broadcast %947 : vector<16x1xf32> to vector<16x32xf32>
    %949 = arith.subf %939, %948 : vector<16x32xf32>
    %950 = arith.mulf %949, %949 : vector<16x32xf32>
    %cst_442 = arith.constant dense<0.000000e+00> : vector<16xf32>
    %951 = vector.multi_reduction <add>, %950, %cst_442 [1] : vector<16x32xf32> to vector<16xf32>
    %952 = vector.shape_cast %951 : vector<16xf32> to vector<16x1xf32>
    %cst_443 = arith.constant 3.200000e+01 : f32
    %953 = vector.broadcast %cst_443 : f32 to vector<16x1xf32>
    %954 = arith.divf %952, %953 : vector<16x1xf32>
    %955 = vector.broadcast %947 : vector<16x1xf32> to vector<16x32xf32>
    %956 = arith.subf %939, %955 : vector<16x32xf32>
    %cst_444 = arith.constant 9.99999974E-6 : f32
    %957 = vector.broadcast %cst_444 : f32 to vector<16x1xf32>
    %958 = arith.addf %954, %957 : vector<16x1xf32>
    %959 = math.rsqrt %958 : vector<16x1xf32>
    %960 = vector.broadcast %959 : vector<16x1xf32> to vector<16x32xf32>
    %961 = arith.mulf %956, %960 : vector<16x32xf32>
    %962 = vector.broadcast %941 : vector<1x32xf32> to vector<16x32xf32>
    %963 = arith.mulf %961, %962 : vector<16x32xf32>
    %964 = vector.broadcast %943 : vector<1x32xf32> to vector<16x32xf32>
    %965 = arith.addf %963, %964 : vector<16x32xf32>
    %c5_445 = arith.constant 5 : index
    %c0_446 = arith.constant 0 : index
    %c0_447 = arith.constant 0 : index
    %966 = vector.load %arg11[%c5_445, %c0_446, %c0_447] : memref<6x32x128xbf16, #tpu.memory_space<vmem>>, vector<1x32x128xbf16>
    %967 = vector.shape_cast %966 : vector<1x32x128xbf16> to vector<32x128xbf16>
    %968 = arith.truncf %965 : vector<16x32xf32> to vector<16x32xbf16>
    %cst_448 = arith.constant dense<0.000000e+00> : vector<16x128xf32>
    %969 = tpu.matmul %968, %967, %cst_448 {dimension_numbers = #tpu.dot_dimension_numbers<[1], [0], [0], [1], [0, 0, 1, 1], [], []>} : vector<16x32xbf16>, vector<32x128xbf16>, vector<16x128xf32> -> vector<16x128xf32>
    %c5_449 = arith.constant 5 : index
    %c0_450 = arith.constant 0 : index
    %c0_451 = arith.constant 0 : index
    %970 = vector.load %arg12[%c5_449, %c0_450, %c0_451] : memref<6x1x128xf32, #tpu.memory_space<vmem>>, vector<1x1x128xf32>
    %971 = vector.shape_cast %970 : vector<1x1x128xf32> to vector<1x128xf32>
    %972 = vector.broadcast %971 : vector<1x128xf32> to vector<16x128xf32>
    %973 = arith.addf %969, %972 : vector<16x128xf32>
    %cst_452 = arith.constant 5.000000e-01 : f32
    %974 = vector.broadcast %cst_452 : f32 to vector<16x128xf32>
    %975 = arith.mulf %974, %973 : vector<16x128xf32>
    %cst_453 = arith.constant 4.471500e-02 : f32
    %976 = vector.broadcast %cst_453 : f32 to vector<16x128xf32>
    %977 = arith.mulf %976, %973 : vector<16x128xf32>
    %978 = arith.mulf %977, %973 : vector<16x128xf32>
    %979 = arith.mulf %978, %973 : vector<16x128xf32>
    %980 = arith.addf %973, %979 : vector<16x128xf32>
    %cst_454 = arith.constant 0.797884583 : f32
    %981 = vector.broadcast %cst_454 : f32 to vector<16x128xf32>
    %982 = arith.mulf %981, %980 : vector<16x128xf32>
    %983 = math.tanh %982 : vector<16x128xf32>
    %cst_455 = arith.constant 1.000000e+00 : f32
    %984 = vector.broadcast %cst_455 : f32 to vector<16x128xf32>
    %985 = arith.addf %984, %983 : vector<16x128xf32>
    %986 = arith.mulf %975, %985 : vector<16x128xf32>
    %c5_456 = arith.constant 5 : index
    %c0_457 = arith.constant 0 : index
    %c0_458 = arith.constant 0 : index
    %987 = vector.load %arg13[%c5_456, %c0_457, %c0_458] : memref<6x128x32xbf16, #tpu.memory_space<vmem>>, vector<1x128x32xbf16>
    %988 = vector.shape_cast %987 : vector<1x128x32xbf16> to vector<128x32xbf16>
    %989 = arith.truncf %986 : vector<16x128xf32> to vector<16x128xbf16>
    %cst_459 = arith.constant dense<0.000000e+00> : vector<16x32xf32>
    %990 = tpu.matmul %989, %988, %cst_459 {dimension_numbers = #tpu.dot_dimension_numbers<[1], [0], [0], [1], [0, 0, 1, 1], [], []>} : vector<16x128xbf16>, vector<128x32xbf16>, vector<16x32xf32> -> vector<16x32xf32>
    %991 = arith.addf %939, %990 : vector<16x32xf32>
    %c5_460 = arith.constant 5 : index
    %c0_461 = arith.constant 0 : index
    %c0_462 = arith.constant 0 : index
    %992 = vector.load %arg14[%c5_460, %c0_461, %c0_462] : memref<6x1x32xf32, #tpu.memory_space<vmem>>, vector<1x1x32xf32>
    %993 = vector.shape_cast %992 : vector<1x1x32xf32> to vector<1x32xf32>
    %994 = vector.broadcast %993 : vector<1x32xf32> to vector<16x32xf32>
    %995 = arith.addf %991, %994 : vector<16x32xf32>
    %c0_463 = arith.constant 0 : index
    %c0_464 = arith.constant 0 : index
    %996 = vector.load %arg15[%c0_463, %c0_464] : memref<16x32xf32, #tpu.memory_space<vmem>>, vector<16x32xf32>
    tpu.vector_store %arg15[%c0_463, %c0_464], %995 {strides = array<i32>} : memref<16x32xf32, #tpu.memory_space<vmem>>, vector<16x32xf32>,
    return
  }
}

</mosaic_0001>

<llo_original>
// kernel: tpu_custom_call.1
$region0: #{tpu_custom_call.1}
  #allocation0 [shape = 'u32[]', space=smem, size = 0x4, offset = 0x4, fixed_abs, tag = 'smem constant byte address 0x4 - core index']
  #allocation1 [shape = 'u32[144,128]{1,0:T(1,128)}', space=vmem, size = 0x12000, scoped, tag = 'internal scratch']
  #allocation2 [shape = 'f32[16,32]{1,0:T(8,128)}', space=vmem, size = 0x2000, scoped, tag = 'scratch operand']
  #allocation3 [shape = 'f32[16,32]{1,0:T(8,128)}', space=vmem, size = 0x2000, scoped, tag = 'scratch operand']
  %s0 = inlined_call_operand.vmem [shape: s32[16], index: 0, kind: input, shape index: {}]
  %s1 = inlined_call_operand.vmem [shape: f32[128,32], index: 1, kind: input, shape index: {}]
  %s2 = inlined_call_operand.vmem [shape: f32[16,16], index: 2, kind: input, shape index: {}]
  %s3 = inlined_call_operand.vmem [shape: f32[6,1,32], index: 3, kind: input, shape index: {}]
  %s4 = inlined_call_operand.vmem [shape: f32[6,1,32], index: 4, kind: input, shape index: {}]
  %s5 = inlined_call_operand.vmem [shape: bf16[6,32,96], index: 5, kind: input, shape index: {}]
  %s6 = inlined_call_operand.vmem [shape: f32[6,1,96], index: 6, kind: input, shape index: {}]
  %s7 = inlined_call_operand.vmem [shape: bf16[6,32,32], index: 7, kind: input, shape index: {}]
  %s8 = inlined_call_operand.vmem [shape: f32[6,1,32], index: 8, kind: input, shape index: {}]
  %s9 = inlined_call_operand.vmem [shape: f32[6,1,32], index: 9, kind: input, shape index: {}]
  %s10 = inlined_call_operand.vmem [shape: f32[6,1,32], index: 10, kind: input, shape index: {}]
  %s11 = inlined_call_operand.vmem [shape: bf16[6,32,128], index: 11, kind: input, shape index: {}]
  %s12 = inlined_call_operand.vmem [shape: f32[6,1,128], index: 12, kind: input, shape index: {}]
  %s13 = inlined_call_operand.vmem [shape: bf16[6,128,32], index: 13, kind: input, shape index: {}]
  %s14 = inlined_call_operand.vmem [shape: f32[6,1,32], index: 14, kind: input, shape index: {}]
  %s15 = inlined_call_operand.hbm [shape: f32[16,32], index: 15, kind: output, shape index: {}]
  %s16 = sld [smem:[#allocation0]]
  $region74: #{tpu_custom_call.1} parent=0
    _
  %s18 = ssub.s32 1, %s16
  %s19 = scalar_select 0, %s18, %s16
  $region1: #{tpu_custom_call.1} parent=0
    #allocation4 [shape = 'u8[512]{0}', space=smem, size = 0x200, scoped, tag = 'input window, operand 0, single buffered']
    #allocation5 [shape = 's32[1]{0}', space=sflag, size = 0x4, scoped, tag = 'scoped memory for tpu_custom_call.1']
    #allocation6 [shape = 's32[1]{0}', space=sflag, size = 0x4, scoped, tag = 'scoped memory for tpu_custom_call.1']
    #allocation7 [shape = 'u8[8192]{0}', space=vmem, size = 0x2000, scoped, tag = 'output window, operand 0, single buffered']
    %20 = vsyncpa [#allocation6], 0
    %21 = vsyncpa [#allocation5], 0
    // Predicated region
    $region2: #{tpu_custom_call.1} parent=1 // pred_check
      _
    $region3: #{tpu_custom_call.1} parent=1 // pred_check_branch
      %23 = sbr.rel (0) target = $region5
    $region4: #{tpu_custom_call.1} parent=1 // pred_region
      %s25 = ssub.s32 16, 16
      %26 = vsyncadd [#allocation6], %s25
      %s28 = sshll.u32 %s0, 4
      %s29 = int_to_ptr.vmem [resolvable:$true] %s28
      %31 = dma.vmem_to_smem %s29, 16, [#allocation4], [#allocation6]
    $region5: #{tpu_custom_call.1} parent=1 // pred_fallthru
      _
    // Predicated region
    $region6: #{tpu_custom_call.1} parent=1 // pred_check
      _
    $region7: #{tpu_custom_call.1} parent=1 // pred_check_branch
      %33 = sbr.rel (0) target = $region9
    $region8: #{tpu_custom_call.1} parent=1 // pred_region
      _
    $region9: #{tpu_custom_call.1} parent=1 // pred_fallthru
      _
    // Predicated region
    $region10: #{tpu_custom_call.1} parent=1 // pred_check
      _
    $region11: #{tpu_custom_call.1} parent=1 // pred_check_branch
      %35 = sbr.rel (0) target = $region13
    $region12: #{tpu_custom_call.1} parent=1 // pred_region
      _
    $region13: #{tpu_custom_call.1} parent=1 // pred_fallthru
      _
    // Predicated region
    $region14: #{tpu_custom_call.1} parent=1 // pred_check
      _
    $region15: #{tpu_custom_call.1} parent=1 // pred_check_branch
      %37 = sbr.rel (0) target = $region17
    $region16: #{tpu_custom_call.1} parent=1 // pred_region
      _
    $region17: #{tpu_custom_call.1} parent=1 // pred_fallthru
      _
    // Predicated region
    $region18: #{tpu_custom_call.1} parent=1 // pred_check
      _
    $region19: #{tpu_custom_call.1} parent=1 // pred_check_branch
      %39 = sbr.rel (0) target = $region21
    $region20: #{tpu_custom_call.1} parent=1 // pred_region
      _
    $region21: #{tpu_custom_call.1} parent=1 // pred_fallthru
      _
    // Predicated region
    $region22: #{tpu_custom_call.1} parent=1 // pred_check
      _
    $region23: #{tpu_custom_call.1} parent=1 // pred_check_branch
      %41 = sbr.rel (0) target = $region25
    $region24: #{tpu_custom_call.1} parent=1 // pred_region
      _
    $region25: #{tpu_custom_call.1} parent=1 // pred_fallthru
      _
    // Predicated region
    $region26: #{tpu_custom_call.1} parent=1 // pred_check
      _
    $region27: #{tpu_custom_call.1} parent=1 // pred_check_branch
      %43 = sbr.rel (0) target = $region29
    $region28: #{tpu_custom_call.1} parent=1 // pred_region
      _
    $region29: #{tpu_custom_call.1} parent=1 // pred_fallthru
      _
    // Predicated region
    $region30: #{tpu_custom_call.1} parent=1 // pred_check
      _
    $region31: #{tpu_custom_call.1} parent=1 // pred_check_branch
      %45 = sbr.rel (0) target = $region33
    $region32: #{tpu_custom_call.1} parent=1 // pred_region
      _
    $region33: #{tpu_custom_call.1} parent=1 // pred_fallthru
      _
    // Predicated region
    $region34: #{tpu_custom_call.1} parent=1 // pred_check
      _
    $region35: #{tpu_custom_call.1} parent=1 // pred_check_branch
      %47 = sbr.rel (0) target = $region37
    $region36: #{tpu_custom_call.1} parent=1 // pred_region
      _
    $region37: #{tpu_custom_call.1} parent=1 // pred_fallthru
      _
    // Predicated region
    $region38: #{tpu_custom_call.1} parent=1 // pred_check
      _
    $region39: #{tpu_custom_call.1} parent=1 // pred_check_branch
      %49 = sbr.rel (0) target = $region41
    $region40: #{tpu_custom_call.1} parent=1 // pred_region
      _
    $region41: #{tpu_custom_call.1} parent=1 // pred_fallthru
      _
    // Predicated region
    $region42: #{tpu_custom_call.1} parent=1 // pred_check
      _
    $region43: #{tpu_custom_call.1} parent=1 // pred_check_branch
      %51 = sbr.rel (0) target = $region45
    $region44: #{tpu_custom_call.1} parent=1 // pred_region
      _
    $region45: #{tpu_custom_call.1} parent=1 // pred_fallthru
      _
    // Predicated region
    $region46: #{tpu_custom_call.1} parent=1 // pred_check
      _
    $region47: #{tpu_custom_call.1} parent=1 // pred_check_branch
      %53 = sbr.rel (0) target = $region49
    $region48: #{tpu_custom_call.1} parent=1 // pred_region
      _
    $region49: #{tpu_custom_call.1} parent=1 // pred_fallthru
      _
    // Predicated region
    $region50: #{tpu_custom_call.1} parent=1 // pred_check
      _
    $region51: #{tpu_custom_call.1} parent=1 // pred_check_branch
      %55 = sbr.rel (0) target = $region53
    $region52: #{tpu_custom_call.1} parent=1 // pred_region
      _
    $region53: #{tpu_custom_call.1} parent=1 // pred_fallthru
      _
    // Predicated region
    $region54: #{tpu_custom_call.1} parent=1 // pred_check
      _
    $region55: #{tpu_custom_call.1} parent=1 // pred_check_branch
      %57 = sbr.rel (0) target = $region57
    $region56: #{tpu_custom_call.1} parent=1 // pred_region
      _
    $region57: #{tpu_custom_call.1} parent=1 // pred_fallthru
      _
    // Predicated region
    $region58: #{tpu_custom_call.1} parent=1 // pred_check
      _
    $region59: #{tpu_custom_call.1} parent=1 // pred_check_branch
      %59 = sbr.rel (0) target = $region61
    $region60: #{tpu_custom_call.1} parent=1 // pred_region
      _
    $region61: #{tpu_custom_call.1} parent=1 // pred_fallthru
      _
    // Predicated region
    $region62: #{tpu_custom_call.1} parent=1 // pred_check
      _
    $region63: #{tpu_custom_call.1} parent=1 // pred_check_branch
      %61 = sbr.rel (0) target = $region65
    $region64: #{tpu_custom_call.1} parent=1 // pred_region
      %62 = dma.done [#allocation6], 16
    $region65: #{tpu_custom_call.1} parent=1 // pred_fallthru
      _
    %63 = sfence
    %s65 = sld [smem:[#allocation4]]
    %s66 = scalar_lea.vmem %s1, %s65
    %v67 = vld [vmem:[%s66] sm:$0x1]
    %vm68 = vcmask 253952
    %69 = vst.msk [vmem:[#allocation2] sm:$0x1] %vm68, %v67
    %s70 = sld [smem:[#allocation4 + $0x1]]
    %s71 = scalar_lea.vmem %s1, %s70
    %v72 = vld [vmem:[%s71] sm:$0x1]
    %73 = vst.msk [vmem:[#allocation2 + $0x1] sm:$0x1] %vm68, %v72
    %s74 = sld [smem:[#allocation4 + $0x2]]
    %s75 = scalar_lea.vmem %s1, %s74
    %v76 = vld [vmem:[%s75] sm:$0x1]
    %77 = vst.msk [vmem:[#allocation2 + $0x2] sm:$0x1] %vm68, %v76
    %s78 = sld [smem:[#allocation4 + $0x3]]
    %s79 = scalar_lea.vmem %s1, %s78
    %v80 = vld [vmem:[%s79] sm:$0x1]
    %81 = vst.msk [vmem:[#allocation2 + $0x3] sm:$0x1] %vm68, %v80
    %s82 = sld [smem:[#allocation4 + $0x4]]
    %s83 = scalar_lea.vmem %s1, %s82
    %v84 = vld [vmem:[%s83] sm:$0x1]
    %85 = vst.msk [vmem:[#allocation2 + $0x4] sm:$0x1] %vm68, %v84
    %s86 = sld [smem:[#allocation4 + $0x5]]
    %s87 = scalar_lea.vmem %s1, %s86
    %v88 = vld [vmem:[%s87] sm:$0x1]
    %89 = vst.msk [vmem:[#allocation2 + $0x5] sm:$0x1] %vm68, %v88
    %s90 = sld [smem:[#allocation4 + $0x6]]
    %s91 = scalar_lea.vmem %s1, %s90
    %v92 = vld [vmem:[%s91] sm:$0x1]
    %93 = vst.msk [vmem:[#allocation2 + $0x6] sm:$0x1] %vm68, %v92
    %s94 = sld [smem:[#allocation4 + $0x7]]
    %s95 = scalar_lea.vmem %s1, %s94
    %v96 = vld [vmem:[%s95] sm:$0x1]
    %97 = vst.msk [vmem:[#allocation2 + $0x7] sm:$0x1] %vm68, %v96
    %s98 = sld [smem:[#allocation4 + $0x8]]
    %s99 = scalar_lea.vmem %s1, %s98
    %v100 = vld [vmem:[%s99] sm:$0x1]
    %101 = vst.msk [vmem:[#allocation2 + $0x8] sm:$0x1] %vm68, %v100
    %s102 = sld [smem:[#allocation4 + $0x9]]
    %s103 = scalar_lea.vmem %s1, %s102
    %v104 = vld [vmem:[%s103] sm:$0x1]
    %105 = vst.msk [vmem:[#allocation2 + $0x9] sm:$0x1] %vm68, %v104
    %s106 = sld [smem:[#allocation4 + $0xa]]
    %s107 = scalar_lea.vmem %s1, %s106
    %v108 = vld [vmem:[%s107] sm:$0x1]
    %109 = vst.msk [vmem:[#allocation2 + $0xa] sm:$0x1] %vm68, %v108
    %s110 = sld [smem:[#allocation4 + $0xb]]
    %s111 = scalar_lea.vmem %s1, %s110
    %v112 = vld [vmem:[%s111] sm:$0x1]
    %113 = vst.msk [vmem:[#allocation2 + $0xb] sm:$0x1] %vm68, %v112
    %s114 = sld [smem:[#allocation4 + $0xc]]
    %s115 = scalar_lea.vmem %s1, %s114
    %v116 = vld [vmem:[%s115] sm:$0x1]
    %117 = vst.msk [vmem:[#allocation2 + $0xc] sm:$0x1] %vm68, %v116
    %s118 = sld [smem:[#allocation4 + $0xd]]
    %s119 = scalar_lea.vmem %s1, %s118
    %v120 = vld [vmem:[%s119] sm:$0x1]
    %121 = vst.msk [vmem:[#allocation2 + $0xd] sm:$0x1] %vm68, %v120
    %s122 = sld [smem:[#allocation4 + $0xe]]
    %s123 = scalar_lea.vmem %s1, %s122
    %v124 = vld [vmem:[%s123] sm:$0x1]
    %125 = vst.msk [vmem:[#allocation2 + $0xe] sm:$0x1] %vm68, %v124
    %s126 = sld [smem:[#allocation4 + $0xf]]
    %s127 = scalar_lea.vmem %s1, %s126
    %v128 = vld [vmem:[%s127] sm:$0x1]
    %129 = vst.msk [vmem:[#allocation2 + $0xf] sm:$0x1] %vm68, %v128
    %v130 = vld [vmem:[#allocation2] sm:$0xff]
    %v131 = vld [vmem:[#allocation2 + $0x8] sm:$0xff]
    %v132 = vld [vmem:[%s2] sm:$0xff]
    %v133 = vld [vmem:[%s2 + $0x8] sm:$0xff]
    %v134 = vld [vmem:[%s3] sm:$0x1]
    %v135 = vld [vmem:[%s4] sm:$0x1]
    %vm136 = vcmask 261120
    %v137 = vsel %vm136, %v130, 0.0
    %138 = vadd.xlane.f32.xlu0 %v137
    %v139 = vpop.xlane.xlu0 %138
    %v140 = vsel %vm136, %v131, 0.0
    %141 = vadd.xlane.f32.xlu0 %v140
    %v142 = vpop.xlane.xlu0 %141
    %v143 = vrcp.pop 32.0
    %v144 = vmul.f32 %v139, %v143
    %v145 = vmul.f32 %v142, %v143
    %v146 = vsub.f32 %v130, %v144
    %v147 = vsub.f32 %v131, %v145
    %v148 = vmul.f32 %v146, %v146
    %v149 = vmul.f32 %v147, %v147
    %v150 = vsel %vm136, %v148, 0.0
    %151 = vadd.xlane.f32.xlu0 %v150
    %v152 = vpop.xlane.xlu0 %151
    %v153 = vsel %vm136, %v149, 0.0
    %154 = vadd.xlane.f32.xlu0 %v153
    %v155 = vpop.xlane.xlu0 %154
    %v156 = vmul.f32 %v152, %v143
    %v157 = vmul.f32 %v155, %v143
    %v158 = vadd.f32 %v156, 1e-05
    %v159 = vadd.f32 %v157, 1e-05
    %v160 = vrsqrt.pop %v158
    %v161 = vrsqrt.pop %v159
    %v162 = vmul.f32 %v146, %v160
    %v163 = vmul.f32 %v147, %v161
    %v165 = vlaneseq
    %v166 = vshrl.u32 %v165, 7
    %v167 = vsub.s32 0, %v166
    %v168 = vrot.slane %v134, %v167
    %v170 = vmul.f32 %v162, %v168
    %v171 = vmul.f32 %v163, %v168
    %v173 = vlaneseq
    %v174 = vshrl.u32 %v173, 7
    %v175 = vsub.s32 0, %v174
    %v176 = vrot.slane %v135, %v175
    %v178 = vadd.f32 %v170, %v176
    %v179 = vadd.f32 %v171, %v176
    %v180 = vld [vmem:[%s5] sm:$0xf]
    %v181 = vld [vmem:[%s5 + $0x4] sm:$0xf]
    %v182 = vld [vmem:[%s5 + $0x8] sm:$0xf]
    %v183 = vld [vmem:[%s5 + $0xc] sm:$0xf]
    %v184 = vpack.c.bf16 %v179, %v178
    %v185 = vld [vmem:[%s6] sm:$0x1]
    %v187 = vlaneseq
    %v188 = vshrl.u32 %v187, 7
    %v189 = vsub.s32 0, %v188
    %v190 = vrot.slane %v185, %v189
    %v196 = vunpack.c.l.b16 %v180
    %v197 = vunpack.c.l.b16 %v181
    %v198 = vunpack.c.l.b16 %v182
    %v199 = vunpack.c.l.b16 %v183
    %v200 = vpack.c.b16 %v197, %v196
    %v201 = vpack.c.b16 %v199, %v198
    %v205 = vsel %vm136, %v184, 0
    %207 = vmatprep.subr.bf16.mxu0 0
    %208 = vmatpush1.bf16.msra.mxu0 %v200
    %209 = vmatprep.subr.bf16.mxu0 0
    %210 = vmatpush1.bf16.msra.mxu0 %v201
    %211 = vmatprep.subr.bf16.mxu0 0
    %212 = vmatpush1.bf16.msra.mxu0 0
    %213 = vmatprep.subr.bf16.mxu0 0
    %214 = vmatpush1.bf16.msra.mxu0 0
    %215 = vmatprep.subr.bf16.mxu0 0
    %216 = vmatpush1.bf16.msra.mxu0 0
    %217 = vmatprep.subr.bf16.mxu0 0
    %218 = vmatpush1.bf16.msra.mxu0 0
    %219 = vmatprep.subr.bf16.mxu0 0
    %220 = vmatpush1.bf16.msra.mxu0 0
    %221 = vmatprep.subr.bf16.mxu0 0
    %222 = vmatpush1.bf16.msra.mxu0 0
    %223 = vmatprep.subr.bf16.mxu0 0
    %224 = vmatpush1.bf16.msra.mxu0 0
    %225 = vmatprep.subr.bf16.mxu0 0
    %226 = vmatpush1.bf16.msra.mxu0 0
    %227 = vmatprep.subr.bf16.mxu0 0
    %228 = vmatpush1.bf16.msra.mxu0 0
    %229 = vmatprep.subr.bf16.mxu0 0
    %230 = vmatpush1.bf16.msra.mxu0 0
    %231 = vmatprep.subr.bf16.mxu0 0
    %232 = vmatpush1.bf16.msra.mxu0 0
    %233 = vmatprep.subr.bf16.mxu0 0
    %234 = vmatpush1.bf16.msra.mxu0 0
    %235 = vmatprep.subr.bf16.mxu0 0
    %236 = vmatpush1.bf16.msra.mxu0 0
    %237 = vmatprep.subr.bf16.mxu0 0
    %238 = vmatpush1.bf16.msra.mxu0 0
    %239 = vmatprep.mubr.bf16.mxu0 0
    %240 = vmatmul.mubr.bf16.gmra.mrb[0].mxu0 %v205
    %v241 = vpop.f32.mrb[0].mxu0
    %v242 = vadd.f32 %v190, %v241
    %v243 = vpop.f32.mrb[0].mxu0
    %v244 = vpop.f32.mrb[0].mxu0
    %v245 = vadd.f32 %v190, %v244
    %v246 = vpop.f32.mrb[0].mxu0
    %247 = vdwg.mxu0
    %250 = vrot.lane.b32.xlu0 %v242, 120
    %v251 = vpop.permute.xlu0 %250
    %252 = vrot.lane.b32.xlu0 %v245, 120
    %v253 = vpop.permute.xlu0 %252
    %254 = vrot.lane.b32.xlu0 %v242, 112
    %v255 = vpop.permute.xlu0 %254
    %256 = vrot.lane.b32.xlu0 %v245, 112
    %v257 = vpop.permute.xlu0 %256
    %258 = vrot.lane.b32.xlu0 %v242, 104
    %v259 = vpop.permute.xlu0 %258
    %260 = vrot.lane.b32.xlu0 %v245, 104
    %v261 = vpop.permute.xlu0 %260
    %262 = vrot.lane.b32.xlu0 %v242, 96
    %v263 = vpop.permute.xlu0 %262
    %264 = vrot.lane.b32.xlu0 %v245, 96
    %v265 = vpop.permute.xlu0 %264
    %vm266 = vcmask 64512
    %v267 = vsel %vm266, %v242, 0
    %v269 = vsel %vm266, %v245, 0
    %v271 = vsel %vm266, %v263, 0
    %v273 = vsel %vm266, %v265, 0
    %275 = vmatprep.subr.mxu0 0.0
    %276 = vmatpush1.xpose.msra.mxu0 %v271
    %277 = vmatprep.subr.mxu0 0.0
    %278 = vmatpush1.xpose.msra.mxu0 %v273
    %279 = vmatprep.subr.mxu0 0.0
    %280 = vmatpush1.xpose.msra.mxu0 0.0
    %281 = vmatprep.subr.mxu0 0.0
    %282 = vmatpush1.xpose.msra.mxu0 0.0
    %283 = vmatprep.subr.mxu0 0.0
    %284 = vmatpush1.xpose.msra.mxu0 0.0
    %285 = vmatprep.subr.mxu0 0.0
    %286 = vmatpush1.xpose.msra.mxu0 0.0
    %287 = vmatprep.subr.mxu0 0.0
    %288 = vmatpush1.xpose.msra.mxu0 0.0
    %289 = vmatprep.subr.mxu0 0.0
    %290 = vmatpush1.xpose.msra.mxu0 0.0
    %291 = vmatprep.subr.mxu0 0.0
    %292 = vmatpush1.xpose.msra.mxu0 0.0
    %293 = vmatprep.subr.mxu0 0.0
    %294 = vmatpush1.xpose.msra.mxu0 0.0
    %295 = vmatprep.subr.mxu0 0.0
    %296 = vmatpush1.xpose.msra.mxu0 0.0
    %297 = vmatprep.subr.mxu0 0.0
    %298 = vmatpush1.xpose.msra.mxu0 0.0
    %299 = vmatprep.subr.mxu0 0.0
    %300 = vmatpush1.xpose.msra.mxu0 0.0
    %301 = vmatprep.subr.mxu0 0.0
    %302 = vmatpush1.xpose.msra.mxu0 0.0
    %303 = vmatprep.subr.mxu0 0.0
    %304 = vmatpush1.xpose.msra.mxu0 0.0
    %305 = vmatprep.subr.mxu0 0.0
    %306 = vmatpush1.xpose.msra.mxu0 0.0
    %307 = vmatprep.subr.mxu0 0.0
    %308 = vmatpush1.xpose.msra.mxu0 0.0
    %309 = vmatprep.subr.mxu0 0.0
    %310 = vmatpush1.xpose.msra.mxu0 0.0
    %311 = vmatprep.subr.mxu0 0.0
    %312 = vmatpush1.xpose.msra.mxu0 0.0
    %313 = vmatprep.subr.mxu0 0.0
    %314 = vmatpush1.xpose.msra.mxu0 0.0
    %315 = vmatprep.subr.mxu0 0.0
    %316 = vmatpush1.xpose.msra.mxu0 0.0
    %317 = vmatprep.subr.mxu0 0.0
    %318 = vmatpush1.xpose.msra.mxu0 0.0
    %319 = vmatprep.subr.mxu0 0.0
    %320 = vmatpush1.xpose.msra.mxu0 0.0
    %321 = vmatprep.subr.mxu0 0.0
    %322 = vmatpush1.xpose.msra.mxu0 0.0
    %323 = vmatprep.subr.mxu0 0.0
    %324 = vmatpush1.xpose.msra.mxu0 0.0
    %325 = vmatprep.subr.mxu0 0.0
    %326 = vmatpush1.xpose.msra.mxu0 0.0
    %327 = vmatprep.subr.mxu0 0.0
    %328 = vmatpush1.xpose.msra.mxu0 0.0
    %329 = vmatprep.subr.mxu0 0.0
    %330 = vmatpush1.xpose.msra.mxu0 0.0
    %331 = vmatprep.subr.mxu0 0.0
    %332 = vmatpush1.xpose.msra.mxu0 0.0
    %333 = vmatprep.subr.mxu0 0.0
    %334 = vmatpush1.xpose.msra.mxu0 0.0
    %335 = vmatprep.subr.mxu0 0.0
    %336 = vmatpush1.xpose.msra.mxu0 0.0
    %337 = vmatprep.subr.mxu0 0.0
    %338 = vmatpush1.xpose.msra.mxu0 0.0
    %339 = vmatprep.mubr.f32.mxu0 0.0
    %340 = vmatmul.mubr.f32.gmra.mrb[0].mxu0 %v267
    %v341 = vpop.f32.mrb[0].mxu0
    %v342 = vadd.f32 0.0, %v341
    %v343 = vpop.f32.mrb[0].mxu0
    %344 = vmatprep.mubr.f32.mxu0 0.0
    %345 = vmatmul.mubr.f32.gmra.mrb[0].mxu0 %v269
    %v346 = vpop.f32.mrb[0].mxu0
    %v347 = vadd.f32 0.0, %v346
    %v348 = vpop.f32.mrb[0].mxu0
    %349 = vdwg.mxu0
    %350 = vrot.lane.b32.xlu0 %v251, 96
    %v351 = vpop.permute.xlu0 %350
    %352 = vrot.lane.b32.xlu0 %v253, 96
    %v353 = vpop.permute.xlu0 %352
    %v354 = vsel %vm266, %v251, 0
    %v356 = vsel %vm266, %v253, 0
    %v358 = vsel %vm266, %v351, 0
    %v360 = vsel %vm266, %v353, 0
    %362 = vmatprep.subr.mxu0 0.0
    %363 = vmatpush1.xpose.msra.mxu0 %v358
    %364 = vmatprep.subr.mxu0 0.0
    %365 = vmatpush1.xpose.msra.mxu0 %v360
    %366 = vmatprep.subr.mxu0 0.0
    %367 = vmatpush1.xpose.msra.mxu0 0.0
    %368 = vmatprep.subr.mxu0 0.0
    %369 = vmatpush1.xpose.msra.mxu0 0.0
    %370 = vmatprep.subr.mxu0 0.0
    %371 = vmatpush1.xpose.msra.mxu0 0.0
    %372 = vmatprep.subr.mxu0 0.0
    %373 = vmatpush1.xpose.msra.mxu0 0.0
    %374 = vmatprep.subr.mxu0 0.0
    %375 = vmatpush1.xpose.msra.mxu0 0.0
    %376 = vmatprep.subr.mxu0 0.0
    %377 = vmatpush1.xpose.msra.mxu0 0.0
    %378 = vmatprep.subr.mxu0 0.0
    %379 = vmatpush1.xpose.msra.mxu0 0.0
    %380 = vmatprep.subr.mxu0 0.0
    %381 = vmatpush1.xpose.msra.mxu0 0.0
    %382 = vmatprep.subr.mxu0 0.0
    %383 = vmatpush1.xpose.msra.mxu0 0.0
    %384 = vmatprep.subr.mxu0 0.0
    %385 = vmatpush1.xpose.msra.mxu0 0.0
    %386 = vmatprep.subr.mxu0 0.0
    %387 = vmatpush1.xpose.msra.mxu0 0.0
    %388 = vmatprep.subr.mxu0 0.0
    %389 = vmatpush1.xpose.msra.mxu0 0.0
    %390 = vmatprep.subr.mxu0 0.0
    %391 = vmatpush1.xpose.msra.mxu0 0.0
    %392 = vmatprep.subr.mxu0 0.0
    %393 = vmatpush1.xpose.msra.mxu0 0.0
    %394 = vmatprep.subr.mxu0 0.0
    %395 = vmatpush1.xpose.msra.mxu0 0.0
    %396 = vmatprep.subr.mxu0 0.0
    %397 = vmatpush1.xpose.msra.mxu0 0.0
    %398 = vmatprep.subr.mxu0 0.0
    %399 = vmatpush1.xpose.msra.mxu0 0.0
    %400 = vmatprep.subr.mxu0 0.0
    %401 = vmatpush1.xpose.msra.mxu0 0.0
    %402 = vmatprep.subr.mxu0 0.0
    %403 = vmatpush1.xpose.msra.mxu0 0.0
    %404 = vmatprep.subr.mxu0 0.0
    %405 = vmatpush1.xpose.msra.mxu0 0.0
    %406 = vmatprep.subr.mxu0 0.0
    %407 = vmatpush1.xpose.msra.mxu0 0.0
    %408 = vmatprep.subr.mxu0 0.0
    %409 = vmatpush1.xpose.msra.mxu0 0.0
    %410 = vmatprep.subr.mxu0 0.0
    %411 = vmatpush1.xpose.msra.mxu0 0.0
    %412 = vmatprep.subr.mxu0 0.0
    %413 = vmatpush1.xpose.msra.mxu0 0.0
    %414 = vmatprep.subr.mxu0 0.0
    %415 = vmatpush1.xpose.msra.mxu0 0.0
    %416 = vmatprep.subr.mxu0 0.0
    %417 = vmatpush1.xpose.msra.mxu0 0.0
    %418 = vmatprep.subr.mxu0 0.0
    %419 = vmatpush1.xpose.msra.mxu0 0.0
    %420 = vmatprep.subr.mxu0 0.0
    %421 = vmatpush1.xpose.msra.mxu0 0.0
    %422 = vmatprep.subr.mxu0 0.0
    %423 = vmatpush1.xpose.msra.mxu0 0.0
    %424 = vmatprep.subr.mxu0 0.0
    %425 = vmatpush1.xpose.msra.mxu0 0.0
    %426 = vmatprep.mubr.f32.mxu0 0.0
    %427 = vmatmul.mubr.f32.gmra.mrb[0].mxu0 %v354
    %v428 = vpop.f32.mrb[0].mxu0
    %v429 = vadd.f32 0.0, %v428
    %v430 = vpop.f32.mrb[0].mxu0
    %431 = vmatprep.mubr.f32.mxu0 0.0
    %432 = vmatmul.mubr.f32.gmra.mrb[0].mxu0 %v356
    %v433 = vpop.f32.mrb[0].mxu0
    %v434 = vadd.f32 0.0, %v433
    %v435 = vpop.f32.mrb[0].mxu0
    %436 = vdwg.mxu0
    %437 = vrot.lane.b32.xlu0 %v255, 96
    %v438 = vpop.permute.xlu0 %437
    %439 = vrot.lane.b32.xlu0 %v257, 96
    %v440 = vpop.permute.xlu0 %439
    %v441 = vsel %vm266, %v255, 0
    %v443 = vsel %vm266, %v257, 0
    %v445 = vsel %vm266, %v438, 0
    %v447 = vsel %vm266, %v440, 0
    %449 = vmatprep.subr.mxu0 0.0
    %450 = vmatpush1.xpose.msra.mxu0 %v445
    %451 = vmatprep.subr.mxu0 0.0
    %452 = vmatpush1.xpose.msra.mxu0 %v447
    %453 = vmatprep.subr.mxu0 0.0
    %454 = vmatpush1.xpose.msra.mxu0 0.0
    %455 = vmatprep.subr.mxu0 0.0
    %456 = vmatpush1.xpose.msra.mxu0 0.0
    %457 = vmatprep.subr.mxu0 0.0
    %458 = vmatpush1.xpose.msra.mxu0 0.0
    %459 = vmatprep.subr.mxu0 0.0
    %460 = vmatpush1.xpose.msra.mxu0 0.0
    %461 = vmatprep.subr.mxu0 0.0
    %462 = vmatpush1.xpose.msra.mxu0 0.0
    %463 = vmatprep.subr.mxu0 0.0
    %464 = vmatpush1.xpose.msra.mxu0 0.0
    %465 = vmatprep.subr.mxu0 0.0
    %466 = vmatpush1.xpose.msra.mxu0 0.0
    %467 = vmatprep.subr.mxu0 0.0
    %468 = vmatpush1.xpose.msra.mxu0 0.0
    %469 = vmatprep.subr.mxu0 0.0
    %470 = vmatpush1.xpose.msra.mxu0 0.0
    %471 = vmatprep.subr.mxu0 0.0
    %472 = vmatpush1.xpose.msra.mxu0 0.0
    %473 = vmatprep.subr.mxu0 0.0
    %474 = vmatpush1.xpose.msra.mxu0 0.0
    %475 = vmatprep.subr.mxu0 0.0
    %476 = vmatpush1.xpose.msra.mxu0 0.0
    %477 = vmatprep.subr.mxu0 0.0
    %478 = vmatpush1.xpose.msra.mxu0 0.0
    %479 = vmatprep.subr.mxu0 0.0
    %480 = vmatpush1.xpose.msra.mxu0 0.0
    %481 = vmatprep.subr.mxu0 0.0
    %482 = vmatpush1.xpose.msra.mxu0 0.0
    %483 = vmatprep.subr.mxu0 0.0
    %484 = vmatpush1.xpose.msra.mxu0 0.0
    %485 = vmatprep.subr.mxu0 0.0
    %486 = vmatpush1.xpose.msra.mxu0 0.0
    %487 = vmatprep.subr.mxu0 0.0
    %488 = vmatpush1.xpose.msra.mxu0 0.0
    %489 = vmatprep.subr.mxu0 0.0
    %490 = vmatpush1.xpose.msra.mxu0 0.0
    %491 = vmatprep.subr.mxu0 0.0
    %492 = vmatpush1.xpose.msra.mxu0 0.0
    %493 = vmatprep.subr.mxu0 0.0
    %494 = vmatpush1.xpose.msra.mxu0 0.0
    %495 = vmatprep.subr.mxu0 0.0
    %496 = vmatpush1.xpose.msra.mxu0 0.0
    %497 = vmatprep.subr.mxu0 0.0
    %498 = vmatpush1.xpose.msra.mxu0 0.0
    %499 = vmatprep.subr.mxu0 0.0
    %500 = vmatpush1.xpose.msra.mxu0 0.0
    %501 = vmatprep.subr.mxu0 0.0
    %502 = vmatpush1.xpose.msra.mxu0 0.0
    %503 = vmatprep.subr.mxu0 0.0
    %504 = vmatpush1.xpose.msra.mxu0 0.0
    %505 = vmatprep.subr.mxu0 0.0
    %506 = vmatpush1.xpose.msra.mxu0 0.0
    %507 = vmatprep.subr.mxu0 0.0
    %508 = vmatpush1.xpose.msra.mxu0 0.0
    %509 = vmatprep.subr.mxu0 0.0
    %510 = vmatpush1.xpose.msra.mxu0 0.0
    %511 = vmatprep.subr.mxu0 0.0
    %512 = vmatpush1.xpose.msra.mxu0 0.0
    %513 = vmatprep.mubr.f32.mxu0 0.0
    %514 = vmatmul.mubr.f32.gmra.mrb[0].mxu0 %v441
    %v515 = vpop.f32.mrb[0].mxu0
    %v516 = vadd.f32 0.0, %v515
    %v517 = vpop.f32.mrb[0].mxu0
    %518 = vmatprep.mubr.f32.mxu0 0.0
    %519 = vmatmul.mubr.f32.gmra.mrb[0].mxu0 %v443
    %v520 = vpop.f32.mrb[0].mxu0
    %v521 = vadd.f32 0.0, %v520
    %v522 = vpop.f32.mrb[0].mxu0
    %523 = vdwg.mxu0
    %524 = vrot.lane.b32.xlu0 %v259, 96
    %v525 = vpop.permute.xlu0 %524
    %526 = vrot.lane.b32.xlu0 %v261, 96
    %v527 = vpop.permute.xlu0 %526
    %v528 = vsel %vm266, %v259, 0
    %v530 = vsel %vm266, %v261, 0
    %v532 = vsel %vm266, %v525, 0
    %v534 = vsel %vm266, %v527, 0
    %536 = vmatprep.subr.mxu0 0.0
    %537 = vmatpush1.xpose.msra.mxu0 %v532
    %538 = vmatprep.subr.mxu0 0.0
    %539 = vmatpush1.xpose.msra.mxu0 %v534
    %540 = vmatprep.subr.mxu0 0.0
    %541 = vmatpush1.xpose.msra.mxu0 0.0
    %542 = vmatprep.subr.mxu0 0.0
    %543 = vmatpush1.xpose.msra.mxu0 0.0
    %544 = vmatprep.subr.mxu0 0.0
    %545 = vmatpush1.xpose.msra.mxu0 0.0
    %546 = vmatprep.subr.mxu0 0.0
    %547 = vmatpush1.xpose.msra.mxu0 0.0
    %548 = vmatprep.subr.mxu0 0.0
    %549 = vmatpush1.xpose.msra.mxu0 0.0
    %550 = vmatprep.subr.mxu0 0.0
    %551 = vmatpush1.xpose.msra.mxu0 0.0
    %552 = vmatprep.subr.mxu0 0.0
    %553 = vmatpush1.xpose.msra.mxu0 0.0
    %554 = vmatprep.subr.mxu0 0.0
    %555 = vmatpush1.xpose.msra.mxu0 0.0
    %556 = vmatprep.subr.mxu0 0.0
    %557 = vmatpush1.xpose.msra.mxu0 0.0
    %558 = vmatprep.subr.mxu0 0.0
    %559 = vmatpush1.xpose.msra.mxu0 0.0
    %560 = vmatprep.subr.mxu0 0.0
    %561 = vmatpush1.xpose.msra.mxu0 0.0
    %562 = vmatprep.subr.mxu0 0.0
    %563 = vmatpush1.xpose.msra.mxu0 0.0
    %564 = vmatprep.subr.mxu0 0.0
    %565 = vmatpush1.xpose.msra.mxu0 0.0
    %566 = vmatprep.subr.mxu0 0.0
    %567 = vmatpush1.xpose.msra.mxu0 0.0
    %568 = vmatprep.subr.mxu0 0.0
    %569 = vmatpush1.xpose.msra.mxu0 0.0
    %570 = vmatprep.subr.mxu0 0.0
    %571 = vmatpush1.xpose.msra.mxu0 0.0
    %572 = vmatprep.subr.mxu0 0.0
    %573 = vmatpush1.xpose.msra.mxu0 0.0
    %574 = vmatprep.subr.mxu0 0.0
    %575 = vmatpush1.xpose.msra.mxu0 0.0
    %576 = vmatprep.subr.mxu0 0.0
    %577 = vmatpush1.xpose.msra.mxu0 0.0
    %578 = vmatprep.subr.mxu0 0.0
    %579 = vmatpush1.xpose.msra.mxu0 0.0
    %580 = vmatprep.subr.mxu0 0.0
    %581 = vmatpush1.xpose.msra.mxu0 0.0
    %582 = vmatprep.subr.mxu0 0.0
    %583 = vmatpush1.xpose.msra.mxu0 0.0
    %584 = vmatprep.subr.mxu0 0.0
    %585 = vmatpush1.xpose.msra.mxu0 0.0
    %586 = vmatprep.subr.mxu0 0.0
    %587 = vmatpush1.xpose.msra.mxu0 0.0
    %588 = vmatprep.subr.mxu0 0.0
    %589 = vmatpush1.xpose.msra.mxu0 0.0
    %590 = vmatprep.subr.mxu0 0.0
    %591 = vmatpush1.xpose.msra.mxu0 0.0
    %592 = vmatprep.subr.mxu0 0.0
    %593 = vmatpush1.xpose.msra.mxu0 0.0
    %594 = vmatprep.subr.mxu0 0.0
    %595 = vmatpush1.xpose.msra.mxu0 0.0
    %596 = vmatprep.subr.mxu0 0.0
    %597 = vmatpush1.xpose.msra.mxu0 0.0
    %598 = vmatprep.subr.mxu0 0.0
    %599 = vmatpush1.xpose.msra.mxu0 0.0
    %600 = vmatprep.mubr.f32.mxu0 0.0
    %601 = vmatmul.mubr.f32.gmra.mrb[0].mxu0 %v528
    %v602 = vpop.f32.mrb[0].mxu0
    %v603 = vadd.f32 0.0, %v602
    %v604 = vpop.f32.mrb[0].mxu0
    %605 = vmatprep.mubr.f32.mxu0 0.0
    %606 = vmatmul.mubr.f32.gmra.mrb[0].mxu0 %v530
    %v607 = vpop.f32.mrb[0].mxu0
    %v608 = vadd.f32 0.0, %v607
    %v609 = vpop.f32.mrb[0].mxu0
    %610 = vdwg.mxu0
    %v611 = vmul.f32 %v342, 0.35355338
    %v612 = vmul.f32 %v347, 0.35355338
    %v613 = vmul.f32 %v429, 0.35355338
    %v614 = vmul.f32 %v434, 0.35355338
    %v615 = vmul.f32 %v516, 0.35355338
    %v616 = vmul.f32 %v521, 0.35355338
    %v617 = vmul.f32 %v603, 0.35355338
    %v618 = vmul.f32 %v608, 0.35355338
    %v619 = vadd.f32 %v611, %v132
    %v620 = vadd.f32 %v612, %v133
    %v621 = vadd.f32 %v613, %v132
    %v622 = vadd.f32 %v614, %v133
    %v623 = vadd.f32 %v615, %v132
    %v624 = vadd.f32 %v616, %v133
    %v625 = vadd.f32 %v617, %v132
    %v626 = vadd.f32 %v618, %v133
    %vm627 = vcmask 130048
    %v628 = vsel %vm627, %v619, -inf
    %629 = vmax.xlane.f32.xlu0 %v628
    %v630 = vpop.xlane.xlu0 %629
    %v631 = vsel %vm627, %v620, -inf
    %632 = vmax.xlane.f32.xlu0 %v631
    %v633 = vpop.xlane.xlu0 %632
    %v634 = vsel %vm627, %v621, -inf
    %635 = vmax.xlane.f32.xlu0 %v634
    %v636 = vpop.xlane.xlu0 %635
    %v637 = vsel %vm627, %v622, -inf
    %638 = vmax.xlane.f32.xlu0 %v637
    %v639 = vpop.xlane.xlu0 %638
    %v640 = vsel %vm627, %v623, -inf
    %641 = vmax.xlane.f32.xlu0 %v640
    %v642 = vpop.xlane.xlu0 %641
    %v643 = vsel %vm627, %v624, -inf
    %644 = vmax.xlane.f32.xlu0 %v643
    %v645 = vpop.xlane.xlu0 %644
    %v646 = vsel %vm627, %v625, -inf
    %647 = vmax.xlane.f32.xlu0 %v646
    %v648 = vpop.xlane.xlu0 %647
    %v649 = vsel %vm627, %v626, -inf
    %650 = vmax.xlane.f32.xlu0 %v649
    %v651 = vpop.xlane.xlu0 %650
    %v652 = vsub.f32 %v619, %v630
    %v653 = vsub.f32 %v620, %v633
    %v654 = vsub.f32 %v621, %v636
    %v655 = vsub.f32 %v622, %v639
    %v656 = vsub.f32 %v623, %v642
    %v657 = vsub.f32 %v624, %v645
    %v658 = vsub.f32 %v625, %v648
    %v659 = vsub.f32 %v626, %v651
    %v660 = vmul.f32 %v652, 1.442695
    %v661 = vpow.pop %v660
    %v662 = vmul.f32 %v653, 1.442695
    %v663 = vpow.pop %v662
    %v664 = vmul.f32 %v654, 1.442695
    %v665 = vpow.pop %v664
    %v666 = vmul.f32 %v655, 1.442695
    %v667 = vpow.pop %v666
    %v668 = vmul.f32 %v656, 1.442695
    %v669 = vpow.pop %v668
    %v670 = vmul.f32 %v657, 1.442695
    %v671 = vpow.pop %v670
    %v672 = vmul.f32 %v658, 1.442695
    %v673 = vpow.pop %v672
    %v674 = vmul.f32 %v659, 1.442695
    %v675 = vpow.pop %v674
    %v676 = vsel %vm627, %v661, 0.0
    %677 = vadd.xlane.f32.xlu0 %v676
    %v678 = vpop.xlane.xlu0 %677
    %v679 = vsel %vm627, %v663, 0.0
    %680 = vadd.xlane.f32.xlu0 %v679
    %v681 = vpop.xlane.xlu0 %680
    %v682 = vsel %vm627, %v665, 0.0
    %683 = vadd.xlane.f32.xlu0 %v682
    %v684 = vpop.xlane.xlu0 %683
    %v685 = vsel %vm627, %v667, 0.0
    %686 = vadd.xlane.f32.xlu0 %v685
    %v687 = vpop.xlane.xlu0 %686
    %v688 = vsel %vm627, %v669, 0.0
    %689 = vadd.xlane.f32.xlu0 %v688
    %v690 = vpop.xlane.xlu0 %689
    %v691 = vsel %vm627, %v671, 0.0
    %692 = vadd.xlane.f32.xlu0 %v691
    %v693 = vpop.xlane.xlu0 %692
    %v694 = vsel %vm627, %v673, 0.0
    %695 = vadd.xlane.f32.xlu0 %v694
    %v696 = vpop.xlane.xlu0 %695
    %v697 = vsel %vm627, %v675, 0.0
    %698 = vadd.xlane.f32.xlu0 %v697
    %v699 = vpop.xlane.xlu0 %698
    %v700 = vrcp.pop %v678
    %v701 = vmul.f32 %v661, %v700
    %v702 = vrcp.pop %v681
    %v703 = vmul.f32 %v663, %v702
    %v704 = vrcp.pop %v684
    %v705 = vmul.f32 %v665, %v704
    %v706 = vrcp.pop %v687
    %v707 = vmul.f32 %v667, %v706
    %v708 = vrcp.pop %v690
    %v709 = vmul.f32 %v669, %v708
    %v710 = vrcp.pop %v693
    %v711 = vmul.f32 %v671, %v710
    %v712 = vrcp.pop %v696
    %v713 = vmul.f32 %v673, %v712
    %v714 = vrcp.pop %v699
    %v715 = vmul.f32 %v675, %v714
    %716 = vrot.lane.b32.xlu0 %v242, 64
    %v717 = vpop.permute.xlu0 %716
    %718 = vrot.lane.b32.xlu0 %v245, 64
    %v719 = vpop.permute.xlu0 %718
    %v723 = vsel %vm627, %v701, 0
    %v726 = vsel %vm627, %v703, 0
    %728 = vmatprep.subr.mxu0 0.0
    %729 = vmatpush1.msra.mxu0 %v717
    %730 = vmatprep.subr.mxu0 0.0
    %731 = vmatpush1.msra.mxu0 %v719
    %732 = vmatprep.subr.mxu0 0.0
    %733 = vmatpush1.msra.mxu0 0.0
    %734 = vmatprep.subr.mxu0 0.0
    %735 = vmatpush1.msra.mxu0 0.0
    %736 = vmatprep.subr.mxu0 0.0
    %737 = vmatpush1.msra.mxu0 0.0
    %738 = vmatprep.subr.mxu0 0.0
    %739 = vmatpush1.msra.mxu0 0.0
    %740 = vmatprep.subr.mxu0 0.0
    %741 = vmatpush1.msra.mxu0 0.0
    %742 = vmatprep.subr.mxu0 0.0
    %743 = vmatpush1.msra.mxu0 0.0
    %744 = vmatprep.subr.mxu0 0.0
    %745 = vmatpush1.msra.mxu0 0.0
    %746 = vmatprep.subr.mxu0 0.0
    %747 = vmatpush1.msra.mxu0 0.0
    %748 = vmatprep.subr.mxu0 0.0
    %749 = vmatpush1.msra.mxu0 0.0
    %750 = vmatprep.subr.mxu0 0.0
    %751 = vmatpush1.msra.mxu0 0.0
    %752 = vmatprep.subr.mxu0 0.0
    %753 = vmatpush1.msra.mxu0 0.0
    %754 = vmatprep.subr.mxu0 0.0
    %755 = vmatpush1.msra.mxu0 0.0
    %756 = vmatprep.subr.mxu0 0.0
    %757 = vmatpush1.msra.mxu0 0.0
    %758 = vmatprep.subr.mxu0 0.0
    %759 = vmatpush1.msra.mxu0 0.0
    %760 = vmatprep.subr.mxu0 0.0
    %761 = vmatpush1.msra.mxu0 0.0
    %762 = vmatprep.subr.mxu0 0.0
    %763 = vmatpush1.msra.mxu0 0.0
    %764 = vmatprep.subr.mxu0 0.0
    %765 = vmatpush1.msra.mxu0 0.0
    %766 = vmatprep.subr.mxu0 0.0
    %767 = vmatpush1.msra.mxu0 0.0
    %768 = vmatprep.subr.mxu0 0.0
    %769 = vmatpush1.msra.mxu0 0.0
    %770 = vmatprep.subr.mxu0 0.0
    %771 = vmatpush1.msra.mxu0 0.0
    %772 = vmatprep.subr.mxu0 0.0
    %773 = vmatpush1.msra.mxu0 0.0
    %774 = vmatprep.subr.mxu0 0.0
    %775 = vmatpush1.msra.mxu0 0.0
    %776 = vmatprep.subr.mxu0 0.0
    %777 = vmatpush1.msra.mxu0 0.0
    %778 = vmatprep.subr.mxu0 0.0
    %779 = vmatpush1.msra.mxu0 0.0
    %780 = vmatprep.subr.mxu0 0.0
    %781 = vmatpush1.msra.mxu0 0.0
    %782 = vmatprep.subr.mxu0 0.0
    %783 = vmatpush1.msra.mxu0 0.0
    %784 = vmatprep.subr.mxu0 0.0
    %785 = vmatpush1.msra.mxu0 0.0
    %786 = vmatprep.subr.mxu0 0.0
    %787 = vmatpush1.msra.mxu0 0.0
    %788 = vmatprep.subr.mxu0 0.0
    %789 = vmatpush1.msra.mxu0 0.0
    %790 = vmatprep.subr.mxu0 0.0
    %791 = vmatpush1.msra.mxu0 0.0
    %792 = vmatprep.mubr.f32.mxu0 0.0
    %793 = vmatmul.mubr.f32.gmra.mrb[0].mxu0 %v723
    %v794 = vpop.f32.mrb[0].mxu0
    %v795 = vadd.f32 0.0, %v794
    %v796 = vpop.f32.mrb[0].mxu0
    %797 = vmatprep.mubr.f32.mxu0 0.0
    %798 = vmatmul.mubr.f32.gmra.mrb[0].mxu0 %v726
    %v799 = vpop.f32.mrb[0].mxu0
    %v800 = vadd.f32 0.0, %v799
    %v801 = vpop.f32.mrb[0].mxu0
    %802 = vdwg.mxu0
    %803 = vrot.lane.b32.xlu0 %v251, 64
    %v804 = vpop.permute.xlu0 %803
    %805 = vrot.lane.b32.xlu0 %v253, 64
    %v806 = vpop.permute.xlu0 %805
    %v810 = vsel %vm627, %v705, 0
    %v813 = vsel %vm627, %v707, 0
    %815 = vmatprep.subr.mxu0 0.0
    %816 = vmatpush1.msra.mxu0 %v804
    %817 = vmatprep.subr.mxu0 0.0
    %818 = vmatpush1.msra.mxu0 %v806
    %819 = vmatprep.subr.mxu0 0.0
    %820 = vmatpush1.msra.mxu0 0.0
    %821 = vmatprep.subr.mxu0 0.0
    %822 = vmatpush1.msra.mxu0 0.0
    %823 = vmatprep.subr.mxu0 0.0
    %824 = vmatpush1.msra.mxu0 0.0
    %825 = vmatprep.subr.mxu0 0.0
    %826 = vmatpush1.msra.mxu0 0.0
    %827 = vmatprep.subr.mxu0 0.0
    %828 = vmatpush1.msra.mxu0 0.0
    %829 = vmatprep.subr.mxu0 0.0
    %830 = vmatpush1.msra.mxu0 0.0
    %831 = vmatprep.subr.mxu0 0.0
    %832 = vmatpush1.msra.mxu0 0.0
    %833 = vmatprep.subr.mxu0 0.0
    %834 = vmatpush1.msra.mxu0 0.0
    %835 = vmatprep.subr.mxu0 0.0
    %836 = vmatpush1.msra.mxu0 0.0
    %837 = vmatprep.subr.mxu0 0.0
    %838 = vmatpush1.msra.mxu0 0.0
    %839 = vmatprep.subr.mxu0 0.0
    %840 = vmatpush1.msra.mxu0 0.0
    %841 = vmatprep.subr.mxu0 0.0
    %842 = vmatpush1.msra.mxu0 0.0
    %843 = vmatprep.subr.mxu0 0.0
    %844 = vmatpush1.msra.mxu0 0.0
    %845 = vmatprep.subr.mxu0 0.0
    %846 = vmatpush1.msra.mxu0 0.0
    %847 = vmatprep.subr.mxu0 0.0
    %848 = vmatpush1.msra.mxu0 0.0
    %849 = vmatprep.subr.mxu0 0.0
    %850 = vmatpush1.msra.mxu0 0.0
    %851 = vmatprep.subr.mxu0 0.0
    %852 = vmatpush1.msra.mxu0 0.0
    %853 = vmatprep.subr.mxu0 0.0
    %854 = vmatpush1.msra.mxu0 0.0
    %855 = vmatprep.subr.mxu0 0.0
    %856 = vmatpush1.msra.mxu0 0.0
    %857 = vmatprep.subr.mxu0 0.0
    %858 = vmatpush1.msra.mxu0 0.0
    %859 = vmatprep.subr.mxu0 0.0
    %860 = vmatpush1.msra.mxu0 0.0
    %861 = vmatprep.subr.mxu0 0.0
    %862 = vmatpush1.msra.mxu0 0.0
    %863 = vmatprep.subr.mxu0 0.0
    %864 = vmatpush1.msra.mxu0 0.0
    %865 = vmatprep.subr.mxu0 0.0
    %866 = vmatpush1.msra.mxu0 0.0
    %867 = vmatprep.subr.mxu0 0.0
    %868 = vmatpush1.msra.mxu0 0.0
    %869 = vmatprep.subr.mxu0 0.0
    %870 = vmatpush1.msra.mxu0 0.0
    %871 = vmatprep.subr.mxu0 0.0
    %872 = vmatpush1.msra.mxu0 0.0
    %873 = vmatprep.subr.mxu0 0.0
    %874 = vmatpush1.msra.mxu0 0.0
    %875 = vmatprep.subr.mxu0 0.0
    %876 = vmatpush1.msra.mxu0 0.0
    %877 = vmatprep.subr.mxu0 0.0
    %878 = vmatpush1.msra.mxu0 0.0
    %879 = vmatprep.mubr.f32.mxu0 0.0
    %880 = vmatmul.mubr.f32.gmra.mrb[0].mxu0 %v810
    %v881 = vpop.f32.mrb[0].mxu0
    %v882 = vadd.f32 0.0, %v881
    %v883 = vpop.f32.mrb[0].mxu0
    %884 = vmatprep.mubr.f32.mxu0 0.0
    %885 = vmatmul.mubr.f32.gmra.mrb[0].mxu0 %v813
    %v886 = vpop.f32.mrb[0].mxu0
    %v887 = vadd.f32 0.0, %v886
    %v888 = vpop.f32.mrb[0].mxu0
    %889 = vdwg.mxu0
    %890 = vrot.lane.b32.xlu0 %v255, 64
    %v891 = vpop.permute.xlu0 %890
    %892 = vrot.lane.b32.xlu0 %v257, 64
    %v893 = vpop.permute.xlu0 %892
    %v897 = vsel %vm627, %v709, 0
    %v900 = vsel %vm627, %v711, 0
    %902 = vmatprep.subr.mxu0 0.0
    %903 = vmatpush1.msra.mxu0 %v891
    %904 = vmatprep.subr.mxu0 0.0
    %905 = vmatpush1.msra.mxu0 %v893
    %906 = vmatprep.subr.mxu0 0.0
    %907 = vmatpush1.msra.mxu0 0.0
    %908 = vmatprep.subr.mxu0 0.0
    %909 = vmatpush1.msra.mxu0 0.0
    %910 = vmatprep.subr.mxu0 0.0
    %911 = vmatpush1.msra.mxu0 0.0
    %912 = vmatprep.subr.mxu0 0.0
    %913 = vmatpush1.msra.mxu0 0.0
    %914 = vmatprep.subr.mxu0 0.0
    %915 = vmatpush1.msra.mxu0 0.0
    %916 = vmatprep.subr.mxu0 0.0
    %917 = vmatpush1.msra.mxu0 0.0
    %918 = vmatprep.subr.mxu0 0.0
    %919 = vmatpush1.msra.mxu0 0.0
    %920 = vmatprep.subr.mxu0 0.0
    %921 = vmatpush1.msra.mxu0 0.0
    %922 = vmatprep.subr.mxu0 0.0
    %923 = vmatpush1.msra.mxu0 0.0
    %924 = vmatprep.subr.mxu0 0.0
    %925 = vmatpush1.msra.mxu0 0.0
    %926 = vmatprep.subr.mxu0 0.0
    %927 = vmatpush1.msra.mxu0 0.0
    %928 = vmatprep.subr.mxu0 0.0
    %929 = vmatpush1.msra.mxu0 0.0
    %930 = vmatprep.subr.mxu0 0.0
    %931 = vmatpush1.msra.mxu0 0.0
    %932 = vmatprep.subr.mxu0 0.0
    %933 = vmatpush1.msra.mxu0 0.0
    %934 = vmatprep.subr.mxu0 0.0
    %935 = vmatpush1.msra.mxu0 0.0
    %936 = vmatprep.subr.mxu0 0.0
    %937 = vmatpush1.msra.mxu0 0.0
    %938 = vmatprep.subr.mxu0 0.0
    %939 = vmatpush1.msra.mxu0 0.0
    %940 = vmatprep.subr.mxu0 0.0
    %941 = vmatpush1.msra.mxu0 0.0
    %942 = vmatprep.subr.mxu0 0.0
    %943 = vmatpush1.msra.mxu0 0.0
    %944 = vmatprep.subr.mxu0 0.0
    %945 = vmatpush1.msra.mxu0 0.0
    %946 = vmatprep.subr.mxu0 0.0
    %947 = vmatpush1.msra.mxu0 0.0
    %948 = vmatprep.subr.mxu0 0.0
    %949 = vmatpush1.msra.mxu0 0.0
    %950 = vmatprep.subr.mxu0 0.0
    %951 = vmatpush1.msra.mxu0 0.0
    %952 = vmatprep.subr.mxu0 0.0
    %953 = vmatpush1.msra.mxu0 0.0
    %954 = vmatprep.subr.mxu0 0.0
    %955 = vmatpush1.msra.mxu0 0.0
    %956 = vmatprep.subr.mxu0 0.0
    %957 = vmatpush1.msra.mxu0 0.0
    %958 = vmatprep.subr.mxu0 0.0
    %959 = vmatpush1.msra.mxu0 0.0
    %960 = vmatprep.subr.mxu0 0.0
    %961 = vmatpush1.msra.mxu0 0.0
    %962 = vmatprep.subr.mxu0 0.0
    %963 = vmatpush1.msra.mxu0 0.0
    %964 = vmatprep.subr.mxu0 0.0
    %965 = vmatpush1.msra.mxu0 0.0
    %966 = vmatprep.mubr.f32.mxu0 0.0
    %967 = vmatmul.mubr.f32.gmra.mrb[0].mxu0 %v897
    %v968 = vpop.f32.mrb[0].mxu0
    %v969 = vadd.f32 0.0, %v968
    %v970 = vpop.f32.mrb[0].mxu0
    %971 = vmatprep.mubr.f32.mxu0 0.0
    %972 = vmatmul.mubr.f32.gmra.mrb[0].mxu0 %v900
    %v973 = vpop.f32.mrb[0].mxu0
    %v974 = vadd.f32 0.0, %v973
    %v975 = vpop.f32.mrb[0].mxu0
    %976 = vdwg.mxu0
    %977 = vrot.lane.b32.xlu0 %v259, 64
    %v978 = vpop.permute.xlu0 %977
    %979 = vrot.lane.b32.xlu0 %v261, 64
    %v980 = vpop.permute.xlu0 %979
    %v984 = vsel %vm627, %v713, 0
    %v987 = vsel %vm627, %v715, 0
    %989 = vmatprep.subr.mxu0 0.0
    %990 = vmatpush1.msra.mxu0 %v978
    %991 = vmatprep.subr.mxu0 0.0
    %992 = vmatpush1.msra.mxu0 %v980
    %993 = vmatprep.subr.mxu0 0.0
    %994 = vmatpush1.msra.mxu0 0.0
    %995 = vmatprep.subr.mxu0 0.0
    %996 = vmatpush1.msra.mxu0 0.0
    %997 = vmatprep.subr.mxu0 0.0
    %998 = vmatpush1.msra.mxu0 0.0
    %999 = vmatprep.subr.mxu0 0.0
    %1000 = vmatpush1.msra.mxu0 0.0
    %1001 = vmatprep.subr.mxu0 0.0
    %1002 = vmatpush1.msra.mxu0 0.0
    %1003 = vmatprep.subr.mxu0 0.0
    %1004 = vmatpush1.msra.mxu0 0.0
    %1005 = vmatprep.subr.mxu0 0.0
    %1006 = vmatpush1.msra.mxu0 0.0
    %1007 = vmatprep.subr.mxu0 0.0
    %1008 = vmatpush1.msra.mxu0 0.0
    %1009 = vmatprep.subr.mxu0 0.0
    %1010 = vmatpush1.msra.mxu0 0.0
    %1011 = vmatprep.subr.mxu0 0.0
    %1012 = vmatpush1.msra.mxu0 0.0
    %1013 = vmatprep.subr.mxu0 0.0
    %1014 = vmatpush1.msra.mxu0 0.0
    %1015 = vmatprep.subr.mxu0 0.0
    %1016 = vmatpush1.msra.mxu0 0.0
    %1017 = vmatprep.subr.mxu0 0.0
    %1018 = vmatpush1.msra.mxu0 0.0
    %1019 = vmatprep.subr.mxu0 0.0
    %1020 = vmatpush1.msra.mxu0 0.0
    %1021 = vmatprep.subr.mxu0 0.0
    %1022 = vmatpush1.msra.mxu0 0.0
    %1023 = vmatprep.subr.mxu0 0.0
    %1024 = vmatpush1.msra.mxu0 0.0
    %1025 = vmatprep.subr.mxu0 0.0
    %1026 = vmatpush1.msra.mxu0 0.0
    %1027 = vmatprep.subr.mxu0 0.0
    %1028 = vmatpush1.msra.mxu0 0.0
    %1029 = vmatprep.subr.mxu0 0.0
    %1030 = vmatpush1.msra.mxu0 0.0
    %1031 = vmatprep.subr.mxu0 0.0
    %1032 = vmatpush1.msra.mxu0 0.0
    %1033 = vmatprep.subr.mxu0 0.0
    %1034 = vmatpush1.msra.mxu0 0.0
    %1035 = vmatprep.subr.mxu0 0.0
    %1036 = vmatpush1.msra.mxu0 0.0
    %1037 = vmatprep.subr.mxu0 0.0
    %1038 = vmatpush1.msra.mxu0 0.0
    %1039 = vmatprep.subr.mxu0 0.0
    %1040 = vmatpush1.msra.mxu0 0.0
    %1041 = vmatprep.subr.mxu0 0.0
    %1042 = vmatpush1.msra.mxu0 0.0
    %1043 = vmatprep.subr.mxu0 0.0
    %1044 = vmatpush1.msra.mxu0 0.0
    %1045 = vmatprep.subr.mxu0 0.0
    %1046 = vmatpush1.msra.mxu0 0.0
    %1047 = vmatprep.subr.mxu0 0.0
    %1048 = vmatpush1.msra.mxu0 0.0
    %1049 = vmatprep.subr.mxu0 0.0
    %1050 = vmatpush1.msra.mxu0 0.0
    %1051 = vmatprep.subr.mxu0 0.0
    %1052 = vmatpush1.msra.mxu0 0.0
    %1053 = vmatprep.mubr.f32.mxu0 0.0
    %1054 = vmatmul.mubr.f32.gmra.mrb[0].mxu0 %v984
    %v1055 = vpop.f32.mrb[0].mxu0
    %v1056 = vadd.f32 0.0, %v1055
    %v1057 = vpop.f32.mrb[0].mxu0
    %1058 = vmatprep.mubr.f32.mxu0 0.0
    %1059 = vmatmul.mubr.f32.gmra.mrb[0].mxu0 %v987
    %v1060 = vpop.f32.mrb[0].mxu0
    %v1061 = vadd.f32 0.0, %v1060
    %v1062 = vpop.f32.mrb[0].mxu0
    %1063 = vdwg.mxu0
    %1064 = vst.msk [vmem:[#allocation3] sm:$0xff] %vm266, %v795
    %1065 = vst.msk [vmem:[#allocation3 + $0x8] sm:$0xff] %vm266, %v800
    %1068 = vrot.lane.b32.xlu0 %v882, 8
    %v1069 = vpop.permute.xlu0 %1068
    %1070 = vrot.lane.b32.xlu0 %v887, 8
    %v1071 = vpop.permute.xlu0 %1070
    %vm1074 = vcmask 130112
    %1075 = vst.msk [vmem:[#allocation3] sm:$0xff] %vm1074, %v1069
    %1076 = vst.msk [vmem:[#allocation3 + $0x8] sm:$0xff] %vm1074, %v1071
    %1079 = vrot.lane.b32.xlu0 %v969, 16
    %v1080 = vpop.permute.xlu0 %1079
    %1081 = vrot.lane.b32.xlu0 %v974, 16
    %v1082 = vpop.permute.xlu0 %1081
    %vm1085 = vcmask 195712
    %1086 = vst.msk [vmem:[#allocation3] sm:$0xff] %vm1085, %v1080
    %1087 = vst.msk [vmem:[#allocation3 + $0x8] sm:$0xff] %vm1085, %v1082
    %1090 = vrot.lane.b32.xlu0 %v1056, 24
    %v1091 = vpop.permute.xlu0 %1090
    %1092 = vrot.lane.b32.xlu0 %v1061, 24
    %v1093 = vpop.permute.xlu0 %1092
    %vm1096 = vcmask 261312
    %1097 = vst.msk [vmem:[#allocation3] sm:$0xff] %vm1096, %v1091
    %1098 = vst.msk [vmem:[#allocation3 + $0x8] sm:$0xff] %vm1096, %v1093
    %v1099 = vld [vmem:[#allocation3] sm:$0xff]
    %v1100 = vld [vmem:[#allocation3 + $0x8] sm:$0xff]
    %v1101 = vld [vmem:[%s7] sm:$0xf]
    %v1102 = vld [vmem:[%s7 + $0x4] sm:$0xf]
    %v1103 = vld [vmem:[%s7 + $0x8] sm:$0xf]
    %v1104 = vld [vmem:[%s7 + $0xc] sm:$0xf]
    %v1105 = vpack.c.bf16 %v1100, %v1099
    %v1110 = vunpack.c.l.b16 %v1101
    %v1111 = vunpack.c.l.b16 %v1102
    %v1112 = vunpack.c.l.b16 %v1103
    %v1113 = vunpack.c.l.b16 %v1104
    %v1114 = vpack.c.b16 %v1111, %v1110
    %v1115 = vpack.c.b16 %v1113, %v1112
    %v1119 = vsel %vm136, %v1105, 0
    %1121 = vmatprep.subr.bf16.mxu0 0
    %1122 = vmatpush1.bf16.msra.mxu0 %v1114
    %1123 = vmatprep.subr.bf16.mxu0 0
    %1124 = vmatpush1.bf16.msra.mxu0 %v1115
    %1125 = vmatprep.subr.bf16.mxu0 0
    %1126 = vmatpush1.bf16.msra.mxu0 0
    %1127 = vmatprep.subr.bf16.mxu0 0
    %1128 = vmatpush1.bf16.msra.mxu0 0
    %1129 = vmatprep.subr.bf16.mxu0 0
    %1130 = vmatpush1.bf16.msra.mxu0 0
    %1131 = vmatprep.subr.bf16.mxu0 0
    %1132 = vmatpush1.bf16.msra.mxu0 0
    %1133 = vmatprep.subr.bf16.mxu0 0
    %1134 = vmatpush1.bf16.msra.mxu0 0
    %1135 = vmatprep.subr.bf16.mxu0 0
    %1136 = vmatpush1.bf16.msra.mxu0 0
    %1137 = vmatprep.subr.bf16.mxu0 0
    %1138 = vmatpush1.bf16.msra.mxu0 0
    %1139 = vmatprep.subr.bf16.mxu0 0
    %1140 = vmatpush1.bf16.msra.mxu0 0
    %1141 = vmatprep.subr.bf16.mxu0 0
    %1142 = vmatpush1.bf16.msra.mxu0 0
    %1143 = vmatprep.subr.bf16.mxu0 0
    %1144 = vmatpush1.bf16.msra.mxu0 0
    %1145 = vmatprep.subr.bf16.mxu0 0
    %1146 = vmatpush1.bf16.msra.mxu0 0
    %1147 = vmatprep.subr.bf16.mxu0 0
    %1148 = vmatpush1.bf16.msra.mxu0 0
    %1149 = vmatprep.subr.bf16.mxu0 0
    %1150 = vmatpush1.bf16.msra.mxu0 0
    %1151 = vmatprep.subr.bf16.mxu0 0
    %1152 = vmatpush1.bf16.msra.mxu0 0
    %1153 = vmatprep.mubr.bf16.mxu0 0
    %1154 = vmatmul.mubr.bf16.gmra.mrb[0].mxu0 %v1119
    %v1155 = vpop.f32.mrb[0].mxu0
    %v1156 = vadd.f32 0.0, %v1155
    %v1157 = vpop.f32.mrb[0].mxu0
    %v1158 = vpop.f32.mrb[0].mxu0
    %v1159 = vadd.f32 0.0, %v1158
    %v1160 = vpop.f32.mrb[0].mxu0
    %1161 = vdwg.mxu0
    %v1162 = vadd.f32 %v130, %v1156
    %v1163 = vadd.f32 %v131, %v1159
    %v1164 = vld [vmem:[%s8] sm:$0x1]
    %v1166 = vlaneseq
    %v1167 = vshrl.u32 %v1166, 7
    %v1168 = vsub.s32 0, %v1167
    %v1169 = vrot.slane %v1164, %v1168
    %v1171 = vadd.f32 %v1162, %v1169
    %v1172 = vadd.f32 %v1163, %v1169
    %v1173 = vld [vmem:[%s9] sm:$0x1]
    %v1174 = vld [vmem:[%s10] sm:$0x1]
    %v1175 = vsel %vm136, %v1171, 0.0
    %1176 = vadd.xlane.f32.xlu0 %v1175
    %v1177 = vpop.xlane.xlu0 %1176
    %v1178 = vsel %vm136, %v1172, 0.0
    %1179 = vadd.xlane.f32.xlu0 %v1178
    %v1180 = vpop.xlane.xlu0 %1179
    %v1181 = vmul.f32 %v1177, %v143
    %v1182 = vmul.f32 %v1180, %v143
    %v1183 = vsub.f32 %v1171, %v1181
    %v1184 = vsub.f32 %v1172, %v1182
    %v1185 = vmul.f32 %v1183, %v1183
    %v1186 = vmul.f32 %v1184, %v1184
    %v1187 = vsel %vm136, %v1185, 0.0
    %1188 = vadd.xlane.f32.xlu0 %v1187
    %v1189 = vpop.xlane.xlu0 %1188
    %v1190 = vsel %vm136, %v1186, 0.0
    %1191 = vadd.xlane.f32.xlu0 %v1190
    %v1192 = vpop.xlane.xlu0 %1191
    %v1193 = vmul.f32 %v1189, %v143
    %v1194 = vmul.f32 %v1192, %v143
    %v1195 = vadd.f32 %v1193, 1e-05
    %v1196 = vadd.f32 %v1194, 1e-05
    %v1197 = vrsqrt.pop %v1195
    %v1198 = vrsqrt.pop %v1196
    %v1199 = vmul.f32 %v1183, %v1197
    %v1200 = vmul.f32 %v1184, %v1198
    %v1202 = vlaneseq
    %v1203 = vshrl.u32 %v1202, 7
    %v1204 = vsub.s32 0, %v1203
    %v1205 = vrot.slane %v1173, %v1204
    %v1207 = vmul.f32 %v1199, %v1205
    %v1208 = vmul.f32 %v1200, %v1205
    %v1210 = vlaneseq
    %v1211 = vshrl.u32 %v1210, 7
    %v1212 = vsub.s32 0, %v1211
    %v1213 = vrot.slane %v1174, %v1212
    %v1215 = vadd.f32 %v1207, %v1213
    %v1216 = vadd.f32 %v1208, %v1213
    %v1217 = vld [vmem:[%s11] sm:$0xf]
    %v1218 = vld [vmem:[%s11 + $0x4] sm:$0xf]
    %v1219 = vld [vmem:[%s11 + $0x8] sm:$0xf]
    %v1220 = vld [vmem:[%s11 + $0xc] sm:$0xf]
    %v1221 = vpack.c.bf16 %v1216, %v1215
    %v1222 = vld [vmem:[%s12] sm:$0x1]
    %v1224 = vlaneseq
    %v1225 = vshrl.u32 %v1224, 7
    %v1226 = vsub.s32 0, %v1225
    %v1227 = vrot.slane %v1222, %v1226
    %v1233 = vunpack.c.l.b16 %v1217
    %v1234 = vunpack.c.l.b16 %v1218
    %v1235 = vunpack.c.l.b16 %v1219
    %v1236 = vunpack.c.l.b16 %v1220
    %v1237 = vpack.c.b16 %v1234, %v1233
    %v1238 = vpack.c.b16 %v1236, %v1235
    %v1242 = vsel %vm136, %v1221, 0
    %1244 = vmatprep.subr.bf16.mxu0 0
    %1245 = vmatpush1.bf16.msra.mxu0 %v1237
    %1246 = vmatprep.subr.bf16.mxu0 0
    %1247 = vmatpush1.bf16.msra.mxu0 %v1238
    %1248 = vmatprep.subr.bf16.mxu0 0
    %1249 = vmatpush1.bf16.msra.mxu0 0
    %1250 = vmatprep.subr.bf16.mxu0 0
    %1251 = vmatpush1.bf16.msra.mxu0 0
    %1252 = vmatprep.subr.bf16.mxu0 0
    %1253 = vmatpush1.bf16.msra.mxu0 0
    %1254 = vmatprep.subr.bf16.mxu0 0
    %1255 = vmatpush1.bf16.msra.mxu0 0
    %1256 = vmatprep.subr.bf16.mxu0 0
    %1257 = vmatpush1.bf16.msra.mxu0 0
    %1258 = vmatprep.subr.bf16.mxu0 0
    %1259 = vmatpush1.bf16.msra.mxu0 0
    %1260 = vmatprep.subr.bf16.mxu0 0
    %1261 = vmatpush1.bf16.msra.mxu0 0
    %1262 = vmatprep.subr.bf16.mxu0 0
    %1263 = vmatpush1.bf16.msra.mxu0 0
    %1264 = vmatprep.subr.bf16.mxu0 0
    %1265 = vmatpush1.bf16.msra.mxu0 0
    %1266 = vmatprep.subr.bf16.mxu0 0
    %1267 = vmatpush1.bf16.msra.mxu0 0
    %1268 = vmatprep.subr.bf16.mxu0 0
    %1269 = vmatpush1.bf16.msra.mxu0 0
    %1270 = vmatprep.subr.bf16.mxu0 0
    %1271 = vmatpush1.bf16.msra.mxu0 0
    %1272 = vmatprep.subr.bf16.mxu0 0
    %1273 = vmatpush1.bf16.msra.mxu0 0
    %1274 = vmatprep.subr.bf16.mxu0 0
    %1275 = vmatpush1.bf16.msra.mxu0 0
    %1276 = vmatprep.mubr.bf16.mxu0 0
    %1277 = vmatmul.mubr.bf16.gmra.mrb[0].mxu0 %v1242
    %v1278 = vpop.f32.mrb[0].mxu0
    %v1279 = vadd.f32 %v1227, %v1278
    %v1280 = vpop.f32.mrb[0].mxu0
    %v1281 = vpop.f32.mrb[0].mxu0
    %v1282 = vadd.f32 %v1227, %v1281
    %v1283 = vpop.f32.mrb[0].mxu0
    %1284 = vdwg.mxu0
    %v1285 = vmul.f32 %v1279, 0.5
    %v1286 = vmul.f32 %v1282, 0.5
    %v1287 = vmul.f32 %v1279, 0.044715
    %v1288 = vmul.f32 %v1282, 0.044715
    %v1289 = vmul.f32 %v1287, %v1279
    %v1290 = vmul.f32 %v1288, %v1282
    %v1291 = vmul.f32 %v1289, %v1279
    %v1292 = vmul.f32 %v1290, %v1282
    %v1293 = vadd.f32 %v1279, %v1291
    %v1294 = vadd.f32 %v1282, %v1292
    %v1295 = vmul.f32 %v1293, 0.7978846
    %v1296 = vmul.f32 %v1294, 0.7978846
    %v1297 = vtanh.pop %v1295
    %v1298 = vtanh.pop %v1296
    %v1299 = vadd.f32 %v1297, 1.0
    %v1300 = vadd.f32 %v1298, 1.0
    %v1301 = vmul.f32 %v1285, %v1299
    %v1302 = vmul.f32 %v1286, %v1300
    %v1303 = vld [vmem:[%s13] sm:$0xf]
    %v1304 = vld [vmem:[%s13 + $0x4] sm:$0xf]
    %v1305 = vld [vmem:[%s13 + $0x8] sm:$0xf]
    %v1306 = vld [vmem:[%s13 + $0xc] sm:$0xf]
    %v1307 = vld [vmem:[%s13 + $0x10] sm:$0xf]
    %v1308 = vld [vmem:[%s13 + $0x14] sm:$0xf]
    %v1309 = vld [vmem:[%s13 + $0x18] sm:$0xf]
    %v1310 = vld [vmem:[%s13 + $0x1c] sm:$0xf]
    %v1311 = vld [vmem:[%s13 + $0x20] sm:$0xf]
    %v1312 = vld [vmem:[%s13 + $0x24] sm:$0xf]
    %v1313 = vld [vmem:[%s13 + $0x28] sm:$0xf]
    %v1314 = vld [vmem:[%s13 + $0x2c] sm:$0xf]
    %v1315 = vld [vmem:[%s13 + $0x30] sm:$0xf]
    %v1316 = vld [vmem:[%s13 + $0x34] sm:$0xf]
    %v1317 = vld [vmem:[%s13 + $0x38] sm:$0xf]
    %v1318 = vld [vmem:[%s13 + $0x3c] sm:$0xf]
    %v1319 = vpack.c.bf16 %v1302, %v1301
    %v1336 = vunpack.c.l.b16 %v1303
    %v1337 = vunpack.c.l.b16 %v1304
    %v1338 = vunpack.c.l.b16 %v1305
    %v1339 = vunpack.c.l.b16 %v1306
    %v1340 = vunpack.c.l.b16 %v1307
    %v1341 = vunpack.c.l.b16 %v1308
    %v1342 = vunpack.c.l.b16 %v1309
    %v1343 = vunpack.c.l.b16 %v1310
    %v1344 = vunpack.c.l.b16 %v1311
    %v1345 = vunpack.c.l.b16 %v1312
    %v1346 = vunpack.c.l.b16 %v1313
    %v1347 = vunpack.c.l.b16 %v1314
    %v1348 = vunpack.c.l.b16 %v1315
    %v1349 = vunpack.c.l.b16 %v1316
    %v1350 = vunpack.c.l.b16 %v1317
    %v1351 = vunpack.c.l.b16 %v1318
    %v1352 = vpack.c.b16 %v1337, %v1336
    %v1353 = vpack.c.b16 %v1339, %v1338
    %v1354 = vpack.c.b16 %v1341, %v1340
    %v1355 = vpack.c.b16 %v1343, %v1342
    %v1356 = vpack.c.b16 %v1345, %v1344
    %v1357 = vpack.c.b16 %v1347, %v1346
    %v1358 = vpack.c.b16 %v1349, %v1348
    %v1359 = vpack.c.b16 %v1351, %v1350
    %1368 = vmatprep.subr.bf16.mxu0 0
    %1369 = vmatpush1.bf16.msra.mxu0 %v1352
    %1370 = vmatprep.subr.bf16.mxu0 0
    %1371 = vmatpush1.bf16.msra.mxu0 %v1353
    %1372 = vmatprep.subr.bf16.mxu0 0
    %1373 = vmatpush1.bf16.msra.mxu0 %v1354
    %1374 = vmatprep.subr.bf16.mxu0 0
    %1375 = vmatpush1.bf16.msra.mxu0 %v1355
    %1376 = vmatprep.subr.bf16.mxu0 0
    %1377 = vmatpush1.bf16.msra.mxu0 %v1356
    %1378 = vmatprep.subr.bf16.mxu0 0
    %1379 = vmatpush1.bf16.msra.mxu0 %v1357
    %1380 = vmatprep.subr.bf16.mxu0 0
    %1381 = vmatpush1.bf16.msra.mxu0 %v1358
    %1382 = vmatprep.subr.bf16.mxu0 0
    %1383 = vmatpush1.bf16.msra.mxu0 %v1359
    %1384 = vmatprep.subr.bf16.mxu0 0
    %1385 = vmatpush1.bf16.msra.mxu0 0
    %1386 = vmatprep.subr.bf16.mxu0 0
    %1387 = vmatpush1.bf16.msra.mxu0 0
    %1388 = vmatprep.subr.bf16.mxu0 0
    %1389 = vmatpush1.bf16.msra.mxu0 0
    %1390 = vmatprep.subr.bf16.mxu0 0
    %1391 = vmatpush1.bf16.msra.mxu0 0
    %1392 = vmatprep.subr.bf16.mxu0 0
    %1393 = vmatpush1.bf16.msra.mxu0 0
    %1394 = vmatprep.subr.bf16.mxu0 0
    %1395 = vmatpush1.bf16.msra.mxu0 0
    %1396 = vmatprep.subr.bf16.mxu0 0
    %1397 = vmatpush1.bf16.msra.mxu0 0
    %1398 = vmatprep.subr.bf16.mxu0 0
    %1399 = vmatpush1.bf16.msra.mxu0 0
    %1400 = vmatprep.mubr.bf16.mxu0 0
    %1401 = vmatmul.mubr.bf16.gmra.mrb[0].mxu0 %v1319
    %v1402 = vpop.f32.mrb[0].mxu0
    %v1403 = vadd.f32 0.0, %v1402
    %v1404 = vpop.f32.mrb[0].mxu0
    %v1405 = vpop.f32.mrb[0].mxu0
    %v1406 = vadd.f32 0.0, %v1405
    %v1407 = vpop.f32.mrb[0].mxu0
    %1408 = vdwg.mxu0
    %v1409 = vadd.f32 %v1171, %v1403
    %v1410 = vadd.f32 %v1172, %v1406
    %v1411 = vld [vmem:[%s14] sm:$0x1]
    %v1413 = vlaneseq
    %v1414 = vshrl.u32 %v1413, 7
    %v1415 = vsub.s32 0, %v1414
    %v1416 = vrot.slane %v1411, %v1415
    %v1418 = vadd.f32 %v1409, %v1416
    %v1419 = vadd.f32 %v1410, %v1416
    %s1420 = scalar_lea.vmem %s3, 1
    %v1421 = vld [vmem:[%s1420] sm:$0x1]
    %s1422 = scalar_lea.vmem %s4, 1
    %v1423 = vld [vmem:[%s1422] sm:$0x1]
    %v1424 = vsel %vm136, %v1418, 0.0
    %1425 = vadd.xlane.f32.xlu0 %v1424
    %v1426 = vpop.xlane.xlu0 %1425
    %v1427 = vsel %vm136, %v1419, 0.0
    %1428 = vadd.xlane.f32.xlu0 %v1427
    %v1429 = vpop.xlane.xlu0 %1428
    %v1430 = vmul.f32 %v1426, %v143
    %v1431 = vmul.f32 %v1429, %v143
    %v1432 = vsub.f32 %v1418, %v1430
    %v1433 = vsub.f32 %v1419, %v1431
    %v1434 = vmul.f32 %v1432, %v1432
    %v1435 = vmul.f32 %v1433, %v1433
    %v1436 = vsel %vm136, %v1434, 0.0
    %1437 = vadd.xlane.f32.xlu0 %v1436
    %v1438 = vpop.xlane.xlu0 %1437
    %v1439 = vsel %vm136, %v1435, 0.0
    %1440 = vadd.xlane.f32.xlu0 %v1439
    %v1441 = vpop.xlane.xlu0 %1440
    %v1442 = vmul.f32 %v1438, %v143
    %v1443 = vmul.f32 %v1441, %v143
    %v1444 = vadd.f32 %v1442, 1e-05
    %v1445 = vadd.f32 %v1443, 1e-05
    %v1446 = vrsqrt.pop %v1444
    %v1447 = vrsqrt.pop %v1445
    %v1448 = vmul.f32 %v1432, %v1446
    %v1449 = vmul.f32 %v1433, %v1447
    %v1451 = vlaneseq
    %v1452 = vshrl.u32 %v1451, 7
    %v1453 = vsub.s32 0, %v1452
    %v1454 = vrot.slane %v1421, %v1453
    %v1456 = vmul.f32 %v1448, %v1454
    %v1457 = vmul.f32 %v1449, %v1454
    %v1459 = vlaneseq
    %v1460 = vshrl.u32 %v1459, 7
    %v1461 = vsub.s32 0, %v1460
    %v1462 = vrot.slane %v1423, %v1461
    %v1464 = vadd.f32 %v1456, %v1462
    %v1465 = vadd.f32 %v1457, %v1462
    %s1466 = scalar_lea.vmem %s5, 16
    %v1467 = vld [vmem:[%s1466] sm:$0xf]
    %v1468 = vld [vmem:[%s1466 + $0x4] sm:$0xf]
    %v1469 = vld [vmem:[%s1466 + $0x8] sm:$0xf]
    %v1470 = vld [vmem:[%s1466 + $0xc] sm:$0xf]
    %v1471 = vpack.c.bf16 %v1465, %v1464
    %s1472 = scalar_lea.vmem %s6, 1
    %v1473 = vld [vmem:[%s1472] sm:$0x1]
    %v1475 = vlaneseq
    %v1476 = vshrl.u32 %v1475, 7
    %v1477 = vsub.s32 0, %v1476
    %v1478 = vrot.slane %v1473, %v1477
    %v1484 = vunpack.c.l.b16 %v1467
    %v1485 = vunpack.c.l.b16 %v1468
    %v1486 = vunpack.c.l.b16 %v1469
    %v1487 = vunpack.c.l.b16 %v1470
    %v1488 = vpack.c.b16 %v1485, %v1484
    %v1489 = vpack.c.b16 %v1487, %v1486
    %v1493 = vsel %vm136, %v1471, 0
    %1495 = vmatprep.subr.bf16.mxu0 0
    %1496 = vmatpush1.bf16.msra.mxu0 %v1488
    %1497 = vmatprep.subr.bf16.mxu0 0
    %1498 = vmatpush1.bf16.msra.mxu0 %v1489
    %1499 = vmatprep.subr.bf16.mxu0 0
    %1500 = vmatpush1.bf16.msra.mxu0 0
    %1501 = vmatprep.subr.bf16.mxu0 0
    %1502 = vmatpush1.bf16.msra.mxu0 0
    %1503 = vmatprep.subr.bf16.mxu0 0
    %1504 = vmatpush1.bf16.msra.mxu0 0
    %1505 = vmatprep.subr.bf16.mxu0 0
    %1506 = vmatpush1.bf16.msra.mxu0 0
    %1507 = vmatprep.subr.bf16.mxu0 0
    %1508 = vmatpush1.bf16.msra.mxu0 0
    %1509 = vmatprep.subr.bf16.mxu0 0
    %1510 = vmatpush1.bf16.msra.mxu0 0
    %1511 = vmatprep.subr.bf16.mxu0 0
    %1512 = vmatpush1.bf16.msra.mxu0 0
    %1513 = vmatprep.subr.bf16.mxu0 0
    %1514 = vmatpush1.bf16.msra.mxu0 0
    %1515 = vmatprep.subr.bf16.mxu0 0
    %1516 = vmatpush1.bf16.msra.mxu0 0
    %1517 = vmatprep.subr.bf16.mxu0 0
    %1518 = vmatpush1.bf16.msra.mxu0 0
    %1519 = vmatprep.subr.bf16.mxu0 0
    %1520 = vmatpush1.bf16.msra.mxu0 0
    %1521 = vmatprep.subr.bf16.mxu0 0
    %1522 = vmatpush1.bf16.msra.mxu0 0
    %1523 = vmatprep.subr.bf16.mxu0 0
    %1524 = vmatpush1.bf16.msra.mxu0 0
    %1525 = vmatprep.subr.bf16.mxu0 0
    %1526 = vmatpush1.bf16.msra.mxu0 0
    %1527 = vmatprep.mubr.bf16.mxu0 0
    %1528 = vmatmul.mubr.bf16.gmra.mrb[0].mxu0 %v1493
    %v1529 = vpop.f32.mrb[0].mxu0
    %v1530 = vadd.f32 %v1478, %v1529
    %v1531 = vpop.f32.mrb[0].mxu0
    %v1532 = vpop.f32.mrb[0].mxu0
    %v1533 = vadd.f32 %v1478, %v1532
    %v1534 = vpop.f32.mrb[0].mxu0
    %1535 = vdwg.mxu0
    %1538 = vrot.lane.b32.xlu0 %v1530, 120
    %v1539 = vpop.permute.xlu0 %1538
    %1540 = vrot.lane.b32.xlu0 %v1533, 120
    %v1541 = vpop.permute.xlu0 %1540
    %1542 = vrot.lane.b32.xlu0 %v1530, 112
    %v1543 = vpop.permute.xlu0 %1542
    %1544 = vrot.lane.b32.xlu0 %v1533, 112
    %v1545 = vpop.permute.xlu0 %1544
    %1546 = vrot.lane.b32.xlu0 %v1530, 104
    %v1547 = vpop.permute.xlu0 %1546
    %1548 = vrot.lane.b32.xlu0 %v1533, 104
    %v1549 = vpop.permute.xlu0 %1548
    %1550 = vrot.lane.b32.xlu0 %v1530, 96
    %v1551 = vpop.permute.xlu0 %1550
    %1552 = vrot.lane.b32.xlu0 %v1533, 96
    %v1553 = vpop.permute.xlu0 %1552
    %v1554 = vsel %vm266, %v1530, 0
    %v1556 = vsel %vm266, %v1533, 0
    %v1558 = vsel %vm266, %v1551, 0
    %v1560 = vsel %vm266, %v1553, 0
    %1562 = vmatprep.subr.mxu0 0.0
    %1563 = vmatpush1.xpose.msra.mxu0 %v1558
    %1564 = vmatprep.subr.mxu0 0.0
    %1565 = vmatpush1.xpose.msra.mxu0 %v1560
    %1566 = vmatprep.subr.mxu0 0.0
    %1567 = vmatpush1.xpose.msra.mxu0 0.0
    %1568 = vmatprep.subr.mxu0 0.0
    %1569 = vmatpush1.xpose.msra.mxu0 0.0
    %1570 = vmatprep.subr.mxu0 0.0
    %1571 = vmatpush1.xpose.msra.mxu0 0.0
    %1572 = vmatprep.subr.mxu0 0.0
    %1573 = vmatpush1.xpose.msra.mxu0 0.0
    %1574 = vmatprep.subr.mxu0 0.0
    %1575 = vmatpush1.xpose.msra.mxu0 0.0
    %1576 = vmatprep.subr.mxu0 0.0
    %1577 = vmatpush1.xpose.msra.mxu0 0.0
    %1578 = vmatprep.subr.mxu0 0.0
    %1579 = vmatpush1.xpose.msra.mxu0 0.0
    %1580 = vmatprep.subr.mxu0 0.0
    %1581 = vmatpush1.xpose.msra.mxu0 0.0
    %1582 = vmatprep.subr.mxu0 0.0
    %1583 = vmatpush1.xpose.msra.mxu0 0.0
    %1584 = vmatprep.subr.mxu0 0.0
    %1585 = vmatpush1.xpose.msra.mxu0 0.0
    %1586 = vmatprep.subr.mxu0 0.0
    %1587 = vmatpush1.xpose.msra.mxu0 0.0
    %1588 = vmatprep.subr.mxu0 0.0
    %1589 = vmatpush1.xpose.msra.mxu0 0.0
    %1590 = vmatprep.subr.mxu0 0.0
    %1591 = vmatpush1.xpose.msra.mxu0 0.0
    %1592 = vmatprep.subr.mxu0 0.0
    %1593 = vmatpush1.xpose.msra.mxu0 0.0
    %1594 = vmatprep.subr.mxu0 0.0
    %1595 = vmatpush1.xpose.msra.mxu0 0.0
    %1596 = vmatprep.subr.mxu0 0.0
    %1597 = vmatpush1.xpose.msra.mxu0 0.0
    %1598 = vmatprep.subr.mxu0 0.0
    %1599 = vmatpush1.xpose.msra.mxu0 0.0
    %1600 = vmatprep.subr.mxu0 0.0
    %1601 = vmatpush1.xpose.msra.mxu0 0.0
    %1602 = vmatprep.subr.mxu0 0.0
    %1603 = vmatpush1.xpose.msra.mxu0 0.0
    %1604 = vmatprep.subr.mxu0 0.0
    %1605 = vmatpush1.xpose.msra.mxu0 0.0
    %1606 = vmatprep.subr.mxu0 0.0
    %1607 = vmatpush1.xpose.msra.mxu0 0.0
    %1608 = vmatprep.subr.mxu0 0.0
    %1609 = vmatpush1.xpose.msra.mxu0 0.0
    %1610 = vmatprep.subr.mxu0 0.0
    %1611 = vmatpush1.xpose.msra.mxu0 0.0
    %1612 = vmatprep.subr.mxu0 0.0
    %1613 = vmatpush1.xpose.msra.mxu0 0.0
    %1614 = vmatprep.subr.mxu0 0.0
    %1615 = vmatpush1.xpose.msra.mxu0 0.0
    %1616 = vmatprep.subr.mxu0 0.0
    %1617 = vmatpush1.xpose.msra.mxu0 0.0
    %1618 = vmatprep.subr.mxu0 0.0
    %1619 = vmatpush1.xpose.msra.mxu0 0.0
    %1620 = vmatprep.subr.mxu0 0.0
    %1621 = vmatpush1.xpose.msra.mxu0 0.0
    %1622 = vmatprep.subr.mxu0 0.0
    %1623 = vmatpush1.xpose.msra.mxu0 0.0
    %1624 = vmatprep.subr.mxu0 0.0
    %1625 = vmatpush1.xpose.msra.mxu0 0.0
    %1626 = vmatprep.mubr.f32.mxu0 0.0
    %1627 = vmatmul.mubr.f32.gmra.mrb[0].mxu0 %v1554
    %v1628 = vpop.f32.mrb[0].mxu0
    %v1629 = vadd.f32 0.0, %v1628
    %v1630 = vpop.f32.mrb[0].mxu0
    %1631 = vmatprep.mubr.f32.mxu0 0.0
    %1632 = vmatmul.mubr.f32.gmra.mrb[0].mxu0 %v1556
    %v1633 = vpop.f32.mrb[0].mxu0
    %v1634 = vadd.f32 0.0, %v1633
    %v1635 = vpop.f32.mrb[0].mxu0
    %1636 = vdwg.mxu0
    %1637 = vrot.lane.b32.xlu0 %v1539, 96
    %v1638 = vpop.permute.xlu0 %1637
    %1639 = vrot.lane.b32.xlu0 %v1541, 96
    %v1640 = vpop.permute.xlu0 %1639
    %v1641 = vsel %vm266, %v1539, 0
    %v1643 = vsel %vm266, %v1541, 0
    %v1645 = vsel %vm266, %v1638, 0
    %v1647 = vsel %vm266, %v1640, 0
    %1649 = vmatprep.subr.mxu0 0.0
    %1650 = vmatpush1.xpose.msra.mxu0 %v1645
    %1651 = vmatprep.subr.mxu0 0.0
    %1652 = vmatpush1.xpose.msra.mxu0 %v1647
    %1653 = vmatprep.subr.mxu0 0.0
    %1654 = vmatpush1.xpose.msra.mxu0 0.0
    %1655 = vmatprep.subr.mxu0 0.0
    %1656 = vmatpush1.xpose.msra.mxu0 0.0
    %1657 = vmatprep.subr.mxu0 0.0
    %1658 = vmatpush1.xpose.msra.mxu0 0.0
    %1659 = vmatprep.subr.mxu0 0.0
    %1660 = vmatpush1.xpose.msra.mxu0 0.0
    %1661 = vmatprep.subr.mxu0 0.0
    %1662 = vmatpush1.xpose.msra.mxu0 0.0
    %1663 = vmatprep.subr.mxu0 0.0
    %1664 = vmatpush1.xpose.msra.mxu0 0.0
    %1665 = vmatprep.subr.mxu0 0.0
    %1666 = vmatpush1.xpose.msra.mxu0 0.0
    %1667 = vmatprep.subr.mxu0 0.0
    %1668 = vmatpush1.xpose.msra.mxu0 0.0
    %1669 = vmatprep.subr.mxu0 0.0
    %1670 = vmatpush1.xpose.msra.mxu0 0.0
    %1671 = vmatprep.subr.mxu0 0.0
    %1672 = vmatpush1.xpose.msra.mxu0 0.0
    %1673 = vmatprep.subr.mxu0 0.0
    %1674 = vmatpush1.xpose.msra.mxu0 0.0
    %1675 = vmatprep.subr.mxu0 0.0
    %1676 = vmatpush1.xpose.msra.mxu0 0.0
    %1677 = vmatprep.subr.mxu0 0.0
    %1678 = vmatpush1.xpose.msra.mxu0 0.0
    %1679 = vmatprep.subr.mxu0 0.0
    %1680 = vmatpush1.xpose.msra.mxu0 0.0
    %1681 = vmatprep.subr.mxu0 0.0
    %1682 = vmatpush1.xpose.msra.mxu0 0.0
    %1683 = vmatprep.subr.mxu0 0.0
    %1684 = vmatpush1.xpose.msra.mxu0 0.0
    %1685 = vmatprep.subr.mxu0 0.0
    %1686 = vmatpush1.xpose.msra.mxu0 0.0
    %1687 = vmatprep.subr.mxu0 0.0
    %1688 = vmatpush1.xpose.msra.mxu0 0.0
    %1689 = vmatprep.subr.mxu0 0.0
    %1690 = vmatpush1.xpose.msra.mxu0 0.0
    %1691 = vmatprep.subr.mxu0 0.0
    %1692 = vmatpush1.xpose.msra.mxu0 0.0
    %1693 = vmatprep.subr.mxu0 0.0
    %1694 = vmatpush1.xpose.msra.mxu0 0.0
    %1695 = vmatprep.subr.mxu0 0.0
    %1696 = vmatpush1.xpose.msra.mxu0 0.0
    %1697 = vmatprep.subr.mxu0 0.0
    %1698 = vmatpush1.xpose.msra.mxu0 0.0
    %1699 = vmatprep.subr.mxu0 0.0
    %1700 = vmatpush1.xpose.msra.mxu0 0.0
    %1701 = vmatprep.subr.mxu0 0.0
    %1702 = vmatpush1.xpose.msra.mxu0 0.0
    %1703 = vmatprep.subr.mxu0 0.0
    %1704 = vmatpush1.xpose.msra.mxu0 0.0
    %1705 = vmatprep.subr.mxu0 0.0
    %1706 = vmatpush1.xpose.msra.mxu0 0.0
    %1707 = vmatprep.subr.mxu0 0.0
    %1708 = vmatpush1.xpose.msra.mxu0 0.0
    %1709 = vmatprep.subr.mxu0 0.0
    %1710 = vmatpush1.xpose.msra.mxu0 0.0
    %1711 = vmatprep.subr.mxu0 0.0
    %1712 = vmatpush1.xpose.msra.mxu0 0.0
    %1713 = vmatprep.mubr.f32.mxu0 0.0
    %1714 = vmatmul.mubr.f32.gmra.mrb[0].mxu0 %v1641
    %v1715 = vpop.f32.mrb[0].mxu0
    %v1716 = vadd.f32 0.0, %v1715
    %v1717 = vpop.f32.mrb[0].mxu0
    %1718 = vmatprep.mubr.f32.mxu0 0.0
    %1719 = vmatmul.mubr.f32.gmra.mrb[0].mxu0 %v1643
    %v1720 = vpop.f32.mrb[0].mxu0
    %v1721 = vadd.f32 0.0, %v1720
    %v1722 = vpop.f32.mrb[0].mxu0
    %1723 = vdwg.mxu0
    %1724 = vrot.lane.b32.xlu0 %v1543, 96
    %v1725 = vpop.permute.xlu0 %1724
    %1726 = vrot.lane.b32.xlu0 %v1545, 96
    %v1727 = vpop.permute.xlu0 %1726
    %v1728 = vsel %vm266, %v1543, 0
    %v1730 = vsel %vm266, %v1545, 0
    %v1732 = vsel %vm266, %v1725, 0
    %v1734 = vsel %vm266, %v1727, 0
    %1736 = vmatprep.subr.mxu0 0.0
    %1737 = vmatpush1.xpose.msra.mxu0 %v1732
    %1738 = vmatprep.subr.mxu0 0.0
    %1739 = vmatpush1.xpose.msra.mxu0 %v1734
    %1740 = vmatprep.subr.mxu0 0.0
    %1741 = vmatpush1.xpose.msra.mxu0 0.0
    %1742 = vmatprep.subr.mxu0 0.0
    %1743 = vmatpush1.xpose.msra.mxu0 0.0
    %1744 = vmatprep.subr.mxu0 0.0
    %1745 = vmatpush1.xpose.msra.mxu0 0.0
    %1746 = vmatprep.subr.mxu0 0.0
    %1747 = vmatpush1.xpose.msra.mxu0 0.0
    %1748 = vmatprep.subr.mxu0 0.0
    %1749 = vmatpush1.xpose.msra.mxu0 0.0
    %1750 = vmatprep.subr.mxu0 0.0
    %1751 = vmatpush1.xpose.msra.mxu0 0.0
    %1752 = vmatprep.subr.mxu0 0.0
    %1753 = vmatpush1.xpose.msra.mxu0 0.0
    %1754 = vmatprep.subr.mxu0 0.0
    %1755 = vmatpush1.xpose.msra.mxu0 0.0
    %1756 = vmatprep.subr.mxu0 0.0
    %1757 = vmatpush1.xpose.msra.mxu0 0.0
    %1758 = vmatprep.subr.mxu0 0.0
    %1759 = vmatpush1.xpose.msra.mxu0 0.0
    %1760 = vmatprep.subr.mxu0 0.0
    %1761 = vmatpush1.xpose.msra.mxu0 0.0
    %1762 = vmatprep.subr.mxu0 0.0
    %1763 = vmatpush1.xpose.msra.mxu0 0.0
    %1764 = vmatprep.subr.mxu0 0.0
    %1765 = vmatpush1.xpose.msra.mxu0 0.0
    %1766 = vmatprep.subr.mxu0 0.0
    %1767 = vmatpush1.xpose.msra.mxu0 0.0
    %1768 = vmatprep.subr.mxu0 0.0
    %1769 = vmatpush1.xpose.msra.mxu0 0.0
    %1770 = vmatprep.subr.mxu0 0.0
    %1771 = vmatpush1.xpose.msra.mxu0 0.0
    %1772 = vmatprep.subr.mxu0 0.0
    %1773 = vmatpush1.xpose.msra.mxu0 0.0
    %1774 = vmatprep.subr.mxu0 0.0
    %1775 = vmatpush1.xpose.msra.mxu0 0.0
    %1776 = vmatprep.subr.mxu0 0.0
    %1777 = vmatpush1.xpose.msra.mxu0 0.0
    %1778 = vmatprep.subr.mxu0 0.0
    %1779 = vmatpush1.xpose.msra.mxu0 0.0
    %1780 = vmatprep.subr.mxu0 0.0
    %1781 = vmatpush1.xpose.msra.mxu0 0.0
    %1782 = vmatprep.subr.mxu0 0.0
    %1783 = vmatpush1.xpose.msra.mxu0 0.0
    %1784 = vmatprep.subr.mxu0 0.0
    %1785 = vmatpush1.xpose.msra.mxu0 0.0
    %1786 = vmatprep.subr.mxu0 0.0
    %1787 = vmatpush1.xpose.msra.mxu0 0.0
    %1788 = vmatprep.subr.mxu0 0.0
    %1789 = vmatpush1.xpose.msra.mxu0 0.0
    %1790 = vmatprep.subr.mxu0 0.0
    %1791 = vmatpush1.xpose.msra.mxu0 0.0
    %1792 = vmatprep.subr.mxu0 0.0
    %1793 = vmatpush1.xpose.msra.mxu0 0.0
    %1794 = vmatprep.subr.mxu0 0.0
    %1795 = vmatpush1.xpose.msra.mxu0 0.0
    %1796 = vmatprep.subr.mxu0 0.0
    %1797 = vmatpush1.xpose.msra.mxu0 0.0
    %1798 = vmatprep.subr.mxu0 0.0
    %1799 = vmatpush1.xpose.msra.mxu0 0.0
    %1800 = vmatprep.mubr.f32.mxu0 0.0
    %1801 = vmatmul.mubr.f32.gmra.mrb[0].mxu0 %v1728
    %v1802 = vpop.f32.mrb[0].mxu0
    %v1803 = vadd.f32 0.0, %v1802
    %v1804 = vpop.f32.mrb[0].mxu0
    %1805 = vmatprep.mubr.f32.mxu0 0.0
    %1806 = vmatmul.mubr.f32.gmra.mrb[0].mxu0 %v1730
    %v1807 = vpop.f32.mrb[0].mxu0
    %v1808 = vadd.f32 0.0, %v1807
    %v1809 = vpop.f32.mrb[0].mxu0
    %1810 = vdwg.mxu0
    %1811 = vrot.lane.b32.xlu0 %v1547, 96
    %v1812 = vpop.permute.xlu0 %1811
    %1813 = vrot.lane.b32.xlu0 %v1549, 96
    %v1814 = vpop.permute.xlu0 %1813
    %v1815 = vsel %vm266, %v1547, 0
    %v1817 = vsel %vm266, %v1549, 0
    %v1819 = vsel %vm266, %v1812, 0
    %v1821 = vsel %vm266, %v1814, 0
    %1823 = vmatprep.subr.mxu0 0.0
    %1824 = vmatpush1.xpose.msra.mxu0 %v1819
    %1825 = vmatprep.subr.mxu0 0.0
    %1826 = vmatpush1.xpose.msra.mxu0 %v1821
    %1827 = vmatprep.subr.mxu0 0.0
    %1828 = vmatpush1.xpose.msra.mxu0 0.0
    %1829 = vmatprep.subr.mxu0 0.0
    %1830 = vmatpush1.xpose.msra.mxu0 0.0
    %1831 = vmatprep.subr.mxu0 0.0
    %1832 = vmatpush1.xpose.msra.mxu0 0.0
    %1833 = vmatprep.subr.mxu0 0.0
    %1834 = vmatpush1.xpose.msra.mxu0 0.0
    %1835 = vmatprep.subr.mxu0 0.0
    %1836 = vmatpush1.xpose.msra.mxu0 0.0
    %1837 = vmatprep.subr.mxu0 0.0
    %1838 = vmatpush1.xpose.msra.mxu0 0.0
    %1839 = vmatprep.subr.mxu0 0.0
    %1840 = vmatpush1.xpose.msra.mxu0 0.0
    %1841 = vmatprep.subr.mxu0 0.0
    %1842 = vmatpush1.xpose.msra.mxu0 0.0
    %1843 = vmatprep.subr.mxu0 0.0
    %1844 = vmatpush1.xpose.msra.mxu0 0.0
    %1845 = vmatprep.subr.mxu0 0.0
    %1846 = vmatpush1.xpose.msra.mxu0 0.0
    %1847 = vmatprep.subr.mxu0 0.0
    %1848 = vmatpush1.xpose.msra.mxu0 0.0
    %1849 = vmatprep.subr.mxu0 0.0
    %1850 = vmatpush1.xpose.msra.mxu0 0.0
    %1851 = vmatprep.subr.mxu0 0.0
    %1852 = vmatpush1.xpose.msra.mxu0 0.0
    %1853 = vmatprep.subr.mxu0 0.0
    %1854 = vmatpush1.xpose.msra.mxu0 0.0
    %1855 = vmatprep.subr.mxu0 0.0
    %1856 = vmatpush1.xpose.msra.mxu0 0.0
    %1857 = vmatprep.subr.mxu0 0.0
    %1858 = vmatpush1.xpose.msra.mxu0 0.0
    %1859 = vmatprep.subr.mxu0 0.0
    %1860 = vmatpush1.xpose.msra.mxu0 0.0
    %1861 = vmatprep.subr.mxu0 0.0
    %1862 = vmatpush1.xpose.msra.mxu0 0.0
    %1863 = vmatprep.subr.mxu0 0.0
    %1864 = vmatpush1.xpose.msra.mxu0 0.0
    %1865 = vmatprep.subr.mxu0 0.0
    %1866 = vmatpush1.xpose.msra.mxu0 0.0
    %1867 = vmatprep.subr.mxu0 0.0
    %1868 = vmatpush1.xpose.msra.mxu0 0.0
    %1869 = vmatprep.subr.mxu0 0.0
    %1870 = vmatpush1.xpose.msra.mxu0 0.0
    %1871 = vmatprep.subr.mxu0 0.0
    %1872 = vmatpush1.xpose.msra.mxu0 0.0
    %1873 = vmatprep.subr.mxu0 0.0
    %1874 = vmatpush1.xpose.msra.mxu0 0.0
    %1875 = vmatprep.subr.mxu0 0.0
    %1876 = vmatpush1.xpose.msra.mxu0 0.0
    %1877 = vmatprep.subr.mxu0 0.0
    %1878 = vmatpush1.xpose.msra.mxu0 0.0
    %1879 = vmatprep.subr.mxu0 0.0
    %1880 = vmatpush1.xpose.msra.mxu0 0.0
    %1881 = vmatprep.subr.mxu0 0.0
    %1882 = vmatpush1.xpose.msra.mxu0 0.0
    %1883 = vmatprep.subr.mxu0 0.0
    %1884 = vmatpush1.xpose.msra.mxu0 0.0
    %1885 = vmatprep.subr.mxu0 0.0
    %1886 = vmatpush1.xpose.msra.mxu0 0.0
    %1887 = vmatprep.mubr.f32.mxu0 0.0
    %1888 = vmatmul.mubr.f32.gmra.mrb[0].mxu0 %v1815
    %v1889 = vpop.f32.mrb[0].mxu0
    %v1890 = vadd.f32 0.0, %v1889
    %v1891 = vpop.f32.mrb[0].mxu0
    %1892 = vmatprep.mubr.f32.mxu0 0.0
    %1893 = vmatmul.mubr.f32.gmra.mrb[0].mxu0 %v1817
    %v1894 = vpop.f32.mrb[0].mxu0
    %v1895 = vadd.f32 0.0, %v1894
    %v1896 = vpop.f32.mrb[0].mxu0
    %1897 = vdwg.mxu0
    %v1898 = vmul.f32 %v1629, 0.35355338
    %v1899 = vmul.f32 %v1634, 0.35355338
    %v1900 = vmul.f32 %v1716, 0.35355338
    %v1901 = vmul.f32 %v1721, 0.35355338
    %v1902 = vmul.f32 %v1803, 0.35355338
    %v1903 = vmul.f32 %v1808, 0.35355338
    %v1904 = vmul.f32 %v1890, 0.35355338
    %v1905 = vmul.f32 %v1895, 0.35355338
    %v1906 = vadd.f32 %v1898, %v132
    %v1907 = vadd.f32 %v1899, %v133
    %v1908 = vadd.f32 %v1900, %v132
    %v1909 = vadd.f32 %v1901, %v133
    %v1910 = vadd.f32 %v1902, %v132
    %v1911 = vadd.f32 %v1903, %v133
    %v1912 = vadd.f32 %v1904, %v132
    %v1913 = vadd.f32 %v1905, %v133
    %v1914 = vsel %vm627, %v1906, -inf
    %1915 = vmax.xlane.f32.xlu0 %v1914
    %v1916 = vpop.xlane.xlu0 %1915
    %v1917 = vsel %vm627, %v1907, -inf
    %1918 = vmax.xlane.f32.xlu0 %v1917
    %v1919 = vpop.xlane.xlu0 %1918
    %v1920 = vsel %vm627, %v1908, -inf
    %1921 = vmax.xlane.f32.xlu0 %v1920
    %v1922 = vpop.xlane.xlu0 %1921
    %v1923 = vsel %vm627, %v1909, -inf
    %1924 = vmax.xlane.f32.xlu0 %v1923
    %v1925 = vpop.xlane.xlu0 %1924
    %v1926 = vsel %vm627, %v1910, -inf
    %1927 = vmax.xlane.f32.xlu0 %v1926
    %v1928 = vpop.xlane.xlu0 %1927
    %v1929 = vsel %vm627, %v1911, -inf
    %1930 = vmax.xlane.f32.xlu0 %v1929
    %v1931 = vpop.xlane.xlu0 %1930
    %v1932 = vsel %vm627, %v1912, -inf
    %1933 = vmax.xlane.f32.xlu0 %v1932
    %v1934 = vpop.xlane.xlu0 %1933
    %v1935 = vsel %vm627, %v1913, -inf
    %1936 = vmax.xlane.f32.xlu0 %v1935
    %v1937 = vpop.xlane.xlu0 %1936
    %v1938 = vsub.f32 %v1906, %v1916
    %v1939 = vsub.f32 %v1907, %v1919
    %v1940 = vsub.f32 %v1908, %v1922
    %v1941 = vsub.f32 %v1909, %v1925
    %v1942 = vsub.f32 %v1910, %v1928
    %v1943 = vsub.f32 %v1911, %v1931
    %v1944 = vsub.f32 %v1912, %v1934
    %v1945 = vsub.f32 %v1913, %v1937
    %v1946 = vmul.f32 %v1938, 1.442695
    %v1947 = vpow.pop %v1946
    %v1948 = vmul.f32 %v1939, 1.442695
    %v1949 = vpow.pop %v1948
    %v1950 = vmul.f32 %v1940, 1.442695
    %v1951 = vpow.pop %v1950
    %v1952 = vmul.f32 %v1941, 1.442695
    %v1953 = vpow.pop %v1952
    %v1954 = vmul.f32 %v1942, 1.442695
    %v1955 = vpow.pop %v1954
    %v1956 = vmul.f32 %v1943, 1.442695
    %v1957 = vpow.pop %v1956
    %v1958 = vmul.f32 %v1944, 1.442695
    %v1959 = vpow.pop %v1958
    %v1960 = vmul.f32 %v1945, 1.442695
    %v1961 = vpow.pop %v1960
    %v1962 = vsel %vm627, %v1947, 0.0
    %1963 = vadd.xlane.f32.xlu0 %v1962
    %v1964 = vpop.xlane.xlu0 %1963
    %v1965 = vsel %vm627, %v1949, 0.0
    %1966 = vadd.xlane.f32.xlu0 %v1965
    %v1967 = vpop.xlane.xlu0 %1966
    %v1968 = vsel %vm627, %v1951, 0.0
    %1969 = vadd.xlane.f32.xlu0 %v1968
    %v1970 = vpop.xlane.xlu0 %1969
    %v1971 = vsel %vm627, %v1953, 0.0
    %1972 = vadd.xlane.f32.xlu0 %v1971
    %v1973 = vpop.xlane.xlu0 %1972
    %v1974 = vsel %vm627, %v1955, 0.0
    %1975 = vadd.xlane.f32.xlu0 %v1974
    %v1976 = vpop.xlane.xlu0 %1975
    %v1977 = vsel %vm627, %v1957, 0.0
    %1978 = vadd.xlane.f32.xlu0 %v1977
    %v1979 = vpop.xlane.xlu0 %1978
    %v1980 = vsel %vm627, %v1959, 0.0
    %1981 = vadd.xlane.f32.xlu0 %v1980
    %v1982 = vpop.xlane.xlu0 %1981
    %v1983 = vsel %vm627, %v1961, 0.0
    %1984 = vadd.xlane.f32.xlu0 %v1983
    %v1985 = vpop.xlane.xlu0 %1984
    %v1986 = vrcp.pop %v1964
    %v1987 = vmul.f32 %v1947, %v1986
    %v1988 = vrcp.pop %v1967
    %v1989 = vmul.f32 %v1949, %v1988
    %v1990 = vrcp.pop %v1970
    %v1991 = vmul.f32 %v1951, %v1990
    %v1992 = vrcp.pop %v1973
    %v1993 = vmul.f32 %v1953, %v1992
    %v1994 = vrcp.pop %v1976
    %v1995 = vmul.f32 %v1955, %v1994
    %v1996 = vrcp.pop %v1979
    %v1997 = vmul.f32 %v1957, %v1996
    %v1998 = vrcp.pop %v1982
    %v1999 = vmul.f32 %v1959, %v1998
    %v2000 = vrcp.pop %v1985
    %v2001 = vmul.f32 %v1961, %v2000
    %2002 = vrot.lane.b32.xlu0 %v1530, 64
    %v2003 = vpop.permute.xlu0 %2002
    %2004 = vrot.lane.b32.xlu0 %v1533, 64
    %v2005 = vpop.permute.xlu0 %2004
    %v2009 = vsel %vm627, %v1987, 0
    %v2012 = vsel %vm627, %v1989, 0
    %2014 = vmatprep.subr.mxu0 0.0
    %2015 = vmatpush1.msra.mxu0 %v2003
    %2016 = vmatprep.subr.mxu0 0.0
    %2017 = vmatpush1.msra.mxu0 %v2005
    %2018 = vmatprep.subr.mxu0 0.0
    %2019 = vmatpush1.msra.mxu0 0.0
    %2020 = vmatprep.subr.mxu0 0.0
    %2021 = vmatpush1.msra.mxu0 0.0
    %2022 = vmatprep.subr.mxu0 0.0
    %2023 = vmatpush1.msra.mxu0 0.0
    %2024 = vmatprep.subr.mxu0 0.0
    %2025 = vmatpush1.msra.mxu0 0.0
    %2026 = vmatprep.subr.mxu0 0.0
    %2027 = vmatpush1.msra.mxu0 0.0
    %2028 = vmatprep.subr.mxu0 0.0
    %2029 = vmatpush1.msra.mxu0 0.0
    %2030 = vmatprep.subr.mxu0 0.0
    %2031 = vmatpush1.msra.mxu0 0.0
    %2032 = vmatprep.subr.mxu0 0.0
    %2033 = vmatpush1.msra.mxu0 0.0
    %2034 = vmatprep.subr.mxu0 0.0
    %2035 = vmatpush1.msra.mxu0 0.0
    %2036 = vmatprep.subr.mxu0 0.0
    %2037 = vmatpush1.msra.mxu0 0.0
    %2038 = vmatprep.subr.mxu0 0.0
    %2039 = vmatpush1.msra.mxu0 0.0
    %2040 = vmatprep.subr.mxu0 0.0
    %2041 = vmatpush1.msra.mxu0 0.0
    %2042 = vmatprep.subr.mxu0 0.0
    %2043 = vmatpush1.msra.mxu0 0.0
    %2044 = vmatprep.subr.mxu0 0.0
    %2045 = vmatpush1.msra.mxu0 0.0
    %2046 = vmatprep.subr.mxu0 0.0
    %2047 = vmatpush1.msra.mxu0 0.0
    %2048 = vmatprep.subr.mxu0 0.0
    %2049 = vmatpush1.msra.mxu0 0.0
    %2050 = vmatprep.subr.mxu0 0.0
    %2051 = vmatpush1.msra.mxu0 0.0
    %2052 = vmatprep.subr.mxu0 0.0
    %2053 = vmatpush1.msra.mxu0 0.0
    %2054 = vmatprep.subr.mxu0 0.0
    %2055 = vmatpush1.msra.mxu0 0.0
    %2056 = vmatprep.subr.mxu0 0.0
    %2057 = vmatpush1.msra.mxu0 0.0
    %2058 = vmatprep.subr.mxu0 0.0
    %2059 = vmatpush1.msra.mxu0 0.0
    %2060 = vmatprep.subr.mxu0 0.0
    %2061 = vmatpush1.msra.mxu0 0.0
    %2062 = vmatprep.subr.mxu0 0.0
    %2063 = vmatpush1.msra.mxu0 0.0
    %2064 = vmatprep.subr.mxu0 0.0
    %2065 = vmatpush1.msra.mxu0 0.0
    %2066 = vmatprep.subr.mxu0 0.0
    %2067 = vmatpush1.msra.mxu0 0.0
    %2068 = vmatprep.subr.mxu0 0.0
    %2069 = vmatpush1.msra.mxu0 0.0
    %2070 = vmatprep.subr.mxu0 0.0
    %2071 = vmatpush1.msra.mxu0 0.0
    %2072 = vmatprep.subr.mxu0 0.0
    %2073 = vmatpush1.msra.mxu0 0.0
    %2074 = vmatprep.subr.mxu0 0.0
    %2075 = vmatpush1.msra.mxu0 0.0
    %2076 = vmatprep.subr.mxu0 0.0
    %2077 = vmatpush1.msra.mxu0 0.0
    %2078 = vmatprep.mubr.f32.mxu0 0.0
    %2079 = vmatmul.mubr.f32.gmra.mrb[0].mxu0 %v2009
    %v2080 = vpop.f32.mrb[0].mxu0
    %v2081 = vadd.f32 0.0, %v2080
    %v2082 = vpop.f32.mrb[0].mxu0
    %2083 = vmatprep.mubr.f32.mxu0 0.0
    %2084 = vmatmul.mubr.f32.gmra.mrb[0].mxu0 %v2012
    %v2085 = vpop.f32.mrb[0].mxu0
    %v2086 = vadd.f32 0.0, %v2085
    %v2087 = vpop.f32.mrb[0].mxu0
    %2088 = vdwg.mxu0
    %2089 = vrot.lane.b32.xlu0 %v1539, 64
    %v2090 = vpop.permute.xlu0 %2089
    %2091 = vrot.lane.b32.xlu0 %v1541, 64
    %v2092 = vpop.permute.xlu0 %2091
    %v2096 = vsel %vm627, %v1991, 0
    %v2099 = vsel %vm627, %v1993, 0
    %2101 = vmatprep.subr.mxu0 0.0
    %2102 = vmatpush1.msra.mxu0 %v2090
    %2103 = vmatprep.subr.mxu0 0.0
    %2104 = vmatpush1.msra.mxu0 %v2092
    %2105 = vmatprep.subr.mxu0 0.0
    %2106 = vmatpush1.msra.mxu0 0.0
    %2107 = vmatprep.subr.mxu0 0.0
    %2108 = vmatpush1.msra.mxu0 0.0
    %2109 = vmatprep.subr.mxu0 0.0
    %2110 = vmatpush1.msra.mxu0 0.0
    %2111 = vmatprep.subr.mxu0 0.0
    %2112 = vmatpush1.msra.mxu0 0.0
    %2113 = vmatprep.subr.mxu0 0.0
    %2114 = vmatpush1.msra.mxu0 0.0
    %2115 = vmatprep.subr.mxu0 0.0
    %2116 = vmatpush1.msra.mxu0 0.0
    %2117 = vmatprep.subr.mxu0 0.0
    %2118 = vmatpush1.msra.mxu0 0.0
    %2119 = vmatprep.subr.mxu0 0.0
    %2120 = vmatpush1.msra.mxu0 0.0
    %2121 = vmatprep.subr.mxu0 0.0
    %2122 = vmatpush1.msra.mxu0 0.0
    %2123 = vmatprep.subr.mxu0 0.0
    %2124 = vmatpush1.msra.mxu0 0.0
    %2125 = vmatprep.subr.mxu0 0.0
    %2126 = vmatpush1.msra.mxu0 0.0
    %2127 = vmatprep.subr.mxu0 0.0
    %2128 = vmatpush1.msra.mxu0 0.0
    %2129 = vmatprep.subr.mxu0 0.0
    %2130 = vmatpush1.msra.mxu0 0.0
    %2131 = vmatprep.subr.mxu0 0.0
    %2132 = vmatpush1.msra.mxu0 0.0
    %2133 = vmatprep.subr.mxu0 0.0
    %2134 = vmatpush1.msra.mxu0 0.0
    %2135 = vmatprep.subr.mxu0 0.0
    %2136 = vmatpush1.msra.mxu0 0.0
    %2137 = vmatprep.subr.mxu0 0.0
    %2138 = vmatpush1.msra.mxu0 0.0
    %2139 = vmatprep.subr.mxu0 0.0
    %2140 = vmatpush1.msra.mxu0 0.0
    %2141 = vmatprep.subr.mxu0 0.0
    %2142 = vmatpush1.msra.mxu0 0.0
    %2143 = vmatprep.subr.mxu0 0.0
    %2144 = vmatpush1.msra.mxu0 0.0
    %2145 = vmatprep.subr.mxu0 0.0
    %2146 = vmatpush1.msra.mxu0 0.0
    %2147 = vmatprep.subr.mxu0 0.0
    %2148 = vmatpush1.msra.mxu0 0.0
    %2149 = vmatprep.subr.mxu0 0.0
    %2150 = vmatpush1.msra.mxu0 0.0
    %2151 = vmatprep.subr.mxu0 0.0
    %2152 = vmatpush1.msra.mxu0 0.0
    %2153 = vmatprep.subr.mxu0 0.0
    %2154 = vmatpush1.msra.mxu0 0.0
    %2155 = vmatprep.subr.mxu0 0.0
    %2156 = vmatpush1.msra.mxu0 0.0
    %2157 = vmatprep.subr.mxu0 0.0
    %2158 = vmatpush1.msra.mxu0 0.0
    %2159 = vmatprep.subr.mxu0 0.0
    %2160 = vmatpush1.msra.mxu0 0.0
    %2161 = vmatprep.subr.mxu0 0.0
    %2162 = vmatpush1.msra.mxu0 0.0
    %2163 = vmatprep.subr.mxu0 0.0
    %2164 = vmatpush1.msra.mxu0 0.0
    %2165 = vmatprep.mubr.f32.mxu0 0.0
    %2166 = vmatmul.mubr.f32.gmra.mrb[0].mxu0 %v2096
    %v2167 = vpop.f32.mrb[0].mxu0
    %v2168 = vadd.f32 0.0, %v2167
    %v2169 = vpop.f32.mrb[0].mxu0
    %2170 = vmatprep.mubr.f32.mxu0 0.0
    %2171 = vmatmul.mubr.f32.gmra.mrb[0].mxu0 %v2099
    %v2172 = vpop.f32.mrb[0].mxu0
    %v2173 = vadd.f32 0.0, %v2172
    %v2174 = vpop.f32.mrb[0].mxu0
    %2175 = vdwg.mxu0
    %2176 = vrot.lane.b32.xlu0 %v1543, 64
    %v2177 = vpop.permute.xlu0 %2176
    %2178 = vrot.lane.b32.xlu0 %v1545, 64
    %v2179 = vpop.permute.xlu0 %2178
    %v2183 = vsel %vm627, %v1995, 0
    %v2186 = vsel %vm627, %v1997, 0
    %2188 = vmatprep.subr.mxu0 0.0
    %2189 = vmatpush1.msra.mxu0 %v2177
    %2190 = vmatprep.subr.mxu0 0.0
    %2191 = vmatpush1.msra.mxu0 %v2179
    %2192 = vmatprep.subr.mxu0 0.0
    %2193 = vmatpush1.msra.mxu0 0.0
    %2194 = vmatprep.subr.mxu0 0.0
    %2195 = vmatpush1.msra.mxu0 0.0
    %2196 = vmatprep.subr.mxu0 0.0
    %2197 = vmatpush1.msra.mxu0 0.0
    %2198 = vmatprep.subr.mxu0 0.0
    %2199 = vmatpush1.msra.mxu0 0.0
    %2200 = vmatprep.subr.mxu0 0.0
    %2201 = vmatpush1.msra.mxu0 0.0
    %2202 = vmatprep.subr.mxu0 0.0
    %2203 = vmatpush1.msra.mxu0 0.0
    %2204 = vmatprep.subr.mxu0 0.0
    %2205 = vmatpush1.msra.mxu0 0.0
    %2206 = vmatprep.subr.mxu0 0.0
    %2207 = vmatpush1.msra.mxu0 0.0
    %2208 = vmatprep.subr.mxu0 0.0
    %2209 = vmatpush1.msra.mxu0 0.0
    %2210 = vmatprep.subr.mxu0 0.0
    %2211 = vmatpush1.msra.mxu0 0.0
    %2212 = vmatprep.subr.mxu0 0.0
    %2213 = vmatpush1.msra.mxu0 0.0
    %2214 = vmatprep.subr.mxu0 0.0
    %2215 = vmatpush1.msra.mxu0 0.0
    %2216 = vmatprep.subr.mxu0 0.0
    %2217 = vmatpush1.msra.mxu0 0.0
    %2218 = vmatprep.subr.mxu0 0.0
    %2219 = vmatpush1.msra.mxu0 0.0
    %2220 = vmatprep.subr.mxu0 0.0
    %2221 = vmatpush1.msra.mxu0 0.0
    %2222 = vmatprep.subr.mxu0 0.0
    %2223 = vmatpush1.msra.mxu0 0.0
    %2224 = vmatprep.subr.mxu0 0.0
    %2225 = vmatpush1.msra.mxu0 0.0
    %2226 = vmatprep.subr.mxu0 0.0
    %2227 = vmatpush1.msra.mxu0 0.0
    %2228 = vmatprep.subr.mxu0 0.0
    %2229 = vmatpush1.msra.mxu0 0.0
    %2230 = vmatprep.subr.mxu0 0.0
    %2231 = vmatpush1.msra.mxu0 0.0
    %2232 = vmatprep.subr.mxu0 0.0
    %2233 = vmatpush1.msra.mxu0 0.0
    %2234 = vmatprep.subr.mxu0 0.0
    %2235 = vmatpush1.msra.mxu0 0.0
    %2236 = vmatprep.subr.mxu0 0.0
    %2237 = vmatpush1.msra.mxu0 0.0
    %2238 = vmatprep.subr.mxu0 0.0
    %2239 = vmatpush1.msra.mxu0 0.0
    %2240 = vmatprep.subr.mxu0 0.0
    %2241 = vmatpush1.msra.mxu0 0.0
    %2242 = vmatprep.subr.mxu0 0.0
    %2243 = vmatpush1.msra.mxu0 0.0
    %2244 = vmatprep.subr.mxu0 0.0
    %2245 = vmatpush1.msra.mxu0 0.0
    %2246 = vmatprep.subr.mxu0 0.0
    %2247 = vmatpush1.msra.mxu0 0.0
    %2248 = vmatprep.subr.mxu0 0.0
    %2249 = vmatpush1.msra.mxu0 0.0
    %2250 = vmatprep.subr.mxu0 0.0
    %2251 = vmatpush1.msra.mxu0 0.0
    %2252 = vmatprep.mubr.f32.mxu0 0.0
    %2253 = vmatmul.mubr.f32.gmra.mrb[0].mxu0 %v2183
    %v2254 = vpop.f32.mrb[0].mxu0
    %v2255 = vadd.f32 0.0, %v2254
    %v2256 = vpop.f32.mrb[0].mxu0
    %2257 = vmatprep.mubr.f32.mxu0 0.0
    %2258 = vmatmul.mubr.f32.gmra.mrb[0].mxu0 %v2186
    %v2259 = vpop.f32.mrb[0].mxu0
    %v2260 = vadd.f32 0.0, %v2259
    %v2261 = vpop.f32.mrb[0].mxu0
    %2262 = vdwg.mxu0
    %2263 = vrot.lane.b32.xlu0 %v1547, 64
    %v2264 = vpop.permute.xlu0 %2263
    %2265 = vrot.lane.b32.xlu0 %v1549, 64
    %v2266 = vpop.permute.xlu0 %2265
    %v2270 = vsel %vm627, %v1999, 0
    %v2273 = vsel %vm627, %v2001, 0
    %2275 = vmatprep.subr.mxu0 0.0
    %2276 = vmatpush1.msra.mxu0 %v2264
    %2277 = vmatprep.subr.mxu0 0.0
    %2278 = vmatpush1.msra.mxu0 %v2266
    %2279 = vmatprep.subr.mxu0 0.0
    %2280 = vmatpush1.msra.mxu0 0.0
    %2281 = vmatprep.subr.mxu0 0.0
    %2282 = vmatpush1.msra.mxu0 0.0
    %2283 = vmatprep.subr.mxu0 0.0
    %2284 = vmatpush1.msra.mxu0 0.0
    %2285 = vmatprep.subr.mxu0 0.0
    %2286 = vmatpush1.msra.mxu0 0.0
    %2287 = vmatprep.subr.mxu0 0.0
    %2288 = vmatpush1.msra.mxu0 0.0
    %2289 = vmatprep.subr.mxu0 0.0
    %2290 = vmatpush1.msra.mxu0 0.0
    %2291 = vmatprep.subr.mxu0 0.0
    %2292 = vmatpush1.msra.mxu0 0.0
    %2293 = vmatprep.subr.mxu0 0.0
    %2294 = vmatpush1.msra.mxu0 0.0
    %2295 = vmatprep.subr.mxu0 0.0
    %2296 = vmatpush1.msra.mxu0 0.0
    %2297 = vmatprep.subr.mxu0 0.0
    %2298 = vmatpush1.msra.mxu0 0.0
    %2299 = vmatprep.subr.mxu0 0.0
    %2300 = vmatpush1.msra.mxu0 0.0
    %2301 = vmatprep.subr.mxu0 0.0
    %2302 = vmatpush1.msra.mxu0 0.0
    %2303 = vmatprep.subr.mxu0 0.0
    %2304 = vmatpush1.msra.mxu0 0.0
    %2305 = vmatprep.subr.mxu0 0.0
    %2306 = vmatpush1.msra.mxu0 0.0
    %2307 = vmatprep.subr.mxu0 0.0
    %2308 = vmatpush1.msra.mxu0 0.0
    %2309 = vmatprep.subr.mxu0 0.0
    %2310 = vmatpush1.msra.mxu0 0.0
    %2311 = vmatprep.subr.mxu0 0.0
    %2312 = vmatpush1.msra.mxu0 0.0
    %2313 = vmatprep.subr.mxu0 0.0
    %2314 = vmatpush1.msra.mxu0 0.0
    %2315 = vmatprep.subr.mxu0 0.0
    %2316 = vmatpush1.msra.mxu0 0.0
    %2317 = vmatprep.subr.mxu0 0.0
    %2318 = vmatpush1.msra.mxu0 0.0
    %2319 = vmatprep.subr.mxu0 0.0
    %2320 = vmatpush1.msra.mxu0 0.0
    %2321 = vmatprep.subr.mxu0 0.0
    %2322 = vmatpush1.msra.mxu0 0.0
    %2323 = vmatprep.subr.mxu0 0.0
    %2324 = vmatpush1.msra.mxu0 0.0
    %2325 = vmatprep.subr.mxu0 0.0
    %2326 = vmatpush1.msra.mxu0 0.0
    %2327 = vmatprep.subr.mxu0 0.0
    %2328 = vmatpush1.msra.mxu0 0.0
    %2329 = vmatprep.subr.mxu0 0.0
    %2330 = vmatpush1.msra.mxu0 0.0
    %2331 = vmatprep.subr.mxu0 0.0
    %2332 = vmatpush1.msra.mxu0 0.0
    %2333 = vmatprep.subr.mxu0 0.0
    %2334 = vmatpush1.msra.mxu0 0.0
    %2335 = vmatprep.subr.mxu0 0.0
    %2336 = vmatpush1.msra.mxu0 0.0
    %2337 = vmatprep.subr.mxu0 0.0
    %2338 = vmatpush1.msra.mxu0 0.0
    %2339 = vmatprep.mubr.f32.mxu0 0.0
    %2340 = vmatmul.mubr.f32.gmra.mrb[0].mxu0 %v2270
    %v2341 = vpop.f32.mrb[0].mxu0
    %v2342 = vadd.f32 0.0, %v2341
    %v2343 = vpop.f32.mrb[0].mxu0
    %2344 = vmatprep.mubr.f32.mxu0 0.0
    %2345 = vmatmul.mubr.f32.gmra.mrb[0].mxu0 %v2273
    %v2346 = vpop.f32.mrb[0].mxu0
    %v2347 = vadd.f32 0.0, %v2346
    %v2348 = vpop.f32.mrb[0].mxu0
    %2349 = vdwg.mxu0
    %2350 = vst.msk [vmem:[#allocation3] sm:$0xff] %vm266, %v2081
    %2351 = vst.msk [vmem:[#allocation3 + $0x8] sm:$0xff] %vm266, %v2086
    %2354 = vrot.lane.b32.xlu0 %v2168, 8
    %v2355 = vpop.permute.xlu0 %2354
    %2356 = vrot.lane.b32.xlu0 %v2173, 8
    %v2357 = vpop.permute.xlu0 %2356
    %2360 = vst.msk [vmem:[#allocation3] sm:$0xff] %vm1074, %v2355
    %2361 = vst.msk [vmem:[#allocation3 + $0x8] sm:$0xff] %vm1074, %v2357
    %2364 = vrot.lane.b32.xlu0 %v2255, 16
    %v2365 = vpop.permute.xlu0 %2364
    %2366 = vrot.lane.b32.xlu0 %v2260, 16
    %v2367 = vpop.permute.xlu0 %2366
    %2370 = vst.msk [vmem:[#allocation3] sm:$0xff] %vm1085, %v2365
    %2371 = vst.msk [vmem:[#allocation3 + $0x8] sm:$0xff] %vm1085, %v2367
    %2374 = vrot.lane.b32.xlu0 %v2342, 24
    %v2375 = vpop.permute.xlu0 %2374
    %2376 = vrot.lane.b32.xlu0 %v2347, 24
    %v2377 = vpop.permute.xlu0 %2376
    %2380 = vst.msk [vmem:[#allocation3] sm:$0xff] %vm1096, %v2375
    %2381 = vst.msk [vmem:[#allocation3 + $0x8] sm:$0xff] %vm1096, %v2377
    %v2382 = vld [vmem:[#allocation3] sm:$0xff]
    %v2383 = vld [vmem:[#allocation3 + $0x8] sm:$0xff]
    %s2384 = scalar_lea.vmem %s7, 16
    %v2385 = vld [vmem:[%s2384] sm:$0xf]
    %v2386 = vld [vmem:[%s2384 + $0x4] sm:$0xf]
    %v2387 = vld [vmem:[%s2384 + $0x8] sm:$0xf]
    %v2388 = vld [vmem:[%s2384 + $0xc] sm:$0xf]
    %v2389 = vpack.c.bf16 %v2383, %v2382
    %v2394 = vunpack.c.l.b16 %v2385
    %v2395 = vunpack.c.l.b16 %v2386
    %v2396 = vunpack.c.l.b16 %v2387
    %v2397 = vunpack.c.l.b16 %v2388
    %v2398 = vpack.c.b16 %v2395, %v2394
    %v2399 = vpack.c.b16 %v2397, %v2396
    %v2403 = vsel %vm136, %v2389, 0
    %2405 = vmatprep.subr.bf16.mxu0 0
    %2406 = vmatpush1.bf16.msra.mxu0 %v2398
    %2407 = vmatprep.subr.bf16.mxu0 0
    %2408 = vmatpush1.bf16.msra.mxu0 %v2399
    %2409 = vmatprep.subr.bf16.mxu0 0
    %2410 = vmatpush1.bf16.msra.mxu0 0
    %2411 = vmatprep.subr.bf16.mxu0 0
    %2412 = vmatpush1.bf16.msra.mxu0 0
    %2413 = vmatprep.subr.bf16.mxu0 0
    %2414 = vmatpush1.bf16.msra.mxu0 0
    %2415 = vmatprep.subr.bf16.mxu0 0
    %2416 = vmatpush1.bf16.msra.mxu0 0
    %2417 = vmatprep.subr.bf16.mxu0 0
    %2418 = vmatpush1.bf16.msra.mxu0 0
    %2419 = vmatprep.subr.bf16.mxu0 0
    %2420 = vmatpush1.bf16.msra.mxu0 0
    %2421 = vmatprep.subr.bf16.mxu0 0
    %2422 = vmatpush1.bf16.msra.mxu0 0
    %2423 = vmatprep.subr.bf16.mxu0 0
    %2424 = vmatpush1.bf16.msra.mxu0 0
    %2425 = vmatprep.subr.bf16.mxu0 0
    %2426 = vmatpush1.bf16.msra.mxu0 0
    %2427 = vmatprep.subr.bf16.mxu0 0
    %2428 = vmatpush1.bf16.msra.mxu0 0
    %2429 = vmatprep.subr.bf16.mxu0 0
    %2430 = vmatpush1.bf16.msra.mxu0 0
    %2431 = vmatprep.subr.bf16.mxu0 0
    %2432 = vmatpush1.bf16.msra.mxu0 0
    %2433 = vmatprep.subr.bf16.mxu0 0
    %2434 = vmatpush1.bf16.msra.mxu0 0
    %2435 = vmatprep.subr.bf16.mxu0 0
    %2436 = vmatpush1.bf16.msra.mxu0 0
    %2437 = vmatprep.mubr.bf16.mxu0 0
    %2438 = vmatmul.mubr.bf16.gmra.mrb[0].mxu0 %v2403
    %v2439 = vpop.f32.mrb[0].mxu0
    %v2440 = vadd.f32 0.0, %v2439
    %v2441 = vpop.f32.mrb[0].mxu0
    %v2442 = vpop.f32.mrb[0].mxu0
    %v2443 = vadd.f32 0.0, %v2442
    %v2444 = vpop.f32.mrb[0].mxu0
    %2445 = vdwg.mxu0
    %v2446 = vadd.f32 %v1418, %v2440
    %v2447 = vadd.f32 %v1419, %v2443
    %s2448 = scalar_lea.vmem %s8, 1
    %v2449 = vld [vmem:[%s2448] sm:$0x1]
    %v2451 = vlaneseq
    %v2452 = vshrl.u32 %v2451, 7
    %v2453 = vsub.s32 0, %v2452
    %v2454 = vrot.slane %v2449, %v2453
    %v2456 = vadd.f32 %v2446, %v2454
    %v2457 = vadd.f32 %v2447, %v2454
    %s2458 = scalar_lea.vmem %s9, 1
    %v2459 = vld [vmem:[%s2458] sm:$0x1]
    %s2460 = scalar_lea.vmem %s10, 1
    %v2461 = vld [vmem:[%s2460] sm:$0x1]
    %v2462 = vsel %vm136, %v2456, 0.0
    %2463 = vadd.xlane.f32.xlu0 %v2462
    %v2464 = vpop.xlane.xlu0 %2463
    %v2465 = vsel %vm136, %v2457, 0.0
    %2466 = vadd.xlane.f32.xlu0 %v2465
    %v2467 = vpop.xlane.xlu0 %2466
    %v2468 = vmul.f32 %v2464, %v143
    %v2469 = vmul.f32 %v2467, %v143
    %v2470 = vsub.f32 %v2456, %v2468
    %v2471 = vsub.f32 %v2457, %v2469
    %v2472 = vmul.f32 %v2470, %v2470
    %v2473 = vmul.f32 %v2471, %v2471
    %v2474 = vsel %vm136, %v2472, 0.0
    %2475 = vadd.xlane.f32.xlu0 %v2474
    %v2476 = vpop.xlane.xlu0 %2475
    %v2477 = vsel %vm136, %v2473, 0.0
    %2478 = vadd.xlane.f32.xlu0 %v2477
    %v2479 = vpop.xlane.xlu0 %2478
    %v2480 = vmul.f32 %v2476, %v143
    %v2481 = vmul.f32 %v2479, %v143
    %v2482 = vadd.f32 %v2480, 1e-05
    %v2483 = vadd.f32 %v2481, 1e-05
    %v2484 = vrsqrt.pop %v2482
    %v2485 = vrsqrt.pop %v2483
    %v2486 = vmul.f32 %v2470, %v2484
    %v2487 = vmul.f32 %v2471, %v2485
    %v2489 = vlaneseq
    %v2490 = vshrl.u32 %v2489, 7
    %v2491 = vsub.s32 0, %v2490
    %v2492 = vrot.slane %v2459, %v2491
    %v2494 = vmul.f32 %v2486, %v2492
    %v2495 = vmul.f32 %v2487, %v2492
    %v2497 = vlaneseq
    %v2498 = vshrl.u32 %v2497, 7
    %v2499 = vsub.s32 0, %v2498
    %v2500 = vrot.slane %v2461, %v2499
    %v2502 = vadd.f32 %v2494, %v2500
    %v2503 = vadd.f32 %v2495, %v2500
    %s2504 = scalar_lea.vmem %s11, 16
    %v2505 = vld [vmem:[%s2504] sm:$0xf]
    %v2506 = vld [vmem:[%s2504 + $0x4] sm:$0xf]
    %v2507 = vld [vmem:[%s2504 + $0x8] sm:$0xf]
    %v2508 = vld [vmem:[%s2504 + $0xc] sm:$0xf]
    %v2509 = vpack.c.bf16 %v2503, %v2502
    %s2510 = scalar_lea.vmem %s12, 1
    %v2511 = vld [vmem:[%s2510] sm:$0x1]
    %v2513 = vlaneseq
    %v2514 = vshrl.u32 %v2513, 7
    %v2515 = vsub.s32 0, %v2514
    %v2516 = vrot.slane %v2511, %v2515
    %v2522 = vunpack.c.l.b16 %v2505
    %v2523 = vunpack.c.l.b16 %v2506
    %v2524 = vunpack.c.l.b16 %v2507
    %v2525 = vunpack.c.l.b16 %v2508
    %v2526 = vpack.c.b16 %v2523, %v2522
    %v2527 = vpack.c.b16 %v2525, %v2524
    %v2531 = vsel %vm136, %v2509, 0
    %2533 = vmatprep.subr.bf16.mxu0 0
    %2534 = vmatpush1.bf16.msra.mxu0 %v2526
    %2535 = vmatprep.subr.bf16.mxu0 0
    %2536 = vmatpush1.bf16.msra.mxu0 %v2527
    %2537 = vmatprep.subr.bf16.mxu0 0
    %2538 = vmatpush1.bf16.msra.mxu0 0
    %2539 = vmatprep.subr.bf16.mxu0 0
    %2540 = vmatpush1.bf16.msra.mxu0 0
    %2541 = vmatprep.subr.bf16.mxu0 0
    %2542 = vmatpush1.bf16.msra.mxu0 0
    %2543 = vmatprep.subr.bf16.mxu0 0
    %2544 = vmatpush1.bf16.msra.mxu0 0
    %2545 = vmatprep.subr.bf16.mxu0 0
    %2546 = vmatpush1.bf16.msra.mxu0 0
    %2547 = vmatprep.subr.bf16.mxu0 0
    %2548 = vmatpush1.bf16.msra.mxu0 0
    %2549 = vmatprep.subr.bf16.mxu0 0
    %2550 = vmatpush1.bf16.msra.mxu0 0
    %2551 = vmatprep.subr.bf16.mxu0 0
    %2552 = vmatpush1.bf16.msra.mxu0 0
    %2553 = vmatprep.subr.bf16.mxu0 0
    %2554 = vmatpush1.bf16.msra.mxu0 0
    %2555 = vmatprep.subr.bf16.mxu0 0
    %2556 = vmatpush1.bf16.msra.mxu0 0
    %2557 = vmatprep.subr.bf16.mxu0 0
    %2558 = vmatpush1.bf16.msra.mxu0 0
    %2559 = vmatprep.subr.bf16.mxu0 0
    %2560 = vmatpush1.bf16.msra.mxu0 0
    %2561 = vmatprep.subr.bf16.mxu0 0
    %2562 = vmatpush1.bf16.msra.mxu0 0
    %2563 = vmatprep.subr.bf16.mxu0 0
    %2564 = vmatpush1.bf16.msra.mxu0 0
    %2565 = vmatprep.mubr.bf16.mxu0 0
    %2566 = vmatmul.mubr.bf16.gmra.mrb[0].mxu0 %v2531
    %v2567 = vpop.f32.mrb[0].mxu0
    %v2568 = vadd.f32 %v2516, %v2567
    %v2569 = vpop.f32.mrb[0].mxu0
    %v2570 = vpop.f32.mrb[0].mxu0
    %v2571 = vadd.f32 %v2516, %v2570
    %v2572 = vpop.f32.mrb[0].mxu0
    %2573 = vdwg.mxu0
    %v2574 = vmul.f32 %v2568, 0.5
    %v2575 = vmul.f32 %v2571, 0.5
    %v2576 = vmul.f32 %v2568, 0.044715
    %v2577 = vmul.f32 %v2571, 0.044715
    %v2578 = vmul.f32 %v2576, %v2568
    %v2579 = vmul.f32 %v2577, %v2571
    %v2580 = vmul.f32 %v2578, %v2568
    %v2581 = vmul.f32 %v2579, %v2571
    %v2582 = vadd.f32 %v2568, %v2580
    %v2583 = vadd.f32 %v2571, %v2581
    %v2584 = vmul.f32 %v2582, 0.7978846
    %v2585 = vmul.f32 %v2583, 0.7978846
    %v2586 = vtanh.pop %v2584
    %v2587 = vtanh.pop %v2585
    %v2588 = vadd.f32 %v2586, 1.0
    %v2589 = vadd.f32 %v2587, 1.0
    %v2590 = vmul.f32 %v2574, %v2588
    %v2591 = vmul.f32 %v2575, %v2589
    %s2592 = scalar_lea.vmem %s13, 64
    %v2593 = vld [vmem:[%s2592] sm:$0xf]
    %v2594 = vld [vmem:[%s2592 + $0x4] sm:$0xf]
    %v2595 = vld [vmem:[%s2592 + $0x8] sm:$0xf]
    %v2596 = vld [vmem:[%s2592 + $0xc] sm:$0xf]
    %v2597 = vld [vmem:[%s2592 + $0x10] sm:$0xf]
    %v2598 = vld [vmem:[%s2592 + $0x14] sm:$0xf]
    %v2599 = vld [vmem:[%s2592 + $0x18] sm:$0xf]
    %v2600 = vld [vmem:[%s2592 + $0x1c] sm:$0xf]
    %v2601 = vld [vmem:[%s2592 + $0x20] sm:$0xf]
    %v2602 = vld [vmem:[%s2592 + $0x24] sm:$0xf]
    %v2603 = vld [vmem:[%s2592 + $0x28] sm:$0xf]
    %v2604 = vld [vmem:[%s2592 + $0x2c] sm:$0xf]
    %v2605 = vld [vmem:[%s2592 + $0x30] sm:$0xf]
    %v2606 = vld [vmem:[%s2592 + $0x34] sm:$0xf]
    %v2607 = vld [vmem:[%s2592 + $0x38] sm:$0xf]
    %v2608 = vld [vmem:[%s2592 + $0x3c] sm:$0xf]
    %v2609 = vpack.c.bf16 %v2591, %v2590
    %v2626 = vunpack.c.l.b16 %v2593
    %v2627 = vunpack.c.l.b16 %v2594
    %v2628 = vunpack.c.l.b16 %v2595
    %v2629 = vunpack.c.l.b16 %v2596
    %v2630 = vunpack.c.l.b16 %v2597
    %v2631 = vunpack.c.l.b16 %v2598
    %v2632 = vunpack.c.l.b16 %v2599
    %v2633 = vunpack.c.l.b16 %v2600
    %v2634 = vunpack.c.l.b16 %v2601
    %v2635 = vunpack.c.l.b16 %v2602
    %v2636 = vunpack.c.l.b16 %v2603
    %v2637 = vunpack.c.l.b16 %v2604
    %v2638 = vunpack.c.l.b16 %v2605
    %v2639 = vunpack.c.l.b16 %v2606
    %v2640 = vunpack.c.l.b16 %v2607
    %v2641 = vunpack.c.l.b16 %v2608
    %v2642 = vpack.c.b16 %v2627, %v2626
    %v2643 = vpack.c.b16 %v2629, %v2628
    %v2644 = vpack.c.b16 %v2631, %v2630
    %v2645 = vpack.c.b16 %v2633, %v2632
    %v2646 = vpack.c.b16 %v2635, %v2634
    %v2647 = vpack.c.b16 %v2637, %v2636
    %v2648 = vpack.c.b16 %v2639, %v2638
    %v2649 = vpack.c.b16 %v2641, %v2640
    %2658 = vmatprep.subr.bf16.mxu0 0
    %2659 = vmatpush1.bf16.msra.mxu0 %v2642
    %2660 = vmatprep.subr.bf16.mxu0 0
    %2661 = vmatpush1.bf16.msra.mxu0 %v2643
    %2662 = vmatprep.subr.bf16.mxu0 0
    %2663 = vmatpush1.bf16.msra.mxu0 %v2644
    %2664 = vmatprep.subr.bf16.mxu0 0
    %2665 = vmatpush1.bf16.msra.mxu0 %v2645
    %2666 = vmatprep.subr.bf16.mxu0 0
    %2667 = vmatpush1.bf16.msra.mxu0 %v2646
    %2668 = vmatprep.subr.bf16.mxu0 0
    %2669 = vmatpush1.bf16.msra.mxu0 %v2647
    %2670 = vmatprep.subr.bf16.mxu0 0
    %2671 = vmatpush1.bf16.msra.mxu0 %v2648
    %2672 = vmatprep.subr.bf16.mxu0 0
    %2673 = vmatpush1.bf16.msra.mxu0 %v2649
    %2674 = vmatprep.subr.bf16.mxu0 0
    %2675 = vmatpush1.bf16.msra.mxu0 0
    %2676 = vmatprep.subr.bf16.mxu0 0
    %2677 = vmatpush1.bf16.msra.mxu0 0
    %2678 = vmatprep.subr.bf16.mxu0 0
    %2679 = vmatpush1.bf16.msra.mxu0 0
    %2680 = vmatprep.subr.bf16.mxu0 0
    %2681 = vmatpush1.bf16.msra.mxu0 0
    %2682 = vmatprep.subr.bf16.mxu0 0
    %2683 = vmatpush1.bf16.msra.mxu0 0
    %2684 = vmatprep.subr.bf16.mxu0 0
    %2685 = vmatpush1.bf16.msra.mxu0 0
    %2686 = vmatprep.subr.bf16.mxu0 0
    %2687 = vmatpush1.bf16.msra.mxu0 0
    %2688 = vmatprep.subr.bf16.mxu0 0
    %2689 = vmatpush1.bf16.msra.mxu0 0
    %2690 = vmatprep.mubr.bf16.mxu0 0
    %2691 = vmatmul.mubr.bf16.gmra.mrb[0].mxu0 %v2609
    %v2692 = vpop.f32.mrb[0].mxu0
    %v2693 = vadd.f32 0.0, %v2692
    %v2694 = vpop.f32.mrb[0].mxu0
    %v2695 = vpop.f32.mrb[0].mxu0
    %v2696 = vadd.f32 0.0, %v2695
    %v2697 = vpop.f32.mrb[0].mxu0
    %2698 = vdwg.mxu0
    %v2699 = vadd.f32 %v2456, %v2693
    %v2700 = vadd.f32 %v2457, %v2696
    %s2701 = scalar_lea.vmem %s14, 1
    %v2702 = vld [vmem:[%s2701] sm:$0x1]
    %v2704 = vlaneseq
    %v2705 = vshrl.u32 %v2704, 7
    %v2706 = vsub.s32 0, %v2705
    %v2707 = vrot.slane %v2702, %v2706
    %v2709 = vadd.f32 %v2699, %v2707
    %v2710 = vadd.f32 %v2700, %v2707
    %s2711 = scalar_lea.vmem %s3, 2
    %v2712 = vld [vmem:[%s2711] sm:$0x1]
    %s2713 = scalar_lea.vmem %s4, 2
    %v2714 = vld [vmem:[%s2713] sm:$0x1]
    %v2715 = vsel %vm136, %v2709, 0.0
    %2716 = vadd.xlane.f32.xlu0 %v2715
    %v2717 = vpop.xlane.xlu0 %2716
    %v2718 = vsel %vm136, %v2710, 0.0
    %2719 = vadd.xlane.f32.xlu0 %v2718
    %v2720 = vpop.xlane.xlu0 %2719
    %v2721 = vmul.f32 %v2717, %v143
    %v2722 = vmul.f32 %v2720, %v143
    %v2723 = vsub.f32 %v2709, %v2721
    %v2724 = vsub.f32 %v2710, %v2722
    %v2725 = vmul.f32 %v2723, %v2723
    %v2726 = vmul.f32 %v2724, %v2724
    %v2727 = vsel %vm136, %v2725, 0.0
    %2728 = vadd.xlane.f32.xlu0 %v2727
    %v2729 = vpop.xlane.xlu0 %2728
    %v2730 = vsel %vm136, %v2726, 0.0
    %2731 = vadd.xlane.f32.xlu0 %v2730
    %v2732 = vpop.xlane.xlu0 %2731
    %v2733 = vmul.f32 %v2729, %v143
    %v2734 = vmul.f32 %v2732, %v143
    %v2735 = vadd.f32 %v2733, 1e-05
    %v2736 = vadd.f32 %v2734, 1e-05
    %v2737 = vrsqrt.pop %v2735
    %v2738 = vrsqrt.pop %v2736
    %v2739 = vmul.f32 %v2723, %v2737
    %v2740 = vmul.f32 %v2724, %v2738
    %v2742 = vlaneseq
    %v2743 = vshrl.u32 %v2742, 7
    %v2744 = vsub.s32 0, %v2743
    %v2745 = vrot.slane %v2712, %v2744
    %v2747 = vmul.f32 %v2739, %v2745
    %v2748 = vmul.f32 %v2740, %v2745
    %v2750 = vlaneseq
    %v2751 = vshrl.u32 %v2750, 7
    %v2752 = vsub.s32 0, %v2751
    %v2753 = vrot.slane %v2714, %v2752
    %v2755 = vadd.f32 %v2747, %v2753
    %v2756 = vadd.f32 %v2748, %v2753
    %s2757 = scalar_lea.vmem %s5, 32
    %v2758 = vld [vmem:[%s2757] sm:$0xf]
    %v2759 = vld [vmem:[%s2757 + $0x4] sm:$0xf]
    %v2760 = vld [vmem:[%s2757 + $0x8] sm:$0xf]
    %v2761 = vld [vmem:[%s2757 + $0xc] sm:$0xf]
    %v2762 = vpack.c.bf16 %v2756, %v2755
    %s2763 = scalar_lea.vmem %s6, 2
    %v2764 = vld [vmem:[%s2763] sm:$0x1]
    %v2766 = vlaneseq
    %v2767 = vshrl.u32 %v2766, 7
    %v2768 = vsub.s32 0, %v2767
    %v2769 = vrot.slane %v2764, %v2768
    %v2775 = vunpack.c.l.b16 %v2758
    %v2776 = vunpack.c.l.b16 %v2759
    %v2777 = vunpack.c.l.b16 %v2760
    %v2778 = vunpack.c.l.b16 %v2761
    %v2779 = vpack.c.b16 %v2776, %v2775
    %v2780 = vpack.c.b16 %v2778, %v2777
    %v2784 = vsel %vm136, %v2762, 0
    %2786 = vmatprep.subr.bf16.mxu0 0
    %2787 = vmatpush1.bf16.msra.mxu0 %v2779
    %2788 = vmatprep.subr.bf16.mxu0 0
    %2789 = vmatpush1.bf16.msra.mxu0 %v2780
    %2790 = vmatprep.subr.bf16.mxu0 0
    %2791 = vmatpush1.bf16.msra.mxu0 0
    %2792 = vmatprep.subr.bf16.mxu0 0
    %2793 = vmatpush1.bf16.msra.mxu0 0
    %2794 = vmatprep.subr.bf16.mxu0 0
    %2795 = vmatpush1.bf16.msra.mxu0 0
    %2796 = vmatprep.subr.bf16.mxu0 0
    %2797 = vmatpush1.bf16.msra.mxu0 0
    %2798 = vmatprep.subr.bf16.mxu0 0
    %2799 = vmatpush1.bf16.msra.mxu0 0
    %2800 = vmatprep.subr.bf16.mxu0 0
    %2801 = vmatpush1.bf16.msra.mxu0 0
    %2802 = vmatprep.subr.bf16.mxu0 0
    %2803 = vmatpush1.bf16.msra.mxu0 0
    %2804 = vmatprep.subr.bf16.mxu0 0
    %2805 = vmatpush1.bf16.msra.mxu0 0
    %2806 = vmatprep.subr.bf16.mxu0 0
    %2807 = vmatpush1.bf16.msra.mxu0 0
    %2808 = vmatprep.subr.bf16.mxu0 0
    %2809 = vmatpush1.bf16.msra.mxu0 0
    %2810 = vmatprep.subr.bf16.mxu0 0
    %2811 = vmatpush1.bf16.msra.mxu0 0
    %2812 = vmatprep.subr.bf16.mxu0 0
    %2813 = vmatpush1.bf16.msra.mxu0 0
    %2814 = vmatprep.subr.bf16.mxu0 0
    %2815 = vmatpush1.bf16.msra.mxu0 0
    %2816 = vmatprep.subr.bf16.mxu0 0
    %2817 = vmatpush1.bf16.msra.mxu0 0
    %2818 = vmatprep.mubr.bf16.mxu0 0
    %2819 = vmatmul.mubr.bf16.gmra.mrb[0].mxu0 %v2784
    %v2820 = vpop.f32.mrb[0].mxu0
    %v2821 = vadd.f32 %v2769, %v2820
    %v2822 = vpop.f32.mrb[0].mxu0
    %v2823 = vpop.f32.mrb[0].mxu0
    %v2824 = vadd.f32 %v2769, %v2823
    %v2825 = vpop.f32.mrb[0].mxu0
    %2826 = vdwg.mxu0
    %2829 = vrot.lane.b32.xlu0 %v2821, 120
    %v2830 = vpop.permute.xlu0 %2829
    %2831 = vrot.lane.b32.xlu0 %v2824, 120
    %v2832 = vpop.permute.xlu0 %2831
    %2833 = vrot.lane.b32.xlu0 %v2821, 112
    %v2834 = vpop.permute.xlu0 %2833
    %2835 = vrot.lane.b32.xlu0 %v2824, 112
    %v2836 = vpop.permute.xlu0 %2835
    %2837 = vrot.lane.b32.xlu0 %v2821, 104
    %v2838 = vpop.permute.xlu0 %2837
    %2839 = vrot.lane.b32.xlu0 %v2824, 104
    %v2840 = vpop.permute.xlu0 %2839
    %2841 = vrot.lane.b32.xlu0 %v2821, 96
    %v2842 = vpop.permute.xlu0 %2841
    %2843 = vrot.lane.b32.xlu0 %v2824, 96
    %v2844 = vpop.permute.xlu0 %2843
    %v2845 = vsel %vm266, %v2821, 0
    %v2847 = vsel %vm266, %v2824, 0
    %v2849 = vsel %vm266, %v2842, 0
    %v2851 = vsel %vm266, %v2844, 0
    %2853 = vmatprep.subr.mxu0 0.0
    %2854 = vmatpush1.xpose.msra.mxu0 %v2849
    %2855 = vmatprep.subr.mxu0 0.0
    %2856 = vmatpush1.xpose.msra.mxu0 %v2851
    %2857 = vmatprep.subr.mxu0 0.0
    %2858 = vmatpush1.xpose.msra.mxu0 0.0
    %2859 = vmatprep.subr.mxu0 0.0
    %2860 = vmatpush1.xpose.msra.mxu0 0.0
    %2861 = vmatprep.subr.mxu0 0.0
    %2862 = vmatpush1.xpose.msra.mxu0 0.0
    %2863 = vmatprep.subr.mxu0 0.0
    %2864 = vmatpush1.xpose.msra.mxu0 0.0
    %2865 = vmatprep.subr.mxu0 0.0
    %2866 = vmatpush1.xpose.msra.mxu0 0.0
    %2867 = vmatprep.subr.mxu0 0.0
    %2868 = vmatpush1.xpose.msra.mxu0 0.0
    %2869 = vmatprep.subr.mxu0 0.0
    %2870 = vmatpush1.xpose.msra.mxu0 0.0
    %2871 = vmatprep.subr.mxu0 0.0
    %2872 = vmatpush1.xpose.msra.mxu0 0.0
    %2873 = vmatprep.subr.mxu0 0.0
    %2874 = vmatpush1.xpose.msra.mxu0 0.0
    %2875 = vmatprep.subr.mxu0 0.0
    %2876 = vmatpush1.xpose.msra.mxu0 0.0
    %2877 = vmatprep.subr.mxu0 0.0
    %2878 = vmatpush1.xpose.msra.mxu0 0.0
    %2879 = vmatprep.subr.mxu0 0.0
    %2880 = vmatpush1.xpose.msra.mxu0 0.0
    %2881 = vmatprep.subr.mxu0 0.0
    %2882 = vmatpush1.xpose.msra.mxu0 0.0
    %2883 = vmatprep.subr.mxu0 0.0
    %2884 = vmatpush1.xpose.msra.mxu0 0.0
    %2885 = vmatprep.subr.mxu0 0.0
    %2886 = vmatpush1.xpose.msra.mxu0 0.0
    %2887 = vmatprep.subr.mxu0 0.0
    %2888 = vmatpush1.xpose.msra.mxu0 0.0
    %2889 = vmatprep.subr.mxu0 0.0
    %2890 = vmatpush1.xpose.msra.mxu0 0.0
    %2891 = vmatprep.subr.mxu0 0.0
    %2892 = vmatpush1.xpose.msra.mxu0 0.0
    %2893 = vmatprep.subr.mxu0 0.0
    %2894 = vmatpush1.xpose.msra.mxu0 0.0
    %2895 = vmatprep.subr.mxu0 0.0
    %2896 = vmatpush1.xpose.msra.mxu0 0.0
    %2897 = vmatprep.subr.mxu0 0.0
    %2898 = vmatpush1.xpose.msra.mxu0 0.0
    %2899 = vmatprep.subr.mxu0 0.0
    %2900 = vmatpush1.xpose.msra.mxu0 0.0
    %2901 = vmatprep.subr.mxu0 0.0
    %2902 = vmatpush1.xpose.msra.mxu0 0.0
    %2903 = vmatprep.subr.mxu0 0.0
    %2904 = vmatpush1.xpose.msra.mxu0 0.0
    %2905 = vmatprep.subr.mxu0 0.0
    %2906 = vmatpush1.xpose.msra.mxu0 0.0
    %2907 = vmatprep.subr.mxu0 0.0
    %2908 = vmatpush1.xpose.msra.mxu0 0.0
    %2909 = vmatprep.subr.mxu0 0.0
    %2910 = vmatpush1.xpose.msra.mxu0 0.0
    %2911 = vmatprep.subr.mxu0 0.0
    %2912 = vmatpush1.xpose.msra.mxu0 0.0
    %2913 = vmatprep.subr.mxu0 0.0
    %2914 = vmatpush1.xpose.msra.mxu0 0.0
    %2915 = vmatprep.subr.mxu0 0.0
    %2916 = vmatpush1.xpose.msra.mxu0 0.0
    %2917 = vmatprep.mubr.f32.mxu0 0.0
    %2918 = vmatmul.mubr.f32.gmra.mrb[0].mxu0 %v2845
    %v2919 = vpop.f32.mrb[0].mxu0
    %v2920 = vadd.f32 0.0, %v2919
    %v2921 = vpop.f32.mrb[0].mxu0
    %2922 = vmatprep.mubr.f32.mxu0 0.0
    %2923 = vmatmul.mubr.f32.gmra.mrb[0].mxu0 %v2847
    %v2924 = vpop.f32.mrb[0].mxu0
    %v2925 = vadd.f32 0.0, %v2924
    %v2926 = vpop.f32.mrb[0].mxu0
    %2927 = vdwg.mxu0
    %2928 = vrot.lane.b32.xlu0 %v2830, 96
    %v2929 = vpop.permute.xlu0 %2928
    %2930 = vrot.lane.b32.xlu0 %v2832, 96
    %v2931 = vpop.permute.xlu0 %2930
    %v2932 = vsel %vm266, %v2830, 0
    %v2934 = vsel %vm266, %v2832, 0
    %v2936 = vsel %vm266, %v2929, 0
    %v2938 = vsel %vm266, %v2931, 0
    %2940 = vmatprep.subr.mxu0 0.0
    %2941 = vmatpush1.xpose.msra.mxu0 %v2936
    %2942 = vmatprep.subr.mxu0 0.0
    %2943 = vmatpush1.xpose.msra.mxu0 %v2938
    %2944 = vmatprep.subr.mxu0 0.0
    %2945 = vmatpush1.xpose.msra.mxu0 0.0
    %2946 = vmatprep.subr.mxu0 0.0
    %2947 = vmatpush1.xpose.msra.mxu0 0.0
    %2948 = vmatprep.subr.mxu0 0.0
    %2949 = vmatpush1.xpose.msra.mxu0 0.0
    %2950 = vmatprep.subr.mxu0 0.0
    %2951 = vmatpush1.xpose.msra.mxu0 0.0
    %2952 = vmatprep.subr.mxu0 0.0
    %2953 = vmatpush1.xpose.msra.mxu0 0.0
    %2954 = vmatprep.subr.mxu0 0.0
    %2955 = vmatpush1.xpose.msra.mxu0 0.0
    %2956 = vmatprep.subr.mxu0 0.0
    %2957 = vmatpush1.xpose.msra.mxu0 0.0
    %2958 = vmatprep.subr.mxu0 0.0
    %2959 = vmatpush1.xpose.msra.mxu0 0.0
    %2960 = vmatprep.subr.mxu0 0.0
    %2961 = vmatpush1.xpose.msra.mxu0 0.0
    %2962 = vmatprep.subr.mxu0 0.0
    %2963 = vmatpush1.xpose.msra.mxu0 0.0
    %2964 = vmatprep.subr.mxu0 0.0
    %2965 = vmatpush1.xpose.msra.mxu0 0.0
    %2966 = vmatprep.subr.mxu0 0.0
    %2967 = vmatpush1.xpose.msra.mxu0 0.0
    %2968 = vmatprep.subr.mxu0 0.0
    %2969 = vmatpush1.xpose.msra.mxu0 0.0
    %2970 = vmatprep.subr.mxu0 0.0
    %2971 = vmatpush1.xpose.msra.mxu0 0.0
    %2972 = vmatprep.subr.mxu0 0.0
    %2973 = vmatpush1.xpose.msra.mxu0 0.0
    %2974 = vmatprep.subr.mxu0 0.0
    %2975 = vmatpush1.xpose.msra.mxu0 0.0
    %2976 = vmatprep.subr.mxu0 0.0
    %2977 = vmatpush1.xpose.msra.mxu0 0.0
    %2978 = vmatprep.subr.mxu0 0.0
    %2979 = vmatpush1.xpose.msra.mxu0 0.0
    %2980 = vmatprep.subr.mxu0 0.0
    %2981 = vmatpush1.xpose.msra.mxu0 0.0
    %2982 = vmatprep.subr.mxu0 0.0
    %2983 = vmatpush1.xpose.msra.mxu0 0.0
    %2984 = vmatprep.subr.mxu0 0.0
    %2985 = vmatpush1.xpose.msra.mxu0 0.0
    %2986 = vmatprep.subr.mxu0 0.0
    %2987 = vmatpush1.xpose.msra.mxu0 0.0
    %2988 = vmatprep.subr.mxu0 0.0
    %2989 = vmatpush1.xpose.msra.mxu0 0.0
    %2990 = vmatprep.subr.mxu0 0.0
    %2991 = vmatpush1.xpose.msra.mxu0 0.0
    %2992 = vmatprep.subr.mxu0 0.0
    %2993 = vmatpush1.xpose.msra.mxu0 0.0
    %2994 = vmatprep.subr.mxu0 0.0
    %2995 = vmatpush1.xpose.msra.mxu0 0.0
    %2996 = vmatprep.subr.mxu0 0.0
    %2997 = vmatpush1.xpose.msra.mxu0 0.0
    %2998 = vmatprep.subr.mxu0 0.0
    %2999 = vmatpush1.xpose.msra.mxu0 0.0
    %3000 = vmatprep.subr.mxu0 0.0
    %3001 = vmatpush1.xpose.msra.mxu0 0.0
    %3002 = vmatprep.subr.mxu0 0.0
    %3003 = vmatpush1.xpose.msra.mxu0 0.0
    %3004 = vmatprep.mubr.f32.mxu0 0.0
    %3005 = vmatmul.mubr.f32.gmra.mrb[0].mxu0 %v2932
    %v3006 = vpop.f32.mrb[0].mxu0
    %v3007 = vadd.f32 0.0, %v3006
    %v3008 = vpop.f32.mrb[0].mxu0
    %3009 = vmatprep.mubr.f32.mxu0 0.0
    %3010 = vmatmul.mubr.f32.gmra.mrb[0].mxu0 %v2934
    %v3011 = vpop.f32.mrb[0].mxu0
    %v3012 = vadd.f32 0.0, %v3011
    %v3013 = vpop.f32.mrb[0].mxu0
    %3014 = vdwg.mxu0
    %3015 = vrot.lane.b32.xlu0 %v2834, 96
    %v3016 = vpop.permute.xlu0 %3015
    %3017 = vrot.lane.b32.xlu0 %v2836, 96
    %v3018 = vpop.permute.xlu0 %3017
    %v3019 = vsel %vm266, %v2834, 0
    %v3021 = vsel %vm266, %v2836, 0
    %v3023 = vsel %vm266, %v3016, 0
    %v3025 = vsel %vm266, %v3018, 0
    %3027 = vmatprep.subr.mxu0 0.0
    %3028 = vmatpush1.xpose.msra.mxu0 %v3023
    %3029 = vmatprep.subr.mxu0 0.0
    %3030 = vmatpush1.xpose.msra.mxu0 %v3025
    %3031 = vmatprep.subr.mxu0 0.0
    %3032 = vmatpush1.xpose.msra.mxu0 0.0
    %3033 = vmatprep.subr.mxu0 0.0
    %3034 = vmatpush1.xpose.msra.mxu0 0.0
    %3035 = vmatprep.subr.mxu0 0.0
    %3036 = vmatpush1.xpose.msra.mxu0 0.0
    %3037 = vmatprep.subr.mxu0 0.0
    %3038 = vmatpush1.xpose.msra.mxu0 0.0
    %3039 = vmatprep.subr.mxu0 0.0
    %3040 = vmatpush1.xpose.msra.mxu0 0.0
    %3041 = vmatprep.subr.mxu0 0.0
    %3042 = vmatpush1.xpose.msra.mxu0 0.0
    %3043 = vmatprep.subr.mxu0 0.0
    %3044 = vmatpush1.xpose.msra.mxu0 0.0
    %3045 = vmatprep.subr.mxu0 0.0
    %3046 = vmatpush1.xpose.msra.mxu0 0.0
    %3047 = vmatprep.subr.mxu0 0.0
    %3048 = vmatpush1.xpose.msra.mxu0 0.0
    %3049 = vmatprep.subr.mxu0 0.0
    %3050 = vmatpush1.xpose.msra.mxu0 0.0
    %3051 = vmatprep.subr.mxu0 0.0
    %3052 = vmatpush1.xpose.msra.mxu0 0.0
    %3053 = vmatprep.subr.mxu0 0.0
    %3054 = vmatpush1.xpose.msra.mxu0 0.0
    %3055 = vmatprep.subr.mxu0 0.0
    %3056 = vmatpush1.xpose.msra.mxu0 0.0
    %3057 = vmatprep.subr.mxu0 0.0
    %3058 = vmatpush1.xpose.msra.mxu0 0.0
    %3059 = vmatprep.subr.mxu0 0.0
    %3060 = vmatpush1.xpose.msra.mxu0 0.0
    %3061 = vmatprep.subr.mxu0 0.0
    %3062 = vmatpush1.xpose.msra.mxu0 0.0
    %3063 = vmatprep.subr.mxu0 0.0
    %3064 = vmatpush1.xpose.msra.mxu0 0.0
    %3065 = vmatprep.subr.mxu0 0.0
    %3066 = vmatpush1.xpose.msra.mxu0 0.0
    %3067 = vmatprep.subr.mxu0 0.0
    %3068 = vmatpush1.xpose.msra.mxu0 0.0
    %3069 = vmatprep.subr.mxu0 0.0
    %3070 = vmatpush1.xpose.msra.mxu0 0.0
    %3071 = vmatprep.subr.mxu0 0.0
    %3072 = vmatpush1.xpose.msra.mxu0 0.0
    %3073 = vmatprep.subr.mxu0 0.0
    %3074 = vmatpush1.xpose.msra.mxu0 0.0
    %3075 = vmatprep.subr.mxu0 0.0
    %3076 = vmatpush1.xpose.msra.mxu0 0.0
    %3077 = vmatprep.subr.mxu0 0.0
    %3078 = vmatpush1.xpose.msra.mxu0 0.0
    %3079 = vmatprep.subr.mxu0 0.0
    %3080 = vmatpush1.xpose.msra.mxu0 0.0
    %3081 = vmatprep.subr.mxu0 0.0
    %3082 = vmatpush1.xpose.msra.mxu0 0.0
    %3083 = vmatprep.subr.mxu0 0.0
    %3084 = vmatpush1.xpose.msra.mxu0 0.0
    %3085 = vmatprep.subr.mxu0 0.0
    %3086 = vmatpush1.xpose.msra.mxu0 0.0
    %3087 = vmatprep.subr.mxu0 0.0
    %3088 = vmatpush1.xpose.msra.mxu0 0.0
    %3089 = vmatprep.subr.mxu0 0.0
    %3090 = vmatpush1.xpose.msra.mxu0 0.0
    %3091 = vmatprep.mubr.f32.mxu0 0.0
    %3092 = vmatmul.mubr.f32.gmra.mrb[0].mxu0 %v3019
    %v3093 = vpop.f32.mrb[0].mxu0
    %v3094 = vadd.f32 0.0, %v3093
    %v3095 = vpop.f32.mrb[0].mxu0
    %3096 = vmatprep.mubr.f32.mxu0 0.0
    %3097 = vmatmul.mubr.f32.gmra.mrb[0].mxu0 %v3021
    %v3098 = vpop.f32.mrb[0].mxu0
    %v3099 = vadd.f32 0.0, %v3098
    %v3100 = vpop.f32.mrb[0].mxu0
    %3101 = vdwg.mxu0
    %3102 = vrot.lane.b32.xlu0 %v2838, 96
    %v3103 = vpop.permute.xlu0 %3102
    %3104 = vrot.lane.b32.xlu0 %v2840, 96
    %v3105 = vpop.permute.xlu0 %3104
    %v3106 = vsel %vm266, %v2838, 0
    %v3108 = vsel %vm266, %v2840, 0
    %v3110 = vsel %vm266, %v3103, 0
    %v3112 = vsel %vm266, %v3105, 0
    %3114 = vmatprep.subr.mxu0 0.0
    %3115 = vmatpush1.xpose.msra.mxu0 %v3110
    %3116 = vmatprep.subr.mxu0 0.0
    %3117 = vmatpush1.xpose.msra.mxu0 %v3112
    %3118 = vmatprep.subr.mxu0 0.0
    %3119 = vmatpush1.xpose.msra.mxu0 0.0
    %3120 = vmatprep.subr.mxu0 0.0
    %3121 = vmatpush1.xpose.msra.mxu0 0.0
    %3122 = vmatprep.subr.mxu0 0.0
    %3123 = vmatpush1.xpose.msra.mxu0 0.0
    %3124 = vmatprep.subr.mxu0 0.0
    %3125 = vmatpush1.xpose.msra.mxu0 0.0
    %3126 = vmatprep.subr.mxu0 0.0
    %3127 = vmatpush1.xpose.msra.mxu0 0.0
    %3128 = vmatprep.subr.mxu0 0.0
    %3129 = vmatpush1.xpose.msra.mxu0 0.0
    %3130 = vmatprep.subr.mxu0 0.0
    %3131 = vmatpush1.xpose.msra.mxu0 0.0
    %3132 = vmatprep.subr.mxu0 0.0
    %3133 = vmatpush1.xpose.msra.mxu0 0.0
    %3134 = vmatprep.subr.mxu0 0.0
    %3135 = vmatpush1.xpose.msra.mxu0 0.0
    %3136 = vmatprep.subr.mxu0 0.0
    %3137 = vmatpush1.xpose.msra.mxu0 0.0
    %3138 = vmatprep.subr.mxu0 0.0
    %3139 = vmatpush1.xpose.msra.mxu0 0.0
    %3140 = vmatprep.subr.mxu0 0.0
    %3141 = vmatpush1.xpose.msra.mxu0 0.0
    %3142 = vmatprep.subr.mxu0 0.0
    %3143 = vmatpush1.xpose.msra.mxu0 0.0
    %3144 = vmatprep.subr.mxu0 0.0
    %3145 = vmatpush1.xpose.msra.mxu0 0.0
    %3146 = vmatprep.subr.mxu0 0.0
    %3147 = vmatpush1.xpose.msra.mxu0 0.0
    %3148 = vmatprep.subr.mxu0 0.0
    %3149 = vmatpush1.xpose.msra.mxu0 0.0
    %3150 = vmatprep.subr.mxu0 0.0
    %3151 = vmatpush1.xpose.msra.mxu0 0.0
    %3152 = vmatprep.subr.mxu0 0.0
    %3153 = vmatpush1.xpose.msra.mxu0 0.0
    %3154 = vmatprep.subr.mxu0 0.0
    %3155 = vmatpush1.xpose.msra.mxu0 0.0
    %3156 = vmatprep.subr.mxu0 0.0
    %3157 = vmatpush1.xpose.msra.mxu0 0.0
    %3158 = vmatprep.subr.mxu0 0.0
    %3159 = vmatpush1.xpose.msra.mxu0 0.0
    %3160 = vmatprep.subr.mxu0 0.0
    %3161 = vmatpush1.xpose.msra.mxu0 0.0
    %3162 = vmatprep.subr.mxu0 0.0
    %3163 = vmatpush1.xpose.msra.mxu0 0.0
    %3164 = vmatprep.subr.mxu0 0.0
    %3165 = vmatpush1.xpose.msra.mxu0 0.0
    %3166 = vmatprep.subr.mxu0 0.0
    %3167 = vmatpush1.xpose.msra.mxu0 0.0
    %3168 = vmatprep.subr.mxu0 0.0
    %3169 = vmatpush1.xpose.msra.mxu0 0.0
    %3170 = vmatprep.subr.mxu0 0.0
    %3171 = vmatpush1.xpose.msra.mxu0 0.0
    %3172 = vmatprep.subr.mxu0 0.0
    %3173 = vmatpush1.xpose.msra.mxu0 0.0
    %3174 = vmatprep.subr.mxu0 0.0
    %3175 = vmatpush1.xpose.msra.mxu0 0.0
    %3176 = vmatprep.subr.mxu0 0.0
    %3177 = vmatpush1.xpose.msra.mxu0 0.0
    %3178 = vmatprep.mubr.f32.mxu0 0.0
    %3179 = vmatmul.mubr.f32.gmra.mrb[0].mxu0 %v3106
    %v3180 = vpop.f32.mrb[0].mxu0
    %v3181 = vadd.f32 0.0, %v3180
    %v3182 = vpop.f32.mrb[0].mxu0
    %3183 = vmatprep.mubr.f32.mxu0 0.0
    %3184 = vmatmul.mubr.f32.gmra.mrb[0].mxu0 %v3108
    %v3185 = vpop.f32.mrb[0].mxu0
    %v3186 = vadd.f32 0.0, %v3185
    %v3187 = vpop.f32.mrb[0].mxu0
    %3188 = vdwg.mxu0
    %v3189 = vmul.f32 %v2920, 0.35355338
    %v3190 = vmul.f32 %v2925, 0.35355338
    %v3191 = vmul.f32 %v3007, 0.35355338
    %v3192 = vmul.f32 %v3012, 0.35355338
    %v3193 = vmul.f32 %v3094, 0.35355338
    %v3194 = vmul.f32 %v3099, 0.35355338
    %v3195 = vmul.f32 %v3181, 0.35355338
    %v3196 = vmul.f32 %v3186, 0.35355338
    %v3197 = vadd.f32 %v3189, %v132
    %v3198 = vadd.f32 %v3190, %v133
    %v3199 = vadd.f32 %v3191, %v132
    %v3200 = vadd.f32 %v3192, %v133
    %v3201 = vadd.f32 %v3193, %v132
    %v3202 = vadd.f32 %v3194, %v133
    %v3203 = vadd.f32 %v3195, %v132
    %v3204 = vadd.f32 %v3196, %v133
    %v3205 = vsel %vm627, %v3197, -inf
    %3206 = vmax.xlane.f32.xlu0 %v3205
    %v3207 = vpop.xlane.xlu0 %3206
    %v3208 = vsel %vm627, %v3198, -inf
    %3209 = vmax.xlane.f32.xlu0 %v3208
    %v3210 = vpop.xlane.xlu0 %3209
    %v3211 = vsel %vm627, %v3199, -inf
    %3212 = vmax.xlane.f32.xlu0 %v3211
    %v3213 = vpop.xlane.xlu0 %3212
    %v3214 = vsel %vm627, %v3200, -inf
    %3215 = vmax.xlane.f32.xlu0 %v3214
    %v3216 = vpop.xlane.xlu0 %3215
    %v3217 = vsel %vm627, %v3201, -inf
    %3218 = vmax.xlane.f32.xlu0 %v3217
    %v3219 = vpop.xlane.xlu0 %3218
    %v3220 = vsel %vm627, %v3202, -inf
    %3221 = vmax.xlane.f32.xlu0 %v3220
    %v3222 = vpop.xlane.xlu0 %3221
    %v3223 = vsel %vm627, %v3203, -inf
    %3224 = vmax.xlane.f32.xlu0 %v3223
    %v3225 = vpop.xlane.xlu0 %3224
    %v3226 = vsel %vm627, %v3204, -inf
    %3227 = vmax.xlane.f32.xlu0 %v3226
    %v3228 = vpop.xlane.xlu0 %3227
    %v3229 = vsub.f32 %v3197, %v3207
    %v3230 = vsub.f32 %v3198, %v3210
    %v3231 = vsub.f32 %v3199, %v3213
    %v3232 = vsub.f32 %v3200, %v3216
    %v3233 = vsub.f32 %v3201, %v3219
    %v3234 = vsub.f32 %v3202, %v3222
    %v3235 = vsub.f32 %v3203, %v3225
    %v3236 = vsub.f32 %v3204, %v3228
    %v3237 = vmul.f32 %v3229, 1.442695
    %v3238 = vpow.pop %v3237
    %v3239 = vmul.f32 %v3230, 1.442695
    %v3240 = vpow.pop %v3239
    %v3241 = vmul.f32 %v3231, 1.442695
    %v3242 = vpow.pop %v3241
    %v3243 = vmul.f32 %v3232, 1.442695
    %v3244 = vpow.pop %v3243
    %v3245 = vmul.f32 %v3233, 1.442695
    %v3246 = vpow.pop %v3245
    %v3247 = vmul.f32 %v3234, 1.442695
    %v3248 = vpow.pop %v3247
    %v3249 = vmul.f32 %v3235, 1.442695
    %v3250 = vpow.pop %v3249
    %v3251 = vmul.f32 %v3236, 1.442695
    %v3252 = vpow.pop %v3251
    %v3253 = vsel %vm627, %v3238, 0.0
    %3254 = vadd.xlane.f32.xlu0 %v3253
    %v3255 = vpop.xlane.xlu0 %3254
    %v3256 = vsel %vm627, %v3240, 0.0
    %3257 = vadd.xlane.f32.xlu0 %v3256
    %v3258 = vpop.xlane.xlu0 %3257
    %v3259 = vsel %vm627, %v3242, 0.0
    %3260 = vadd.xlane.f32.xlu0 %v3259
    %v3261 = vpop.xlane.xlu0 %3260
    %v3262 = vsel %vm627, %v3244, 0.0
    %3263 = vadd.xlane.f32.xlu0 %v3262
    %v3264 = vpop.xlane.xlu0 %3263
    %v3265 = vsel %vm627, %v3246, 0.0
    %3266 = vadd.xlane.f32.xlu0 %v3265
    %v3267 = vpop.xlane.xlu0 %3266
    %v3268 = vsel %vm627, %v3248, 0.0
    %3269 = vadd.xlane.f32.xlu0 %v3268
    %v3270 = vpop.xlane.xlu0 %3269
    %v3271 = vsel %vm627, %v3250, 0.0
    %3272 = vadd.xlane.f32.xlu0 %v3271
    %v3273 = vpop.xlane.xlu0 %3272
    %v3274 = vsel %vm627, %v3252, 0.0
    %3275 = vadd.xlane.f32.xlu0 %v3274
    %v3276 = vpop.xlane.xlu0 %3275
    %v3277 = vrcp.pop %v3255
    %v3278 = vmul.f32 %v3238, %v3277
    %v3279 = vrcp.pop %v3258
    %v3280 = vmul.f32 %v3240, %v3279
    %v3281 = vrcp.pop %v3261
    %v3282 = vmul.f32 %v3242, %v3281
    %v3283 = vrcp.pop %v3264
    %v3284 = vmul.f32 %v3244, %v3283
    %v3285 = vrcp.pop %v3267
    %v3286 = vmul.f32 %v3246, %v3285
    %v3287 = vrcp.pop %v3270
    %v3288 = vmul.f32 %v3248, %v3287
    %v3289 = vrcp.pop %v3273
    %v3290 = vmul.f32 %v3250, %v3289
    %v3291 = vrcp.pop %v3276
    %v3292 = vmul.f32 %v3252, %v3291
    %3293 = vrot.lane.b32.xlu0 %v2821, 64
    %v3294 = vpop.permute.xlu0 %3293
    %3295 = vrot.lane.b32.xlu0 %v2824, 64
    %v3296 = vpop.permute.xlu0 %3295
    %v3300 = vsel %vm627, %v3278, 0
    %v3303 = vsel %vm627, %v3280, 0
    %3305 = vmatprep.subr.mxu0 0.0
    %3306 = vmatpush1.msra.mxu0 %v3294
    %3307 = vmatprep.subr.mxu0 0.0
    %3308 = vmatpush1.msra.mxu0 %v3296
    %3309 = vmatprep.subr.mxu0 0.0
    %3310 = vmatpush1.msra.mxu0 0.0
    %3311 = vmatprep.subr.mxu0 0.0
    %3312 = vmatpush1.msra.mxu0 0.0
    %3313 = vmatprep.subr.mxu0 0.0
    %3314 = vmatpush1.msra.mxu0 0.0
    %3315 = vmatprep.subr.mxu0 0.0
    %3316 = vmatpush1.msra.mxu0 0.0
    %3317 = vmatprep.subr.mxu0 0.0
    %3318 = vmatpush1.msra.mxu0 0.0
    %3319 = vmatprep.subr.mxu0 0.0
    %3320 = vmatpush1.msra.mxu0 0.0
    %3321 = vmatprep.subr.mxu0 0.0
    %3322 = vmatpush1.msra.mxu0 0.0
    %3323 = vmatprep.subr.mxu0 0.0
    %3324 = vmatpush1.msra.mxu0 0.0
    %3325 = vmatprep.subr.mxu0 0.0
    %3326 = vmatpush1.msra.mxu0 0.0
    %3327 = vmatprep.subr.mxu0 0.0
    %3328 = vmatpush1.msra.mxu0 0.0
    %3329 = vmatprep.subr.mxu0 0.0
    %3330 = vmatpush1.msra.mxu0 0.0
    %3331 = vmatprep.subr.mxu0 0.0
    %3332 = vmatpush1.msra.mxu0 0.0
    %3333 = vmatprep.subr.mxu0 0.0
    %3334 = vmatpush1.msra.mxu0 0.0
    %3335 = vmatprep.subr.mxu0 0.0
    %3336 = vmatpush1.msra.mxu0 0.0
    %3337 = vmatprep.subr.mxu0 0.0
    %3338 = vmatpush1.msra.mxu0 0.0
    %3339 = vmatprep.subr.mxu0 0.0
    %3340 = vmatpush1.msra.mxu0 0.0
    %3341 = vmatprep.subr.mxu0 0.0
    %3342 = vmatpush1.msra.mxu0 0.0
    %3343 = vmatprep.subr.mxu0 0.0
    %3344 = vmatpush1.msra.mxu0 0.0
    %3345 = vmatprep.subr.mxu0 0.0
    %3346 = vmatpush1.msra.mxu0 0.0
    %3347 = vmatprep.subr.mxu0 0.0
    %3348 = vmatpush1.msra.mxu0 0.0
    %3349 = vmatprep.subr.mxu0 0.0
    %3350 = vmatpush1.msra.mxu0 0.0
    %3351 = vmatprep.subr.mxu0 0.0
    %3352 = vmatpush1.msra.mxu0 0.0
    %3353 = vmatprep.subr.mxu0 0.0
    %3354 = vmatpush1.msra.mxu0 0.0
    %3355 = vmatprep.subr.mxu0 0.0
    %3356 = vmatpush1.msra.mxu0 0.0
    %3357 = vmatprep.subr.mxu0 0.0
    %3358 = vmatpush1.msra.mxu0 0.0
    %3359 = vmatprep.subr.mxu0 0.0
    %3360 = vmatpush1.msra.mxu0 0.0
    %3361 = vmatprep.subr.mxu0 0.0
    %3362 = vmatpush1.msra.mxu0 0.0
    %3363 = vmatprep.subr.mxu0 0.0
    %3364 = vmatpush1.msra.mxu0 0.0
    %3365 = vmatprep.subr.mxu0 0.0
    %3366 = vmatpush1.msra.mxu0 0.0
    %3367 = vmatprep.subr.mxu0 0.0
    %3368 = vmatpush1.msra.mxu0 0.0
    %3369 = vmatprep.mubr.f32.mxu0 0.0
    %3370 = vmatmul.mubr.f32.gmra.mrb[0].mxu0 %v3300
    %v3371 = vpop.f32.mrb[0].mxu0
    %v3372 = vadd.f32 0.0, %v3371
    %v3373 = vpop.f32.mrb[0].mxu0
    %3374 = vmatprep.mubr.f32.mxu0 0.0
    %3375 = vmatmul.mubr.f32.gmra.mrb[0].mxu0 %v3303
    %v3376 = vpop.f32.mrb[0].mxu0
    %v3377 = vadd.f32 0.0, %v3376
    %v3378 = vpop.f32.mrb[0].mxu0
    %3379 = vdwg.mxu0
    %3380 = vrot.lane.b32.xlu0 %v2830, 64
    %v3381 = vpop.permute.xlu0 %3380
    %3382 = vrot.lane.b32.xlu0 %v2832, 64
    %v3383 = vpop.permute.xlu0 %3382
    %v3387 = vsel %vm627, %v3282, 0
    %v3390 = vsel %vm627, %v3284, 0
    %3392 = vmatprep.subr.mxu0 0.0
    %3393 = vmatpush1.msra.mxu0 %v3381
    %3394 = vmatprep.subr.mxu0 0.0
    %3395 = vmatpush1.msra.mxu0 %v3383
    %3396 = vmatprep.subr.mxu0 0.0
    %3397 = vmatpush1.msra.mxu0 0.0
    %3398 = vmatprep.subr.mxu0 0.0
    %3399 = vmatpush1.msra.mxu0 0.0
    %3400 = vmatprep.subr.mxu0 0.0
    %3401 = vmatpush1.msra.mxu0 0.0
    %3402 = vmatprep.subr.mxu0 0.0
    %3403 = vmatpush1.msra.mxu0 0.0
    %3404 = vmatprep.subr.mxu0 0.0
    %3405 = vmatpush1.msra.mxu0 0.0
    %3406 = vmatprep.subr.mxu0 0.0
    %3407 = vmatpush1.msra.mxu0 0.0
    %3408 = vmatprep.subr.mxu0 0.0
    %3409 = vmatpush1.msra.mxu0 0.0
    %3410 = vmatprep.subr.mxu0 0.0
    %3411 = vmatpush1.msra.mxu0 0.0
    %3412 = vmatprep.subr.mxu0 0.0
    %3413 = vmatpush1.msra.mxu0 0.0
    %3414 = vmatprep.subr.mxu0 0.0
    %3415 = vmatpush1.msra.mxu0 0.0
    %3416 = vmatprep.subr.mxu0 0.0
    %3417 = vmatpush1.msra.mxu0 0.0
    %3418 = vmatprep.subr.mxu0 0.0
    %3419 = vmatpush1.msra.mxu0 0.0
    %3420 = vmatprep.subr.mxu0 0.0
    %3421 = vmatpush1.msra.mxu0 0.0
    %3422 = vmatprep.subr.mxu0 0.0
    %3423 = vmatpush1.msra.mxu0 0.0
    %3424 = vmatprep.subr.mxu0 0.0
    %3425 = vmatpush1.msra.mxu0 0.0
    %3426 = vmatprep.subr.mxu0 0.0
    %3427 = vmatpush1.msra.mxu0 0.0
    %3428 = vmatprep.subr.mxu0 0.0
    %3429 = vmatpush1.msra.mxu0 0.0
    %3430 = vmatprep.subr.mxu0 0.0
    %3431 = vmatpush1.msra.mxu0 0.0
    %3432 = vmatprep.subr.mxu0 0.0
    %3433 = vmatpush1.msra.mxu0 0.0
    %3434 = vmatprep.subr.mxu0 0.0
    %3435 = vmatpush1.msra.mxu0 0.0
    %3436 = vmatprep.subr.mxu0 0.0
    %3437 = vmatpush1.msra.mxu0 0.0
    %3438 = vmatprep.subr.mxu0 0.0
    %3439 = vmatpush1.msra.mxu0 0.0
    %3440 = vmatprep.subr.mxu0 0.0
    %3441 = vmatpush1.msra.mxu0 0.0
    %3442 = vmatprep.subr.mxu0 0.0
    %3443 = vmatpush1.msra.mxu0 0.0
    %3444 = vmatprep.subr.mxu0 0.0
    %3445 = vmatpush1.msra.mxu0 0.0
    %3446 = vmatprep.subr.mxu0 0.0
    %3447 = vmatpush1.msra.mxu0 0.0
    %3448 = vmatprep.subr.mxu0 0.0
    %3449 = vmatpush1.msra.mxu0 0.0
    %3450 = vmatprep.subr.mxu0 0.0
    %3451 = vmatpush1.msra.mxu0 0.0
    %3452 = vmatprep.subr.mxu0 0.0
    %3453 = vmatpush1.msra.mxu0 0.0
    %3454 = vmatprep.subr.mxu0 0.0
    %3455 = vmatpush1.msra.mxu0 0.0
    %3456 = vmatprep.mubr.f32.mxu0 0.0
    %3457 = vmatmul.mubr.f32.gmra.mrb[0].mxu0 %v3387
    %v3458 = vpop.f32.mrb[0].mxu0
    %v3459 = vadd.f32 0.0, %v3458
    %v3460 = vpop.f32.mrb[0].mxu0
    %3461 = vmatprep.mubr.f32.mxu0 0.0
    %3462 = vmatmul.mubr.f32.gmra.mrb[0].mxu0 %v3390
    %v3463 = vpop.f32.mrb[0].mxu0
    %v3464 = vadd.f32 0.0, %v3463
    %v3465 = vpop.f32.mrb[0].mxu0
    %3466 = vdwg.mxu0
    %3467 = vrot.lane.b32.xlu0 %v2834, 64
    %v3468 = vpop.permute.xlu0 %3467
    %3469 = vrot.lane.b32.xlu0 %v2836, 64
    %v3470 = vpop.permute.xlu0 %3469
    %v3474 = vsel %vm627, %v3286, 0
    %v3477 = vsel %vm627, %v3288, 0
    %3479 = vmatprep.subr.mxu0 0.0
    %3480 = vmatpush1.msra.mxu0 %v3468
    %3481 = vmatprep.subr.mxu0 0.0
    %3482 = vmatpush1.msra.mxu0 %v3470
    %3483 = vmatprep.subr.mxu0 0.0
    %3484 = vmatpush1.msra.mxu0 0.0
    %3485 = vmatprep.subr.mxu0 0.0
    %3486 = vmatpush1.msra.mxu0 0.0
    %3487 = vmatprep.subr.mxu0 0.0
    %3488 = vmatpush1.msra.mxu0 0.0
    %3489 = vmatprep.subr.mxu0 0.0
    %3490 = vmatpush1.msra.mxu0 0.0
    %3491 = vmatprep.subr.mxu0 0.0
    %3492 = vmatpush1.msra.mxu0 0.0
    %3493 = vmatprep.subr.mxu0 0.0
    %3494 = vmatpush1.msra.mxu0 0.0
    %3495 = vmatprep.subr.mxu0 0.0
    %3496 = vmatpush1.msra.mxu0 0.0
    %3497 = vmatprep.subr.mxu0 0.0
    %3498 = vmatpush1.msra.mxu0 0.0
    %3499 = vmatprep.subr.mxu0 0.0
    %3500 = vmatpush1.msra.mxu0 0.0
    %3501 = vmatprep.subr.mxu0 0.0
    %3502 = vmatpush1.msra.mxu0 0.0
    %3503 = vmatprep.subr.mxu0 0.0
    %3504 = vmatpush1.msra.mxu0 0.0
    %3505 = vmatprep.subr.mxu0 0.0
    %3506 = vmatpush1.msra.mxu0 0.0
    %3507 = vmatprep.subr.mxu0 0.0
    %3508 = vmatpush1.msra.mxu0 0.0
    %3509 = vmatprep.subr.mxu0 0.0
    %3510 = vmatpush1.msra.mxu0 0.0
    %3511 = vmatprep.subr.mxu0 0.0
    %3512 = vmatpush1.msra.mxu0 0.0
    %3513 = vmatprep.subr.mxu0 0.0
    %3514 = vmatpush1.msra.mxu0 0.0
    %3515 = vmatprep.subr.mxu0 0.0
    %3516 = vmatpush1.msra.mxu0 0.0
    %3517 = vmatprep.subr.mxu0 0.0
    %3518 = vmatpush1.msra.mxu0 0.0
    %3519 = vmatprep.subr.mxu0 0.0
    %3520 = vmatpush1.msra.mxu0 0.0
    %3521 = vmatprep.subr.mxu0 0.0
    %3522 = vmatpush1.msra.mxu0 0.0
    %3523 = vmatprep.subr.mxu0 0.0
    %3524 = vmatpush1.msra.mxu0 0.0
    %3525 = vmatprep.subr.mxu0 0.0
    %3526 = vmatpush1.msra.mxu0 0.0
    %3527 = vmatprep.subr.mxu0 0.0
    %3528 = vmatpush1.msra.mxu0 0.0
    %3529 = vmatprep.subr.mxu0 0.0
    %3530 = vmatpush1.msra.mxu0 0.0
    %3531 = vmatprep.subr.mxu0 0.0
    %3532 = vmatpush1.msra.mxu0 0.0
    %3533 = vmatprep.subr.mxu0 0.0
    %3534 = vmatpush1.msra.mxu0 0.0
    %3535 = vmatprep.subr.mxu0 0.0
    %3536 = vmatpush1.msra.mxu0 0.0
    %3537 = vmatprep.subr.mxu0 0.0
    %3538 = vmatpush1.msra.mxu0 0.0
    %3539 = vmatprep.subr.mxu0 0.0
    %3540 = vmatpush1.msra.mxu0 0.0
    %3541 = vmatprep.subr.mxu0 0.0
    %3542 = vmatpush1.msra.mxu0 0.0
    %3543 = vmatprep.mubr.f32.mxu0 0.0
    %3544 = vmatmul.mubr.f32.gmra.mrb[0].mxu0 %v3474
    %v3545 = vpop.f32.mrb[0].mxu0
    %v3546 = vadd.f32 0.0, %v3545
    %v3547 = vpop.f32.mrb[0].mxu0
    %3548 = vmatprep.mubr.f32.mxu0 0.0
    %3549 = vmatmul.mubr.f32.gmra.mrb[0].mxu0 %v3477
    %v3550 = vpop.f32.mrb[0].mxu0
    %v3551 = vadd.f32 0.0, %v3550
    %v3552 = vpop.f32.mrb[0].mxu0
    %3553 = vdwg.mxu0
    %3554 = vrot.lane.b32.xlu0 %v2838, 64
    %v3555 = vpop.permute.xlu0 %3554
    %3556 = vrot.lane.b32.xlu0 %v2840, 64
    %v3557 = vpop.permute.xlu0 %3556
    %v3561 = vsel %vm627, %v3290, 0
    %v3564 = vsel %vm627, %v3292, 0
    %3566 = vmatprep.subr.mxu0 0.0
    %3567 = vmatpush1.msra.mxu0 %v3555
    %3568 = vmatprep.subr.mxu0 0.0
    %3569 = vmatpush1.msra.mxu0 %v3557
    %3570 = vmatprep.subr.mxu0 0.0
    %3571 = vmatpush1.msra.mxu0 0.0
    %3572 = vmatprep.subr.mxu0 0.0
    %3573 = vmatpush1.msra.mxu0 0.0
    %3574 = vmatprep.subr.mxu0 0.0
    %3575 = vmatpush1.msra.mxu0 0.0
    %3576 = vmatprep.subr.mxu0 0.0
    %3577 = vmatpush1.msra.mxu0 0.0
    %3578 = vmatprep.subr.mxu0 0.0
    %3579 = vmatpush1.msra.mxu0 0.0
    %3580 = vmatprep.subr.mxu0 0.0
    %3581 = vmatpush1.msra.mxu0 0.0
    %3582 = vmatprep.subr.mxu0 0.0
    %3583 = vmatpush1.msra.mxu0 0.0
    %3584 = vmatprep.subr.mxu0 0.0
    %3585 = vmatpush1.msra.mxu0 0.0
    %3586 = vmatprep.subr.mxu0 0.0
    %3587 = vmatpush1.msra.mxu0 0.0
    %3588 = vmatprep.subr.mxu0 0.0
    %3589 = vmatpush1.msra.mxu0 0.0
    %3590 = vmatprep.subr.mxu0 0.0
    %3591 = vmatpush1.msra.mxu0 0.0
    %3592 = vmatprep.subr.mxu0 0.0
    %3593 = vmatpush1.msra.mxu0 0.0
    %3594 = vmatprep.subr.mxu0 0.0
    %3595 = vmatpush1.msra.mxu0 0.0
    %3596 = vmatprep.subr.mxu0 0.0
    %3597 = vmatpush1.msra.mxu0 0.0
    %3598 = vmatprep.subr.mxu0 0.0
    %3599 = vmatpush1.msra.mxu0 0.0
    %3600 = vmatprep.subr.mxu0 0.0
    %3601 = vmatpush1.msra.mxu0 0.0
    %3602 = vmatprep.subr.mxu0 0.0
    %3603 = vmatpush1.msra.mxu0 0.0
    %3604 = vmatprep.subr.mxu0 0.0
    %3605 = vmatpush1.msra.mxu0 0.0
    %3606 = vmatprep.subr.mxu0 0.0
    %3607 = vmatpush1.msra.mxu0 0.0
    %3608 = vmatprep.subr.mxu0 0.0
    %3609 = vmatpush1.msra.mxu0 0.0
    %3610 = vmatprep.subr.mxu0 0.0
    %3611 = vmatpush1.msra.mxu0 0.0
    %3612 = vmatprep.subr.mxu0 0.0
    %3613 = vmatpush1.msra.mxu0 0.0
    %3614 = vmatprep.subr.mxu0 0.0
    %3615 = vmatpush1.msra.mxu0 0.0
    %3616 = vmatprep.subr.mxu0 0.0
    %3617 = vmatpush1.msra.mxu0 0.0
    %3618 = vmatprep.subr.mxu0 0.0
    %3619 = vmatpush1.msra.mxu0 0.0
    %3620 = vmatprep.subr.mxu0 0.0
    %3621 = vmatpush1.msra.mxu0 0.0
    %3622 = vmatprep.subr.mxu0 0.0
    %3623 = vmatpush1.msra.mxu0 0.0
    %3624 = vmatprep.subr.mxu0 0.0
    %3625 = vmatpush1.msra.mxu0 0.0
    %3626 = vmatprep.subr.mxu0 0.0
    %3627 = vmatpush1.msra.mxu0 0.0
    %3628 = vmatprep.subr.mxu0 0.0
    %3629 = vmatpush1.msra.mxu0 0.0
    %3630 = vmatprep.mubr.f32.mxu0 0.0
    %3631 = vmatmul.mubr.f32.gmra.mrb[0].mxu0 %v3561
    %v3632 = vpop.f32.mrb[0].mxu0
    %v3633 = vadd.f32 0.0, %v3632
    %v3634 = vpop.f32.mrb[0].mxu0
    %3635 = vmatprep.mubr.f32.mxu0 0.0
    %3636 = vmatmul.mubr.f32.gmra.mrb[0].mxu0 %v3564
    %v3637 = vpop.f32.mrb[0].mxu0
    %v3638 = vadd.f32 0.0, %v3637
    %v3639 = vpop.f32.mrb[0].mxu0
    %3640 = vdwg.mxu0
    %3641 = vst.msk [vmem:[#allocation3] sm:$0xff] %vm266, %v3372
    %3642 = vst.msk [vmem:[#allocation3 + $0x8] sm:$0xff] %vm266, %v3377
    %3645 = vrot.lane.b32.xlu0 %v3459, 8
    %v3646 = vpop.permute.xlu0 %3645
    %3647 = vrot.lane.b32.xlu0 %v3464, 8
    %v3648 = vpop.permute.xlu0 %3647
    %3651 = vst.msk [vmem:[#allocation3] sm:$0xff] %vm1074, %v3646
    %3652 = vst.msk [vmem:[#allocation3 + $0x8] sm:$0xff] %vm1074, %v3648
    %3655 = vrot.lane.b32.xlu0 %v3546, 16
    %v3656 = vpop.permute.xlu0 %3655
    %3657 = vrot.lane.b32.xlu0 %v3551, 16
    %v3658 = vpop.permute.xlu0 %3657
    %3661 = vst.msk [vmem:[#allocation3] sm:$0xff] %vm1085, %v3656
    %3662 = vst.msk [vmem:[#allocation3 + $0x8] sm:$0xff] %vm1085, %v3658
    %3665 = vrot.lane.b32.xlu0 %v3633, 24
    %v3666 = vpop.permute.xlu0 %3665
    %3667 = vrot.lane.b32.xlu0 %v3638, 24
    %v3668 = vpop.permute.xlu0 %3667
    %3671 = vst.msk [vmem:[#allocation3] sm:$0xff] %vm1096, %v3666
    %3672 = vst.msk [vmem:[#allocation3 + $0x8] sm:$0xff] %vm1096, %v3668
    %v3673 = vld [vmem:[#allocation3] sm:$0xff]
    %v3674 = vld [vmem:[#allocation3 + $0x8] sm:$0xff]
    %s3675 = scalar_lea.vmem %s7, 32
    %v3676 = vld [vmem:[%s3675] sm:$0xf]
    %v3677 = vld [vmem:[%s3675 + $0x4] sm:$0xf]
    %v3678 = vld [vmem:[%s3675 + $0x8] sm:$0xf]
    %v3679 = vld [vmem:[%s3675 + $0xc] sm:$0xf]
    %v3680 = vpack.c.bf16 %v3674, %v3673
    %v3685 = vunpack.c.l.b16 %v3676
    %v3686 = vunpack.c.l.b16 %v3677
    %v3687 = vunpack.c.l.b16 %v3678
    %v3688 = vunpack.c.l.b16 %v3679
    %v3689 = vpack.c.b16 %v3686, %v3685
    %v3690 = vpack.c.b16 %v3688, %v3687
    %v3694 = vsel %vm136, %v3680, 0
    %3696 = vmatprep.subr.bf16.mxu0 0
    %3697 = vmatpush1.bf16.msra.mxu0 %v3689
    %3698 = vmatprep.subr.bf16.mxu0 0
    %3699 = vmatpush1.bf16.msra.mxu0 %v3690
    %3700 = vmatprep.subr.bf16.mxu0 0
    %3701 = vmatpush1.bf16.msra.mxu0 0
    %3702 = vmatprep.subr.bf16.mxu0 0
    %3703 = vmatpush1.bf16.msra.mxu0 0
    %3704 = vmatprep.subr.bf16.mxu0 0
    %3705 = vmatpush1.bf16.msra.mxu0 0
    %3706 = vmatprep.subr.bf16.mxu0 0
    %3707 = vmatpush1.bf16.msra.mxu0 0
    %3708 = vmatprep.subr.bf16.mxu0 0
    %3709 = vmatpush1.bf16.msra.mxu0 0
    %3710 = vmatprep.subr.bf16.mxu0 0
    %3711 = vmatpush1.bf16.msra.mxu0 0
    %3712 = vmatprep.subr.bf16.mxu0 0
    %3713 = vmatpush1.bf16.msra.mxu0 0
    %3714 = vmatprep.subr.bf16.mxu0 0
    %3715 = vmatpush1.bf16.msra.mxu0 0
    %3716 = vmatprep.subr.bf16.mxu0 0
    %3717 = vmatpush1.bf16.msra.mxu0 0
    %3718 = vmatprep.subr.bf16.mxu0 0
    %3719 = vmatpush1.bf16.msra.mxu0 0
    %3720 = vmatprep.subr.bf16.mxu0 0
    %3721 = vmatpush1.bf16.msra.mxu0 0
    %3722 = vmatprep.subr.bf16.mxu0 0
    %3723 = vmatpush1.bf16.msra.mxu0 0
    %3724 = vmatprep.subr.bf16.mxu0 0
    %3725 = vmatpush1.bf16.msra.mxu0 0
    %3726 = vmatprep.subr.bf16.mxu0 0
    %3727 = vmatpush1.bf16.msra.mxu0 0
    %3728 = vmatprep.mubr.bf16.mxu0 0
    %3729 = vmatmul.mubr.bf16.gmra.mrb[0].mxu0 %v3694
    %v3730 = vpop.f32.mrb[0].mxu0
    %v3731 = vadd.f32 0.0, %v3730
    %v3732 = vpop.f32.mrb[0].mxu0
    %v3733 = vpop.f32.mrb[0].mxu0
    %v3734 = vadd.f32 0.0, %v3733
    %v3735 = vpop.f32.mrb[0].mxu0
    %3736 = vdwg.mxu0
    %v3737 = vadd.f32 %v2709, %v3731
    %v3738 = vadd.f32 %v2710, %v3734
    %s3739 = scalar_lea.vmem %s8, 2
    %v3740 = vld [vmem:[%s3739] sm:$0x1]
    %v3742 = vlaneseq
    %v3743 = vshrl.u32 %v3742, 7
    %v3744 = vsub.s32 0, %v3743
    %v3745 = vrot.slane %v3740, %v3744
    %v3747 = vadd.f32 %v3737, %v3745
    %v3748 = vadd.f32 %v3738, %v3745
    %s3749 = scalar_lea.vmem %s9, 2
    %v3750 = vld [vmem:[%s3749] sm:$0x1]
    %s3751 = scalar_lea.vmem %s10, 2
    %v3752 = vld [vmem:[%s3751] sm:$0x1]
    %v3753 = vsel %vm136, %v3747, 0.0
    %3754 = vadd.xlane.f32.xlu0 %v3753
    %v3755 = vpop.xlane.xlu0 %3754
    %v3756 = vsel %vm136, %v3748, 0.0
    %3757 = vadd.xlane.f32.xlu0 %v3756
    %v3758 = vpop.xlane.xlu0 %3757
    %v3759 = vmul.f32 %v3755, %v143
    %v3760 = vmul.f32 %v3758, %v143
    %v3761 = vsub.f32 %v3747, %v3759
    %v3762 = vsub.f32 %v3748, %v3760
    %v3763 = vmul.f32 %v3761, %v3761
    %v3764 = vmul.f32 %v3762, %v3762
    %v3765 = vsel %vm136, %v3763, 0.0
    %3766 = vadd.xlane.f32.xlu0 %v3765
    %v3767 = vpop.xlane.xlu0 %3766
    %v3768 = vsel %vm136, %v3764, 0.0
    %3769 = vadd.xlane.f32.xlu0 %v3768
    %v3770 = vpop.xlane.xlu0 %3769
    %v3771 = vmul.f32 %v3767, %v143
    %v3772 = vmul.f32 %v3770, %v143
    %v3773 = vadd.f32 %v3771, 1e-05
    %v3774 = vadd.f32 %v3772, 1e-05
    %v3775 = vrsqrt.pop %v3773
    %v3776 = vrsqrt.pop %v3774
    %v3777 = vmul.f32 %v3761, %v3775
    %v3778 = vmul.f32 %v3762, %v3776
    %v3780 = vlaneseq
    %v3781 = vshrl.u32 %v3780, 7
    %v3782 = vsub.s32 0, %v3781
    %v3783 = vrot.slane %v3750, %v3782
    %v3785 = vmul.f32 %v3777, %v3783
    %v3786 = vmul.f32 %v3778, %v3783
    %v3788 = vlaneseq
    %v3789 = vshrl.u32 %v3788, 7
    %v3790 = vsub.s32 0, %v3789
    %v3791 = vrot.slane %v3752, %v3790
    %v3793 = vadd.f32 %v3785, %v3791
    %v3794 = vadd.f32 %v3786, %v3791
    %s3795 = scalar_lea.vmem %s11, 32
    %v3796 = vld [vmem:[%s3795] sm:$0xf]
    %v3797 = vld [vmem:[%s3795 + $0x4] sm:$0xf]
    %v3798 = vld [vmem:[%s3795 + $0x8] sm:$0xf]
    %v3799 = vld [vmem:[%s3795 + $0xc] sm:$0xf]
    %v3800 = vpack.c.bf16 %v3794, %v3793
    %s3801 = scalar_lea.vmem %s12, 2
    %v3802 = vld [vmem:[%s3801] sm:$0x1]
    %v3804 = vlaneseq
    %v3805 = vshrl.u32 %v3804, 7
    %v3806 = vsub.s32 0, %v3805
    %v3807 = vrot.slane %v3802, %v3806
    %v3813 = vunpack.c.l.b16 %v3796
    %v3814 = vunpack.c.l.b16 %v3797
    %v3815 = vunpack.c.l.b16 %v3798
    %v3816 = vunpack.c.l.b16 %v3799
    %v3817 = vpack.c.b16 %v3814, %v3813
    %v3818 = vpack.c.b16 %v3816, %v3815
    %v3822 = vsel %vm136, %v3800, 0
    %3824 = vmatprep.subr.bf16.mxu0 0
    %3825 = vmatpush1.bf16.msra.mxu0 %v3817
    %3826 = vmatprep.subr.bf16.mxu0 0
    %3827 = vmatpush1.bf16.msra.mxu0 %v3818
    %3828 = vmatprep.subr.bf16.mxu0 0
    %3829 = vmatpush1.bf16.msra.mxu0 0
    %3830 = vmatprep.subr.bf16.mxu0 0
    %3831 = vmatpush1.bf16.msra.mxu0 0
    %3832 = vmatprep.subr.bf16.mxu0 0
    %3833 = vmatpush1.bf16.msra.mxu0 0
    %3834 = vmatprep.subr.bf16.mxu0 0
    %3835 = vmatpush1.bf16.msra.mxu0 0
    %3836 = vmatprep.subr.bf16.mxu0 0
    %3837 = vmatpush1.bf16.msra.mxu0 0
    %3838 = vmatprep.subr.bf16.mxu0 0
    %3839 = vmatpush1.bf16.msra.mxu0 0
    %3840 = vmatprep.subr.bf16.mxu0 0
    %3841 = vmatpush1.bf16.msra.mxu0 0
    %3842 = vmatprep.subr.bf16.mxu0 0
    %3843 = vmatpush1.bf16.msra.mxu0 0
    %3844 = vmatprep.subr.bf16.mxu0 0
    %3845 = vmatpush1.bf16.msra.mxu0 0
    %3846 = vmatprep.subr.bf16.mxu0 0
    %3847 = vmatpush1.bf16.msra.mxu0 0
    %3848 = vmatprep.subr.bf16.mxu0 0
    %3849 = vmatpush1.bf16.msra.mxu0 0
    %3850 = vmatprep.subr.bf16.mxu0 0
    %3851 = vmatpush1.bf16.msra.mxu0 0
    %3852 = vmatprep.subr.bf16.mxu0 0
    %3853 = vmatpush1.bf16.msra.mxu0 0
    %3854 = vmatprep.subr.bf16.mxu0 0
    %3855 = vmatpush1.bf16.msra.mxu0 0
    %3856 = vmatprep.mubr.bf16.mxu0 0
    %3857 = vmatmul.mubr.bf16.gmra.mrb[0].mxu0 %v3822
    %v3858 = vpop.f32.mrb[0].mxu0
    %v3859 = vadd.f32 %v3807, %v3858
    %v3860 = vpop.f32.mrb[0].mxu0
    %v3861 = vpop.f32.mrb[0].mxu0
    %v3862 = vadd.f32 %v3807, %v3861
    %v3863 = vpop.f32.mrb[0].mxu0
    %3864 = vdwg.mxu0
    %v3865 = vmul.f32 %v3859, 0.5
    %v3866 = vmul.f32 %v3862, 0.5
    %v3867 = vmul.f32 %v3859, 0.044715
    %v3868 = vmul.f32 %v3862, 0.044715
    %v3869 = vmul.f32 %v3867, %v3859
    %v3870 = vmul.f32 %v3868, %v3862
    %v3871 = vmul.f32 %v3869, %v3859
    %v3872 = vmul.f32 %v3870, %v3862
    %v3873 = vadd.f32 %v3859, %v3871
    %v3874 = vadd.f32 %v3862, %v3872
    %v3875 = vmul.f32 %v3873, 0.7978846
    %v3876 = vmul.f32 %v3874, 0.7978846
    %v3877 = vtanh.pop %v3875
    %v3878 = vtanh.pop %v3876
    %v3879 = vadd.f32 %v3877, 1.0
    %v3880 = vadd.f32 %v3878, 1.0
    %v3881 = vmul.f32 %v3865, %v3879
    %v3882 = vmul.f32 %v3866, %v3880
    %s3883 = scalar_lea.vmem %s13, 128
    %v3884 = vld [vmem:[%s3883] sm:$0xf]
    %v3885 = vld [vmem:[%s3883 + $0x4] sm:$0xf]
    %v3886 = vld [vmem:[%s3883 + $0x8] sm:$0xf]
    %v3887 = vld [vmem:[%s3883 + $0xc] sm:$0xf]
    %v3888 = vld [vmem:[%s3883 + $0x10] sm:$0xf]
    %v3889 = vld [vmem:[%s3883 + $0x14] sm:$0xf]
    %v3890 = vld [vmem:[%s3883 + $0x18] sm:$0xf]
    %v3891 = vld [vmem:[%s3883 + $0x1c] sm:$0xf]
    %v3892 = vld [vmem:[%s3883 + $0x20] sm:$0xf]
    %v3893 = vld [vmem:[%s3883 + $0x24] sm:$0xf]
    %v3894 = vld [vmem:[%s3883 + $0x28] sm:$0xf]
    %v3895 = vld [vmem:[%s3883 + $0x2c] sm:$0xf]
    %v3896 = vld [vmem:[%s3883 + $0x30] sm:$0xf]
    %v3897 = vld [vmem:[%s3883 + $0x34] sm:$0xf]
    %v3898 = vld [vmem:[%s3883 + $0x38] sm:$0xf]
    %v3899 = vld [vmem:[%s3883 + $0x3c] sm:$0xf]
    %v3900 = vpack.c.bf16 %v3882, %v3881
    %v3917 = vunpack.c.l.b16 %v3884
    %v3918 = vunpack.c.l.b16 %v3885
    %v3919 = vunpack.c.l.b16 %v3886
    %v3920 = vunpack.c.l.b16 %v3887
    %v3921 = vunpack.c.l.b16 %v3888
    %v3922 = vunpack.c.l.b16 %v3889
    %v3923 = vunpack.c.l.b16 %v3890
    %v3924 = vunpack.c.l.b16 %v3891
    %v3925 = vunpack.c.l.b16 %v3892
    %v3926 = vunpack.c.l.b16 %v3893
    %v3927 = vunpack.c.l.b16 %v3894
    %v3928 = vunpack.c.l.b16 %v3895
    %v3929 = vunpack.c.l.b16 %v3896
    %v3930 = vunpack.c.l.b16 %v3897
    %v3931 = vunpack.c.l.b16 %v3898
    %v3932 = vunpack.c.l.b16 %v3899
    %v3933 = vpack.c.b16 %v3918, %v3917
    %v3934 = vpack.c.b16 %v3920, %v3919
    %v3935 = vpack.c.b16 %v3922, %v3921
    %v3936 = vpack.c.b16 %v3924, %v3923
    %v3937 = vpack.c.b16 %v3926, %v3925
    %v3938 = vpack.c.b16 %v3928, %v3927
    %v3939 = vpack.c.b16 %v3930, %v3929
    %v3940 = vpack.c.b16 %v3932, %v3931
    %3949 = vmatprep.subr.bf16.mxu0 0
    %3950 = vmatpush1.bf16.msra.mxu0 %v3933
    %3951 = vmatprep.subr.bf16.mxu0 0
    %3952 = vmatpush1.bf16.msra.mxu0 %v3934
    %3953 = vmatprep.subr.bf16.mxu0 0
    %3954 = vmatpush1.bf16.msra.mxu0 %v3935
    %3955 = vmatprep.subr.bf16.mxu0 0
    %3956 = vmatpush1.bf16.msra.mxu0 %v3936
    %3957 = vmatprep.subr.bf16.mxu0 0
    %3958 = vmatpush1.bf16.msra.mxu0 %v3937
    %3959 = vmatprep.subr.bf16.mxu0 0
    %3960 = vmatpush1.bf16.msra.mxu0 %v3938
    %3961 = vmatprep.subr.bf16.mxu0 0
    %3962 = vmatpush1.bf16.msra.mxu0 %v3939
    %3963 = vmatprep.subr.bf16.mxu0 0
    %3964 = vmatpush1.bf16.msra.mxu0 %v3940
    %3965 = vmatprep.subr.bf16.mxu0 0
    %3966 = vmatpush1.bf16.msra.mxu0 0
    %3967 = vmatprep.subr.bf16.mxu0 0
    %3968 = vmatpush1.bf16.msra.mxu0 0
    %3969 = vmatprep.subr.bf16.mxu0 0
    %3970 = vmatpush1.bf16.msra.mxu0 0
    %3971 = vmatprep.subr.bf16.mxu0 0
    %3972 = vmatpush1.bf16.msra.mxu0 0
    %3973 = vmatprep.subr.bf16.mxu0 0
    %3974 = vmatpush1.bf16.msra.mxu0 0
    %3975 = vmatprep.subr.bf16.mxu0 0
    %3976 = vmatpush1.bf16.msra.mxu0 0
    %3977 = vmatprep.subr.bf16.mxu0 0
    %3978 = vmatpush1.bf16.msra.mxu0 0
    %3979 = vmatprep.subr.bf16.mxu0 0
    %3980 = vmatpush1.bf16.msra.mxu0 0
    %3981 = vmatprep.mubr.bf16.mxu0 0
    %3982 = vmatmul.mubr.bf16.gmra.mrb[0].mxu0 %v3900
    %v3983 = vpop.f32.mrb[0].mxu0
    %v3984 = vadd.f32 0.0, %v3983
    %v3985 = vpop.f32.mrb[0].mxu0
    %v3986 = vpop.f32.mrb[0].mxu0
    %v3987 = vadd.f32 0.0, %v3986
    %v3988 = vpop.f32.mrb[0].mxu0
    %3989 = vdwg.mxu0
    %v3990 = vadd.f32 %v3747, %v3984
    %v3991 = vadd.f32 %v3748, %v3987
    %s3992 = scalar_lea.vmem %s14, 2
    %v3993 = vld [vmem:[%s3992] sm:$0x1]
    %v3995 = vlaneseq
    %v3996 = vshrl.u32 %v3995, 7
    %v3997 = vsub.s32 0, %v3996
    %v3998 = vrot.slane %v3993, %v3997
    %v4000 = vadd.f32 %v3990, %v3998
    %v4001 = vadd.f32 %v3991, %v3998
    %s4002 = scalar_lea.vmem %s3, 3
    %v4003 = vld [vmem:[%s4002] sm:$0x1]
    %s4004 = scalar_lea.vmem %s4, 3
    %v4005 = vld [vmem:[%s4004] sm:$0x1]
    %v4006 = vsel %vm136, %v4000, 0.0
    %4007 = vadd.xlane.f32.xlu0 %v4006
    %v4008 = vpop.xlane.xlu0 %4007
    %v4009 = vsel %vm136, %v4001, 0.0
    %4010 = vadd.xlane.f32.xlu0 %v4009
    %v4011 = vpop.xlane.xlu0 %4010
    %v4012 = vmul.f32 %v4008, %v143
    %v4013 = vmul.f32 %v4011, %v143
    %v4014 = vsub.f32 %v4000, %v4012
    %v4015 = vsub.f32 %v4001, %v4013
    %v4016 = vmul.f32 %v4014, %v4014
    %v4017 = vmul.f32 %v4015, %v4015
    %v4018 = vsel %vm136, %v4016, 0.0
    %4019 = vadd.xlane.f32.xlu0 %v4018
    %v4020 = vpop.xlane.xlu0 %4019
    %v4021 = vsel %vm136, %v4017, 0.0
    %4022 = vadd.xlane.f32.xlu0 %v4021
    %v4023 = vpop.xlane.xlu0 %4022
    %v4024 = vmul.f32 %v4020, %v143
    %v4025 = vmul.f32 %v4023, %v143
    %v4026 = vadd.f32 %v4024, 1e-05
    %v4027 = vadd.f32 %v4025, 1e-05
    %v4028 = vrsqrt.pop %v4026
    %v4029 = vrsqrt.pop %v4027
    %v4030 = vmul.f32 %v4014, %v4028
    %v4031 = vmul.f32 %v4015, %v4029
    %v4033 = vlaneseq
    %v4034 = vshrl.u32 %v4033, 7
    %v4035 = vsub.s32 0, %v4034
    %v4036 = vrot.slane %v4003, %v4035
    %v4038 = vmul.f32 %v4030, %v4036
    %v4039 = vmul.f32 %v4031, %v4036
    %v4041 = vlaneseq
    %v4042 = vshrl.u32 %v4041, 7
    %v4043 = vsub.s32 0, %v4042
    %v4044 = vrot.slane %v4005, %v4043
    %v4046 = vadd.f32 %v4038, %v4044
    %v4047 = vadd.f32 %v4039, %v4044
    %s4048 = scalar_lea.vmem %s5, 48
    %v4049 = vld [vmem:[%s4048] sm:$0xf]
    %v4050 = vld [vmem:[%s4048 + $0x4] sm:$0xf]
    %v4051 = vld [vmem:[%s4048 + $0x8] sm:$0xf]
    %v4052 = vld [vmem:[%s4048 + $0xc] sm:$0xf]
    %v4053 = vpack.c.bf16 %v4047, %v4046
    %s4054 = scalar_lea.vmem %s6, 3
    %v4055 = vld [vmem:[%s4054] sm:$0x1]
    %v4057 = vlaneseq
    %v4058 = vshrl.u32 %v4057, 7
    %v4059 = vsub.s32 0, %v4058
    %v4060 = vrot.slane %v4055, %v4059
    %v4066 = vunpack.c.l.b16 %v4049
    %v4067 = vunpack.c.l.b16 %v4050
    %v4068 = vunpack.c.l.b16 %v4051
    %v4069 = vunpack.c.l.b16 %v4052
    %v4070 = vpack.c.b16 %v4067, %v4066
    %v4071 = vpack.c.b16 %v4069, %v4068
    %v4075 = vsel %vm136, %v4053, 0
    %4077 = vmatprep.subr.bf16.mxu0 0
    %4078 = vmatpush1.bf16.msra.mxu0 %v4070
    %4079 = vmatprep.subr.bf16.mxu0 0
    %4080 = vmatpush1.bf16.msra.mxu0 %v4071
    %4081 = vmatprep.subr.bf16.mxu0 0
    %4082 = vmatpush1.bf16.msra.mxu0 0
    %4083 = vmatprep.subr.bf16.mxu0 0
    %4084 = vmatpush1.bf16.msra.mxu0 0
    %4085 = vmatprep.subr.bf16.mxu0 0
    %4086 = vmatpush1.bf16.msra.mxu0 0
    %4087 = vmatprep.subr.bf16.mxu0 0
    %4088 = vmatpush1.bf16.msra.mxu0 0
    %4089 = vmatprep.subr.bf16.mxu0 0
    %4090 = vmatpush1.bf16.msra.mxu0 0
    %4091 = vmatprep.subr.bf16.mxu0 0
    %4092 = vmatpush1.bf16.msra.mxu0 0
    %4093 = vmatprep.subr.bf16.mxu0 0
    %4094 = vmatpush1.bf16.msra.mxu0 0
    %4095 = vmatprep.subr.bf16.mxu0 0
    %4096 = vmatpush1.bf16.msra.mxu0 0
    %4097 = vmatprep.subr.bf16.mxu0 0
    %4098 = vmatpush1.bf16.msra.mxu0 0
    %4099 = vmatprep.subr.bf16.mxu0 0
    %4100 = vmatpush1.bf16.msra.mxu0 0
    %4101 = vmatprep.subr.bf16.mxu0 0
    %4102 = vmatpush1.bf16.msra.mxu0 0
    %4103 = vmatprep.subr.bf16.mxu0 0
    %4104 = vmatpush1.bf16.msra.mxu0 0
    %4105 = vmatprep.subr.bf16.mxu0 0
    %4106 = vmatpush1.bf16.msra.mxu0 0
    %4107 = vmatprep.subr.bf16.mxu0 0
    %4108 = vmatpush1.bf16.msra.mxu0 0
    %4109 = vmatprep.mubr.bf16.mxu0 0
    %4110 = vmatmul.mubr.bf16.gmra.mrb[0].mxu0 %v4075
    %v4111 = vpop.f32.mrb[0].mxu0
    %v4112 = vadd.f32 %v4060, %v4111
    %v4113 = vpop.f32.mrb[0].mxu0
    %v4114 = vpop.f32.mrb[0].mxu0
    %v4115 = vadd.f32 %v4060, %v4114
    %v4116 = vpop.f32.mrb[0].mxu0
    %4117 = vdwg.mxu0
    %4120 = vrot.lane.b32.xlu0 %v4112, 120
    %v4121 = vpop.permute.xlu0 %4120
    %4122 = vrot.lane.b32.xlu0 %v4115, 120
    %v4123 = vpop.permute.xlu0 %4122
    %4124 = vrot.lane.b32.xlu0 %v4112, 112
    %v4125 = vpop.permute.xlu0 %4124
    %4126 = vrot.lane.b32.xlu0 %v4115, 112
    %v4127 = vpop.permute.xlu0 %4126
    %4128 = vrot.lane.b32.xlu0 %v4112, 104
    %v4129 = vpop.permute.xlu0 %4128
    %4130 = vrot.lane.b32.xlu0 %v4115, 104
    %v4131 = vpop.permute.xlu0 %4130
    %4132 = vrot.lane.b32.xlu0 %v4112, 96
    %v4133 = vpop.permute.xlu0 %4132
    %4134 = vrot.lane.b32.xlu0 %v4115, 96
    %v4135 = vpop.permute.xlu0 %4134
    %v4136 = vsel %vm266, %v4112, 0
    %v4138 = vsel %vm266, %v4115, 0
    %v4140 = vsel %vm266, %v4133, 0
    %v4142 = vsel %vm266, %v4135, 0
    %4144 = vmatprep.subr.mxu0 0.0
    %4145 = vmatpush1.xpose.msra.mxu0 %v4140
    %4146 = vmatprep.subr.mxu0 0.0
    %4147 = vmatpush1.xpose.msra.mxu0 %v4142
    %4148 = vmatprep.subr.mxu0 0.0
    %4149 = vmatpush1.xpose.msra.mxu0 0.0
    %4150 = vmatprep.subr.mxu0 0.0
    %4151 = vmatpush1.xpose.msra.mxu0 0.0
    %4152 = vmatprep.subr.mxu0 0.0
    %4153 = vmatpush1.xpose.msra.mxu0 0.0
    %4154 = vmatprep.subr.mxu0 0.0
    %4155 = vmatpush1.xpose.msra.mxu0 0.0
    %4156 = vmatprep.subr.mxu0 0.0
    %4157 = vmatpush1.xpose.msra.mxu0 0.0
    %4158 = vmatprep.subr.mxu0 0.0
    %4159 = vmatpush1.xpose.msra.mxu0 0.0
    %4160 = vmatprep.subr.mxu0 0.0
    %4161 = vmatpush1.xpose.msra.mxu0 0.0
    %4162 = vmatprep.subr.mxu0 0.0
    %4163 = vmatpush1.xpose.msra.mxu0 0.0
    %4164 = vmatprep.subr.mxu0 0.0
    %4165 = vmatpush1.xpose.msra.mxu0 0.0
    %4166 = vmatprep.subr.mxu0 0.0
    %4167 = vmatpush1.xpose.msra.mxu0 0.0
    %4168 = vmatprep.subr.mxu0 0.0
    %4169 = vmatpush1.xpose.msra.mxu0 0.0
    %4170 = vmatprep.subr.mxu0 0.0
    %4171 = vmatpush1.xpose.msra.mxu0 0.0
    %4172 = vmatprep.subr.mxu0 0.0
    %4173 = vmatpush1.xpose.msra.mxu0 0.0
    %4174 = vmatprep.subr.mxu0 0.0
    %4175 = vmatpush1.xpose.msra.mxu0 0.0
    %4176 = vmatprep.subr.mxu0 0.0
    %4177 = vmatpush1.xpose.msra.mxu0 0.0
    %4178 = vmatprep.subr.mxu0 0.0
    %4179 = vmatpush1.xpose.msra.mxu0 0.0
    %4180 = vmatprep.subr.mxu0 0.0
    %4181 = vmatpush1.xpose.msra.mxu0 0.0
    %4182 = vmatprep.subr.mxu0 0.0
    %4183 = vmatpush1.xpose.msra.mxu0 0.0
    %4184 = vmatprep.subr.mxu0 0.0
    %4185 = vmatpush1.xpose.msra.mxu0 0.0
    %4186 = vmatprep.subr.mxu0 0.0
    %4187 = vmatpush1.xpose.msra.mxu0 0.0
    %4188 = vmatprep.subr.mxu0 0.0
    %4189 = vmatpush1.xpose.msra.mxu0 0.0
    %4190 = vmatprep.subr.mxu0 0.0
    %4191 = vmatpush1.xpose.msra.mxu0 0.0
    %4192 = vmatprep.subr.mxu0 0.0
    %4193 = vmatpush1.xpose.msra.mxu0 0.0
    %4194 = vmatprep.subr.mxu0 0.0
    %4195 = vmatpush1.xpose.msra.mxu0 0.0
    %4196 = vmatprep.subr.mxu0 0.0
    %4197 = vmatpush1.xpose.msra.mxu0 0.0
    %4198 = vmatprep.subr.mxu0 0.0
    %4199 = vmatpush1.xpose.msra.mxu0 0.0
    %4200 = vmatprep.subr.mxu0 0.0
    %4201 = vmatpush1.xpose.msra.mxu0 0.0
    %4202 = vmatprep.subr.mxu0 0.0
    %4203 = vmatpush1.xpose.msra.mxu0 0.0
    %4204 = vmatprep.subr.mxu0 0.0
    %4205 = vmatpush1.xpose.msra.mxu0 0.0
    %4206 = vmatprep.subr.mxu0 0.0
    %4207 = vmatpush1.xpose.msra.mxu0 0.0
    %4208 = vmatprep.mubr.f32.mxu0 0.0
    %4209 = vmatmul.mubr.f32.gmra.mrb[0].mxu0 %v4136
    %v4210 = vpop.f32.mrb[0].mxu0
    %v4211 = vadd.f32 0.0, %v4210
    %v4212 = vpop.f32.mrb[0].mxu0
    %4213 = vmatprep.mubr.f32.mxu0 0.0
    %4214 = vmatmul.mubr.f32.gmra.mrb[0].mxu0 %v4138
    %v4215 = vpop.f32.mrb[0].mxu0
    %v4216 = vadd.f32 0.0, %v4215
    %v4217 = vpop.f32.mrb[0].mxu0
    %4218 = vdwg.mxu0
    %4219 = vrot.lane.b32.xlu0 %v4121, 96
    %v4220 = vpop.permute.xlu0 %4219
    %4221 = vrot.lane.b32.xlu0 %v4123, 96
    %v4222 = vpop.permute.xlu0 %4221
    %v4223 = vsel %vm266, %v4121, 0
    %v4225 = vsel %vm266, %v4123, 0
    %v4227 = vsel %vm266, %v4220, 0
    %v4229 = vsel %vm266, %v4222, 0
    %4231 = vmatprep.subr.mxu0 0.0
    %4232 = vmatpush1.xpose.msra.mxu0 %v4227
    %4233 = vmatprep.subr.mxu0 0.0
    %4234 = vmatpush1.xpose.msra.mxu0 %v4229
    %4235 = vmatprep.subr.mxu0 0.0
    %4236 = vmatpush1.xpose.msra.mxu0 0.0
    %4237 = vmatprep.subr.mxu0 0.0
    %4238 = vmatpush1.xpose.msra.mxu0 0.0
    %4239 = vmatprep.subr.mxu0 0.0
    %4240 = vmatpush1.xpose.msra.mxu0 0.0
    %4241 = vmatprep.subr.mxu0 0.0
    %4242 = vmatpush1.xpose.msra.mxu0 0.0
    %4243 = vmatprep.subr.mxu0 0.0
    %4244 = vmatpush1.xpose.msra.mxu0 0.0
    %4245 = vmatprep.subr.mxu0 0.0
    %4246 = vmatpush1.xpose.msra.mxu0 0.0
    %4247 = vmatprep.subr.mxu0 0.0
    %4248 = vmatpush1.xpose.msra.mxu0 0.0
    %4249 = vmatprep.subr.mxu0 0.0
    %4250 = vmatpush1.xpose.msra.mxu0 0.0
    %4251 = vmatprep.subr.mxu0 0.0
    %4252 = vmatpush1.xpose.msra.mxu0 0.0
    %4253 = vmatprep.subr.mxu0 0.0
    %4254 = vmatpush1.xpose.msra.mxu0 0.0
    %4255 = vmatprep.subr.mxu0 0.0
    %4256 = vmatpush1.xpose.msra.mxu0 0.0
    %4257 = vmatprep.subr.mxu0 0.0
    %4258 = vmatpush1.xpose.msra.mxu0 0.0
    %4259 = vmatprep.subr.mxu0 0.0
    %4260 = vmatpush1.xpose.msra.mxu0 0.0
    %4261 = vmatprep.subr.mxu0 0.0
    %4262 = vmatpush1.xpose.msra.mxu0 0.0
    %4263 = vmatprep.subr.mxu0 0.0
    %4264 = vmatpush1.xpose.msra.mxu0 0.0
    %4265 = vmatprep.subr.mxu0 0.0
    %4266 = vmatpush1.xpose.msra.mxu0 0.0
    %4267 = vmatprep.subr.mxu0 0.0
    %4268 = vmatpush1.xpose.msra.mxu0 0.0
    %4269 = vmatprep.subr.mxu0 0.0
    %4270 = vmatpush1.xpose.msra.mxu0 0.0
    %4271 = vmatprep.subr.mxu0 0.0
    %4272 = vmatpush1.xpose.msra.mxu0 0.0
    %4273 = vmatprep.subr.mxu0 0.0
    %4274 = vmatpush1.xpose.msra.mxu0 0.0
    %4275 = vmatprep.subr.mxu0 0.0
    %4276 = vmatpush1.xpose.msra.mxu0 0.0
    %4277 = vmatprep.subr.mxu0 0.0
    %4278 = vmatpush1.xpose.msra.mxu0 0.0
    %4279 = vmatprep.subr.mxu0 0.0
    %4280 = vmatpush1.xpose.msra.mxu0 0.0
    %4281 = vmatprep.subr.mxu0 0.0
    %4282 = vmatpush1.xpose.msra.mxu0 0.0
    %4283 = vmatprep.subr.mxu0 0.0
    %4284 = vmatpush1.xpose.msra.mxu0 0.0
    %4285 = vmatprep.subr.mxu0 0.0
    %4286 = vmatpush1.xpose.msra.mxu0 0.0
    %4287 = vmatprep.subr.mxu0 0.0
    %4288 = vmatpush1.xpose.msra.mxu0 0.0
    %4289 = vmatprep.subr.mxu0 0.0
    %4290 = vmatpush1.xpose.msra.mxu0 0.0
    %4291 = vmatprep.subr.mxu0 0.0
    %4292 = vmatpush1.xpose.msra.mxu0 0.0
    %4293 = vmatprep.subr.mxu0 0.0
    %4294 = vmatpush1.xpose.msra.mxu0 0.0
    %4295 = vmatprep.mubr.f32.mxu0 0.0
    %4296 = vmatmul.mubr.f32.gmra.mrb[0].mxu0 %v4223
    %v4297 = vpop.f32.mrb[0].mxu0
    %v4298 = vadd.f32 0.0, %v4297
    %v4299 = vpop.f32.mrb[0].mxu0
    %4300 = vmatprep.mubr.f32.mxu0 0.0
    %4301 = vmatmul.mubr.f32.gmra.mrb[0].mxu0 %v4225
    %v4302 = vpop.f32.mrb[0].mxu0
    %v4303 = vadd.f32 0.0, %v4302
    %v4304 = vpop.f32.mrb[0].mxu0
    %4305 = vdwg.mxu0
    %4306 = vrot.lane.b32.xlu0 %v4125, 96
    %v4307 = vpop.permute.xlu0 %4306
    %4308 = vrot.lane.b32.xlu0 %v4127, 96
    %v4309 = vpop.permute.xlu0 %4308
    %v4310 = vsel %vm266, %v4125, 0
    %v4312 = vsel %vm266, %v4127, 0
    %v4314 = vsel %vm266, %v4307, 0
    %v4316 = vsel %vm266, %v4309, 0
    %4318 = vmatprep.subr.mxu0 0.0
    %4319 = vmatpush1.xpose.msra.mxu0 %v4314
    %4320 = vmatprep.subr.mxu0 0.0
    %4321 = vmatpush1.xpose.msra.mxu0 %v4316
    %4322 = vmatprep.subr.mxu0 0.0
    %4323 = vmatpush1.xpose.msra.mxu0 0.0
    %4324 = vmatprep.subr.mxu0 0.0
    %4325 = vmatpush1.xpose.msra.mxu0 0.0
    %4326 = vmatprep.subr.mxu0 0.0
    %4327 = vmatpush1.xpose.msra.mxu0 0.0
    %4328 = vmatprep.subr.mxu0 0.0
    %4329 = vmatpush1.xpose.msra.mxu0 0.0
    %4330 = vmatprep.subr.mxu0 0.0
    %4331 = vmatpush1.xpose.msra.mxu0 0.0
    %4332 = vmatprep.subr.mxu0 0.0
    %4333 = vmatpush1.xpose.msra.mxu0 0.0
    %4334 = vmatprep.subr.mxu0 0.0
    %4335 = vmatpush1.xpose.msra.mxu0 0.0
    %4336 = vmatprep.subr.mxu0 0.0
    %4337 = vmatpush1.xpose.msra.mxu0 0.0
    %4338 = vmatprep.subr.mxu0 0.0
    %4339 = vmatpush1.xpose.msra.mxu0 0.0
    %4340 = vmatprep.subr.mxu0 0.0
    %4341 = vmatpush1.xpose.msra.mxu0 0.0
    %4342 = vmatprep.subr.mxu0 0.0
    %4343 = vmatpush1.xpose.msra.mxu0 0.0
    %4344 = vmatprep.subr.mxu0 0.0
    %4345 = vmatpush1.xpose.msra.mxu0 0.0
    %4346 = vmatprep.subr.mxu0 0.0
    %4347 = vmatpush1.xpose.msra.mxu0 0.0
    %4348 = vmatprep.subr.mxu0 0.0
    %4349 = vmatpush1.xpose.msra.mxu0 0.0
    %4350 = vmatprep.subr.mxu0 0.0
    %4351 = vmatpush1.xpose.msra.mxu0 0.0
    %4352 = vmatprep.subr.mxu0 0.0
    %4353 = vmatpush1.xpose.msra.mxu0 0.0
    %4354 = vmatprep.subr.mxu0 0.0
    %4355 = vmatpush1.xpose.msra.mxu0 0.0
    %4356 = vmatprep.subr.mxu0 0.0
    %4357 = vmatpush1.xpose.msra.mxu0 0.0
    %4358 = vmatprep.subr.mxu0 0.0
    %4359 = vmatpush1.xpose.msra.mxu0 0.0
    %4360 = vmatprep.subr.mxu0 0.0
    %4361 = vmatpush1.xpose.msra.mxu0 0.0
    %4362 = vmatprep.subr.mxu0 0.0
    %4363 = vmatpush1.xpose.msra.mxu0 0.0
    %4364 = vmatprep.subr.mxu0 0.0
    %4365 = vmatpush1.xpose.msra.mxu0 0.0
    %4366 = vmatprep.subr.mxu0 0.0
    %4367 = vmatpush1.xpose.msra.mxu0 0.0
    %4368 = vmatprep.subr.mxu0 0.0
    %4369 = vmatpush1.xpose.msra.mxu0 0.0
    %4370 = vmatprep.subr.mxu0 0.0
    %4371 = vmatpush1.xpose.msra.mxu0 0.0
    %4372 = vmatprep.subr.mxu0 0.0
    %4373 = vmatpush1.xpose.msra.mxu0 0.0
    %4374 = vmatprep.subr.mxu0 0.0
    %4375 = vmatpush1.xpose.msra.mxu0 0.0
    %4376 = vmatprep.subr.mxu0 0.0
    %4377 = vmatpush1.xpose.msra.mxu0 0.0
    %4378 = vmatprep.subr.mxu0 0.0
    %4379 = vmatpush1.xpose.msra.mxu0 0.0
    %4380 = vmatprep.subr.mxu0 0.0
    %4381 = vmatpush1.xpose.msra.mxu0 0.0
    %4382 = vmatprep.mubr.f32.mxu0 0.0
    %4383 = vmatmul.mubr.f32.gmra.mrb[0].mxu0 %v4310
    %v4384 = vpop.f32.mrb[0].mxu0
    %v4385 = vadd.f32 0.0, %v4384
    %v4386 = vpop.f32.mrb[0].mxu0
    %4387 = vmatprep.mubr.f32.mxu0 0.0
    %4388 = vmatmul.mubr.f32.gmra.mrb[0].mxu0 %v4312
    %v4389 = vpop.f32.mrb[0].mxu0
    %v4390 = vadd.f32 0.0, %v4389
    %v4391 = vpop.f32.mrb[0].mxu0
    %4392 = vdwg.mxu0
    %4393 = vrot.lane.b32.xlu0 %v4129, 96
    %v4394 = vpop.permute.xlu0 %4393
    %4395 = vrot.lane.b32.xlu0 %v4131, 96
    %v4396 = vpop.permute.xlu0 %4395
    %v4397 = vsel %vm266, %v4129, 0
    %v4399 = vsel %vm266, %v4131, 0
    %v4401 = vsel %vm266, %v4394, 0
    %v4403 = vsel %vm266, %v4396, 0
    %4405 = vmatprep.subr.mxu0 0.0
    %4406 = vmatpush1.xpose.msra.mxu0 %v4401
    %4407 = vmatprep.subr.mxu0 0.0
    %4408 = vmatpush1.xpose.msra.mxu0 %v4403
    %4409 = vmatprep.subr.mxu0 0.0
    %4410 = vmatpush1.xpose.msra.mxu0 0.0
    %4411 = vmatprep.subr.mxu0 0.0
    %4412 = vmatpush1.xpose.msra.mxu0 0.0
    %4413 = vmatprep.subr.mxu0 0.0
    %4414 = vmatpush1.xpose.msra.mxu0 0.0
    %4415 = vmatprep.subr.mxu0 0.0
    %4416 = vmatpush1.xpose.msra.mxu0 0.0
    %4417 = vmatprep.subr.mxu0 0.0
    %4418 = vmatpush1.xpose.msra.mxu0 0.0
    %4419 = vmatprep.subr.mxu0 0.0
    %4420 = vmatpush1.xpose.msra.mxu0 0.0
    %4421 = vmatprep.subr.mxu0 0.0
    %4422 = vmatpush1.xpose.msra.mxu0 0.0
    %4423 = vmatprep.subr.mxu0 0.0
    %4424 = vmatpush1.xpose.msra.mxu0 0.0
    %4425 = vmatprep.subr.mxu0 0.0
    %4426 = vmatpush1.xpose.msra.mxu0 0.0
    %4427 = vmatprep.subr.mxu0 0.0
    %4428 = vmatpush1.xpose.msra.mxu0 0.0
    %4429 = vmatprep.subr.mxu0 0.0
    %4430 = vmatpush1.xpose.msra.mxu0 0.0
    %4431 = vmatprep.subr.mxu0 0.0
    %4432 = vmatpush1.xpose.msra.mxu0 0.0
    %4433 = vmatprep.subr.mxu0 0.0
    %4434 = vmatpush1.xpose.msra.mxu0 0.0
    %4435 = vmatprep.subr.mxu0 0.0
    %4436 = vmatpush1.xpose.msra.mxu0 0.0
    %4437 = vmatprep.subr.mxu0 0.0
    %4438 = vmatpush1.xpose.msra.mxu0 0.0
    %4439 = vmatprep.subr.mxu0 0.0
    %4440 = vmatpush1.xpose.msra.mxu0 0.0
    %4441 = vmatprep.subr.mxu0 0.0
    %4442 = vmatpush1.xpose.msra.mxu0 0.0
    %4443 = vmatprep.subr.mxu0 0.0
    %4444 = vmatpush1.xpose.msra.mxu0 0.0
    %4445 = vmatprep.subr.mxu0 0.0
    %4446 = vmatpush1.xpose.msra.mxu0 0.0
    %4447 = vmatprep.subr.mxu0 0.0
    %4448 = vmatpush1.xpose.msra.mxu0 0.0
    %4449 = vmatprep.subr.mxu0 0.0
    %4450 = vmatpush1.xpose.msra.mxu0 0.0
    %4451 = vmatprep.subr.mxu0 0.0
    %4452 = vmatpush1.xpose.msra.mxu0 0.0
    %4453 = vmatprep.subr.mxu0 0.0
    %4454 = vmatpush1.xpose.msra.mxu0 0.0
    %4455 = vmatprep.subr.mxu0 0.0
    %4456 = vmatpush1.xpose.msra.mxu0 0.0
    %4457 = vmatprep.subr.mxu0 0.0
    %4458 = vmatpush1.xpose.msra.mxu0 0.0
    %4459 = vmatprep.subr.mxu0 0.0
    %4460 = vmatpush1.xpose.msra.mxu0 0.0
    %4461 = vmatprep.subr.mxu0 0.0
    %4462 = vmatpush1.xpose.msra.mxu0 0.0
    %4463 = vmatprep.subr.mxu0 0.0
    %4464 = vmatpush1.xpose.msra.mxu0 0.0
    %4465 = vmatprep.subr.mxu0 0.0
    %4466 = vmatpush1.xpose.msra.mxu0 0.0
    %4467 = vmatprep.subr.mxu0 0.0
    %4468 = vmatpush1.xpose.msra.mxu0 0.0
    %4469 = vmatprep.mubr.f32.mxu0 0.0
    %4470 = vmatmul.mubr.f32.gmra.mrb[0].mxu0 %v4397
    %v4471 = vpop.f32.mrb[0].mxu0
    %v4472 = vadd.f32 0.0, %v4471
    %v4473 = vpop.f32.mrb[0].mxu0
    %4474 = vmatprep.mubr.f32.mxu0 0.0
    %4475 = vmatmul.mubr.f32.gmra.mrb[0].mxu0 %v4399
    %v4476 = vpop.f32.mrb[0].mxu0
    %v4477 = vadd.f32 0.0, %v4476
    %v4478 = vpop.f32.mrb[0].mxu0
    %4479 = vdwg.mxu0
    %v4480 = vmul.f32 %v4211, 0.35355338
    %v4481 = vmul.f32 %v4216, 0.35355338
    %v4482 = vmul.f32 %v4298, 0.35355338
    %v4483 = vmul.f32 %v4303, 0.35355338
    %v4484 = vmul.f32 %v4385, 0.35355338
    %v4485 = vmul.f32 %v4390, 0.35355338
    %v4486 = vmul.f32 %v4472, 0.35355338
    %v4487 = vmul.f32 %v4477, 0.35355338
    %v4488 = vadd.f32 %v4480, %v132
    %v4489 = vadd.f32 %v4481, %v133
    %v4490 = vadd.f32 %v4482, %v132
    %v4491 = vadd.f32 %v4483, %v133
    %v4492 = vadd.f32 %v4484, %v132
    %v4493 = vadd.f32 %v4485, %v133
    %v4494 = vadd.f32 %v4486, %v132
    %v4495 = vadd.f32 %v4487, %v133
    %v4496 = vsel %vm627, %v4488, -inf
    %4497 = vmax.xlane.f32.xlu0 %v4496
    %v4498 = vpop.xlane.xlu0 %4497
    %v4499 = vsel %vm627, %v4489, -inf
    %4500 = vmax.xlane.f32.xlu0 %v4499
    %v4501 = vpop.xlane.xlu0 %4500
    %v4502 = vsel %vm627, %v4490, -inf
    %4503 = vmax.xlane.f32.xlu0 %v4502
    %v4504 = vpop.xlane.xlu0 %4503
    %v4505 = vsel %vm627, %v4491, -inf
    %4506 = vmax.xlane.f32.xlu0 %v4505
    %v4507 = vpop.xlane.xlu0 %4506
    %v4508 = vsel %vm627, %v4492, -inf
    %4509 = vmax.xlane.f32.xlu0 %v4508
    %v4510 = vpop.xlane.xlu0 %4509
    %v4511 = vsel %vm627, %v4493, -inf
    %4512 = vmax.xlane.f32.xlu0 %v4511
    %v4513 = vpop.xlane.xlu0 %4512
    %v4514 = vsel %vm627, %v4494, -inf
    %4515 = vmax.xlane.f32.xlu0 %v4514
    %v4516 = vpop.xlane.xlu0 %4515
    %v4517 = vsel %vm627, %v4495, -inf
    %4518 = vmax.xlane.f32.xlu0 %v4517
    %v4519 = vpop.xlane.xlu0 %4518
    %v4520 = vsub.f32 %v4488, %v4498
    %v4521 = vsub.f32 %v4489, %v4501
    %v4522 = vsub.f32 %v4490, %v4504
    %v4523 = vsub.f32 %v4491, %v4507
    %v4524 = vsub.f32 %v4492, %v4510
    %v4525 = vsub.f32 %v4493, %v4513
    %v4526 = vsub.f32 %v4494, %v4516
    %v4527 = vsub.f32 %v4495, %v4519
    %v4528 = vmul.f32 %v4520, 1.442695
    %v4529 = vpow.pop %v4528
    %v4530 = vmul.f32 %v4521, 1.442695
    %v4531 = vpow.pop %v4530
    %v4532 = vmul.f32 %v4522, 1.442695
    %v4533 = vpow.pop %v4532
    %v4534 = vmul.f32 %v4523, 1.442695
    %v4535 = vpow.pop %v4534
    %v4536 = vmul.f32 %v4524, 1.442695
    %v4537 = vpow.pop %v4536
    %v4538 = vmul.f32 %v4525, 1.442695
    %v4539 = vpow.pop %v4538
    %v4540 = vmul.f32 %v4526, 1.442695
    %v4541 = vpow.pop %v4540
    %v4542 = vmul.f32 %v4527, 1.442695
    %v4543 = vpow.pop %v4542
    %v4544 = vsel %vm627, %v4529, 0.0
    %4545 = vadd.xlane.f32.xlu0 %v4544
    %v4546 = vpop.xlane.xlu0 %4545
    %v4547 = vsel %vm627, %v4531, 0.0
    %4548 = vadd.xlane.f32.xlu0 %v4547
    %v4549 = vpop.xlane.xlu0 %4548
    %v4550 = vsel %vm627, %v4533, 0.0
    %4551 = vadd.xlane.f32.xlu0 %v4550
    %v4552 = vpop.xlane.xlu0 %4551
    %v4553 = vsel %vm627, %v4535, 0.0
    %4554 = vadd.xlane.f32.xlu0 %v4553
    %v4555 = vpop.xlane.xlu0 %4554
    %v4556 = vsel %vm627, %v4537, 0.0
    %4557 = vadd.xlane.f32.xlu0 %v4556
    %v4558 = vpop.xlane.xlu0 %4557
    %v4559 = vsel %vm627, %v4539, 0.0
    %4560 = vadd.xlane.f32.xlu0 %v4559
    %v4561 = vpop.xlane.xlu0 %4560
    %v4562 = vsel %vm627, %v4541, 0.0
    %4563 = vadd.xlane.f32.xlu0 %v4562
    %v4564 = vpop.xlane.xlu0 %4563
    %v4565 = vsel %vm627, %v4543, 0.0
    %4566 = vadd.xlane.f32.xlu0 %v4565
    %v4567 = vpop.xlane.xlu0 %4566
    %v4568 = vrcp.pop %v4546
    %v4569 = vmul.f32 %v4529, %v4568
    %v4570 = vrcp.pop %v4549
    %v4571 = vmul.f32 %v4531, %v4570
    %v4572 = vrcp.pop %v4552
    %v4573 = vmul.f32 %v4533, %v4572
    %v4574 = vrcp.pop %v4555
    %v4575 = vmul.f32 %v4535, %v4574
    %v4576 = vrcp.pop %v4558
    %v4577 = vmul.f32 %v4537, %v4576
    %v4578 = vrcp.pop %v4561
    %v4579 = vmul.f32 %v4539, %v4578
    %v4580 = vrcp.pop %v4564
    %v4581 = vmul.f32 %v4541, %v4580
    %v4582 = vrcp.pop %v4567
    %v4583 = vmul.f32 %v4543, %v4582
    %4584 = vrot.lane.b32.xlu0 %v4112, 64
    %v4585 = vpop.permute.xlu0 %4584
    %4586 = vrot.lane.b32.xlu0 %v4115, 64
    %v4587 = vpop.permute.xlu0 %4586
    %v4591 = vsel %vm627, %v4569, 0
    %v4594 = vsel %vm627, %v4571, 0
    %4596 = vmatprep.subr.mxu0 0.0
    %4597 = vmatpush1.msra.mxu0 %v4585
    %4598 = vmatprep.subr.mxu0 0.0
    %4599 = vmatpush1.msra.mxu0 %v4587
    %4600 = vmatprep.subr.mxu0 0.0
    %4601 = vmatpush1.msra.mxu0 0.0
    %4602 = vmatprep.subr.mxu0 0.0
    %4603 = vmatpush1.msra.mxu0 0.0
    %4604 = vmatprep.subr.mxu0 0.0
    %4605 = vmatpush1.msra.mxu0 0.0
    %4606 = vmatprep.subr.mxu0 0.0
    %4607 = vmatpush1.msra.mxu0 0.0
    %4608 = vmatprep.subr.mxu0 0.0
    %4609 = vmatpush1.msra.mxu0 0.0
    %4610 = vmatprep.subr.mxu0 0.0
    %4611 = vmatpush1.msra.mxu0 0.0
    %4612 = vmatprep.subr.mxu0 0.0
    %4613 = vmatpush1.msra.mxu0 0.0
    %4614 = vmatprep.subr.mxu0 0.0
    %4615 = vmatpush1.msra.mxu0 0.0
    %4616 = vmatprep.subr.mxu0 0.0
    %4617 = vmatpush1.msra.mxu0 0.0
    %4618 = vmatprep.subr.mxu0 0.0
    %4619 = vmatpush1.msra.mxu0 0.0
    %4620 = vmatprep.subr.mxu0 0.0
    %4621 = vmatpush1.msra.mxu0 0.0
    %4622 = vmatprep.subr.mxu0 0.0
    %4623 = vmatpush1.msra.mxu0 0.0
    %4624 = vmatprep.subr.mxu0 0.0
    %4625 = vmatpush1.msra.mxu0 0.0
    %4626 = vmatprep.subr.mxu0 0.0
    %4627 = vmatpush1.msra.mxu0 0.0
    %4628 = vmatprep.subr.mxu0 0.0
    %4629 = vmatpush1.msra.mxu0 0.0
    %4630 = vmatprep.subr.mxu0 0.0
    %4631 = vmatpush1.msra.mxu0 0.0
    %4632 = vmatprep.subr.mxu0 0.0
    %4633 = vmatpush1.msra.mxu0 0.0
    %4634 = vmatprep.subr.mxu0 0.0
    %4635 = vmatpush1.msra.mxu0 0.0
    %4636 = vmatprep.subr.mxu0 0.0
    %4637 = vmatpush1.msra.mxu0 0.0
    %4638 = vmatprep.subr.mxu0 0.0
    %4639 = vmatpush1.msra.mxu0 0.0
    %4640 = vmatprep.subr.mxu0 0.0
    %4641 = vmatpush1.msra.mxu0 0.0
    %4642 = vmatprep.subr.mxu0 0.0
    %4643 = vmatpush1.msra.mxu0 0.0
    %4644 = vmatprep.subr.mxu0 0.0
    %4645 = vmatpush1.msra.mxu0 0.0
    %4646 = vmatprep.subr.mxu0 0.0
    %4647 = vmatpush1.msra.mxu0 0.0
    %4648 = vmatprep.subr.mxu0 0.0
    %4649 = vmatpush1.msra.mxu0 0.0
    %4650 = vmatprep.subr.mxu0 0.0
    %4651 = vmatpush1.msra.mxu0 0.0
    %4652 = vmatprep.subr.mxu0 0.0
    %4653 = vmatpush1.msra.mxu0 0.0
    %4654 = vmatprep.subr.mxu0 0.0
    %4655 = vmatpush1.msra.mxu0 0.0
    %4656 = vmatprep.subr.mxu0 0.0
    %4657 = vmatpush1.msra.mxu0 0.0
    %4658 = vmatprep.subr.mxu0 0.0
    %4659 = vmatpush1.msra.mxu0 0.0
    %4660 = vmatprep.mubr.f32.mxu0 0.0
    %4661 = vmatmul.mubr.f32.gmra.mrb[0].mxu0 %v4591
    %v4662 = vpop.f32.mrb[0].mxu0
    %v4663 = vadd.f32 0.0, %v4662
    %v4664 = vpop.f32.mrb[0].mxu0
    %4665 = vmatprep.mubr.f32.mxu0 0.0
    %4666 = vmatmul.mubr.f32.gmra.mrb[0].mxu0 %v4594
    %v4667 = vpop.f32.mrb[0].mxu0
    %v4668 = vadd.f32 0.0, %v4667
    %v4669 = vpop.f32.mrb[0].mxu0
    %4670 = vdwg.mxu0
    %4671 = vrot.lane.b32.xlu0 %v4121, 64
    %v4672 = vpop.permute.xlu0 %4671
    %4673 = vrot.lane.b32.xlu0 %v4123, 64
    %v4674 = vpop.permute.xlu0 %4673
    %v4678 = vsel %vm627, %v4573, 0
    %v4681 = vsel %vm627, %v4575, 0
    %4683 = vmatprep.subr.mxu0 0.0
    %4684 = vmatpush1.msra.mxu0 %v4672
    %4685 = vmatprep.subr.mxu0 0.0
    %4686 = vmatpush1.msra.mxu0 %v4674
    %4687 = vmatprep.subr.mxu0 0.0
    %4688 = vmatpush1.msra.mxu0 0.0
    %4689 = vmatprep.subr.mxu0 0.0
    %4690 = vmatpush1.msra.mxu0 0.0
    %4691 = vmatprep.subr.mxu0 0.0
    %4692 = vmatpush1.msra.mxu0 0.0
    %4693 = vmatprep.subr.mxu0 0.0
    %4694 = vmatpush1.msra.mxu0 0.0
    %4695 = vmatprep.subr.mxu0 0.0
    %4696 = vmatpush1.msra.mxu0 0.0
    %4697 = vmatprep.subr.mxu0 0.0
    %4698 = vmatpush1.msra.mxu0 0.0
    %4699 = vmatprep.subr.mxu0 0.0
    %4700 = vmatpush1.msra.mxu0 0.0
    %4701 = vmatprep.subr.mxu0 0.0
    %4702 = vmatpush1.msra.mxu0 0.0
    %4703 = vmatprep.subr.mxu0 0.0
    %4704 = vmatpush1.msra.mxu0 0.0
    %4705 = vmatprep.subr.mxu0 0.0
    %4706 = vmatpush1.msra.mxu0 0.0
    %4707 = vmatprep.subr.mxu0 0.0
    %4708 = vmatpush1.msra.mxu0 0.0
    %4709 = vmatprep.subr.mxu0 0.0
    %4710 = vmatpush1.msra.mxu0 0.0
    %4711 = vmatprep.subr.mxu0 0.0
    %4712 = vmatpush1.msra.mxu0 0.0
    %4713 = vmatprep.subr.mxu0 0.0
    %4714 = vmatpush1.msra.mxu0 0.0
    %4715 = vmatprep.subr.mxu0 0.0
    %4716 = vmatpush1.msra.mxu0 0.0
    %4717 = vmatprep.subr.mxu0 0.0
    %4718 = vmatpush1.msra.mxu0 0.0
    %4719 = vmatprep.subr.mxu0 0.0
    %4720 = vmatpush1.msra.mxu0 0.0
    %4721 = vmatprep.subr.mxu0 0.0
    %4722 = vmatpush1.msra.mxu0 0.0
    %4723 = vmatprep.subr.mxu0 0.0
    %4724 = vmatpush1.msra.mxu0 0.0
    %4725 = vmatprep.subr.mxu0 0.0
    %4726 = vmatpush1.msra.mxu0 0.0
    %4727 = vmatprep.subr.mxu0 0.0
    %4728 = vmatpush1.msra.mxu0 0.0
    %4729 = vmatprep.subr.mxu0 0.0
    %4730 = vmatpush1.msra.mxu0 0.0
    %4731 = vmatprep.subr.mxu0 0.0
    %4732 = vmatpush1.msra.mxu0 0.0
    %4733 = vmatprep.subr.mxu0 0.0
    %4734 = vmatpush1.msra.mxu0 0.0
    %4735 = vmatprep.subr.mxu0 0.0
    %4736 = vmatpush1.msra.mxu0 0.0
    %4737 = vmatprep.subr.mxu0 0.0
    %4738 = vmatpush1.msra.mxu0 0.0
    %4739 = vmatprep.subr.mxu0 0.0
    %4740 = vmatpush1.msra.mxu0 0.0
    %4741 = vmatprep.subr.mxu0 0.0
    %4742 = vmatpush1.msra.mxu0 0.0
    %4743 = vmatprep.subr.mxu0 0.0
    %4744 = vmatpush1.msra.mxu0 0.0
    %4745 = vmatprep.subr.mxu0 0.0
    %4746 = vmatpush1.msra.mxu0 0.0
    %4747 = vmatprep.mubr.f32.mxu0 0.0
    %4748 = vmatmul.mubr.f32.gmra.mrb[0].mxu0 %v4678
    %v4749 = vpop.f32.mrb[0].mxu0
    %v4750 = vadd.f32 0.0, %v4749
    %v4751 = vpop.f32.mrb[0].mxu0
    %4752 = vmatprep.mubr.f32.mxu0 0.0
    %4753 = vmatmul.mubr.f32.gmra.mrb[0].mxu0 %v4681
    %v4754 = vpop.f32.mrb[0].mxu0
    %v4755 = vadd.f32 0.0, %v4754
    %v4756 = vpop.f32.mrb[0].mxu0
    %4757 = vdwg.mxu0
    %4758 = vrot.lane.b32.xlu0 %v4125, 64
    %v4759 = vpop.permute.xlu0 %4758
    %4760 = vrot.lane.b32.xlu0 %v4127, 64
    %v4761 = vpop.permute.xlu0 %4760
    %v4765 = vsel %vm627, %v4577, 0
    %v4768 = vsel %vm627, %v4579, 0
    %4770 = vmatprep.subr.mxu0 0.0
    %4771 = vmatpush1.msra.mxu0 %v4759
    %4772 = vmatprep.subr.mxu0 0.0
    %4773 = vmatpush1.msra.mxu0 %v4761
    %4774 = vmatprep.subr.mxu0 0.0
    %4775 = vmatpush1.msra.mxu0 0.0
    %4776 = vmatprep.subr.mxu0 0.0
    %4777 = vmatpush1.msra.mxu0 0.0
    %4778 = vmatprep.subr.mxu0 0.0
    %4779 = vmatpush1.msra.mxu0 0.0
    %4780 = vmatprep.subr.mxu0 0.0
    %4781 = vmatpush1.msra.mxu0 0.0
    %4782 = vmatprep.subr.mxu0 0.0
    %4783 = vmatpush1.msra.mxu0 0.0
    %4784 = vmatprep.subr.mxu0 0.0
    %4785 = vmatpush1.msra.mxu0 0.0
    %4786 = vmatprep.subr.mxu0 0.0
    %4787 = vmatpush1.msra.mxu0 0.0
    %4788 = vmatprep.subr.mxu0 0.0
    %4789 = vmatpush1.msra.mxu0 0.0
    %4790 = vmatprep.subr.mxu0 0.0
    %4791 = vmatpush1.msra.mxu0 0.0
    %4792 = vmatprep.subr.mxu0 0.0
    %4793 = vmatpush1.msra.mxu0 0.0
    %4794 = vmatprep.subr.mxu0 0.0
    %4795 = vmatpush1.msra.mxu0 0.0
    %4796 = vmatprep.subr.mxu0 0.0
    %4797 = vmatpush1.msra.mxu0 0.0
    %4798 = vmatprep.subr.mxu0 0.0
    %4799 = vmatpush1.msra.mxu0 0.0
    %4800 = vmatprep.subr.mxu0 0.0
    %4801 = vmatpush1.msra.mxu0 0.0
    %4802 = vmatprep.subr.mxu0 0.0
    %4803 = vmatpush1.msra.mxu0 0.0
    %4804 = vmatprep.subr.mxu0 0.0
    %4805 = vmatpush1.msra.mxu0 0.0
    %4806 = vmatprep.subr.mxu0 0.0
    %4807 = vmatpush1.msra.mxu0 0.0
    %4808 = vmatprep.subr.mxu0 0.0
    %4809 = vmatpush1.msra.mxu0 0.0
    %4810 = vmatprep.subr.mxu0 0.0
    %4811 = vmatpush1.msra.mxu0 0.0
    %4812 = vmatprep.subr.mxu0 0.0
    %4813 = vmatpush1.msra.mxu0 0.0
    %4814 = vmatprep.subr.mxu0 0.0
    %4815 = vmatpush1.msra.mxu0 0.0
    %4816 = vmatprep.subr.mxu0 0.0
    %4817 = vmatpush1.msra.mxu0 0.0
    %4818 = vmatprep.subr.mxu0 0.0
    %4819 = vmatpush1.msra.mxu0 0.0
    %4820 = vmatprep.subr.mxu0 0.0
    %4821 = vmatpush1.msra.mxu0 0.0
    %4822 = vmatprep.subr.mxu0 0.0
    %4823 = vmatpush1.msra.mxu0 0.0
    %4824 = vmatprep.subr.mxu0 0.0
    %4825 = vmatpush1.msra.mxu0 0.0
    %4826 = vmatprep.subr.mxu0 0.0
    %4827 = vmatpush1.msra.mxu0 0.0
    %4828 = vmatprep.subr.mxu0 0.0
    %4829 = vmatpush1.msra.mxu0 0.0
    %4830 = vmatprep.subr.mxu0 0.0
    %4831 = vmatpush1.msra.mxu0 0.0
    %4832 = vmatprep.subr.mxu0 0.0
    %4833 = vmatpush1.msra.mxu0 0.0
    %4834 = vmatprep.mubr.f32.mxu0 0.0
    %4835 = vmatmul.mubr.f32.gmra.mrb[0].mxu0 %v4765
    %v4836 = vpop.f32.mrb[0].mxu0
    %v4837 = vadd.f32 0.0, %v4836
    %v4838 = vpop.f32.mrb[0].mxu0
    %4839 = vmatprep.mubr.f32.mxu0 0.0
    %4840 = vmatmul.mubr.f32.gmra.mrb[0].mxu0 %v4768
    %v4841 = vpop.f32.mrb[0].mxu0
    %v4842 = vadd.f32 0.0, %v4841
    %v4843 = vpop.f32.mrb[0].mxu0
    %4844 = vdwg.mxu0
    %4845 = vrot.lane.b32.xlu0 %v4129, 64
    %v4846 = vpop.permute.xlu0 %4845
    %4847 = vrot.lane.b32.xlu0 %v4131, 64
    %v4848 = vpop.permute.xlu0 %4847
    %v4852 = vsel %vm627, %v4581, 0
    %v4855 = vsel %vm627, %v4583, 0
    %4857 = vmatprep.subr.mxu0 0.0
    %4858 = vmatpush1.msra.mxu0 %v4846
    %4859 = vmatprep.subr.mxu0 0.0
    %4860 = vmatpush1.msra.mxu0 %v4848
    %4861 = vmatprep.subr.mxu0 0.0
    %4862 = vmatpush1.msra.mxu0 0.0
    %4863 = vmatprep.subr.mxu0 0.0
    %4864 = vmatpush1.msra.mxu0 0.0
    %4865 = vmatprep.subr.mxu0 0.0
    %4866 = vmatpush1.msra.mxu0 0.0
    %4867 = vmatprep.subr.mxu0 0.0
    %4868 = vmatpush1.msra.mxu0 0.0
    %4869 = vmatprep.subr.mxu0 0.0
    %4870 = vmatpush1.msra.mxu0 0.0
    %4871 = vmatprep.subr.mxu0 0.0
    %4872 = vmatpush1.msra.mxu0 0.0
    %4873 = vmatprep.subr.mxu0 0.0
    %4874 = vmatpush1.msra.mxu0 0.0
    %4875 = vmatprep.subr.mxu0 0.0
    %4876 = vmatpush1.msra.mxu0 0.0
    %4877 = vmatprep.subr.mxu0 0.0
    %4878 = vmatpush1.msra.mxu0 0.0
    %4879 = vmatprep.subr.mxu0 0.0
    %4880 = vmatpush1.msra.mxu0 0.0
    %4881 = vmatprep.subr.mxu0 0.0
    %4882 = vmatpush1.msra.mxu0 0.0
    %4883 = vmatprep.subr.mxu0 0.0
    %4884 = vmatpush1.msra.mxu0 0.0
    %4885 = vmatprep.subr.mxu0 0.0
    %4886 = vmatpush1.msra.mxu0 0.0
    %4887 = vmatprep.subr.mxu0 0.0
    %4888 = vmatpush1.msra.mxu0 0.0
    %4889 = vmatprep.subr.mxu0 0.0
    %4890 = vmatpush1.msra.mxu0 0.0
    %4891 = vmatprep.subr.mxu0 0.0
    %4892 = vmatpush1.msra.mxu0 0.0
    %4893 = vmatprep.subr.mxu0 0.0
    %4894 = vmatpush1.msra.mxu0 0.0
    %4895 = vmatprep.subr.mxu0 0.0
    %4896 = vmatpush1.msra.mxu0 0.0
    %4897 = vmatprep.subr.mxu0 0.0
    %4898 = vmatpush1.msra.mxu0 0.0
    %4899 = vmatprep.subr.mxu0 0.0
    %4900 = vmatpush1.msra.mxu0 0.0
    %4901 = vmatprep.subr.mxu0 0.0
    %4902 = vmatpush1.msra.mxu0 0.0
    %4903 = vmatprep.subr.mxu0 0.0
    %4904 = vmatpush1.msra.mxu0 0.0
    %4905 = vmatprep.subr.mxu0 0.0
    %4906 = vmatpush1.msra.mxu0 0.0
    %4907 = vmatprep.subr.mxu0 0.0
    %4908 = vmatpush1.msra.mxu0 0.0
    %4909 = vmatprep.subr.mxu0 0.0
    %4910 = vmatpush1.msra.mxu0 0.0
    %4911 = vmatprep.subr.mxu0 0.0
    %4912 = vmatpush1.msra.mxu0 0.0
    %4913 = vmatprep.subr.mxu0 0.0
    %4914 = vmatpush1.msra.mxu0 0.0
    %4915 = vmatprep.subr.mxu0 0.0
    %4916 = vmatpush1.msra.mxu0 0.0
    %4917 = vmatprep.subr.mxu0 0.0
    %4918 = vmatpush1.msra.mxu0 0.0
    %4919 = vmatprep.subr.mxu0 0.0
    %4920 = vmatpush1.msra.mxu0 0.0
    %4921 = vmatprep.mubr.f32.mxu0 0.0
    %4922 = vmatmul.mubr.f32.gmra.mrb[0].mxu0 %v4852
    %v4923 = vpop.f32.mrb[0].mxu0
    %v4924 = vadd.f32 0.0, %v4923
    %v4925 = vpop.f32.mrb[0].mxu0
    %4926 = vmatprep.mubr.f32.mxu0 0.0
    %4927 = vmatmul.mubr.f32.gmra.mrb[0].mxu0 %v4855
    %v4928 = vpop.f32.mrb[0].mxu0
    %v4929 = vadd.f32 0.0, %v4928
    %v4930 = vpop.f32.mrb[0].mxu0
    %4931 = vdwg.mxu0
    %4932 = vst.msk [vmem:[#allocation3] sm:$0xff] %vm266, %v4663
    %4933 = vst.msk [vmem:[#allocation3 + $0x8] sm:$0xff] %vm266, %v4668
    %4936 = vrot.lane.b32.xlu0 %v4750, 8
    %v4937 = vpop.permute.xlu0 %4936
    %4938 = vrot.lane.b32.xlu0 %v4755, 8
    %v4939 = vpop.permute.xlu0 %4938
    %4942 = vst.msk [vmem:[#allocation3] sm:$0xff] %vm1074, %v4937
    %4943 = vst.msk [vmem:[#allocation3 + $0x8] sm:$0xff] %vm1074, %v4939
    %4946 = vrot.lane.b32.xlu0 %v4837, 16
    %v4947 = vpop.permute.xlu0 %4946
    %4948 = vrot.lane.b32.xlu0 %v4842, 16
    %v4949 = vpop.permute.xlu0 %4948
    %4952 = vst.msk [vmem:[#allocation3] sm:$0xff] %vm1085, %v4947
    %4953 = vst.msk [vmem:[#allocation3 + $0x8] sm:$0xff] %vm1085, %v4949
    %4956 = vrot.lane.b32.xlu0 %v4924, 24
    %v4957 = vpop.permute.xlu0 %4956
    %4958 = vrot.lane.b32.xlu0 %v4929, 24
    %v4959 = vpop.permute.xlu0 %4958
    %4962 = vst.msk [vmem:[#allocation3] sm:$0xff] %vm1096, %v4957
    %4963 = vst.msk [vmem:[#allocation3 + $0x8] sm:$0xff] %vm1096, %v4959
    %v4964 = vld [vmem:[#allocation3] sm:$0xff]
    %v4965 = vld [vmem:[#allocation3 + $0x8] sm:$0xff]
    %s4966 = scalar_lea.vmem %s7, 48
    %v4967 = vld [vmem:[%s4966] sm:$0xf]
    %v4968 = vld [vmem:[%s4966 + $0x4] sm:$0xf]
    %v4969 = vld [vmem:[%s4966 + $0x8] sm:$0xf]
    %v4970 = vld [vmem:[%s4966 + $0xc] sm:$0xf]
    %v4971 = vpack.c.bf16 %v4965, %v4964
    %v4976 = vunpack.c.l.b16 %v4967
    %v4977 = vunpack.c.l.b16 %v4968
    %v4978 = vunpack.c.l.b16 %v4969
    %v4979 = vunpack.c.l.b16 %v4970
    %v4980 = vpack.c.b16 %v4977, %v4976
    %v4981 = vpack.c.b16 %v4979, %v4978
    %v4985 = vsel %vm136, %v4971, 0
    %4987 = vmatprep.subr.bf16.mxu0 0
    %4988 = vmatpush1.bf16.msra.mxu0 %v4980
    %4989 = vmatprep.subr.bf16.mxu0 0
    %4990 = vmatpush1.bf16.msra.mxu0 %v4981
    %4991 = vmatprep.subr.bf16.mxu0 0
    %4992 = vmatpush1.bf16.msra.mxu0 0
    %4993 = vmatprep.subr.bf16.mxu0 0
    %4994 = vmatpush1.bf16.msra.mxu0 0
    %4995 = vmatprep.subr.bf16.mxu0 0
    %4996 = vmatpush1.bf16.msra.mxu0 0
    %4997 = vmatprep.subr.bf16.mxu0 0
    %4998 = vmatpush1.bf16.msra.mxu0 0
    %4999 = vmatprep.subr.bf16.mxu0 0
    %5000 = vmatpush1.bf16.msra.mxu0 0
    %5001 = vmatprep.subr.bf16.mxu0 0
    %5002 = vmatpush1.bf16.msra.mxu0 0
    %5003 = vmatprep.subr.bf16.mxu0 0
    %5004 = vmatpush1.bf16.msra.mxu0 0
    %5005 = vmatprep.subr.bf16.mxu0 0
    %5006 = vmatpush1.bf16.msra.mxu0 0
    %5007 = vmatprep.subr.bf16.mxu0 0
    %5008 = vmatpush1.bf16.msra.mxu0 0
    %5009 = vmatprep.subr.bf16.mxu0 0
    %5010 = vmatpush1.bf16.msra.mxu0 0
    %5011 = vmatprep.subr.bf16.mxu0 0
    %5012 = vmatpush1.bf16.msra.mxu0 0
    %5013 = vmatprep.subr.bf16.mxu0 0
    %5014 = vmatpush1.bf16.msra.mxu0 0
    %5015 = vmatprep.subr.bf16.mxu0 0
    %5016 = vmatpush1.bf16.msra.mxu0 0
    %5017 = vmatprep.subr.bf16.mxu0 0
    %5018 = vmatpush1.bf16.msra.mxu0 0
    %5019 = vmatprep.mubr.bf16.mxu0 0
    %5020 = vmatmul.mubr.bf16.gmra.mrb[0].mxu0 %v4985
    %v5021 = vpop.f32.mrb[0].mxu0
    %v5022 = vadd.f32 0.0, %v5021
    %v5023 = vpop.f32.mrb[0].mxu0
    %v5024 = vpop.f32.mrb[0].mxu0
    %v5025 = vadd.f32 0.0, %v5024
    %v5026 = vpop.f32.mrb[0].mxu0
    %5027 = vdwg.mxu0
    %v5028 = vadd.f32 %v4000, %v5022
    %v5029 = vadd.f32 %v4001, %v5025
    %s5030 = scalar_lea.vmem %s8, 3
    %v5031 = vld [vmem:[%s5030] sm:$0x1]
    %v5033 = vlaneseq
    %v5034 = vshrl.u32 %v5033, 7
    %v5035 = vsub.s32 0, %v5034
    %v5036 = vrot.slane %v5031, %v5035
    %v5038 = vadd.f32 %v5028, %v5036
    %v5039 = vadd.f32 %v5029, %v5036
    %s5040 = scalar_lea.vmem %s9, 3
    %v5041 = vld [vmem:[%s5040] sm:$0x1]
    %s5042 = scalar_lea.vmem %s10, 3
    %v5043 = vld [vmem:[%s5042] sm:$0x1]
    %v5044 = vsel %vm136, %v5038, 0.0
    %5045 = vadd.xlane.f32.xlu0 %v5044
    %v5046 = vpop.xlane.xlu0 %5045
    %v5047 = vsel %vm136, %v5039, 0.0
    %5048 = vadd.xlane.f32.xlu0 %v5047
    %v5049 = vpop.xlane.xlu0 %5048
    %v5050 = vmul.f32 %v5046, %v143
    %v5051 = vmul.f32 %v5049, %v143
    %v5052 = vsub.f32 %v5038, %v5050
    %v5053 = vsub.f32 %v5039, %v5051
    %v5054 = vmul.f32 %v5052, %v5052
    %v5055 = vmul.f32 %v5053, %v5053
    %v5056 = vsel %vm136, %v5054, 0.0
    %5057 = vadd.xlane.f32.xlu0 %v5056
    %v5058 = vpop.xlane.xlu0 %5057
    %v5059 = vsel %vm136, %v5055, 0.0
    %5060 = vadd.xlane.f32.xlu0 %v5059
    %v5061 = vpop.xlane.xlu0 %5060
    %v5062 = vmul.f32 %v5058, %v143
    %v5063 = vmul.f32 %v5061, %v143
    %v5064 = vadd.f32 %v5062, 1e-05
    %v5065 = vadd.f32 %v5063, 1e-05
    %v5066 = vrsqrt.pop %v5064
    %v5067 = vrsqrt.pop %v5065
    %v5068 = vmul.f32 %v5052, %v5066
    %v5069 = vmul.f32 %v5053, %v5067
    %v5071 = vlaneseq
    %v5072 = vshrl.u32 %v5071, 7
    %v5073 = vsub.s32 0, %v5072
    %v5074 = vrot.slane %v5041, %v5073
    %v5076 = vmul.f32 %v5068, %v5074
    %v5077 = vmul.f32 %v5069, %v5074
    %v5079 = vlaneseq
    %v5080 = vshrl.u32 %v5079, 7
    %v5081 = vsub.s32 0, %v5080
    %v5082 = vrot.slane %v5043, %v5081
    %v5084 = vadd.f32 %v5076, %v5082
    %v5085 = vadd.f32 %v5077, %v5082
    %s5086 = scalar_lea.vmem %s11, 48
    %v5087 = vld [vmem:[%s5086] sm:$0xf]
    %v5088 = vld [vmem:[%s5086 + $0x4] sm:$0xf]
    %v5089 = vld [vmem:[%s5086 + $0x8] sm:$0xf]
    %v5090 = vld [vmem:[%s5086 + $0xc] sm:$0xf]
    %v5091 = vpack.c.bf16 %v5085, %v5084
    %s5092 = scalar_lea.vmem %s12, 3
    %v5093 = vld [vmem:[%s5092] sm:$0x1]
    %v5095 = vlaneseq
    %v5096 = vshrl.u32 %v5095, 7
    %v5097 = vsub.s32 0, %v5096
    %v5098 = vrot.slane %v5093, %v5097
    %v5104 = vunpack.c.l.b16 %v5087
    %v5105 = vunpack.c.l.b16 %v5088
    %v5106 = vunpack.c.l.b16 %v5089
    %v5107 = vunpack.c.l.b16 %v5090
    %v5108 = vpack.c.b16 %v5105, %v5104
    %v5109 = vpack.c.b16 %v5107, %v5106
    %v5113 = vsel %vm136, %v5091, 0
    %5115 = vmatprep.subr.bf16.mxu0 0
    %5116 = vmatpush1.bf16.msra.mxu0 %v5108
    %5117 = vmatprep.subr.bf16.mxu0 0
    %5118 = vmatpush1.bf16.msra.mxu0 %v5109
    %5119 = vmatprep.subr.bf16.mxu0 0
    %5120 = vmatpush1.bf16.msra.mxu0 0
    %5121 = vmatprep.subr.bf16.mxu0 0
    %5122 = vmatpush1.bf16.msra.mxu0 0
    %5123 = vmatprep.subr.bf16.mxu0 0
    %5124 = vmatpush1.bf16.msra.mxu0 0
    %5125 = vmatprep.subr.bf16.mxu0 0
    %5126 = vmatpush1.bf16.msra.mxu0 0
    %5127 = vmatprep.subr.bf16.mxu0 0
    %5128 = vmatpush1.bf16.msra.mxu0 0
    %5129 = vmatprep.subr.bf16.mxu0 0
    %5130 = vmatpush1.bf16.msra.mxu0 0
    %5131 = vmatprep.subr.bf16.mxu0 0
    %5132 = vmatpush1.bf16.msra.mxu0 0
    %5133 = vmatprep.subr.bf16.mxu0 0
    %5134 = vmatpush1.bf16.msra.mxu0 0
    %5135 = vmatprep.subr.bf16.mxu0 0
    %5136 = vmatpush1.bf16.msra.mxu0 0
    %5137 = vmatprep.subr.bf16.mxu0 0
    %5138 = vmatpush1.bf16.msra.mxu0 0
    %5139 = vmatprep.subr.bf16.mxu0 0
    %5140 = vmatpush1.bf16.msra.mxu0 0
    %5141 = vmatprep.subr.bf16.mxu0 0
    %5142 = vmatpush1.bf16.msra.mxu0 0
    %5143 = vmatprep.subr.bf16.mxu0 0
    %5144 = vmatpush1.bf16.msra.mxu0 0
    %5145 = vmatprep.subr.bf16.mxu0 0
    %5146 = vmatpush1.bf16.msra.mxu0 0
    %5147 = vmatprep.mubr.bf16.mxu0 0
    %5148 = vmatmul.mubr.bf16.gmra.mrb[0].mxu0 %v5113
    %v5149 = vpop.f32.mrb[0].mxu0
    %v5150 = vadd.f32 %v5098, %v5149
    %v5151 = vpop.f32.mrb[0].mxu0
    %v5152 = vpop.f32.mrb[0].mxu0
    %v5153 = vadd.f32 %v5098, %v5152
    %v5154 = vpop.f32.mrb[0].mxu0
    %5155 = vdwg.mxu0
    %v5156 = vmul.f32 %v5150, 0.5
    %v5157 = vmul.f32 %v5153, 0.5
    %v5158 = vmul.f32 %v5150, 0.044715
    %v5159 = vmul.f32 %v5153, 0.044715
    %v5160 = vmul.f32 %v5158, %v5150
    %v5161 = vmul.f32 %v5159, %v5153
    %v5162 = vmul.f32 %v5160, %v5150
    %v5163 = vmul.f32 %v5161, %v5153
    %v5164 = vadd.f32 %v5150, %v5162
    %v5165 = vadd.f32 %v5153, %v5163
    %v5166 = vmul.f32 %v5164, 0.7978846
    %v5167 = vmul.f32 %v5165, 0.7978846
    %v5168 = vtanh.pop %v5166
    %v5169 = vtanh.pop %v5167
    %v5170 = vadd.f32 %v5168, 1.0
    %v5171 = vadd.f32 %v5169, 1.0
    %v5172 = vmul.f32 %v5156, %v5170
    %v5173 = vmul.f32 %v5157, %v5171
    %s5174 = scalar_lea.vmem %s13, 192
    %v5175 = vld [vmem:[%s5174] sm:$0xf]
    %v5176 = vld [vmem:[%s5174 + $0x4] sm:$0xf]
    %v5177 = vld [vmem:[%s5174 + $0x8] sm:$0xf]
    %v5178 = vld [vmem:[%s5174 + $0xc] sm:$0xf]
    %v5179 = vld [vmem:[%s5174 + $0x10] sm:$0xf]
    %v5180 = vld [vmem:[%s5174 + $0x14] sm:$0xf]
    %v5181 = vld [vmem:[%s5174 + $0x18] sm:$0xf]
    %v5182 = vld [vmem:[%s5174 + $0x1c] sm:$0xf]
    %v5183 = vld [vmem:[%s5174 + $0x20] sm:$0xf]
    %v5184 = vld [vmem:[%s5174 + $0x24] sm:$0xf]
    %v5185 = vld [vmem:[%s5174 + $0x28] sm:$0xf]
    %v5186 = vld [vmem:[%s5174 + $0x2c] sm:$0xf]
    %v5187 = vld [vmem:[%s5174 + $0x30] sm:$0xf]
    %v5188 = vld [vmem:[%s5174 + $0x34] sm:$0xf]
    %v5189 = vld [vmem:[%s5174 + $0x38] sm:$0xf]
    %v5190 = vld [vmem:[%s5174 + $0x3c] sm:$0xf]
    %v5191 = vpack.c.bf16 %v5173, %v5172
    %v5208 = vunpack.c.l.b16 %v5175
    %v5209 = vunpack.c.l.b16 %v5176
    %v5210 = vunpack.c.l.b16 %v5177
    %v5211 = vunpack.c.l.b16 %v5178
    %v5212 = vunpack.c.l.b16 %v5179
    %v5213 = vunpack.c.l.b16 %v5180
    %v5214 = vunpack.c.l.b16 %v5181
    %v5215 = vunpack.c.l.b16 %v5182
    %v5216 = vunpack.c.l.b16 %v5183
    %v5217 = vunpack.c.l.b16 %v5184
    %v5218 = vunpack.c.l.b16 %v5185
    %v5219 = vunpack.c.l.b16 %v5186
    %v5220 = vunpack.c.l.b16 %v5187
    %v5221 = vunpack.c.l.b16 %v5188
    %v5222 = vunpack.c.l.b16 %v5189
    %v5223 = vunpack.c.l.b16 %v5190
    %v5224 = vpack.c.b16 %v5209, %v5208
    %v5225 = vpack.c.b16 %v5211, %v5210
    %v5226 = vpack.c.b16 %v5213, %v5212
    %v5227 = vpack.c.b16 %v5215, %v5214
    %v5228 = vpack.c.b16 %v5217, %v5216
    %v5229 = vpack.c.b16 %v5219, %v5218
    %v5230 = vpack.c.b16 %v5221, %v5220
    %v5231 = vpack.c.b16 %v5223, %v5222
    %5240 = vmatprep.subr.bf16.mxu0 0
    %5241 = vmatpush1.bf16.msra.mxu0 %v5224
    %5242 = vmatprep.subr.bf16.mxu0 0
    %5243 = vmatpush1.bf16.msra.mxu0 %v5225
    %5244 = vmatprep.subr.bf16.mxu0 0
    %5245 = vmatpush1.bf16.msra.mxu0 %v5226
    %5246 = vmatprep.subr.bf16.mxu0 0
    %5247 = vmatpush1.bf16.msra.mxu0 %v5227
    %5248 = vmatprep.subr.bf16.mxu0 0
    %5249 = vmatpush1.bf16.msra.mxu0 %v5228
    %5250 = vmatprep.subr.bf16.mxu0 0
    %5251 = vmatpush1.bf16.msra.mxu0 %v5229
    %5252 = vmatprep.subr.bf16.mxu0 0
    %5253 = vmatpush1.bf16.msra.mxu0 %v5230
    %5254 = vmatprep.subr.bf16.mxu0 0
    %5255 = vmatpush1.bf16.msra.mxu0 %v5231
    %5256 = vmatprep.subr.bf16.mxu0 0
    %5257 = vmatpush1.bf16.msra.mxu0 0
    %5258 = vmatprep.subr.bf16.mxu0 0
    %5259 = vmatpush1.bf16.msra.mxu0 0
    %5260 = vmatprep.subr.bf16.mxu0 0
    %5261 = vmatpush1.bf16.msra.mxu0 0
    %5262 = vmatprep.subr.bf16.mxu0 0
    %5263 = vmatpush1.bf16.msra.mxu0 0
    %5264 = vmatprep.subr.bf16.mxu0 0
    %5265 = vmatpush1.bf16.msra.mxu0 0
    %5266 = vmatprep.subr.bf16.mxu0 0
    %5267 = vmatpush1.bf16.msra.mxu0 0
    %5268 = vmatprep.subr.bf16.mxu0 0
    %5269 = vmatpush1.bf16.msra.mxu0 0
    %5270 = vmatprep.subr.bf16.mxu0 0
    %5271 = vmatpush1.bf16.msra.mxu0 0
    %5272 = vmatprep.mubr.bf16.mxu0 0
    %5273 = vmatmul.mubr.bf16.gmra.mrb[0].mxu0 %v5191
    %v5274 = vpop.f32.mrb[0].mxu0
    %v5275 = vadd.f32 0.0, %v5274
    %v5276 = vpop.f32.mrb[0].mxu0
    %v5277 = vpop.f32.mrb[0].mxu0
    %v5278 = vadd.f32 0.0, %v5277
    %v5279 = vpop.f32.mrb[0].mxu0
    %5280 = vdwg.mxu0
    %v5281 = vadd.f32 %v5038, %v5275
    %v5282 = vadd.f32 %v5039, %v5278
    %s5283 = scalar_lea.vmem %s14, 3
    %v5284 = vld [vmem:[%s5283] sm:$0x1]
    %v5286 = vlaneseq
    %v5287 = vshrl.u32 %v5286, 7
    %v5288 = vsub.s32 0, %v5287
    %v5289 = vrot.slane %v5284, %v5288
    %v5291 = vadd.f32 %v5281, %v5289
    %v5292 = vadd.f32 %v5282, %v5289
    %s5293 = scalar_lea.vmem %s3, 4
    %v5294 = vld [vmem:[%s5293] sm:$0x1]
    %s5295 = scalar_lea.vmem %s4, 4
    %v5296 = vld [vmem:[%s5295] sm:$0x1]
    %v5297 = vsel %vm136, %v5291, 0.0
    %5298 = vadd.xlane.f32.xlu0 %v5297
    %v5299 = vpop.xlane.xlu0 %5298
    %v5300 = vsel %vm136, %v5292, 0.0
    %5301 = vadd.xlane.f32.xlu0 %v5300
    %v5302 = vpop.xlane.xlu0 %5301
    %v5303 = vmul.f32 %v5299, %v143
    %v5304 = vmul.f32 %v5302, %v143
    %v5305 = vsub.f32 %v5291, %v5303
    %v5306 = vsub.f32 %v5292, %v5304
    %v5307 = vmul.f32 %v5305, %v5305
    %v5308 = vmul.f32 %v5306, %v5306
    %v5309 = vsel %vm136, %v5307, 0.0
    %5310 = vadd.xlane.f32.xlu0 %v5309
    %v5311 = vpop.xlane.xlu0 %5310
    %v5312 = vsel %vm136, %v5308, 0.0
    %5313 = vadd.xlane.f32.xlu0 %v5312
    %v5314 = vpop.xlane.xlu0 %5313
    %v5315 = vmul.f32 %v5311, %v143
    %v5316 = vmul.f32 %v5314, %v143
    %v5317 = vadd.f32 %v5315, 1e-05
    %v5318 = vadd.f32 %v5316, 1e-05
    %v5319 = vrsqrt.pop %v5317
    %v5320 = vrsqrt.pop %v5318
    %v5321 = vmul.f32 %v5305, %v5319
    %v5322 = vmul.f32 %v5306, %v5320
    %v5324 = vlaneseq
    %v5325 = vshrl.u32 %v5324, 7
    %v5326 = vsub.s32 0, %v5325
    %v5327 = vrot.slane %v5294, %v5326
    %v5329 = vmul.f32 %v5321, %v5327
    %v5330 = vmul.f32 %v5322, %v5327
    %v5332 = vlaneseq
    %v5333 = vshrl.u32 %v5332, 7
    %v5334 = vsub.s32 0, %v5333
    %v5335 = vrot.slane %v5296, %v5334
    %v5337 = vadd.f32 %v5329, %v5335
    %v5338 = vadd.f32 %v5330, %v5335
    %s5339 = scalar_lea.vmem %s5, 64
    %v5340 = vld [vmem:[%s5339] sm:$0xf]
    %v5341 = vld [vmem:[%s5339 + $0x4] sm:$0xf]
    %v5342 = vld [vmem:[%s5339 + $0x8] sm:$0xf]
    %v5343 = vld [vmem:[%s5339 + $0xc] sm:$0xf]
    %v5344 = vpack.c.bf16 %v5338, %v5337
    %s5345 = scalar_lea.vmem %s6, 4
    %v5346 = vld [vmem:[%s5345] sm:$0x1]
    %v5348 = vlaneseq
    %v5349 = vshrl.u32 %v5348, 7
    %v5350 = vsub.s32 0, %v5349
    %v5351 = vrot.slane %v5346, %v5350
    %v5357 = vunpack.c.l.b16 %v5340
    %v5358 = vunpack.c.l.b16 %v5341
    %v5359 = vunpack.c.l.b16 %v5342
    %v5360 = vunpack.c.l.b16 %v5343
    %v5361 = vpack.c.b16 %v5358, %v5357
    %v5362 = vpack.c.b16 %v5360, %v5359
    %v5366 = vsel %vm136, %v5344, 0
    %5368 = vmatprep.subr.bf16.mxu0 0
    %5369 = vmatpush1.bf16.msra.mxu0 %v5361
    %5370 = vmatprep.subr.bf16.mxu0 0
    %5371 = vmatpush1.bf16.msra.mxu0 %v5362
    %5372 = vmatprep.subr.bf16.mxu0 0
    %5373 = vmatpush1.bf16.msra.mxu0 0
    %5374 = vmatprep.subr.bf16.mxu0 0
    %5375 = vmatpush1.bf16.msra.mxu0 0
    %5376 = vmatprep.subr.bf16.mxu0 0
    %5377 = vmatpush1.bf16.msra.mxu0 0
    %5378 = vmatprep.subr.bf16.mxu0 0
    %5379 = vmatpush1.bf16.msra.mxu0 0
    %5380 = vmatprep.subr.bf16.mxu0 0
    %5381 = vmatpush1.bf16.msra.mxu0 0
    %5382 = vmatprep.subr.bf16.mxu0 0
    %5383 = vmatpush1.bf16.msra.mxu0 0
    %5384 = vmatprep.subr.bf16.mxu0 0
    %5385 = vmatpush1.bf16.msra.mxu0 0
    %5386 = vmatprep.subr.bf16.mxu0 0
    %5387 = vmatpush1.bf16.msra.mxu0 0
    %5388 = vmatprep.subr.bf16.mxu0 0
    %5389 = vmatpush1.bf16.msra.mxu0 0
    %5390 = vmatprep.subr.bf16.mxu0 0
    %5391 = vmatpush1.bf16.msra.mxu0 0
    %5392 = vmatprep.subr.bf16.mxu0 0
    %5393 = vmatpush1.bf16.msra.mxu0 0
    %5394 = vmatprep.subr.bf16.mxu0 0
    %5395 = vmatpush1.bf16.msra.mxu0 0
    %5396 = vmatprep.subr.bf16.mxu0 0
    %5397 = vmatpush1.bf16.msra.mxu0 0
    %5398 = vmatprep.subr.bf16.mxu0 0
    %5399 = vmatpush1.bf16.msra.mxu0 0
    %5400 = vmatprep.mubr.bf16.mxu0 0
    %5401 = vmatmul.mubr.bf16.gmra.mrb[0].mxu0 %v5366
    %v5402 = vpop.f32.mrb[0].mxu0
    %v5403 = vadd.f32 %v5351, %v5402
    %v5404 = vpop.f32.mrb[0].mxu0
    %v5405 = vpop.f32.mrb[0].mxu0
    %v5406 = vadd.f32 %v5351, %v5405
    %v5407 = vpop.f32.mrb[0].mxu0
    %5408 = vdwg.mxu0
    %5411 = vrot.lane.b32.xlu0 %v5403, 120
    %v5412 = vpop.permute.xlu0 %5411
    %5413 = vrot.lane.b32.xlu0 %v5406, 120
    %v5414 = vpop.permute.xlu0 %5413
    %5415 = vrot.lane.b32.xlu0 %v5403, 112
    %v5416 = vpop.permute.xlu0 %5415
    %5417 = vrot.lane.b32.xlu0 %v5406, 112
    %v5418 = vpop.permute.xlu0 %5417
    %5419 = vrot.lane.b32.xlu0 %v5403, 104
    %v5420 = vpop.permute.xlu0 %5419
    %5421 = vrot.lane.b32.xlu0 %v5406, 104
    %v5422 = vpop.permute.xlu0 %5421
    %5423 = vrot.lane.b32.xlu0 %v5403, 96
    %v5424 = vpop.permute.xlu0 %5423
    %5425 = vrot.lane.b32.xlu0 %v5406, 96
    %v5426 = vpop.permute.xlu0 %5425
    %v5427 = vsel %vm266, %v5403, 0
    %v5429 = vsel %vm266, %v5406, 0
    %v5431 = vsel %vm266, %v5424, 0
    %v5433 = vsel %vm266, %v5426, 0
    %5435 = vmatprep.subr.mxu0 0.0
    %5436 = vmatpush1.xpose.msra.mxu0 %v5431
    %5437 = vmatprep.subr.mxu0 0.0
    %5438 = vmatpush1.xpose.msra.mxu0 %v5433
    %5439 = vmatprep.subr.mxu0 0.0
    %5440 = vmatpush1.xpose.msra.mxu0 0.0
    %5441 = vmatprep.subr.mxu0 0.0
    %5442 = vmatpush1.xpose.msra.mxu0 0.0
    %5443 = vmatprep.subr.mxu0 0.0
    %5444 = vmatpush1.xpose.msra.mxu0 0.0
    %5445 = vmatprep.subr.mxu0 0.0
    %5446 = vmatpush1.xpose.msra.mxu0 0.0
    %5447 = vmatprep.subr.mxu0 0.0
    %5448 = vmatpush1.xpose.msra.mxu0 0.0
    %5449 = vmatprep.subr.mxu0 0.0
    %5450 = vmatpush1.xpose.msra.mxu0 0.0
    %5451 = vmatprep.subr.mxu0 0.0
    %5452 = vmatpush1.xpose.msra.mxu0 0.0
    %5453 = vmatprep.subr.mxu0 0.0
    %5454 = vmatpush1.xpose.msra.mxu0 0.0
    %5455 = vmatprep.subr.mxu0 0.0
    %5456 = vmatpush1.xpose.msra.mxu0 0.0
    %5457 = vmatprep.subr.mxu0 0.0
    %5458 = vmatpush1.xpose.msra.mxu0 0.0
    %5459 = vmatprep.subr.mxu0 0.0
    %5460 = vmatpush1.xpose.msra.mxu0 0.0
    %5461 = vmatprep.subr.mxu0 0.0
    %5462 = vmatpush1.xpose.msra.mxu0 0.0
    %5463 = vmatprep.subr.mxu0 0.0
    %5464 = vmatpush1.xpose.msra.mxu0 0.0
    %5465 = vmatprep.subr.mxu0 0.0
    %5466 = vmatpush1.xpose.msra.mxu0 0.0
    %5467 = vmatprep.subr.mxu0 0.0
    %5468 = vmatpush1.xpose.msra.mxu0 0.0
    %5469 = vmatprep.subr.mxu0 0.0
    %5470 = vmatpush1.xpose.msra.mxu0 0.0
    %5471 = vmatprep.subr.mxu0 0.0
    %5472 = vmatpush1.xpose.msra.mxu0 0.0
    %5473 = vmatprep.subr.mxu0 0.0
    %5474 = vmatpush1.xpose.msra.mxu0 0.0
    %5475 = vmatprep.subr.mxu0 0.0
    %5476 = vmatpush1.xpose.msra.mxu0 0.0
    %5477 = vmatprep.subr.mxu0 0.0
    %5478 = vmatpush1.xpose.msra.mxu0 0.0
    %5479 = vmatprep.subr.mxu0 0.0
    %5480 = vmatpush1.xpose.msra.mxu0 0.0
    %5481 = vmatprep.subr.mxu0 0.0
    %5482 = vmatpush1.xpose.msra.mxu0 0.0
    %5483 = vmatprep.subr.mxu0 0.0
    %5484 = vmatpush1.xpose.msra.mxu0 0.0
    %5485 = vmatprep.subr.mxu0 0.0
    %5486 = vmatpush1.xpose.msra.mxu0 0.0
    %5487 = vmatprep.subr.mxu0 0.0
    %5488 = vmatpush1.xpose.msra.mxu0 0.0
    %5489 = vmatprep.subr.mxu0 0.0
    %5490 = vmatpush1.xpose.msra.mxu0 0.0
    %5491 = vmatprep.subr.mxu0 0.0
    %5492 = vmatpush1.xpose.msra.mxu0 0.0
    %5493 = vmatprep.subr.mxu0 0.0
    %5494 = vmatpush1.xpose.msra.mxu0 0.0
    %5495 = vmatprep.subr.mxu0 0.0
    %5496 = vmatpush1.xpose.msra.mxu0 0.0
    %5497 = vmatprep.subr.mxu0 0.0
    %5498 = vmatpush1.xpose.msra.mxu0 0.0
    %5499 = vmatprep.mubr.f32.mxu0 0.0
    %5500 = vmatmul.mubr.f32.gmra.mrb[0].mxu0 %v5427
    %v5501 = vpop.f32.mrb[0].mxu0
    %v5502 = vadd.f32 0.0, %v5501
    %v5503 = vpop.f32.mrb[0].mxu0
    %5504 = vmatprep.mubr.f32.mxu0 0.0
    %5505 = vmatmul.mubr.f32.gmra.mrb[0].mxu0 %v5429
    %v5506 = vpop.f32.mrb[0].mxu0
    %v5507 = vadd.f32 0.0, %v5506
    %v5508 = vpop.f32.mrb[0].mxu0
    %5509 = vdwg.mxu0
    %5510 = vrot.lane.b32.xlu0 %v5412, 96
    %v5511 = vpop.permute.xlu0 %5510
    %5512 = vrot.lane.b32.xlu0 %v5414, 96
    %v5513 = vpop.permute.xlu0 %5512
    %v5514 = vsel %vm266, %v5412, 0
    %v5516 = vsel %vm266, %v5414, 0
    %v5518 = vsel %vm266, %v5511, 0
    %v5520 = vsel %vm266, %v5513, 0
    %5522 = vmatprep.subr.mxu0 0.0
    %5523 = vmatpush1.xpose.msra.mxu0 %v5518
    %5524 = vmatprep.subr.mxu0 0.0
    %5525 = vmatpush1.xpose.msra.mxu0 %v5520
    %5526 = vmatprep.subr.mxu0 0.0
    %5527 = vmatpush1.xpose.msra.mxu0 0.0
    %5528 = vmatprep.subr.mxu0 0.0
    %5529 = vmatpush1.xpose.msra.mxu0 0.0
    %5530 = vmatprep.subr.mxu0 0.0
    %5531 = vmatpush1.xpose.msra.mxu0 0.0
    %5532 = vmatprep.subr.mxu0 0.0
    %5533 = vmatpush1.xpose.msra.mxu0 0.0
    %5534 = vmatprep.subr.mxu0 0.0
    %5535 = vmatpush1.xpose.msra.mxu0 0.0
    %5536 = vmatprep.subr.mxu0 0.0
    %5537 = vmatpush1.xpose.msra.mxu0 0.0
    %5538 = vmatprep.subr.mxu0 0.0
    %5539 = vmatpush1.xpose.msra.mxu0 0.0
    %5540 = vmatprep.subr.mxu0 0.0
    %5541 = vmatpush1.xpose.msra.mxu0 0.0
    %5542 = vmatprep.subr.mxu0 0.0
    %5543 = vmatpush1.xpose.msra.mxu0 0.0
    %5544 = vmatprep.subr.mxu0 0.0
    %5545 = vmatpush1.xpose.msra.mxu0 0.0
    %5546 = vmatprep.subr.mxu0 0.0
    %5547 = vmatpush1.xpose.msra.mxu0 0.0
    %5548 = vmatprep.subr.mxu0 0.0
    %5549 = vmatpush1.xpose.msra.mxu0 0.0
    %5550 = vmatprep.subr.mxu0 0.0
    %5551 = vmatpush1.xpose.msra.mxu0 0.0
    %5552 = vmatprep.subr.mxu0 0.0
    %5553 = vmatpush1.xpose.msra.mxu0 0.0
    %5554 = vmatprep.subr.mxu0 0.0
    %5555 = vmatpush1.xpose.msra.mxu0 0.0
    %5556 = vmatprep.subr.mxu0 0.0
    %5557 = vmatpush1.xpose.msra.mxu0 0.0
    %5558 = vmatprep.subr.mxu0 0.0
    %5559 = vmatpush1.xpose.msra.mxu0 0.0
    %5560 = vmatprep.subr.mxu0 0.0
    %5561 = vmatpush1.xpose.msra.mxu0 0.0
    %5562 = vmatprep.subr.mxu0 0.0
    %5563 = vmatpush1.xpose.msra.mxu0 0.0
    %5564 = vmatprep.subr.mxu0 0.0
    %5565 = vmatpush1.xpose.msra.mxu0 0.0
    %5566 = vmatprep.subr.mxu0 0.0
    %5567 = vmatpush1.xpose.msra.mxu0 0.0
    %5568 = vmatprep.subr.mxu0 0.0
    %5569 = vmatpush1.xpose.msra.mxu0 0.0
    %5570 = vmatprep.subr.mxu0 0.0
    %5571 = vmatpush1.xpose.msra.mxu0 0.0
    %5572 = vmatprep.subr.mxu0 0.0
    %5573 = vmatpush1.xpose.msra.mxu0 0.0
    %5574 = vmatprep.subr.mxu0 0.0
    %5575 = vmatpush1.xpose.msra.mxu0 0.0
    %5576 = vmatprep.subr.mxu0 0.0
    %5577 = vmatpush1.xpose.msra.mxu0 0.0
    %5578 = vmatprep.subr.mxu0 0.0
    %5579 = vmatpush1.xpose.msra.mxu0 0.0
    %5580 = vmatprep.subr.mxu0 0.0
    %5581 = vmatpush1.xpose.msra.mxu0 0.0
    %5582 = vmatprep.subr.mxu0 0.0
    %5583 = vmatpush1.xpose.msra.mxu0 0.0
    %5584 = vmatprep.subr.mxu0 0.0
    %5585 = vmatpush1.xpose.msra.mxu0 0.0
    %5586 = vmatprep.mubr.f32.mxu0 0.0
    %5587 = vmatmul.mubr.f32.gmra.mrb[0].mxu0 %v5514
    %v5588 = vpop.f32.mrb[0].mxu0
    %v5589 = vadd.f32 0.0, %v5588
    %v5590 = vpop.f32.mrb[0].mxu0
    %5591 = vmatprep.mubr.f32.mxu0 0.0
    %5592 = vmatmul.mubr.f32.gmra.mrb[0].mxu0 %v5516
    %v5593 = vpop.f32.mrb[0].mxu0
    %v5594 = vadd.f32 0.0, %v5593
    %v5595 = vpop.f32.mrb[0].mxu0
    %5596 = vdwg.mxu0
    %5597 = vrot.lane.b32.xlu0 %v5416, 96
    %v5598 = vpop.permute.xlu0 %5597
    %5599 = vrot.lane.b32.xlu0 %v5418, 96
    %v5600 = vpop.permute.xlu0 %5599
    %v5601 = vsel %vm266, %v5416, 0
    %v5603 = vsel %vm266, %v5418, 0
    %v5605 = vsel %vm266, %v5598, 0
    %v5607 = vsel %vm266, %v5600, 0
    %5609 = vmatprep.subr.mxu0 0.0
    %5610 = vmatpush1.xpose.msra.mxu0 %v5605
    %5611 = vmatprep.subr.mxu0 0.0
    %5612 = vmatpush1.xpose.msra.mxu0 %v5607
    %5613 = vmatprep.subr.mxu0 0.0
    %5614 = vmatpush1.xpose.msra.mxu0 0.0
    %5615 = vmatprep.subr.mxu0 0.0
    %5616 = vmatpush1.xpose.msra.mxu0 0.0
    %5617 = vmatprep.subr.mxu0 0.0
    %5618 = vmatpush1.xpose.msra.mxu0 0.0
    %5619 = vmatprep.subr.mxu0 0.0
    %5620 = vmatpush1.xpose.msra.mxu0 0.0
    %5621 = vmatprep.subr.mxu0 0.0
    %5622 = vmatpush1.xpose.msra.mxu0 0.0
    %5623 = vmatprep.subr.mxu0 0.0
    %5624 = vmatpush1.xpose.msra.mxu0 0.0
    %5625 = vmatprep.subr.mxu0 0.0
    %5626 = vmatpush1.xpose.msra.mxu0 0.0
    %5627 = vmatprep.subr.mxu0 0.0
    %5628 = vmatpush1.xpose.msra.mxu0 0.0
    %5629 = vmatprep.subr.mxu0 0.0
    %5630 = vmatpush1.xpose.msra.mxu0 0.0
    %5631 = vmatprep.subr.mxu0 0.0
    %5632 = vmatpush1.xpose.msra.mxu0 0.0
    %5633 = vmatprep.subr.mxu0 0.0
    %5634 = vmatpush1.xpose.msra.mxu0 0.0
    %5635 = vmatprep.subr.mxu0 0.0
    %5636 = vmatpush1.xpose.msra.mxu0 0.0
    %5637 = vmatprep.subr.mxu0 0.0
    %5638 = vmatpush1.xpose.msra.mxu0 0.0
    %5639 = vmatprep.subr.mxu0 0.0
    %5640 = vmatpush1.xpose.msra.mxu0 0.0
    %5641 = vmatprep.subr.mxu0 0.0
    %5642 = vmatpush1.xpose.msra.mxu0 0.0
    %5643 = vmatprep.subr.mxu0 0.0
    %5644 = vmatpush1.xpose.msra.mxu0 0.0
    %5645 = vmatprep.subr.mxu0 0.0
    %5646 = vmatpush1.xpose.msra.mxu0 0.0
    %5647 = vmatprep.subr.mxu0 0.0
    %5648 = vmatpush1.xpose.msra.mxu0 0.0
    %5649 = vmatprep.subr.mxu0 0.0
    %5650 = vmatpush1.xpose.msra.mxu0 0.0
    %5651 = vmatprep.subr.mxu0 0.0
    %5652 = vmatpush1.xpose.msra.mxu0 0.0
    %5653 = vmatprep.subr.mxu0 0.0
    %5654 = vmatpush1.xpose.msra.mxu0 0.0
    %5655 = vmatprep.subr.mxu0 0.0
    %5656 = vmatpush1.xpose.msra.mxu0 0.0
    %5657 = vmatprep.subr.mxu0 0.0
    %5658 = vmatpush1.xpose.msra.mxu0 0.0
    %5659 = vmatprep.subr.mxu0 0.0
    %5660 = vmatpush1.xpose.msra.mxu0 0.0
    %5661 = vmatprep.subr.mxu0 0.0
    %5662 = vmatpush1.xpose.msra.mxu0 0.0
    %5663 = vmatprep.subr.mxu0 0.0
    %5664 = vmatpush1.xpose.msra.mxu0 0.0
    %5665 = vmatprep.subr.mxu0 0.0
    %5666 = vmatpush1.xpose.msra.mxu0 0.0
    %5667 = vmatprep.subr.mxu0 0.0
    %5668 = vmatpush1.xpose.msra.mxu0 0.0
    %5669 = vmatprep.subr.mxu0 0.0
    %5670 = vmatpush1.xpose.msra.mxu0 0.0
    %5671 = vmatprep.subr.mxu0 0.0
    %5672 = vmatpush1.xpose.msra.mxu0 0.0
    %5673 = vmatprep.mubr.f32.mxu0 0.0
    %5674 = vmatmul.mubr.f32.gmra.mrb[0].mxu0 %v5601
    %v5675 = vpop.f32.mrb[0].mxu0
    %v5676 = vadd.f32 0.0, %v5675
    %v5677 = vpop.f32.mrb[0].mxu0
    %5678 = vmatprep.mubr.f32.mxu0 0.0
    %5679 = vmatmul.mubr.f32.gmra.mrb[0].mxu0 %v5603
    %v5680 = vpop.f32.mrb[0].mxu0
    %v5681 = vadd.f32 0.0, %v5680
    %v5682 = vpop.f32.mrb[0].mxu0
    %5683 = vdwg.mxu0
    %5684 = vrot.lane.b32.xlu0 %v5420, 96
    %v5685 = vpop.permute.xlu0 %5684
    %5686 = vrot.lane.b32.xlu0 %v5422, 96
    %v5687 = vpop.permute.xlu0 %5686
    %v5688 = vsel %vm266, %v5420, 0
    %v5690 = vsel %vm266, %v5422, 0
    %v5692 = vsel %vm266, %v5685, 0
    %v5694 = vsel %vm266, %v5687, 0
    %5696 = vmatprep.subr.mxu0 0.0
    %5697 = vmatpush1.xpose.msra.mxu0 %v5692
    %5698 = vmatprep.subr.mxu0 0.0
    %5699 = vmatpush1.xpose.msra.mxu0 %v5694
    %5700 = vmatprep.subr.mxu0 0.0
    %5701 = vmatpush1.xpose.msra.mxu0 0.0
    %5702 = vmatprep.subr.mxu0 0.0
    %5703 = vmatpush1.xpose.msra.mxu0 0.0
    %5704 = vmatprep.subr.mxu0 0.0
    %5705 = vmatpush1.xpose.msra.mxu0 0.0
    %5706 = vmatprep.subr.mxu0 0.0
    %5707 = vmatpush1.xpose.msra.mxu0 0.0
    %5708 = vmatprep.subr.mxu0 0.0
    %5709 = vmatpush1.xpose.msra.mxu0 0.0
    %5710 = vmatprep.subr.mxu0 0.0
    %5711 = vmatpush1.xpose.msra.mxu0 0.0
    %5712 = vmatprep.subr.mxu0 0.0
    %5713 = vmatpush1.xpose.msra.mxu0 0.0
    %5714 = vmatprep.subr.mxu0 0.0
    %5715 = vmatpush1.xpose.msra.mxu0 0.0
    %5716 = vmatprep.subr.mxu0 0.0
    %5717 = vmatpush1.xpose.msra.mxu0 0.0
    %5718 = vmatprep.subr.mxu0 0.0
    %5719 = vmatpush1.xpose.msra.mxu0 0.0
    %5720 = vmatprep.subr.mxu0 0.0
    %5721 = vmatpush1.xpose.msra.mxu0 0.0
    %5722 = vmatprep.subr.mxu0 0.0
    %5723 = vmatpush1.xpose.msra.mxu0 0.0
    %5724 = vmatprep.subr.mxu0 0.0
    %5725 = vmatpush1.xpose.msra.mxu0 0.0
    %5726 = vmatprep.subr.mxu0 0.0
    %5727 = vmatpush1.xpose.msra.mxu0 0.0
    %5728 = vmatprep.subr.mxu0 0.0
    %5729 = vmatpush1.xpose.msra.mxu0 0.0
    %5730 = vmatprep.subr.mxu0 0.0
    %5731 = vmatpush1.xpose.msra.mxu0 0.0
    %5732 = vmatprep.subr.mxu0 0.0
    %5733 = vmatpush1.xpose.msra.mxu0 0.0
    %5734 = vmatprep.subr.mxu0 0.0
    %5735 = vmatpush1.xpose.msra.mxu0 0.0
    %5736 = vmatprep.subr.mxu0 0.0
    %5737 = vmatpush1.xpose.msra.mxu0 0.0
    %5738 = vmatprep.subr.mxu0 0.0
    %5739 = vmatpush1.xpose.msra.mxu0 0.0
    %5740 = vmatprep.subr.mxu0 0.0
    %5741 = vmatpush1.xpose.msra.mxu0 0.0
    %5742 = vmatprep.subr.mxu0 0.0
    %5743 = vmatpush1.xpose.msra.mxu0 0.0
    %5744 = vmatprep.subr.mxu0 0.0
    %5745 = vmatpush1.xpose.msra.mxu0 0.0
    %5746 = vmatprep.subr.mxu0 0.0
    %5747 = vmatpush1.xpose.msra.mxu0 0.0
    %5748 = vmatprep.subr.mxu0 0.0
    %5749 = vmatpush1.xpose.msra.mxu0 0.0
    %5750 = vmatprep.subr.mxu0 0.0
    %5751 = vmatpush1.xpose.msra.mxu0 0.0
    %5752 = vmatprep.subr.mxu0 0.0
    %5753 = vmatpush1.xpose.msra.mxu0 0.0
    %5754 = vmatprep.subr.mxu0 0.0
    %5755 = vmatpush1.xpose.msra.mxu0 0.0
    %5756 = vmatprep.subr.mxu0 0.0
    %5757 = vmatpush1.xpose.msra.mxu0 0.0
    %5758 = vmatprep.subr.mxu0 0.0
    %5759 = vmatpush1.xpose.msra.mxu0 0.0
    %5760 = vmatprep.mubr.f32.mxu0 0.0
    %5761 = vmatmul.mubr.f32.gmra.mrb[0].mxu0 %v5688
    %v5762 = vpop.f32.mrb[0].mxu0
    %v5763 = vadd.f32 0.0, %v5762
    %v5764 = vpop.f32.mrb[0].mxu0
    %5765 = vmatprep.mubr.f32.mxu0 0.0
    %5766 = vmatmul.mubr.f32.gmra.mrb[0].mxu0 %v5690
    %v5767 = vpop.f32.mrb[0].mxu0
    %v5768 = vadd.f32 0.0, %v5767
    %v5769 = vpop.f32.mrb[0].mxu0
    %5770 = vdwg.mxu0
    %v5771 = vmul.f32 %v5502, 0.35355338
    %v5772 = vmul.f32 %v5507, 0.35355338
    %v5773 = vmul.f32 %v5589, 0.35355338
    %v5774 = vmul.f32 %v5594, 0.35355338
    %v5775 = vmul.f32 %v5676, 0.35355338
    %v5776 = vmul.f32 %v5681, 0.35355338
    %v5777 = vmul.f32 %v5763, 0.35355338
    %v5778 = vmul.f32 %v5768, 0.35355338
    %v5779 = vadd.f32 %v5771, %v132
    %v5780 = vadd.f32 %v5772, %v133
    %v5781 = vadd.f32 %v5773, %v132
    %v5782 = vadd.f32 %v5774, %v133
    %v5783 = vadd.f32 %v5775, %v132
    %v5784 = vadd.f32 %v5776, %v133
    %v5785 = vadd.f32 %v5777, %v132
    %v5786 = vadd.f32 %v5778, %v133
    %v5787 = vsel %vm627, %v5779, -inf
    %5788 = vmax.xlane.f32.xlu0 %v5787
    %v5789 = vpop.xlane.xlu0 %5788
    %v5790 = vsel %vm627, %v5780, -inf
    %5791 = vmax.xlane.f32.xlu0 %v5790
    %v5792 = vpop.xlane.xlu0 %5791
    %v5793 = vsel %vm627, %v5781, -inf
    %5794 = vmax.xlane.f32.xlu0 %v5793
    %v5795 = vpop.xlane.xlu0 %5794
    %v5796 = vsel %vm627, %v5782, -inf
    %5797 = vmax.xlane.f32.xlu0 %v5796
    %v5798 = vpop.xlane.xlu0 %5797
    %v5799 = vsel %vm627, %v5783, -inf
    %5800 = vmax.xlane.f32.xlu0 %v5799
    %v5801 = vpop.xlane.xlu0 %5800
    %v5802 = vsel %vm627, %v5784, -inf
    %5803 = vmax.xlane.f32.xlu0 %v5802
    %v5804 = vpop.xlane.xlu0 %5803
    %v5805 = vsel %vm627, %v5785, -inf
    %5806 = vmax.xlane.f32.xlu0 %v5805
    %v5807 = vpop.xlane.xlu0 %5806
    %v5808 = vsel %vm627, %v5786, -inf
    %5809 = vmax.xlane.f32.xlu0 %v5808
    %v5810 = vpop.xlane.xlu0 %5809
    %v5811 = vsub.f32 %v5779, %v5789
    %v5812 = vsub.f32 %v5780, %v5792
    %v5813 = vsub.f32 %v5781, %v5795
    %v5814 = vsub.f32 %v5782, %v5798
    %v5815 = vsub.f32 %v5783, %v5801
    %v5816 = vsub.f32 %v5784, %v5804
    %v5817 = vsub.f32 %v5785, %v5807
    %v5818 = vsub.f32 %v5786, %v5810
    %v5819 = vmul.f32 %v5811, 1.442695
    %v5820 = vpow.pop %v5819
    %v5821 = vmul.f32 %v5812, 1.442695
    %v5822 = vpow.pop %v5821
    %v5823 = vmul.f32 %v5813, 1.442695
    %v5824 = vpow.pop %v5823
    %v5825 = vmul.f32 %v5814, 1.442695
    %v5826 = vpow.pop %v5825
    %v5827 = vmul.f32 %v5815, 1.442695
    %v5828 = vpow.pop %v5827
    %v5829 = vmul.f32 %v5816, 1.442695
    %v5830 = vpow.pop %v5829
    %v5831 = vmul.f32 %v5817, 1.442695
    %v5832 = vpow.pop %v5831
    %v5833 = vmul.f32 %v5818, 1.442695
    %v5834 = vpow.pop %v5833
    %v5835 = vsel %vm627, %v5820, 0.0
    %5836 = vadd.xlane.f32.xlu0 %v5835
    %v5837 = vpop.xlane.xlu0 %5836
    %v5838 = vsel %vm627, %v5822, 0.0
    %5839 = vadd.xlane.f32.xlu0 %v5838
    %v5840 = vpop.xlane.xlu0 %5839
    %v5841 = vsel %vm627, %v5824, 0.0
    %5842 = vadd.xlane.f32.xlu0 %v5841
    %v5843 = vpop.xlane.xlu0 %5842
    %v5844 = vsel %vm627, %v5826, 0.0
    %5845 = vadd.xlane.f32.xlu0 %v5844
    %v5846 = vpop.xlane.xlu0 %5845
    %v5847 = vsel %vm627, %v5828, 0.0
    %5848 = vadd.xlane.f32.xlu0 %v5847
    %v5849 = vpop.xlane.xlu0 %5848
    %v5850 = vsel %vm627, %v5830, 0.0
    %5851 = vadd.xlane.f32.xlu0 %v5850
    %v5852 = vpop.xlane.xlu0 %5851
    %v5853 = vsel %vm627, %v5832, 0.0
    %5854 = vadd.xlane.f32.xlu0 %v5853
    %v5855 = vpop.xlane.xlu0 %5854
    %v5856 = vsel %vm627, %v5834, 0.0
    %5857 = vadd.xlane.f32.xlu0 %v5856
    %v5858 = vpop.xlane.xlu0 %5857
    %v5859 = vrcp.pop %v5837
    %v5860 = vmul.f32 %v5820, %v5859
    %v5861 = vrcp.pop %v5840
    %v5862 = vmul.f32 %v5822, %v5861
    %v5863 = vrcp.pop %v5843
    %v5864 = vmul.f32 %v5824, %v5863
    %v5865 = vrcp.pop %v5846
    %v5866 = vmul.f32 %v5826, %v5865
    %v5867 = vrcp.pop %v5849
    %v5868 = vmul.f32 %v5828, %v5867
    %v5869 = vrcp.pop %v5852
    %v5870 = vmul.f32 %v5830, %v5869
    %v5871 = vrcp.pop %v5855
    %v5872 = vmul.f32 %v5832, %v5871
    %v5873 = vrcp.pop %v5858
    %v5874 = vmul.f32 %v5834, %v5873
    %5875 = vrot.lane.b32.xlu0 %v5403, 64
    %v5876 = vpop.permute.xlu0 %5875
    %5877 = vrot.lane.b32.xlu0 %v5406, 64
    %v5878 = vpop.permute.xlu0 %5877
    %v5882 = vsel %vm627, %v5860, 0
    %v5885 = vsel %vm627, %v5862, 0
    %5887 = vmatprep.subr.mxu0 0.0
    %5888 = vmatpush1.msra.mxu0 %v5876
    %5889 = vmatprep.subr.mxu0 0.0
    %5890 = vmatpush1.msra.mxu0 %v5878
    %5891 = vmatprep.subr.mxu0 0.0
    %5892 = vmatpush1.msra.mxu0 0.0
    %5893 = vmatprep.subr.mxu0 0.0
    %5894 = vmatpush1.msra.mxu0 0.0
    %5895 = vmatprep.subr.mxu0 0.0
    %5896 = vmatpush1.msra.mxu0 0.0
    %5897 = vmatprep.subr.mxu0 0.0
    %5898 = vmatpush1.msra.mxu0 0.0
    %5899 = vmatprep.subr.mxu0 0.0
    %5900 = vmatpush1.msra.mxu0 0.0
    %5901 = vmatprep.subr.mxu0 0.0
    %5902 = vmatpush1.msra.mxu0 0.0
    %5903 = vmatprep.subr.mxu0 0.0
    %5904 = vmatpush1.msra.mxu0 0.0
    %5905 = vmatprep.subr.mxu0 0.0
    %5906 = vmatpush1.msra.mxu0 0.0
    %5907 = vmatprep.subr.mxu0 0.0
    %5908 = vmatpush1.msra.mxu0 0.0
    %5909 = vmatprep.subr.mxu0 0.0
    %5910 = vmatpush1.msra.mxu0 0.0
    %5911 = vmatprep.subr.mxu0 0.0
    %5912 = vmatpush1.msra.mxu0 0.0
    %5913 = vmatprep.subr.mxu0 0.0
    %5914 = vmatpush1.msra.mxu0 0.0
    %5915 = vmatprep.subr.mxu0 0.0
    %5916 = vmatpush1.msra.mxu0 0.0
    %5917 = vmatprep.subr.mxu0 0.0
    %5918 = vmatpush1.msra.mxu0 0.0
    %5919 = vmatprep.subr.mxu0 0.0
    %5920 = vmatpush1.msra.mxu0 0.0
    %5921 = vmatprep.subr.mxu0 0.0
    %5922 = vmatpush1.msra.mxu0 0.0
    %5923 = vmatprep.subr.mxu0 0.0
    %5924 = vmatpush1.msra.mxu0 0.0
    %5925 = vmatprep.subr.mxu0 0.0
    %5926 = vmatpush1.msra.mxu0 0.0
    %5927 = vmatprep.subr.mxu0 0.0
    %5928 = vmatpush1.msra.mxu0 0.0
    %5929 = vmatprep.subr.mxu0 0.0
    %5930 = vmatpush1.msra.mxu0 0.0
    %5931 = vmatprep.subr.mxu0 0.0
    %5932 = vmatpush1.msra.mxu0 0.0
    %5933 = vmatprep.subr.mxu0 0.0
    %5934 = vmatpush1.msra.mxu0 0.0
    %5935 = vmatprep.subr.mxu0 0.0
    %5936 = vmatpush1.msra.mxu0 0.0
    %5937 = vmatprep.subr.mxu0 0.0
    %5938 = vmatpush1.msra.mxu0 0.0
    %5939 = vmatprep.subr.mxu0 0.0
    %5940 = vmatpush1.msra.mxu0 0.0
    %5941 = vmatprep.subr.mxu0 0.0
    %5942 = vmatpush1.msra.mxu0 0.0
    %5943 = vmatprep.subr.mxu0 0.0
    %5944 = vmatpush1.msra.mxu0 0.0
    %5945 = vmatprep.subr.mxu0 0.0
    %5946 = vmatpush1.msra.mxu0 0.0
    %5947 = vmatprep.subr.mxu0 0.0
    %5948 = vmatpush1.msra.mxu0 0.0
    %5949 = vmatprep.subr.mxu0 0.0
    %5950 = vmatpush1.msra.mxu0 0.0
    %5951 = vmatprep.mubr.f32.mxu0 0.0
    %5952 = vmatmul.mubr.f32.gmra.mrb[0].mxu0 %v5882
    %v5953 = vpop.f32.mrb[0].mxu0
    %v5954 = vadd.f32 0.0, %v5953
    %v5955 = vpop.f32.mrb[0].mxu0
    %5956 = vmatprep.mubr.f32.mxu0 0.0
    %5957 = vmatmul.mubr.f32.gmra.mrb[0].mxu0 %v5885
    %v5958 = vpop.f32.mrb[0].mxu0
    %v5959 = vadd.f32 0.0, %v5958
    %v5960 = vpop.f32.mrb[0].mxu0
    %5961 = vdwg.mxu0
    %5962 = vrot.lane.b32.xlu0 %v5412, 64
    %v5963 = vpop.permute.xlu0 %5962
    %5964 = vrot.lane.b32.xlu0 %v5414, 64
    %v5965 = vpop.permute.xlu0 %5964
    %v5969 = vsel %vm627, %v5864, 0
    %v5972 = vsel %vm627, %v5866, 0
    %5974 = vmatprep.subr.mxu0 0.0
    %5975 = vmatpush1.msra.mxu0 %v5963
    %5976 = vmatprep.subr.mxu0 0.0
    %5977 = vmatpush1.msra.mxu0 %v5965
    %5978 = vmatprep.subr.mxu0 0.0
    %5979 = vmatpush1.msra.mxu0 0.0
    %5980 = vmatprep.subr.mxu0 0.0
    %5981 = vmatpush1.msra.mxu0 0.0
    %5982 = vmatprep.subr.mxu0 0.0
    %5983 = vmatpush1.msra.mxu0 0.0
    %5984 = vmatprep.subr.mxu0 0.0
    %5985 = vmatpush1.msra.mxu0 0.0
    %5986 = vmatprep.subr.mxu0 0.0
    %5987 = vmatpush1.msra.mxu0 0.0
    %5988 = vmatprep.subr.mxu0 0.0
    %5989 = vmatpush1.msra.mxu0 0.0
    %5990 = vmatprep.subr.mxu0 0.0
    %5991 = vmatpush1.msra.mxu0 0.0
    %5992 = vmatprep.subr.mxu0 0.0
    %5993 = vmatpush1.msra.mxu0 0.0
    %5994 = vmatprep.subr.mxu0 0.0
    %5995 = vmatpush1.msra.mxu0 0.0
    %5996 = vmatprep.subr.mxu0 0.0
    %5997 = vmatpush1.msra.mxu0 0.0
    %5998 = vmatprep.subr.mxu0 0.0
    %5999 = vmatpush1.msra.mxu0 0.0
    %6000 = vmatprep.subr.mxu0 0.0
    %6001 = vmatpush1.msra.mxu0 0.0
    %6002 = vmatprep.subr.mxu0 0.0
    %6003 = vmatpush1.msra.mxu0 0.0
    %6004 = vmatprep.subr.mxu0 0.0
    %6005 = vmatpush1.msra.mxu0 0.0
    %6006 = vmatprep.subr.mxu0 0.0
    %6007 = vmatpush1.msra.mxu0 0.0
    %6008 = vmatprep.subr.mxu0 0.0
    %6009 = vmatpush1.msra.mxu0 0.0
    %6010 = vmatprep.subr.mxu0 0.0
    %6011 = vmatpush1.msra.mxu0 0.0
    %6012 = vmatprep.subr.mxu0 0.0
    %6013 = vmatpush1.msra.mxu0 0.0
    %6014 = vmatprep.subr.mxu0 0.0
    %6015 = vmatpush1.msra.mxu0 0.0
    %6016 = vmatprep.subr.mxu0 0.0
    %6017 = vmatpush1.msra.mxu0 0.0
    %6018 = vmatprep.subr.mxu0 0.0
    %6019 = vmatpush1.msra.mxu0 0.0
    %6020 = vmatprep.subr.mxu0 0.0
    %6021 = vmatpush1.msra.mxu0 0.0
    %6022 = vmatprep.subr.mxu0 0.0
    %6023 = vmatpush1.msra.mxu0 0.0
    %6024 = vmatprep.subr.mxu0 0.0
    %6025 = vmatpush1.msra.mxu0 0.0
    %6026 = vmatprep.subr.mxu0 0.0
    %6027 = vmatpush1.msra.mxu0 0.0
    %6028 = vmatprep.subr.mxu0 0.0
    %6029 = vmatpush1.msra.mxu0 0.0
    %6030 = vmatprep.subr.mxu0 0.0
    %6031 = vmatpush1.msra.mxu0 0.0
    %6032 = vmatprep.subr.mxu0 0.0
    %6033 = vmatpush1.msra.mxu0 0.0
    %6034 = vmatprep.subr.mxu0 0.0
    %6035 = vmatpush1.msra.mxu0 0.0
    %6036 = vmatprep.subr.mxu0 0.0
    %6037 = vmatpush1.msra.mxu0 0.0
    %6038 = vmatprep.mubr.f32.mxu0 0.0
    %6039 = vmatmul.mubr.f32.gmra.mrb[0].mxu0 %v5969
    %v6040 = vpop.f32.mrb[0].mxu0
    %v6041 = vadd.f32 0.0, %v6040
    %v6042 = vpop.f32.mrb[0].mxu0
    %6043 = vmatprep.mubr.f32.mxu0 0.0
    %6044 = vmatmul.mubr.f32.gmra.mrb[0].mxu0 %v5972
    %v6045 = vpop.f32.mrb[0].mxu0
    %v6046 = vadd.f32 0.0, %v6045
    %v6047 = vpop.f32.mrb[0].mxu0
    %6048 = vdwg.mxu0
    %6049 = vrot.lane.b32.xlu0 %v5416, 64
    %v6050 = vpop.permute.xlu0 %6049
    %6051 = vrot.lane.b32.xlu0 %v5418, 64
    %v6052 = vpop.permute.xlu0 %6051
    %v6056 = vsel %vm627, %v5868, 0
    %v6059 = vsel %vm627, %v5870, 0
    %6061 = vmatprep.subr.mxu0 0.0
    %6062 = vmatpush1.msra.mxu0 %v6050
    %6063 = vmatprep.subr.mxu0 0.0
    %6064 = vmatpush1.msra.mxu0 %v6052
    %6065 = vmatprep.subr.mxu0 0.0
    %6066 = vmatpush1.msra.mxu0 0.0
    %6067 = vmatprep.subr.mxu0 0.0
    %6068 = vmatpush1.msra.mxu0 0.0
    %6069 = vmatprep.subr.mxu0 0.0
    %6070 = vmatpush1.msra.mxu0 0.0
    %6071 = vmatprep.subr.mxu0 0.0
    %6072 = vmatpush1.msra.mxu0 0.0
    %6073 = vmatprep.subr.mxu0 0.0
    %6074 = vmatpush1.msra.mxu0 0.0
    %6075 = vmatprep.subr.mxu0 0.0
    %6076 = vmatpush1.msra.mxu0 0.0
    %6077 = vmatprep.subr.mxu0 0.0
    %6078 = vmatpush1.msra.mxu0 0.0
    %6079 = vmatprep.subr.mxu0 0.0
    %6080 = vmatpush1.msra.mxu0 0.0
    %6081 = vmatprep.subr.mxu0 0.0
    %6082 = vmatpush1.msra.mxu0 0.0
    %6083 = vmatprep.subr.mxu0 0.0
    %6084 = vmatpush1.msra.mxu0 0.0
    %6085 = vmatprep.subr.mxu0 0.0
    %6086 = vmatpush1.msra.mxu0 0.0
    %6087 = vmatprep.subr.mxu0 0.0
    %6088 = vmatpush1.msra.mxu0 0.0
    %6089 = vmatprep.subr.mxu0 0.0
    %6090 = vmatpush1.msra.mxu0 0.0
    %6091 = vmatprep.subr.mxu0 0.0
    %6092 = vmatpush1.msra.mxu0 0.0
    %6093 = vmatprep.subr.mxu0 0.0
    %6094 = vmatpush1.msra.mxu0 0.0
    %6095 = vmatprep.subr.mxu0 0.0
    %6096 = vmatpush1.msra.mxu0 0.0
    %6097 = vmatprep.subr.mxu0 0.0
    %6098 = vmatpush1.msra.mxu0 0.0
    %6099 = vmatprep.subr.mxu0 0.0
    %6100 = vmatpush1.msra.mxu0 0.0
    %6101 = vmatprep.subr.mxu0 0.0
    %6102 = vmatpush1.msra.mxu0 0.0
    %6103 = vmatprep.subr.mxu0 0.0
    %6104 = vmatpush1.msra.mxu0 0.0
    %6105 = vmatprep.subr.mxu0 0.0
    %6106 = vmatpush1.msra.mxu0 0.0
    %6107 = vmatprep.subr.mxu0 0.0
    %6108 = vmatpush1.msra.mxu0 0.0
    %6109 = vmatprep.subr.mxu0 0.0
    %6110 = vmatpush1.msra.mxu0 0.0
    %6111 = vmatprep.subr.mxu0 0.0
    %6112 = vmatpush1.msra.mxu0 0.0
    %6113 = vmatprep.subr.mxu0 0.0
    %6114 = vmatpush1.msra.mxu0 0.0
    %6115 = vmatprep.subr.mxu0 0.0
    %6116 = vmatpush1.msra.mxu0 0.0
    %6117 = vmatprep.subr.mxu0 0.0
    %6118 = vmatpush1.msra.mxu0 0.0
    %6119 = vmatprep.subr.mxu0 0.0
    %6120 = vmatpush1.msra.mxu0 0.0
    %6121 = vmatprep.subr.mxu0 0.0
    %6122 = vmatpush1.msra.mxu0 0.0
    %6123 = vmatprep.subr.mxu0 0.0
    %6124 = vmatpush1.msra.mxu0 0.0
    %6125 = vmatprep.mubr.f32.mxu0 0.0
    %6126 = vmatmul.mubr.f32.gmra.mrb[0].mxu0 %v6056
    %v6127 = vpop.f32.mrb[0].mxu0
    %v6128 = vadd.f32 0.0, %v6127
    %v6129 = vpop.f32.mrb[0].mxu0
    %6130 = vmatprep.mubr.f32.mxu0 0.0
    %6131 = vmatmul.mubr.f32.gmra.mrb[0].mxu0 %v6059
    %v6132 = vpop.f32.mrb[0].mxu0
    %v6133 = vadd.f32 0.0, %v6132
    %v6134 = vpop.f32.mrb[0].mxu0
    %6135 = vdwg.mxu0
    %6136 = vrot.lane.b32.xlu0 %v5420, 64
    %v6137 = vpop.permute.xlu0 %6136
    %6138 = vrot.lane.b32.xlu0 %v5422, 64
    %v6139 = vpop.permute.xlu0 %6138
    %v6143 = vsel %vm627, %v5872, 0
    %v6146 = vsel %vm627, %v5874, 0
    %6148 = vmatprep.subr.mxu0 0.0
    %6149 = vmatpush1.msra.mxu0 %v6137
    %6150 = vmatprep.subr.mxu0 0.0
    %6151 = vmatpush1.msra.mxu0 %v6139
    %6152 = vmatprep.subr.mxu0 0.0
    %6153 = vmatpush1.msra.mxu0 0.0
    %6154 = vmatprep.subr.mxu0 0.0
    %6155 = vmatpush1.msra.mxu0 0.0
    %6156 = vmatprep.subr.mxu0 0.0
    %6157 = vmatpush1.msra.mxu0 0.0
    %6158 = vmatprep.subr.mxu0 0.0
    %6159 = vmatpush1.msra.mxu0 0.0
    %6160 = vmatprep.subr.mxu0 0.0
    %6161 = vmatpush1.msra.mxu0 0.0
    %6162 = vmatprep.subr.mxu0 0.0
    %6163 = vmatpush1.msra.mxu0 0.0
    %6164 = vmatprep.subr.mxu0 0.0
    %6165 = vmatpush1.msra.mxu0 0.0
    %6166 = vmatprep.subr.mxu0 0.0
    %6167 = vmatpush1.msra.mxu0 0.0
    %6168 = vmatprep.subr.mxu0 0.0
    %6169 = vmatpush1.msra.mxu0 0.0
    %6170 = vmatprep.subr.mxu0 0.0
    %6171 = vmatpush1.msra.mxu0 0.0
    %6172 = vmatprep.subr.mxu0 0.0
    %6173 = vmatpush1.msra.mxu0 0.0
    %6174 = vmatprep.subr.mxu0 0.0
    %6175 = vmatpush1.msra.mxu0 0.0
    %6176 = vmatprep.subr.mxu0 0.0
    %6177 = vmatpush1.msra.mxu0 0.0
    %6178 = vmatprep.subr.mxu0 0.0
    %6179 = vmatpush1.msra.mxu0 0.0
    %6180 = vmatprep.subr.mxu0 0.0
    %6181 = vmatpush1.msra.mxu0 0.0
    %6182 = vmatprep.subr.mxu0 0.0
    %6183 = vmatpush1.msra.mxu0 0.0
    %6184 = vmatprep.subr.mxu0 0.0
    %6185 = vmatpush1.msra.mxu0 0.0
    %6186 = vmatprep.subr.mxu0 0.0
    %6187 = vmatpush1.msra.mxu0 0.0
    %6188 = vmatprep.subr.mxu0 0.0
    %6189 = vmatpush1.msra.mxu0 0.0
    %6190 = vmatprep.subr.mxu0 0.0
    %6191 = vmatpush1.msra.mxu0 0.0
    %6192 = vmatprep.subr.mxu0 0.0
    %6193 = vmatpush1.msra.mxu0 0.0
    %6194 = vmatprep.subr.mxu0 0.0
    %6195 = vmatpush1.msra.mxu0 0.0
    %6196 = vmatprep.subr.mxu0 0.0
    %6197 = vmatpush1.msra.mxu0 0.0
    %6198 = vmatprep.subr.mxu0 0.0
    %6199 = vmatpush1.msra.mxu0 0.0
    %6200 = vmatprep.subr.mxu0 0.0
    %6201 = vmatpush1.msra.mxu0 0.0
    %6202 = vmatprep.subr.mxu0 0.0
    %6203 = vmatpush1.msra.mxu0 0.0
    %6204 = vmatprep.subr.mxu0 0.0
    %6205 = vmatpush1.msra.mxu0 0.0
    %6206 = vmatprep.subr.mxu0 0.0
    %6207 = vmatpush1.msra.mxu0 0.0
    %6208 = vmatprep.subr.mxu0 0.0
    %6209 = vmatpush1.msra.mxu0 0.0
    %6210 = vmatprep.subr.mxu0 0.0
    %6211 = vmatpush1.msra.mxu0 0.0
    %6212 = vmatprep.mubr.f32.mxu0 0.0
    %6213 = vmatmul.mubr.f32.gmra.mrb[0].mxu0 %v6143
    %v6214 = vpop.f32.mrb[0].mxu0
    %v6215 = vadd.f32 0.0, %v6214
    %v6216 = vpop.f32.mrb[0].mxu0
    %6217 = vmatprep.mubr.f32.mxu0 0.0
    %6218 = vmatmul.mubr.f32.gmra.mrb[0].mxu0 %v6146
    %v6219 = vpop.f32.mrb[0].mxu0
    %v6220 = vadd.f32 0.0, %v6219
    %v6221 = vpop.f32.mrb[0].mxu0
    %6222 = vdwg.mxu0
    %6223 = vst.msk [vmem:[#allocation3] sm:$0xff] %vm266, %v5954
    %6224 = vst.msk [vmem:[#allocation3 + $0x8] sm:$0xff] %vm266, %v5959
    %6227 = vrot.lane.b32.xlu0 %v6041, 8
    %v6228 = vpop.permute.xlu0 %6227
    %6229 = vrot.lane.b32.xlu0 %v6046, 8
    %v6230 = vpop.permute.xlu0 %6229
    %6233 = vst.msk [vmem:[#allocation3] sm:$0xff] %vm1074, %v6228
    %6234 = vst.msk [vmem:[#allocation3 + $0x8] sm:$0xff] %vm1074, %v6230
    %6237 = vrot.lane.b32.xlu0 %v6128, 16
    %v6238 = vpop.permute.xlu0 %6237
    %6239 = vrot.lane.b32.xlu0 %v6133, 16
    %v6240 = vpop.permute.xlu0 %6239
    %6243 = vst.msk [vmem:[#allocation3] sm:$0xff] %vm1085, %v6238
    %6244 = vst.msk [vmem:[#allocation3 + $0x8] sm:$0xff] %vm1085, %v6240
    %6247 = vrot.lane.b32.xlu0 %v6215, 24
    %v6248 = vpop.permute.xlu0 %6247
    %6249 = vrot.lane.b32.xlu0 %v6220, 24
    %v6250 = vpop.permute.xlu0 %6249
    %6253 = vst.msk [vmem:[#allocation3] sm:$0xff] %vm1096, %v6248
    %6254 = vst.msk [vmem:[#allocation3 + $0x8] sm:$0xff] %vm1096, %v6250
    %v6255 = vld [vmem:[#allocation3] sm:$0xff]
    %v6256 = vld [vmem:[#allocation3 + $0x8] sm:$0xff]
    %s6257 = scalar_lea.vmem %s7, 64
    %v6258 = vld [vmem:[%s6257] sm:$0xf]
    %v6259 = vld [vmem:[%s6257 + $0x4] sm:$0xf]
    %v6260 = vld [vmem:[%s6257 + $0x8] sm:$0xf]
    %v6261 = vld [vmem:[%s6257 + $0xc] sm:$0xf]
    %v6262 = vpack.c.bf16 %v6256, %v6255
    %v6267 = vunpack.c.l.b16 %v6258
    %v6268 = vunpack.c.l.b16 %v6259
    %v6269 = vunpack.c.l.b16 %v6260
    %v6270 = vunpack.c.l.b16 %v6261
    %v6271 = vpack.c.b16 %v6268, %v6267
    %v6272 = vpack.c.b16 %v6270, %v6269
    %v6276 = vsel %vm136, %v6262, 0
    %6278 = vmatprep.subr.bf16.mxu0 0
    %6279 = vmatpush1.bf16.msra.mxu0 %v6271
    %6280 = vmatprep.subr.bf16.mxu0 0
    %6281 = vmatpush1.bf16.msra.mxu0 %v6272
    %6282 = vmatprep.subr.bf16.mxu0 0
    %6283 = vmatpush1.bf16.msra.mxu0 0
    %6284 = vmatprep.subr.bf16.mxu0 0
    %6285 = vmatpush1.bf16.msra.mxu0 0
    %6286 = vmatprep.subr.bf16.mxu0 0
    %6287 = vmatpush1.bf16.msra.mxu0 0
    %6288 = vmatprep.subr.bf16.mxu0 0
    %6289 = vmatpush1.bf16.msra.mxu0 0
    %6290 = vmatprep.subr.bf16.mxu0 0
    %6291 = vmatpush1.bf16.msra.mxu0 0
    %6292 = vmatprep.subr.bf16.mxu0 0
    %6293 = vmatpush1.bf16.msra.mxu0 0
    %6294 = vmatprep.subr.bf16.mxu0 0
    %6295 = vmatpush1.bf16.msra.mxu0 0
    %6296 = vmatprep.subr.bf16.mxu0 0
    %6297 = vmatpush1.bf16.msra.mxu0 0
    %6298 = vmatprep.subr.bf16.mxu0 0
    %6299 = vmatpush1.bf16.msra.mxu0 0
    %6300 = vmatprep.subr.bf16.mxu0 0
    %6301 = vmatpush1.bf16.msra.mxu0 0
    %6302 = vmatprep.subr.bf16.mxu0 0
    %6303 = vmatpush1.bf16.msra.mxu0 0
    %6304 = vmatprep.subr.bf16.mxu0 0
    %6305 = vmatpush1.bf16.msra.mxu0 0
    %6306 = vmatprep.subr.bf16.mxu0 0
    %6307 = vmatpush1.bf16.msra.mxu0 0
    %6308 = vmatprep.subr.bf16.mxu0 0
    %6309 = vmatpush1.bf16.msra.mxu0 0
    %6310 = vmatprep.mubr.bf16.mxu0 0
    %6311 = vmatmul.mubr.bf16.gmra.mrb[0].mxu0 %v6276
    %v6312 = vpop.f32.mrb[0].mxu0
    %v6313 = vadd.f32 0.0, %v6312
    %v6314 = vpop.f32.mrb[0].mxu0
    %v6315 = vpop.f32.mrb[0].mxu0
    %v6316 = vadd.f32 0.0, %v6315
    %v6317 = vpop.f32.mrb[0].mxu0
    %6318 = vdwg.mxu0
    %v6319 = vadd.f32 %v5291, %v6313
    %v6320 = vadd.f32 %v5292, %v6316
    %s6321 = scalar_lea.vmem %s8, 4
    %v6322 = vld [vmem:[%s6321] sm:$0x1]
    %v6324 = vlaneseq
    %v6325 = vshrl.u32 %v6324, 7
    %v6326 = vsub.s32 0, %v6325
    %v6327 = vrot.slane %v6322, %v6326
    %v6329 = vadd.f32 %v6319, %v6327
    %v6330 = vadd.f32 %v6320, %v6327
    %s6331 = scalar_lea.vmem %s9, 4
    %v6332 = vld [vmem:[%s6331] sm:$0x1]
    %s6333 = scalar_lea.vmem %s10, 4
    %v6334 = vld [vmem:[%s6333] sm:$0x1]
    %v6335 = vsel %vm136, %v6329, 0.0
    %6336 = vadd.xlane.f32.xlu0 %v6335
    %v6337 = vpop.xlane.xlu0 %6336
    %v6338 = vsel %vm136, %v6330, 0.0
    %6339 = vadd.xlane.f32.xlu0 %v6338
    %v6340 = vpop.xlane.xlu0 %6339
    %v6341 = vmul.f32 %v6337, %v143
    %v6342 = vmul.f32 %v6340, %v143
    %v6343 = vsub.f32 %v6329, %v6341
    %v6344 = vsub.f32 %v6330, %v6342
    %v6345 = vmul.f32 %v6343, %v6343
    %v6346 = vmul.f32 %v6344, %v6344
    %v6347 = vsel %vm136, %v6345, 0.0
    %6348 = vadd.xlane.f32.xlu0 %v6347
    %v6349 = vpop.xlane.xlu0 %6348
    %v6350 = vsel %vm136, %v6346, 0.0
    %6351 = vadd.xlane.f32.xlu0 %v6350
    %v6352 = vpop.xlane.xlu0 %6351
    %v6353 = vmul.f32 %v6349, %v143
    %v6354 = vmul.f32 %v6352, %v143
    %v6355 = vadd.f32 %v6353, 1e-05
    %v6356 = vadd.f32 %v6354, 1e-05
    %v6357 = vrsqrt.pop %v6355
    %v6358 = vrsqrt.pop %v6356
    %v6359 = vmul.f32 %v6343, %v6357
    %v6360 = vmul.f32 %v6344, %v6358
    %v6362 = vlaneseq
    %v6363 = vshrl.u32 %v6362, 7
    %v6364 = vsub.s32 0, %v6363
    %v6365 = vrot.slane %v6332, %v6364
    %v6367 = vmul.f32 %v6359, %v6365
    %v6368 = vmul.f32 %v6360, %v6365
    %v6370 = vlaneseq
    %v6371 = vshrl.u32 %v6370, 7
    %v6372 = vsub.s32 0, %v6371
    %v6373 = vrot.slane %v6334, %v6372
    %v6375 = vadd.f32 %v6367, %v6373
    %v6376 = vadd.f32 %v6368, %v6373
    %s6377 = scalar_lea.vmem %s11, 64
    %v6378 = vld [vmem:[%s6377] sm:$0xf]
    %v6379 = vld [vmem:[%s6377 + $0x4] sm:$0xf]
    %v6380 = vld [vmem:[%s6377 + $0x8] sm:$0xf]
    %v6381 = vld [vmem:[%s6377 + $0xc] sm:$0xf]
    %v6382 = vpack.c.bf16 %v6376, %v6375
    %s6383 = scalar_lea.vmem %s12, 4
    %v6384 = vld [vmem:[%s6383] sm:$0x1]
    %v6386 = vlaneseq
    %v6387 = vshrl.u32 %v6386, 7
    %v6388 = vsub.s32 0, %v6387
    %v6389 = vrot.slane %v6384, %v6388
    %v6395 = vunpack.c.l.b16 %v6378
    %v6396 = vunpack.c.l.b16 %v6379
    %v6397 = vunpack.c.l.b16 %v6380
    %v6398 = vunpack.c.l.b16 %v6381
    %v6399 = vpack.c.b16 %v6396, %v6395
    %v6400 = vpack.c.b16 %v6398, %v6397
    %v6404 = vsel %vm136, %v6382, 0
    %6406 = vmatprep.subr.bf16.mxu0 0
    %6407 = vmatpush1.bf16.msra.mxu0 %v6399
    %6408 = vmatprep.subr.bf16.mxu0 0
    %6409 = vmatpush1.bf16.msra.mxu0 %v6400
    %6410 = vmatprep.subr.bf16.mxu0 0
    %6411 = vmatpush1.bf16.msra.mxu0 0
    %6412 = vmatprep.subr.bf16.mxu0 0
    %6413 = vmatpush1.bf16.msra.mxu0 0
    %6414 = vmatprep.subr.bf16.mxu0 0
    %6415 = vmatpush1.bf16.msra.mxu0 0
    %6416 = vmatprep.subr.bf16.mxu0 0
    %6417 = vmatpush1.bf16.msra.mxu0 0
    %6418 = vmatprep.subr.bf16.mxu0 0
    %6419 = vmatpush1.bf16.msra.mxu0 0
    %6420 = vmatprep.subr.bf16.mxu0 0
    %6421 = vmatpush1.bf16.msra.mxu0 0
    %6422 = vmatprep.subr.bf16.mxu0 0
    %6423 = vmatpush1.bf16.msra.mxu0 0
    %6424 = vmatprep.subr.bf16.mxu0 0
    %6425 = vmatpush1.bf16.msra.mxu0 0
    %6426 = vmatprep.subr.bf16.mxu0 0
    %6427 = vmatpush1.bf16.msra.mxu0 0
    %6428 = vmatprep.subr.bf16.mxu0 0
    %6429 = vmatpush1.bf16.msra.mxu0 0
    %6430 = vmatprep.subr.bf16.mxu0 0
    %6431 = vmatpush1.bf16.msra.mxu0 0
    %6432 = vmatprep.subr.bf16.mxu0 0
    %6433 = vmatpush1.bf16.msra.mxu0 0
    %6434 = vmatprep.subr.bf16.mxu0 0
    %6435 = vmatpush1.bf16.msra.mxu0 0
    %6436 = vmatprep.subr.bf16.mxu0 0
    %6437 = vmatpush1.bf16.msra.mxu0 0
    %6438 = vmatprep.mubr.bf16.mxu0 0
    %6439 = vmatmul.mubr.bf16.gmra.mrb[0].mxu0 %v6404
    %v6440 = vpop.f32.mrb[0].mxu0
    %v6441 = vadd.f32 %v6389, %v6440
    %v6442 = vpop.f32.mrb[0].mxu0
    %v6443 = vpop.f32.mrb[0].mxu0
    %v6444 = vadd.f32 %v6389, %v6443
    %v6445 = vpop.f32.mrb[0].mxu0
    %6446 = vdwg.mxu0
    %v6447 = vmul.f32 %v6441, 0.5
    %v6448 = vmul.f32 %v6444, 0.5
    %v6449 = vmul.f32 %v6441, 0.044715
    %v6450 = vmul.f32 %v6444, 0.044715
    %v6451 = vmul.f32 %v6449, %v6441
    %v6452 = vmul.f32 %v6450, %v6444
    %v6453 = vmul.f32 %v6451, %v6441
    %v6454 = vmul.f32 %v6452, %v6444
    %v6455 = vadd.f32 %v6441, %v6453
    %v6456 = vadd.f32 %v6444, %v6454
    %v6457 = vmul.f32 %v6455, 0.7978846
    %v6458 = vmul.f32 %v6456, 0.7978846
    %v6459 = vtanh.pop %v6457
    %v6460 = vtanh.pop %v6458
    %v6461 = vadd.f32 %v6459, 1.0
    %v6462 = vadd.f32 %v6460, 1.0
    %v6463 = vmul.f32 %v6447, %v6461
    %v6464 = vmul.f32 %v6448, %v6462
    %s6465 = scalar_lea.vmem %s13, 256
    %v6466 = vld [vmem:[%s6465] sm:$0xf]
    %v6467 = vld [vmem:[%s6465 + $0x4] sm:$0xf]
    %v6468 = vld [vmem:[%s6465 + $0x8] sm:$0xf]
    %v6469 = vld [vmem:[%s6465 + $0xc] sm:$0xf]
    %v6470 = vld [vmem:[%s6465 + $0x10] sm:$0xf]
    %v6471 = vld [vmem:[%s6465 + $0x14] sm:$0xf]
    %v6472 = vld [vmem:[%s6465 + $0x18] sm:$0xf]
    %v6473 = vld [vmem:[%s6465 + $0x1c] sm:$0xf]
    %v6474 = vld [vmem:[%s6465 + $0x20] sm:$0xf]
    %v6475 = vld [vmem:[%s6465 + $0x24] sm:$0xf]
    %v6476 = vld [vmem:[%s6465 + $0x28] sm:$0xf]
    %v6477 = vld [vmem:[%s6465 + $0x2c] sm:$0xf]
    %v6478 = vld [vmem:[%s6465 + $0x30] sm:$0xf]
    %v6479 = vld [vmem:[%s6465 + $0x34] sm:$0xf]
    %v6480 = vld [vmem:[%s6465 + $0x38] sm:$0xf]
    %v6481 = vld [vmem:[%s6465 + $0x3c] sm:$0xf]
    %v6482 = vpack.c.bf16 %v6464, %v6463
    %v6499 = vunpack.c.l.b16 %v6466
    %v6500 = vunpack.c.l.b16 %v6467
    %v6501 = vunpack.c.l.b16 %v6468
    %v6502 = vunpack.c.l.b16 %v6469
    %v6503 = vunpack.c.l.b16 %v6470
    %v6504 = vunpack.c.l.b16 %v6471
    %v6505 = vunpack.c.l.b16 %v6472
    %v6506 = vunpack.c.l.b16 %v6473
    %v6507 = vunpack.c.l.b16 %v6474
    %v6508 = vunpack.c.l.b16 %v6475
    %v6509 = vunpack.c.l.b16 %v6476
    %v6510 = vunpack.c.l.b16 %v6477
    %v6511 = vunpack.c.l.b16 %v6478
    %v6512 = vunpack.c.l.b16 %v6479
    %v6513 = vunpack.c.l.b16 %v6480
    %v6514 = vunpack.c.l.b16 %v6481
    %v6515 = vpack.c.b16 %v6500, %v6499
    %v6516 = vpack.c.b16 %v6502, %v6501
    %v6517 = vpack.c.b16 %v6504, %v6503
    %v6518 = vpack.c.b16 %v6506, %v6505
    %v6519 = vpack.c.b16 %v6508, %v6507
    %v6520 = vpack.c.b16 %v6510, %v6509
    %v6521 = vpack.c.b16 %v6512, %v6511
    %v6522 = vpack.c.b16 %v6514, %v6513
    %6531 = vmatprep.subr.bf16.mxu0 0
    %6532 = vmatpush1.bf16.msra.mxu0 %v6515
    %6533 = vmatprep.subr.bf16.mxu0 0
    %6534 = vmatpush1.bf16.msra.mxu0 %v6516
    %6535 = vmatprep.subr.bf16.mxu0 0
    %6536 = vmatpush1.bf16.msra.mxu0 %v6517
    %6537 = vmatprep.subr.bf16.mxu0 0
    %6538 = vmatpush1.bf16.msra.mxu0 %v6518
    %6539 = vmatprep.subr.bf16.mxu0 0
    %6540 = vmatpush1.bf16.msra.mxu0 %v6519
    %6541 = vmatprep.subr.bf16.mxu0 0
    %6542 = vmatpush1.bf16.msra.mxu0 %v6520
    %6543 = vmatprep.subr.bf16.mxu0 0
    %6544 = vmatpush1.bf16.msra.mxu0 %v6521
    %6545 = vmatprep.subr.bf16.mxu0 0
    %6546 = vmatpush1.bf16.msra.mxu0 %v6522
    %6547 = vmatprep.subr.bf16.mxu0 0
    %6548 = vmatpush1.bf16.msra.mxu0 0
    %6549 = vmatprep.subr.bf16.mxu0 0
    %6550 = vmatpush1.bf16.msra.mxu0 0
    %6551 = vmatprep.subr.bf16.mxu0 0
    %6552 = vmatpush1.bf16.msra.mxu0 0
    %6553 = vmatprep.subr.bf16.mxu0 0
    %6554 = vmatpush1.bf16.msra.mxu0 0
    %6555 = vmatprep.subr.bf16.mxu0 0
    %6556 = vmatpush1.bf16.msra.mxu0 0
    %6557 = vmatprep.subr.bf16.mxu0 0
    %6558 = vmatpush1.bf16.msra.mxu0 0
    %6559 = vmatprep.subr.bf16.mxu0 0
    %6560 = vmatpush1.bf16.msra.mxu0 0
    %6561 = vmatprep.subr.bf16.mxu0 0
    %6562 = vmatpush1.bf16.msra.mxu0 0
    %6563 = vmatprep.mubr.bf16.mxu0 0
    %6564 = vmatmul.mubr.bf16.gmra.mrb[0].mxu0 %v6482
    %v6565 = vpop.f32.mrb[0].mxu0
    %v6566 = vadd.f32 0.0, %v6565
    %v6567 = vpop.f32.mrb[0].mxu0
    %v6568 = vpop.f32.mrb[0].mxu0
    %v6569 = vadd.f32 0.0, %v6568
    %v6570 = vpop.f32.mrb[0].mxu0
    %6571 = vdwg.mxu0
    %v6572 = vadd.f32 %v6329, %v6566
    %v6573 = vadd.f32 %v6330, %v6569
    %s6574 = scalar_lea.vmem %s14, 4
    %v6575 = vld [vmem:[%s6574] sm:$0x1]
    %v6577 = vlaneseq
    %v6578 = vshrl.u32 %v6577, 7
    %v6579 = vsub.s32 0, %v6578
    %v6580 = vrot.slane %v6575, %v6579
    %v6582 = vadd.f32 %v6572, %v6580
    %v6583 = vadd.f32 %v6573, %v6580
    %s6584 = scalar_lea.vmem %s3, 5
    %v6585 = vld [vmem:[%s6584] sm:$0x1]
    %s6586 = scalar_lea.vmem %s4, 5
    %v6587 = vld [vmem:[%s6586] sm:$0x1]
    %v6588 = vsel %vm136, %v6582, 0.0
    %6589 = vadd.xlane.f32.xlu0 %v6588
    %v6590 = vpop.xlane.xlu0 %6589
    %v6591 = vsel %vm136, %v6583, 0.0
    %6592 = vadd.xlane.f32.xlu0 %v6591
    %v6593 = vpop.xlane.xlu0 %6592
    %v6594 = vmul.f32 %v6590, %v143
    %v6595 = vmul.f32 %v6593, %v143
    %v6596 = vsub.f32 %v6582, %v6594
    %v6597 = vsub.f32 %v6583, %v6595
    %v6598 = vmul.f32 %v6596, %v6596
    %v6599 = vmul.f32 %v6597, %v6597
    %v6600 = vsel %vm136, %v6598, 0.0
    %6601 = vadd.xlane.f32.xlu0 %v6600
    %v6602 = vpop.xlane.xlu0 %6601
    %v6603 = vsel %vm136, %v6599, 0.0
    %6604 = vadd.xlane.f32.xlu0 %v6603
    %v6605 = vpop.xlane.xlu0 %6604
    %v6606 = vmul.f32 %v6602, %v143
    %v6607 = vmul.f32 %v6605, %v143
    %v6608 = vadd.f32 %v6606, 1e-05
    %v6609 = vadd.f32 %v6607, 1e-05
    %v6610 = vrsqrt.pop %v6608
    %v6611 = vrsqrt.pop %v6609
    %v6612 = vmul.f32 %v6596, %v6610
    %v6613 = vmul.f32 %v6597, %v6611
    %v6615 = vlaneseq
    %v6616 = vshrl.u32 %v6615, 7
    %v6617 = vsub.s32 0, %v6616
    %v6618 = vrot.slane %v6585, %v6617
    %v6620 = vmul.f32 %v6612, %v6618
    %v6621 = vmul.f32 %v6613, %v6618
    %v6623 = vlaneseq
    %v6624 = vshrl.u32 %v6623, 7
    %v6625 = vsub.s32 0, %v6624
    %v6626 = vrot.slane %v6587, %v6625
    %v6628 = vadd.f32 %v6620, %v6626
    %v6629 = vadd.f32 %v6621, %v6626
    %s6630 = scalar_lea.vmem %s5, 80
    %v6631 = vld [vmem:[%s6630] sm:$0xf]
    %v6632 = vld [vmem:[%s6630 + $0x4] sm:$0xf]
    %v6633 = vld [vmem:[%s6630 + $0x8] sm:$0xf]
    %v6634 = vld [vmem:[%s6630 + $0xc] sm:$0xf]
    %v6635 = vpack.c.bf16 %v6629, %v6628
    %s6636 = scalar_lea.vmem %s6, 5
    %v6637 = vld [vmem:[%s6636] sm:$0x1]
    %v6639 = vlaneseq
    %v6640 = vshrl.u32 %v6639, 7
    %v6641 = vsub.s32 0, %v6640
    %v6642 = vrot.slane %v6637, %v6641
    %v6648 = vunpack.c.l.b16 %v6631
    %v6649 = vunpack.c.l.b16 %v6632
    %v6650 = vunpack.c.l.b16 %v6633
    %v6651 = vunpack.c.l.b16 %v6634
    %v6652 = vpack.c.b16 %v6649, %v6648
    %v6653 = vpack.c.b16 %v6651, %v6650
    %v6657 = vsel %vm136, %v6635, 0
    %6659 = vmatprep.subr.bf16.mxu0 0
    %6660 = vmatpush1.bf16.msra.mxu0 %v6652
    %6661 = vmatprep.subr.bf16.mxu0 0
    %6662 = vmatpush1.bf16.msra.mxu0 %v6653
    %6663 = vmatprep.subr.bf16.mxu0 0
    %6664 = vmatpush1.bf16.msra.mxu0 0
    %6665 = vmatprep.subr.bf16.mxu0 0
    %6666 = vmatpush1.bf16.msra.mxu0 0
    %6667 = vmatprep.subr.bf16.mxu0 0
    %6668 = vmatpush1.bf16.msra.mxu0 0
    %6669 = vmatprep.subr.bf16.mxu0 0
    %6670 = vmatpush1.bf16.msra.mxu0 0
    %6671 = vmatprep.subr.bf16.mxu0 0
    %6672 = vmatpush1.bf16.msra.mxu0 0
    %6673 = vmatprep.subr.bf16.mxu0 0
    %6674 = vmatpush1.bf16.msra.mxu0 0
    %6675 = vmatprep.subr.bf16.mxu0 0
    %6676 = vmatpush1.bf16.msra.mxu0 0
    %6677 = vmatprep.subr.bf16.mxu0 0
    %6678 = vmatpush1.bf16.msra.mxu0 0
    %6679 = vmatprep.subr.bf16.mxu0 0
    %6680 = vmatpush1.bf16.msra.mxu0 0
    %6681 = vmatprep.subr.bf16.mxu0 0
    %6682 = vmatpush1.bf16.msra.mxu0 0
    %6683 = vmatprep.subr.bf16.mxu0 0
    %6684 = vmatpush1.bf16.msra.mxu0 0
    %6685 = vmatprep.subr.bf16.mxu0 0
    %6686 = vmatpush1.bf16.msra.mxu0 0
    %6687 = vmatprep.subr.bf16.mxu0 0
    %6688 = vmatpush1.bf16.msra.mxu0 0
    %6689 = vmatprep.subr.bf16.mxu0 0
    %6690 = vmatpush1.bf16.msra.mxu0 0
    %6691 = vmatprep.mubr.bf16.mxu0 0
    %6692 = vmatmul.mubr.bf16.gmra.mrb[0].mxu0 %v6657
    %v6693 = vpop.f32.mrb[0].mxu0
    %v6694 = vadd.f32 %v6642, %v6693
    %v6695 = vpop.f32.mrb[0].mxu0
    %v6696 = vpop.f32.mrb[0].mxu0
    %v6697 = vadd.f32 %v6642, %v6696
    %v6698 = vpop.f32.mrb[0].mxu0
    %6699 = vdwg.mxu0
    %6702 = vrot.lane.b32.xlu0 %v6694, 120
    %v6703 = vpop.permute.xlu0 %6702
    %6704 = vrot.lane.b32.xlu0 %v6697, 120
    %v6705 = vpop.permute.xlu0 %6704
    %6706 = vrot.lane.b32.xlu0 %v6694, 112
    %v6707 = vpop.permute.xlu0 %6706
    %6708 = vrot.lane.b32.xlu0 %v6697, 112
    %v6709 = vpop.permute.xlu0 %6708
    %6710 = vrot.lane.b32.xlu0 %v6694, 104
    %v6711 = vpop.permute.xlu0 %6710
    %6712 = vrot.lane.b32.xlu0 %v6697, 104
    %v6713 = vpop.permute.xlu0 %6712
    %6714 = vrot.lane.b32.xlu0 %v6694, 96
    %v6715 = vpop.permute.xlu0 %6714
    %6716 = vrot.lane.b32.xlu0 %v6697, 96
    %v6717 = vpop.permute.xlu0 %6716
    %v6718 = vsel %vm266, %v6694, 0
    %v6720 = vsel %vm266, %v6697, 0
    %v6722 = vsel %vm266, %v6715, 0
    %v6724 = vsel %vm266, %v6717, 0
    %6726 = vmatprep.subr.mxu0 0.0
    %6727 = vmatpush1.xpose.msra.mxu0 %v6722
    %6728 = vmatprep.subr.mxu0 0.0
    %6729 = vmatpush1.xpose.msra.mxu0 %v6724
    %6730 = vmatprep.subr.mxu0 0.0
    %6731 = vmatpush1.xpose.msra.mxu0 0.0
    %6732 = vmatprep.subr.mxu0 0.0
    %6733 = vmatpush1.xpose.msra.mxu0 0.0
    %6734 = vmatprep.subr.mxu0 0.0
    %6735 = vmatpush1.xpose.msra.mxu0 0.0
    %6736 = vmatprep.subr.mxu0 0.0
    %6737 = vmatpush1.xpose.msra.mxu0 0.0
    %6738 = vmatprep.subr.mxu0 0.0
    %6739 = vmatpush1.xpose.msra.mxu0 0.0
    %6740 = vmatprep.subr.mxu0 0.0
    %6741 = vmatpush1.xpose.msra.mxu0 0.0
    %6742 = vmatprep.subr.mxu0 0.0
    %6743 = vmatpush1.xpose.msra.mxu0 0.0
    %6744 = vmatprep.subr.mxu0 0.0
    %6745 = vmatpush1.xpose.msra.mxu0 0.0
    %6746 = vmatprep.subr.mxu0 0.0
    %6747 = vmatpush1.xpose.msra.mxu0 0.0
    %6748 = vmatprep.subr.mxu0 0.0
    %6749 = vmatpush1.xpose.msra.mxu0 0.0
    %6750 = vmatprep.subr.mxu0 0.0
    %6751 = vmatpush1.xpose.msra.mxu0 0.0
    %6752 = vmatprep.subr.mxu0 0.0
    %6753 = vmatpush1.xpose.msra.mxu0 0.0
    %6754 = vmatprep.subr.mxu0 0.0
    %6755 = vmatpush1.xpose.msra.mxu0 0.0
    %6756 = vmatprep.subr.mxu0 0.0
    %6757 = vmatpush1.xpose.msra.mxu0 0.0
    %6758 = vmatprep.subr.mxu0 0.0
    %6759 = vmatpush1.xpose.msra.mxu0 0.0
    %6760 = vmatprep.subr.mxu0 0.0
    %6761 = vmatpush1.xpose.msra.mxu0 0.0
    %6762 = vmatprep.subr.mxu0 0.0
    %6763 = vmatpush1.xpose.msra.mxu0 0.0
    %6764 = vmatprep.subr.mxu0 0.0
    %6765 = vmatpush1.xpose.msra.mxu0 0.0
    %6766 = vmatprep.subr.mxu0 0.0
    %6767 = vmatpush1.xpose.msra.mxu0 0.0
    %6768 = vmatprep.subr.mxu0 0.0
    %6769 = vmatpush1.xpose.msra.mxu0 0.0
    %6770 = vmatprep.subr.mxu0 0.0
    %6771 = vmatpush1.xpose.msra.mxu0 0.0
    %6772 = vmatprep.subr.mxu0 0.0
    %6773 = vmatpush1.xpose.msra.mxu0 0.0
    %6774 = vmatprep.subr.mxu0 0.0
    %6775 = vmatpush1.xpose.msra.mxu0 0.0
    %6776 = vmatprep.subr.mxu0 0.0
    %6777 = vmatpush1.xpose.msra.mxu0 0.0
    %6778 = vmatprep.subr.mxu0 0.0
    %6779 = vmatpush1.xpose.msra.mxu0 0.0
    %6780 = vmatprep.subr.mxu0 0.0
    %6781 = vmatpush1.xpose.msra.mxu0 0.0
    %6782 = vmatprep.subr.mxu0 0.0
    %6783 = vmatpush1.xpose.msra.mxu0 0.0
    %6784 = vmatprep.subr.mxu0 0.0
    %6785 = vmatpush1.xpose.msra.mxu0 0.0
    %6786 = vmatprep.subr.mxu0 0.0
    %6787 = vmatpush1.xpose.msra.mxu0 0.0
    %6788 = vmatprep.subr.mxu0 0.0
    %6789 = vmatpush1.xpose.msra.mxu0 0.0
    %6790 = vmatprep.mubr.f32.mxu0 0.0
    %6791 = vmatmul.mubr.f32.gmra.mrb[0].mxu0 %v6718
    %v6792 = vpop.f32.mrb[0].mxu0
    %v6793 = vadd.f32 0.0, %v6792
    %v6794 = vpop.f32.mrb[0].mxu0
    %6795 = vmatprep.mubr.f32.mxu0 0.0
    %6796 = vmatmul.mubr.f32.gmra.mrb[0].mxu0 %v6720
    %v6797 = vpop.f32.mrb[0].mxu0
    %v6798 = vadd.f32 0.0, %v6797
    %v6799 = vpop.f32.mrb[0].mxu0
    %6800 = vdwg.mxu0
    %6801 = vrot.lane.b32.xlu0 %v6703, 96
    %v6802 = vpop.permute.xlu0 %6801
    %6803 = vrot.lane.b32.xlu0 %v6705, 96
    %v6804 = vpop.permute.xlu0 %6803
    %v6805 = vsel %vm266, %v6703, 0
    %v6807 = vsel %vm266, %v6705, 0
    %v6809 = vsel %vm266, %v6802, 0
    %v6811 = vsel %vm266, %v6804, 0
    %6813 = vmatprep.subr.mxu0 0.0
    %6814 = vmatpush1.xpose.msra.mxu0 %v6809
    %6815 = vmatprep.subr.mxu0 0.0
    %6816 = vmatpush1.xpose.msra.mxu0 %v6811
    %6817 = vmatprep.subr.mxu0 0.0
    %6818 = vmatpush1.xpose.msra.mxu0 0.0
    %6819 = vmatprep.subr.mxu0 0.0
    %6820 = vmatpush1.xpose.msra.mxu0 0.0
    %6821 = vmatprep.subr.mxu0 0.0
    %6822 = vmatpush1.xpose.msra.mxu0 0.0
    %6823 = vmatprep.subr.mxu0 0.0
    %6824 = vmatpush1.xpose.msra.mxu0 0.0
    %6825 = vmatprep.subr.mxu0 0.0
    %6826 = vmatpush1.xpose.msra.mxu0 0.0
    %6827 = vmatprep.subr.mxu0 0.0
    %6828 = vmatpush1.xpose.msra.mxu0 0.0
    %6829 = vmatprep.subr.mxu0 0.0
    %6830 = vmatpush1.xpose.msra.mxu0 0.0
    %6831 = vmatprep.subr.mxu0 0.0
    %6832 = vmatpush1.xpose.msra.mxu0 0.0
    %6833 = vmatprep.subr.mxu0 0.0
    %6834 = vmatpush1.xpose.msra.mxu0 0.0
    %6835 = vmatprep.subr.mxu0 0.0
    %6836 = vmatpush1.xpose.msra.mxu0 0.0
    %6837 = vmatprep.subr.mxu0 0.0
    %6838 = vmatpush1.xpose.msra.mxu0 0.0
    %6839 = vmatprep.subr.mxu0 0.0
    %6840 = vmatpush1.xpose.msra.mxu0 0.0
    %6841 = vmatprep.subr.mxu0 0.0
    %6842 = vmatpush1.xpose.msra.mxu0 0.0
    %6843 = vmatprep.subr.mxu0 0.0
    %6844 = vmatpush1.xpose.msra.mxu0 0.0
    %6845 = vmatprep.subr.mxu0 0.0
    %6846 = vmatpush1.xpose.msra.mxu0 0.0
    %6847 = vmatprep.subr.mxu0 0.0
    %6848 = vmatpush1.xpose.msra.mxu0 0.0
    %6849 = vmatprep.subr.mxu0 0.0
    %6850 = vmatpush1.xpose.msra.mxu0 0.0
    %6851 = vmatprep.subr.mxu0 0.0
    %6852 = vmatpush1.xpose.msra.mxu0 0.0
    %6853 = vmatprep.subr.mxu0 0.0
    %6854 = vmatpush1.xpose.msra.mxu0 0.0
    %6855 = vmatprep.subr.mxu0 0.0
    %6856 = vmatpush1.xpose.msra.mxu0 0.0
    %6857 = vmatprep.subr.mxu0 0.0
    %6858 = vmatpush1.xpose.msra.mxu0 0.0
    %6859 = vmatprep.subr.mxu0 0.0
    %6860 = vmatpush1.xpose.msra.mxu0 0.0
    %6861 = vmatprep.subr.mxu0 0.0
    %6862 = vmatpush1.xpose.msra.mxu0 0.0
    %6863 = vmatprep.subr.mxu0 0.0
    %6864 = vmatpush1.xpose.msra.mxu0 0.0
    %6865 = vmatprep.subr.mxu0 0.0
    %6866 = vmatpush1.xpose.msra.mxu0 0.0
    %6867 = vmatprep.subr.mxu0 0.0
    %6868 = vmatpush1.xpose.msra.mxu0 0.0
    %6869 = vmatprep.subr.mxu0 0.0
    %6870 = vmatpush1.xpose.msra.mxu0 0.0
    %6871 = vmatprep.subr.mxu0 0.0
    %6872 = vmatpush1.xpose.msra.mxu0 0.0
    %6873 = vmatprep.subr.mxu0 0.0
    %6874 = vmatpush1.xpose.msra.mxu0 0.0
    %6875 = vmatprep.subr.mxu0 0.0
    %6876 = vmatpush1.xpose.msra.mxu0 0.0
    %6877 = vmatprep.mubr.f32.mxu0 0.0
    %6878 = vmatmul.mubr.f32.gmra.mrb[0].mxu0 %v6805
    %v6879 = vpop.f32.mrb[0].mxu0
    %v6880 = vadd.f32 0.0, %v6879
    %v6881 = vpop.f32.mrb[0].mxu0
    %6882 = vmatprep.mubr.f32.mxu0 0.0
    %6883 = vmatmul.mubr.f32.gmra.mrb[0].mxu0 %v6807
    %v6884 = vpop.f32.mrb[0].mxu0
    %v6885 = vadd.f32 0.0, %v6884
    %v6886 = vpop.f32.mrb[0].mxu0
    %6887 = vdwg.mxu0
    %6888 = vrot.lane.b32.xlu0 %v6707, 96
    %v6889 = vpop.permute.xlu0 %6888
    %6890 = vrot.lane.b32.xlu0 %v6709, 96
    %v6891 = vpop.permute.xlu0 %6890
    %v6892 = vsel %vm266, %v6707, 0
    %v6894 = vsel %vm266, %v6709, 0
    %v6896 = vsel %vm266, %v6889, 0
    %v6898 = vsel %vm266, %v6891, 0
    %6900 = vmatprep.subr.mxu0 0.0
    %6901 = vmatpush1.xpose.msra.mxu0 %v6896
    %6902 = vmatprep.subr.mxu0 0.0
    %6903 = vmatpush1.xpose.msra.mxu0 %v6898
    %6904 = vmatprep.subr.mxu0 0.0
    %6905 = vmatpush1.xpose.msra.mxu0 0.0
    %6906 = vmatprep.subr.mxu0 0.0
    %6907 = vmatpush1.xpose.msra.mxu0 0.0
    %6908 = vmatprep.subr.mxu0 0.0
    %6909 = vmatpush1.xpose.msra.mxu0 0.0
    %6910 = vmatprep.subr.mxu0 0.0
    %6911 = vmatpush1.xpose.msra.mxu0 0.0
    %6912 = vmatprep.subr.mxu0 0.0
    %6913 = vmatpush1.xpose.msra.mxu0 0.0
    %6914 = vmatprep.subr.mxu0 0.0
    %6915 = vmatpush1.xpose.msra.mxu0 0.0
    %6916 = vmatprep.subr.mxu0 0.0
    %6917 = vmatpush1.xpose.msra.mxu0 0.0
    %6918 = vmatprep.subr.mxu0 0.0
    %6919 = vmatpush1.xpose.msra.mxu0 0.0
    %6920 = vmatprep.subr.mxu0 0.0
    %6921 = vmatpush1.xpose.msra.mxu0 0.0
    %6922 = vmatprep.subr.mxu0 0.0
    %6923 = vmatpush1.xpose.msra.mxu0 0.0
    %6924 = vmatprep.subr.mxu0 0.0
    %6925 = vmatpush1.xpose.msra.mxu0 0.0
    %6926 = vmatprep.subr.mxu0 0.0
    %6927 = vmatpush1.xpose.msra.mxu0 0.0
    %6928 = vmatprep.subr.mxu0 0.0
    %6929 = vmatpush1.xpose.msra.mxu0 0.0
    %6930 = vmatprep.subr.mxu0 0.0
    %6931 = vmatpush1.xpose.msra.mxu0 0.0
    %6932 = vmatprep.subr.mxu0 0.0
    %6933 = vmatpush1.xpose.msra.mxu0 0.0
    %6934 = vmatprep.subr.mxu0 0.0
    %6935 = vmatpush1.xpose.msra.mxu0 0.0
    %6936 = vmatprep.subr.mxu0 0.0
    %6937 = vmatpush1.xpose.msra.mxu0 0.0
    %6938 = vmatprep.subr.mxu0 0.0
    %6939 = vmatpush1.xpose.msra.mxu0 0.0
    %6940 = vmatprep.subr.mxu0 0.0
    %6941 = vmatpush1.xpose.msra.mxu0 0.0
    %6942 = vmatprep.subr.mxu0 0.0
    %6943 = vmatpush1.xpose.msra.mxu0 0.0
    %6944 = vmatprep.subr.mxu0 0.0
    %6945 = vmatpush1.xpose.msra.mxu0 0.0
    %6946 = vmatprep.subr.mxu0 0.0
    %6947 = vmatpush1.xpose.msra.mxu0 0.0
    %6948 = vmatprep.subr.mxu0 0.0
    %6949 = vmatpush1.xpose.msra.mxu0 0.0
    %6950 = vmatprep.subr.mxu0 0.0
    %6951 = vmatpush1.xpose.msra.mxu0 0.0
    %6952 = vmatprep.subr.mxu0 0.0
    %6953 = vmatpush1.xpose.msra.mxu0 0.0
    %6954 = vmatprep.subr.mxu0 0.0
    %6955 = vmatpush1.xpose.msra.mxu0 0.0
    %6956 = vmatprep.subr.mxu0 0.0
    %6957 = vmatpush1.xpose.msra.mxu0 0.0
    %6958 = vmatprep.subr.mxu0 0.0
    %6959 = vmatpush1.xpose.msra.mxu0 0.0
    %6960 = vmatprep.subr.mxu0 0.0
    %6961 = vmatpush1.xpose.msra.mxu0 0.0
    %6962 = vmatprep.subr.mxu0 0.0
    %6963 = vmatpush1.xpose.msra.mxu0 0.0
    %6964 = vmatprep.mubr.f32.mxu0 0.0
    %6965 = vmatmul.mubr.f32.gmra.mrb[0].mxu0 %v6892
    %v6966 = vpop.f32.mrb[0].mxu0
    %v6967 = vadd.f32 0.0, %v6966
    %v6968 = vpop.f32.mrb[0].mxu0
    %6969 = vmatprep.mubr.f32.mxu0 0.0
    %6970 = vmatmul.mubr.f32.gmra.mrb[0].mxu0 %v6894
    %v6971 = vpop.f32.mrb[0].mxu0
    %v6972 = vadd.f32 0.0, %v6971
    %v6973 = vpop.f32.mrb[0].mxu0
    %6974 = vdwg.mxu0
    %6975 = vrot.lane.b32.xlu0 %v6711, 96
    %v6976 = vpop.permute.xlu0 %6975
    %6977 = vrot.lane.b32.xlu0 %v6713, 96
    %v6978 = vpop.permute.xlu0 %6977
    %v6979 = vsel %vm266, %v6711, 0
    %v6981 = vsel %vm266, %v6713, 0
    %v6983 = vsel %vm266, %v6976, 0
    %v6985 = vsel %vm266, %v6978, 0
    %6987 = vmatprep.subr.mxu0 0.0
    %6988 = vmatpush1.xpose.msra.mxu0 %v6983
    %6989 = vmatprep.subr.mxu0 0.0
    %6990 = vmatpush1.xpose.msra.mxu0 %v6985
    %6991 = vmatprep.subr.mxu0 0.0
    %6992 = vmatpush1.xpose.msra.mxu0 0.0
    %6993 = vmatprep.subr.mxu0 0.0
    %6994 = vmatpush1.xpose.msra.mxu0 0.0
    %6995 = vmatprep.subr.mxu0 0.0
    %6996 = vmatpush1.xpose.msra.mxu0 0.0
    %6997 = vmatprep.subr.mxu0 0.0
    %6998 = vmatpush1.xpose.msra.mxu0 0.0
    %6999 = vmatprep.subr.mxu0 0.0
    %7000 = vmatpush1.xpose.msra.mxu0 0.0
    %7001 = vmatprep.subr.mxu0 0.0
    %7002 = vmatpush1.xpose.msra.mxu0 0.0
    %7003 = vmatprep.subr.mxu0 0.0
    %7004 = vmatpush1.xpose.msra.mxu0 0.0
    %7005 = vmatprep.subr.mxu0 0.0
    %7006 = vmatpush1.xpose.msra.mxu0 0.0
    %7007 = vmatprep.subr.mxu0 0.0
    %7008 = vmatpush1.xpose.msra.mxu0 0.0
    %7009 = vmatprep.subr.mxu0 0.0
    %7010 = vmatpush1.xpose.msra.mxu0 0.0
    %7011 = vmatprep.subr.mxu0 0.0
    %7012 = vmatpush1.xpose.msra.mxu0 0.0
    %7013 = vmatprep.subr.mxu0 0.0
    %7014 = vmatpush1.xpose.msra.mxu0 0.0
    %7015 = vmatprep.subr.mxu0 0.0
    %7016 = vmatpush1.xpose.msra.mxu0 0.0
    %7017 = vmatprep.subr.mxu0 0.0
    %7018 = vmatpush1.xpose.msra.mxu0 0.0
    %7019 = vmatprep.subr.mxu0 0.0
    %7020 = vmatpush1.xpose.msra.mxu0 0.0
    %7021 = vmatprep.subr.mxu0 0.0
    %7022 = vmatpush1.xpose.msra.mxu0 0.0
    %7023 = vmatprep.subr.mxu0 0.0
    %7024 = vmatpush1.xpose.msra.mxu0 0.0
    %7025 = vmatprep.subr.mxu0 0.0
    %7026 = vmatpush1.xpose.msra.mxu0 0.0
    %7027 = vmatprep.subr.mxu0 0.0
    %7028 = vmatpush1.xpose.msra.mxu0 0.0
    %7029 = vmatprep.subr.mxu0 0.0
    %7030 = vmatpush1.xpose.msra.mxu0 0.0
    %7031 = vmatprep.subr.mxu0 0.0
    %7032 = vmatpush1.xpose.msra.mxu0 0.0
    %7033 = vmatprep.subr.mxu0 0.0
    %7034 = vmatpush1.xpose.msra.mxu0 0.0
    %7035 = vmatprep.subr.mxu0 0.0
    %7036 = vmatpush1.xpose.msra.mxu0 0.0
    %7037 = vmatprep.subr.mxu0 0.0
    %7038 = vmatpush1.xpose.msra.mxu0 0.0
    %7039 = vmatprep.subr.mxu0 0.0
    %7040 = vmatpush1.xpose.msra.mxu0 0.0
    %7041 = vmatprep.subr.mxu0 0.0
    %7042 = vmatpush1.xpose.msra.mxu0 0.0
    %7043 = vmatprep.subr.mxu0 0.0
    %7044 = vmatpush1.xpose.msra.mxu0 0.0
    %7045 = vmatprep.subr.mxu0 0.0
    %7046 = vmatpush1.xpose.msra.mxu0 0.0
    %7047 = vmatprep.subr.mxu0 0.0
    %7048 = vmatpush1.xpose.msra.mxu0 0.0
    %7049 = vmatprep.subr.mxu0 0.0
    %7050 = vmatpush1.xpose.msra.mxu0 0.0
    %7051 = vmatprep.mubr.f32.mxu0 0.0
    %7052 = vmatmul.mubr.f32.gmra.mrb[0].mxu0 %v6979
    %v7053 = vpop.f32.mrb[0].mxu0
    %v7054 = vadd.f32 0.0, %v7053
    %v7055 = vpop.f32.mrb[0].mxu0
    %7056 = vmatprep.mubr.f32.mxu0 0.0
    %7057 = vmatmul.mubr.f32.gmra.mrb[0].mxu0 %v6981
    %v7058 = vpop.f32.mrb[0].mxu0
    %v7059 = vadd.f32 0.0, %v7058
    %v7060 = vpop.f32.mrb[0].mxu0
    %7061 = vdwg.mxu0
    %v7062 = vmul.f32 %v6793, 0.35355338
    %v7063 = vmul.f32 %v6798, 0.35355338
    %v7064 = vmul.f32 %v6880, 0.35355338
    %v7065 = vmul.f32 %v6885, 0.35355338
    %v7066 = vmul.f32 %v6967, 0.35355338
    %v7067 = vmul.f32 %v6972, 0.35355338
    %v7068 = vmul.f32 %v7054, 0.35355338
    %v7069 = vmul.f32 %v7059, 0.35355338
    %v7070 = vadd.f32 %v7062, %v132
    %v7071 = vadd.f32 %v7063, %v133
    %v7072 = vadd.f32 %v7064, %v132
    %v7073 = vadd.f32 %v7065, %v133
    %v7074 = vadd.f32 %v7066, %v132
    %v7075 = vadd.f32 %v7067, %v133
    %v7076 = vadd.f32 %v7068, %v132
    %v7077 = vadd.f32 %v7069, %v133
    %v7078 = vsel %vm627, %v7070, -inf
    %7079 = vmax.xlane.f32.xlu0 %v7078
    %v7080 = vpop.xlane.xlu0 %7079
    %v7081 = vsel %vm627, %v7071, -inf
    %7082 = vmax.xlane.f32.xlu0 %v7081
    %v7083 = vpop.xlane.xlu0 %7082
    %v7084 = vsel %vm627, %v7072, -inf
    %7085 = vmax.xlane.f32.xlu0 %v7084
    %v7086 = vpop.xlane.xlu0 %7085
    %v7087 = vsel %vm627, %v7073, -inf
    %7088 = vmax.xlane.f32.xlu0 %v7087
    %v7089 = vpop.xlane.xlu0 %7088
    %v7090 = vsel %vm627, %v7074, -inf
    %7091 = vmax.xlane.f32.xlu0 %v7090
    %v7092 = vpop.xlane.xlu0 %7091
    %v7093 = vsel %vm627, %v7075, -inf
    %7094 = vmax.xlane.f32.xlu0 %v7093
    %v7095 = vpop.xlane.xlu0 %7094
    %v7096 = vsel %vm627, %v7076, -inf
    %7097 = vmax.xlane.f32.xlu0 %v7096
    %v7098 = vpop.xlane.xlu0 %7097
    %v7099 = vsel %vm627, %v7077, -inf
    %7100 = vmax.xlane.f32.xlu0 %v7099
    %v7101 = vpop.xlane.xlu0 %7100
    %v7102 = vsub.f32 %v7070, %v7080
    %v7103 = vsub.f32 %v7071, %v7083
    %v7104 = vsub.f32 %v7072, %v7086
    %v7105 = vsub.f32 %v7073, %v7089
    %v7106 = vsub.f32 %v7074, %v7092
    %v7107 = vsub.f32 %v7075, %v7095
    %v7108 = vsub.f32 %v7076, %v7098
    %v7109 = vsub.f32 %v7077, %v7101
    %v7110 = vmul.f32 %v7102, 1.442695
    %v7111 = vpow.pop %v7110
    %v7112 = vmul.f32 %v7103, 1.442695
    %v7113 = vpow.pop %v7112
    %v7114 = vmul.f32 %v7104, 1.442695
    %v7115 = vpow.pop %v7114
    %v7116 = vmul.f32 %v7105, 1.442695
    %v7117 = vpow.pop %v7116
    %v7118 = vmul.f32 %v7106, 1.442695
    %v7119 = vpow.pop %v7118
    %v7120 = vmul.f32 %v7107, 1.442695
    %v7121 = vpow.pop %v7120
    %v7122 = vmul.f32 %v7108, 1.442695
    %v7123 = vpow.pop %v7122
    %v7124 = vmul.f32 %v7109, 1.442695
    %v7125 = vpow.pop %v7124
    %v7126 = vsel %vm627, %v7111, 0.0
    %7127 = vadd.xlane.f32.xlu0 %v7126
    %v7128 = vpop.xlane.xlu0 %7127
    %v7129 = vsel %vm627, %v7113, 0.0
    %7130 = vadd.xlane.f32.xlu0 %v7129
    %v7131 = vpop.xlane.xlu0 %7130
    %v7132 = vsel %vm627, %v7115, 0.0
    %7133 = vadd.xlane.f32.xlu0 %v7132
    %v7134 = vpop.xlane.xlu0 %7133
    %v7135 = vsel %vm627, %v7117, 0.0
    %7136 = vadd.xlane.f32.xlu0 %v7135
    %v7137 = vpop.xlane.xlu0 %7136
    %v7138 = vsel %vm627, %v7119, 0.0
    %7139 = vadd.xlane.f32.xlu0 %v7138
    %v7140 = vpop.xlane.xlu0 %7139
    %v7141 = vsel %vm627, %v7121, 0.0
    %7142 = vadd.xlane.f32.xlu0 %v7141
    %v7143 = vpop.xlane.xlu0 %7142
    %v7144 = vsel %vm627, %v7123, 0.0
    %7145 = vadd.xlane.f32.xlu0 %v7144
    %v7146 = vpop.xlane.xlu0 %7145
    %v7147 = vsel %vm627, %v7125, 0.0
    %7148 = vadd.xlane.f32.xlu0 %v7147
    %v7149 = vpop.xlane.xlu0 %7148
    %v7150 = vrcp.pop %v7128
    %v7151 = vmul.f32 %v7111, %v7150
    %v7152 = vrcp.pop %v7131
    %v7153 = vmul.f32 %v7113, %v7152
    %v7154 = vrcp.pop %v7134
    %v7155 = vmul.f32 %v7115, %v7154
    %v7156 = vrcp.pop %v7137
    %v7157 = vmul.f32 %v7117, %v7156
    %v7158 = vrcp.pop %v7140
    %v7159 = vmul.f32 %v7119, %v7158
    %v7160 = vrcp.pop %v7143
    %v7161 = vmul.f32 %v7121, %v7160
    %v7162 = vrcp.pop %v7146
    %v7163 = vmul.f32 %v7123, %v7162
    %v7164 = vrcp.pop %v7149
    %v7165 = vmul.f32 %v7125, %v7164
    %7166 = vrot.lane.b32.xlu0 %v6694, 64
    %v7167 = vpop.permute.xlu0 %7166
    %7168 = vrot.lane.b32.xlu0 %v6697, 64
    %v7169 = vpop.permute.xlu0 %7168
    %v7173 = vsel %vm627, %v7151, 0
    %v7176 = vsel %vm627, %v7153, 0
    %7178 = vmatprep.subr.mxu0 0.0
    %7179 = vmatpush1.msra.mxu0 %v7167
    %7180 = vmatprep.subr.mxu0 0.0
    %7181 = vmatpush1.msra.mxu0 %v7169
    %7182 = vmatprep.subr.mxu0 0.0
    %7183 = vmatpush1.msra.mxu0 0.0
    %7184 = vmatprep.subr.mxu0 0.0
    %7185 = vmatpush1.msra.mxu0 0.0
    %7186 = vmatprep.subr.mxu0 0.0
    %7187 = vmatpush1.msra.mxu0 0.0
    %7188 = vmatprep.subr.mxu0 0.0
    %7189 = vmatpush1.msra.mxu0 0.0
    %7190 = vmatprep.subr.mxu0 0.0
    %7191 = vmatpush1.msra.mxu0 0.0
    %7192 = vmatprep.subr.mxu0 0.0
    %7193 = vmatpush1.msra.mxu0 0.0
    %7194 = vmatprep.subr.mxu0 0.0
    %7195 = vmatpush1.msra.mxu0 0.0
    %7196 = vmatprep.subr.mxu0 0.0
    %7197 = vmatpush1.msra.mxu0 0.0
    %7198 = vmatprep.subr.mxu0 0.0
    %7199 = vmatpush1.msra.mxu0 0.0
    %7200 = vmatprep.subr.mxu0 0.0
    %7201 = vmatpush1.msra.mxu0 0.0
    %7202 = vmatprep.subr.mxu0 0.0
    %7203 = vmatpush1.msra.mxu0 0.0
    %7204 = vmatprep.subr.mxu0 0.0
    %7205 = vmatpush1.msra.mxu0 0.0
    %7206 = vmatprep.subr.mxu0 0.0
    %7207 = vmatpush1.msra.mxu0 0.0
    %7208 = vmatprep.subr.mxu0 0.0
    %7209 = vmatpush1.msra.mxu0 0.0
    %7210 = vmatprep.subr.mxu0 0.0
    %7211 = vmatpush1.msra.mxu0 0.0
    %7212 = vmatprep.subr.mxu0 0.0
    %7213 = vmatpush1.msra.mxu0 0.0
    %7214 = vmatprep.subr.mxu0 0.0
    %7215 = vmatpush1.msra.mxu0 0.0
    %7216 = vmatprep.subr.mxu0 0.0
    %7217 = vmatpush1.msra.mxu0 0.0
    %7218 = vmatprep.subr.mxu0 0.0
    %7219 = vmatpush1.msra.mxu0 0.0
    %7220 = vmatprep.subr.mxu0 0.0
    %7221 = vmatpush1.msra.mxu0 0.0
    %7222 = vmatprep.subr.mxu0 0.0
    %7223 = vmatpush1.msra.mxu0 0.0
    %7224 = vmatprep.subr.mxu0 0.0
    %7225 = vmatpush1.msra.mxu0 0.0
    %7226 = vmatprep.subr.mxu0 0.0
    %7227 = vmatpush1.msra.mxu0 0.0
    %7228 = vmatprep.subr.mxu0 0.0
    %7229 = vmatpush1.msra.mxu0 0.0
    %7230 = vmatprep.subr.mxu0 0.0
    %7231 = vmatpush1.msra.mxu0 0.0
    %7232 = vmatprep.subr.mxu0 0.0
    %7233 = vmatpush1.msra.mxu0 0.0
    %7234 = vmatprep.subr.mxu0 0.0
    %7235 = vmatpush1.msra.mxu0 0.0
    %7236 = vmatprep.subr.mxu0 0.0
    %7237 = vmatpush1.msra.mxu0 0.0
    %7238 = vmatprep.subr.mxu0 0.0
    %7239 = vmatpush1.msra.mxu0 0.0
    %7240 = vmatprep.subr.mxu0 0.0
    %7241 = vmatpush1.msra.mxu0 0.0
    %7242 = vmatprep.mubr.f32.mxu0 0.0
    %7243 = vmatmul.mubr.f32.gmra.mrb[0].mxu0 %v7173
    %v7244 = vpop.f32.mrb[0].mxu0
    %v7245 = vadd.f32 0.0, %v7244
    %v7246 = vpop.f32.mrb[0].mxu0
    %7247 = vmatprep.mubr.f32.mxu0 0.0
    %7248 = vmatmul.mubr.f32.gmra.mrb[0].mxu0 %v7176
    %v7249 = vpop.f32.mrb[0].mxu0
    %v7250 = vadd.f32 0.0, %v7249
    %v7251 = vpop.f32.mrb[0].mxu0
    %7252 = vdwg.mxu0
    %7253 = vrot.lane.b32.xlu0 %v6703, 64
    %v7254 = vpop.permute.xlu0 %7253
    %7255 = vrot.lane.b32.xlu0 %v6705, 64
    %v7256 = vpop.permute.xlu0 %7255
    %v7260 = vsel %vm627, %v7155, 0
    %v7263 = vsel %vm627, %v7157, 0
    %7265 = vmatprep.subr.mxu0 0.0
    %7266 = vmatpush1.msra.mxu0 %v7254
    %7267 = vmatprep.subr.mxu0 0.0
    %7268 = vmatpush1.msra.mxu0 %v7256
    %7269 = vmatprep.subr.mxu0 0.0
    %7270 = vmatpush1.msra.mxu0 0.0
    %7271 = vmatprep.subr.mxu0 0.0
    %7272 = vmatpush1.msra.mxu0 0.0
    %7273 = vmatprep.subr.mxu0 0.0
    %7274 = vmatpush1.msra.mxu0 0.0
    %7275 = vmatprep.subr.mxu0 0.0
    %7276 = vmatpush1.msra.mxu0 0.0
    %7277 = vmatprep.subr.mxu0 0.0
    %7278 = vmatpush1.msra.mxu0 0.0
    %7279 = vmatprep.subr.mxu0 0.0
    %7280 = vmatpush1.msra.mxu0 0.0
    %7281 = vmatprep.subr.mxu0 0.0
    %7282 = vmatpush1.msra.mxu0 0.0
    %7283 = vmatprep.subr.mxu0 0.0
    %7284 = vmatpush1.msra.mxu0 0.0
    %7285 = vmatprep.subr.mxu0 0.0
    %7286 = vmatpush1.msra.mxu0 0.0
    %7287 = vmatprep.subr.mxu0 0.0
    %7288 = vmatpush1.msra.mxu0 0.0
    %7289 = vmatprep.subr.mxu0 0.0
    %7290 = vmatpush1.msra.mxu0 0.0
    %7291 = vmatprep.subr.mxu0 0.0
    %7292 = vmatpush1.msra.mxu0 0.0
    %7293 = vmatprep.subr.mxu0 0.0
    %7294 = vmatpush1.msra.mxu0 0.0
    %7295 = vmatprep.subr.mxu0 0.0
    %7296 = vmatpush1.msra.mxu0 0.0
    %7297 = vmatprep.subr.mxu0 0.0
    %7298 = vmatpush1.msra.mxu0 0.0
    %7299 = vmatprep.subr.mxu0 0.0
    %7300 = vmatpush1.msra.mxu0 0.0
    %7301 = vmatprep.subr.mxu0 0.0
    %7302 = vmatpush1.msra.mxu0 0.0
    %7303 = vmatprep.subr.mxu0 0.0
    %7304 = vmatpush1.msra.mxu0 0.0
    %7305 = vmatprep.subr.mxu0 0.0
    %7306 = vmatpush1.msra.mxu0 0.0
    %7307 = vmatprep.subr.mxu0 0.0
    %7308 = vmatpush1.msra.mxu0 0.0
    %7309 = vmatprep.subr.mxu0 0.0
    %7310 = vmatpush1.msra.mxu0 0.0
    %7311 = vmatprep.subr.mxu0 0.0
    %7312 = vmatpush1.msra.mxu0 0.0
    %7313 = vmatprep.subr.mxu0 0.0
    %7314 = vmatpush1.msra.mxu0 0.0
    %7315 = vmatprep.subr.mxu0 0.0
    %7316 = vmatpush1.msra.mxu0 0.0
    %7317 = vmatprep.subr.mxu0 0.0
    %7318 = vmatpush1.msra.mxu0 0.0
    %7319 = vmatprep.subr.mxu0 0.0
    %7320 = vmatpush1.msra.mxu0 0.0
    %7321 = vmatprep.subr.mxu0 0.0
    %7322 = vmatpush1.msra.mxu0 0.0
    %7323 = vmatprep.subr.mxu0 0.0
    %7324 = vmatpush1.msra.mxu0 0.0
    %7325 = vmatprep.subr.mxu0 0.0
    %7326 = vmatpush1.msra.mxu0 0.0
    %7327 = vmatprep.subr.mxu0 0.0
    %7328 = vmatpush1.msra.mxu0 0.0
    %7329 = vmatprep.mubr.f32.mxu0 0.0
    %7330 = vmatmul.mubr.f32.gmra.mrb[0].mxu0 %v7260
    %v7331 = vpop.f32.mrb[0].mxu0
    %v7332 = vadd.f32 0.0, %v7331
    %v7333 = vpop.f32.mrb[0].mxu0
    %7334 = vmatprep.mubr.f32.mxu0 0.0
    %7335 = vmatmul.mubr.f32.gmra.mrb[0].mxu0 %v7263
    %v7336 = vpop.f32.mrb[0].mxu0
    %v7337 = vadd.f32 0.0, %v7336
    %v7338 = vpop.f32.mrb[0].mxu0
    %7339 = vdwg.mxu0
    %7340 = vrot.lane.b32.xlu0 %v6707, 64
    %v7341 = vpop.permute.xlu0 %7340
    %7342 = vrot.lane.b32.xlu0 %v6709, 64
    %v7343 = vpop.permute.xlu0 %7342
    %v7347 = vsel %vm627, %v7159, 0
    %v7350 = vsel %vm627, %v7161, 0
    %7352 = vmatprep.subr.mxu0 0.0
    %7353 = vmatpush1.msra.mxu0 %v7341
    %7354 = vmatprep.subr.mxu0 0.0
    %7355 = vmatpush1.msra.mxu0 %v7343
    %7356 = vmatprep.subr.mxu0 0.0
    %7357 = vmatpush1.msra.mxu0 0.0
    %7358 = vmatprep.subr.mxu0 0.0
    %7359 = vmatpush1.msra.mxu0 0.0
    %7360 = vmatprep.subr.mxu0 0.0
    %7361 = vmatpush1.msra.mxu0 0.0
    %7362 = vmatprep.subr.mxu0 0.0
    %7363 = vmatpush1.msra.mxu0 0.0
    %7364 = vmatprep.subr.mxu0 0.0
    %7365 = vmatpush1.msra.mxu0 0.0
    %7366 = vmatprep.subr.mxu0 0.0
    %7367 = vmatpush1.msra.mxu0 0.0
    %7368 = vmatprep.subr.mxu0 0.0
    %7369 = vmatpush1.msra.mxu0 0.0
    %7370 = vmatprep.subr.mxu0 0.0
    %7371 = vmatpush1.msra.mxu0 0.0
    %7372 = vmatprep.subr.mxu0 0.0
    %7373 = vmatpush1.msra.mxu0 0.0
    %7374 = vmatprep.subr.mxu0 0.0
    %7375 = vmatpush1.msra.mxu0 0.0
    %7376 = vmatprep.subr.mxu0 0.0
    %7377 = vmatpush1.msra.mxu0 0.0
    %7378 = vmatprep.subr.mxu0 0.0
    %7379 = vmatpush1.msra.mxu0 0.0
    %7380 = vmatprep.subr.mxu0 0.0
    %7381 = vmatpush1.msra.mxu0 0.0
    %7382 = vmatprep.subr.mxu0 0.0
    %7383 = vmatpush1.msra.mxu0 0.0
    %7384 = vmatprep.subr.mxu0 0.0
    %7385 = vmatpush1.msra.mxu0 0.0
    %7386 = vmatprep.subr.mxu0 0.0
    %7387 = vmatpush1.msra.mxu0 0.0
    %7388 = vmatprep.subr.mxu0 0.0
    %7389 = vmatpush1.msra.mxu0 0.0
    %7390 = vmatprep.subr.mxu0 0.0
    %7391 = vmatpush1.msra.mxu0 0.0
    %7392 = vmatprep.subr.mxu0 0.0
    %7393 = vmatpush1.msra.mxu0 0.0
    %7394 = vmatprep.subr.mxu0 0.0
    %7395 = vmatpush1.msra.mxu0 0.0
    %7396 = vmatprep.subr.mxu0 0.0
    %7397 = vmatpush1.msra.mxu0 0.0
    %7398 = vmatprep.subr.mxu0 0.0
    %7399 = vmatpush1.msra.mxu0 0.0
    %7400 = vmatprep.subr.mxu0 0.0
    %7401 = vmatpush1.msra.mxu0 0.0
    %7402 = vmatprep.subr.mxu0 0.0
    %7403 = vmatpush1.msra.mxu0 0.0
    %7404 = vmatprep.subr.mxu0 0.0
    %7405 = vmatpush1.msra.mxu0 0.0
    %7406 = vmatprep.subr.mxu0 0.0
    %7407 = vmatpush1.msra.mxu0 0.0
    %7408 = vmatprep.subr.mxu0 0.0
    %7409 = vmatpush1.msra.mxu0 0.0
    %7410 = vmatprep.subr.mxu0 0.0
    %7411 = vmatpush1.msra.mxu0 0.0
    %7412 = vmatprep.subr.mxu0 0.0
    %7413 = vmatpush1.msra.mxu0 0.0
    %7414 = vmatprep.subr.mxu0 0.0
    %7415 = vmatpush1.msra.mxu0 0.0
    %7416 = vmatprep.mubr.f32.mxu0 0.0
    %7417 = vmatmul.mubr.f32.gmra.mrb[0].mxu0 %v7347
    %v7418 = vpop.f32.mrb[0].mxu0
    %v7419 = vadd.f32 0.0, %v7418
    %v7420 = vpop.f32.mrb[0].mxu0
    %7421 = vmatprep.mubr.f32.mxu0 0.0
    %7422 = vmatmul.mubr.f32.gmra.mrb[0].mxu0 %v7350
    %v7423 = vpop.f32.mrb[0].mxu0
    %v7424 = vadd.f32 0.0, %v7423
    %v7425 = vpop.f32.mrb[0].mxu0
    %7426 = vdwg.mxu0
    %7427 = vrot.lane.b32.xlu0 %v6711, 64
    %v7428 = vpop.permute.xlu0 %7427
    %7429 = vrot.lane.b32.xlu0 %v6713, 64
    %v7430 = vpop.permute.xlu0 %7429
    %v7434 = vsel %vm627, %v7163, 0
    %v7437 = vsel %vm627, %v7165, 0
    %7439 = vmatprep.subr.mxu0 0.0
    %7440 = vmatpush1.msra.mxu0 %v7428
    %7441 = vmatprep.subr.mxu0 0.0
    %7442 = vmatpush1.msra.mxu0 %v7430
    %7443 = vmatprep.subr.mxu0 0.0
    %7444 = vmatpush1.msra.mxu0 0.0
    %7445 = vmatprep.subr.mxu0 0.0
    %7446 = vmatpush1.msra.mxu0 0.0
    %7447 = vmatprep.subr.mxu0 0.0
    %7448 = vmatpush1.msra.mxu0 0.0
    %7449 = vmatprep.subr.mxu0 0.0
    %7450 = vmatpush1.msra.mxu0 0.0
    %7451 = vmatprep.subr.mxu0 0.0
    %7452 = vmatpush1.msra.mxu0 0.0
    %7453 = vmatprep.subr.mxu0 0.0
    %7454 = vmatpush1.msra.mxu0 0.0
    %7455 = vmatprep.subr.mxu0 0.0
    %7456 = vmatpush1.msra.mxu0 0.0
    %7457 = vmatprep.subr.mxu0 0.0
    %7458 = vmatpush1.msra.mxu0 0.0
    %7459 = vmatprep.subr.mxu0 0.0
    %7460 = vmatpush1.msra.mxu0 0.0
    %7461 = vmatprep.subr.mxu0 0.0
    %7462 = vmatpush1.msra.mxu0 0.0
    %7463 = vmatprep.subr.mxu0 0.0
    %7464 = vmatpush1.msra.mxu0 0.0
    %7465 = vmatprep.subr.mxu0 0.0
    %7466 = vmatpush1.msra.mxu0 0.0
    %7467 = vmatprep.subr.mxu0 0.0
    %7468 = vmatpush1.msra.mxu0 0.0
    %7469 = vmatprep.subr.mxu0 0.0
    %7470 = vmatpush1.msra.mxu0 0.0
    %7471 = vmatprep.subr.mxu0 0.0
    %7472 = vmatpush1.msra.mxu0 0.0
    %7473 = vmatprep.subr.mxu0 0.0
    %7474 = vmatpush1.msra.mxu0 0.0
    %7475 = vmatprep.subr.mxu0 0.0
    %7476 = vmatpush1.msra.mxu0 0.0
    %7477 = vmatprep.subr.mxu0 0.0
    %7478 = vmatpush1.msra.mxu0 0.0
    %7479 = vmatprep.subr.mxu0 0.0
    %7480 = vmatpush1.msra.mxu0 0.0
    %7481 = vmatprep.subr.mxu0 0.0
    %7482 = vmatpush1.msra.mxu0 0.0
    %7483 = vmatprep.subr.mxu0 0.0
    %7484 = vmatpush1.msra.mxu0 0.0
    %7485 = vmatprep.subr.mxu0 0.0
    %7486 = vmatpush1.msra.mxu0 0.0
    %7487 = vmatprep.subr.mxu0 0.0
    %7488 = vmatpush1.msra.mxu0 0.0
    %7489 = vmatprep.subr.mxu0 0.0
    %7490 = vmatpush1.msra.mxu0 0.0
    %7491 = vmatprep.subr.mxu0 0.0
    %7492 = vmatpush1.msra.mxu0 0.0
    %7493 = vmatprep.subr.mxu0 0.0
    %7494 = vmatpush1.msra.mxu0 0.0
    %7495 = vmatprep.subr.mxu0 0.0
    %7496 = vmatpush1.msra.mxu0 0.0
    %7497 = vmatprep.subr.mxu0 0.0
    %7498 = vmatpush1.msra.mxu0 0.0
    %7499 = vmatprep.subr.mxu0 0.0
    %7500 = vmatpush1.msra.mxu0 0.0
    %7501 = vmatprep.subr.mxu0 0.0
    %7502 = vmatpush1.msra.mxu0 0.0
    %7503 = vmatprep.mubr.f32.mxu0 0.0
    %7504 = vmatmul.mubr.f32.gmra.mrb[0].mxu0 %v7434
    %v7505 = vpop.f32.mrb[0].mxu0
    %v7506 = vadd.f32 0.0, %v7505
    %v7507 = vpop.f32.mrb[0].mxu0
    %7508 = vmatprep.mubr.f32.mxu0 0.0
    %7509 = vmatmul.mubr.f32.gmra.mrb[0].mxu0 %v7437
    %v7510 = vpop.f32.mrb[0].mxu0
    %v7511 = vadd.f32 0.0, %v7510
    %v7512 = vpop.f32.mrb[0].mxu0
    %7513 = vdwg.mxu0
    %7514 = vst.msk [vmem:[#allocation3] sm:$0xff] %vm266, %v7245
    %7515 = vst.msk [vmem:[#allocation3 + $0x8] sm:$0xff] %vm266, %v7250
    %7518 = vrot.lane.b32.xlu0 %v7332, 8
    %v7519 = vpop.permute.xlu0 %7518
    %7520 = vrot.lane.b32.xlu0 %v7337, 8
    %v7521 = vpop.permute.xlu0 %7520
    %7524 = vst.msk [vmem:[#allocation3] sm:$0xff] %vm1074, %v7519
    %7525 = vst.msk [vmem:[#allocation3 + $0x8] sm:$0xff] %vm1074, %v7521
    %7528 = vrot.lane.b32.xlu0 %v7419, 16
    %v7529 = vpop.permute.xlu0 %7528
    %7530 = vrot.lane.b32.xlu0 %v7424, 16
    %v7531 = vpop.permute.xlu0 %7530
    %7534 = vst.msk [vmem:[#allocation3] sm:$0xff] %vm1085, %v7529
    %7535 = vst.msk [vmem:[#allocation3 + $0x8] sm:$0xff] %vm1085, %v7531
    %7538 = vrot.lane.b32.xlu0 %v7506, 24
    %v7539 = vpop.permute.xlu0 %7538
    %7540 = vrot.lane.b32.xlu0 %v7511, 24
    %v7541 = vpop.permute.xlu0 %7540
    %7544 = vst.msk [vmem:[#allocation3] sm:$0xff] %vm1096, %v7539
    %7545 = vst.msk [vmem:[#allocation3 + $0x8] sm:$0xff] %vm1096, %v7541
    %v7546 = vld [vmem:[#allocation3] sm:$0xff]
    %v7547 = vld [vmem:[#allocation3 + $0x8] sm:$0xff]
    %s7548 = scalar_lea.vmem %s7, 80
    %v7549 = vld [vmem:[%s7548] sm:$0xf]
    %v7550 = vld [vmem:[%s7548 + $0x4] sm:$0xf]
    %v7551 = vld [vmem:[%s7548 + $0x8] sm:$0xf]
    %v7552 = vld [vmem:[%s7548 + $0xc] sm:$0xf]
    %v7553 = vpack.c.bf16 %v7547, %v7546
    %v7558 = vunpack.c.l.b16 %v7549
    %v7559 = vunpack.c.l.b16 %v7550
    %v7560 = vunpack.c.l.b16 %v7551
    %v7561 = vunpack.c.l.b16 %v7552
    %v7562 = vpack.c.b16 %v7559, %v7558
    %v7563 = vpack.c.b16 %v7561, %v7560
    %v7567 = vsel %vm136, %v7553, 0
    %7569 = vmatprep.subr.bf16.mxu0 0
    %7570 = vmatpush1.bf16.msra.mxu0 %v7562
    %7571 = vmatprep.subr.bf16.mxu0 0
    %7572 = vmatpush1.bf16.msra.mxu0 %v7563
    %7573 = vmatprep.subr.bf16.mxu0 0
    %7574 = vmatpush1.bf16.msra.mxu0 0
    %7575 = vmatprep.subr.bf16.mxu0 0
    %7576 = vmatpush1.bf16.msra.mxu0 0
    %7577 = vmatprep.subr.bf16.mxu0 0
    %7578 = vmatpush1.bf16.msra.mxu0 0
    %7579 = vmatprep.subr.bf16.mxu0 0
    %7580 = vmatpush1.bf16.msra.mxu0 0
    %7581 = vmatprep.subr.bf16.mxu0 0
    %7582 = vmatpush1.bf16.msra.mxu0 0
    %7583 = vmatprep.subr.bf16.mxu0 0
    %7584 = vmatpush1.bf16.msra.mxu0 0
    %7585 = vmatprep.subr.bf16.mxu0 0
    %7586 = vmatpush1.bf16.msra.mxu0 0
    %7587 = vmatprep.subr.bf16.mxu0 0
    %7588 = vmatpush1.bf16.msra.mxu0 0
    %7589 = vmatprep.subr.bf16.mxu0 0
    %7590 = vmatpush1.bf16.msra.mxu0 0
    %7591 = vmatprep.subr.bf16.mxu0 0
    %7592 = vmatpush1.bf16.msra.mxu0 0
    %7593 = vmatprep.subr.bf16.mxu0 0
    %7594 = vmatpush1.bf16.msra.mxu0 0
    %7595 = vmatprep.subr.bf16.mxu0 0
    %7596 = vmatpush1.bf16.msra.mxu0 0
    %7597 = vmatprep.subr.bf16.mxu0 0
    %7598 = vmatpush1.bf16.msra.mxu0 0
    %7599 = vmatprep.subr.bf16.mxu0 0
    %7600 = vmatpush1.bf16.msra.mxu0 0
    %7601 = vmatprep.mubr.bf16.mxu0 0
    %7602 = vmatmul.mubr.bf16.gmra.mrb[0].mxu0 %v7567
    %v7603 = vpop.f32.mrb[0].mxu0
    %v7604 = vadd.f32 0.0, %v7603
    %v7605 = vpop.f32.mrb[0].mxu0
    %v7606 = vpop.f32.mrb[0].mxu0
    %v7607 = vadd.f32 0.0, %v7606
    %v7608 = vpop.f32.mrb[0].mxu0
    %7609 = vdwg.mxu0
    %v7610 = vadd.f32 %v6582, %v7604
    %v7611 = vadd.f32 %v6583, %v7607
    %s7612 = scalar_lea.vmem %s8, 5
    %v7613 = vld [vmem:[%s7612] sm:$0x1]
    %v7615 = vlaneseq
    %v7616 = vshrl.u32 %v7615, 7
    %v7617 = vsub.s32 0, %v7616
    %v7618 = vrot.slane %v7613, %v7617
    %v7620 = vadd.f32 %v7610, %v7618
    %v7621 = vadd.f32 %v7611, %v7618
    %s7622 = scalar_lea.vmem %s9, 5
    %v7623 = vld [vmem:[%s7622] sm:$0x1]
    %s7624 = scalar_lea.vmem %s10, 5
    %v7625 = vld [vmem:[%s7624] sm:$0x1]
    %v7626 = vsel %vm136, %v7620, 0.0
    %7627 = vadd.xlane.f32.xlu0 %v7626
    %v7628 = vpop.xlane.xlu0 %7627
    %v7629 = vsel %vm136, %v7621, 0.0
    %7630 = vadd.xlane.f32.xlu0 %v7629
    %v7631 = vpop.xlane.xlu0 %7630
    %v7632 = vmul.f32 %v7628, %v143
    %v7633 = vmul.f32 %v7631, %v143
    %v7634 = vsub.f32 %v7620, %v7632
    %v7635 = vsub.f32 %v7621, %v7633
    %v7636 = vmul.f32 %v7634, %v7634
    %v7637 = vmul.f32 %v7635, %v7635
    %v7638 = vsel %vm136, %v7636, 0.0
    %7639 = vadd.xlane.f32.xlu0 %v7638
    %v7640 = vpop.xlane.xlu0 %7639
    %v7641 = vsel %vm136, %v7637, 0.0
    %7642 = vadd.xlane.f32.xlu0 %v7641
    %v7643 = vpop.xlane.xlu0 %7642
    %v7644 = vmul.f32 %v7640, %v143
    %v7645 = vmul.f32 %v7643, %v143
    %v7646 = vadd.f32 %v7644, 1e-05
    %v7647 = vadd.f32 %v7645, 1e-05
    %v7648 = vrsqrt.pop %v7646
    %v7649 = vrsqrt.pop %v7647
    %v7650 = vmul.f32 %v7634, %v7648
    %v7651 = vmul.f32 %v7635, %v7649
    %v7653 = vlaneseq
    %v7654 = vshrl.u32 %v7653, 7
    %v7655 = vsub.s32 0, %v7654
    %v7656 = vrot.slane %v7623, %v7655
    %v7658 = vmul.f32 %v7650, %v7656
    %v7659 = vmul.f32 %v7651, %v7656
    %v7661 = vlaneseq
    %v7662 = vshrl.u32 %v7661, 7
    %v7663 = vsub.s32 0, %v7662
    %v7664 = vrot.slane %v7625, %v7663
    %v7666 = vadd.f32 %v7658, %v7664
    %v7667 = vadd.f32 %v7659, %v7664
    %s7668 = scalar_lea.vmem %s11, 80
    %v7669 = vld [vmem:[%s7668] sm:$0xf]
    %v7670 = vld [vmem:[%s7668 + $0x4] sm:$0xf]
    %v7671 = vld [vmem:[%s7668 + $0x8] sm:$0xf]
    %v7672 = vld [vmem:[%s7668 + $0xc] sm:$0xf]
    %v7673 = vpack.c.bf16 %v7667, %v7666
    %s7674 = scalar_lea.vmem %s12, 5
    %v7675 = vld [vmem:[%s7674] sm:$0x1]
    %v7677 = vlaneseq
    %v7678 = vshrl.u32 %v7677, 7
    %v7679 = vsub.s32 0, %v7678
    %v7680 = vrot.slane %v7675, %v7679
    %v7686 = vunpack.c.l.b16 %v7669
    %v7687 = vunpack.c.l.b16 %v7670
    %v7688 = vunpack.c.l.b16 %v7671
    %v7689 = vunpack.c.l.b16 %v7672
    %v7690 = vpack.c.b16 %v7687, %v7686
    %v7691 = vpack.c.b16 %v7689, %v7688
    %v7695 = vsel %vm136, %v7673, 0
    %7697 = vmatprep.subr.bf16.mxu0 0
    %7698 = vmatpush1.bf16.msra.mxu0 %v7690
    %7699 = vmatprep.subr.bf16.mxu0 0
    %7700 = vmatpush1.bf16.msra.mxu0 %v7691
    %7701 = vmatprep.subr.bf16.mxu0 0
    %7702 = vmatpush1.bf16.msra.mxu0 0
    %7703 = vmatprep.subr.bf16.mxu0 0
    %7704 = vmatpush1.bf16.msra.mxu0 0
    %7705 = vmatprep.subr.bf16.mxu0 0
    %7706 = vmatpush1.bf16.msra.mxu0 0
    %7707 = vmatprep.subr.bf16.mxu0 0
    %7708 = vmatpush1.bf16.msra.mxu0 0
    %7709 = vmatprep.subr.bf16.mxu0 0
    %7710 = vmatpush1.bf16.msra.mxu0 0
    %7711 = vmatprep.subr.bf16.mxu0 0
    %7712 = vmatpush1.bf16.msra.mxu0 0
    %7713 = vmatprep.subr.bf16.mxu0 0
    %7714 = vmatpush1.bf16.msra.mxu0 0
    %7715 = vmatprep.subr.bf16.mxu0 0
    %7716 = vmatpush1.bf16.msra.mxu0 0
    %7717 = vmatprep.subr.bf16.mxu0 0
    %7718 = vmatpush1.bf16.msra.mxu0 0
    %7719 = vmatprep.subr.bf16.mxu0 0
    %7720 = vmatpush1.bf16.msra.mxu0 0
    %7721 = vmatprep.subr.bf16.mxu0 0
    %7722 = vmatpush1.bf16.msra.mxu0 0
    %7723 = vmatprep.subr.bf16.mxu0 0
    %7724 = vmatpush1.bf16.msra.mxu0 0
    %7725 = vmatprep.subr.bf16.mxu0 0
    %7726 = vmatpush1.bf16.msra.mxu0 0
    %7727 = vmatprep.subr.bf16.mxu0 0
    %7728 = vmatpush1.bf16.msra.mxu0 0
    %7729 = vmatprep.mubr.bf16.mxu0 0
    %7730 = vmatmul.mubr.bf16.gmra.mrb[0].mxu0 %v7695
    %v7731 = vpop.f32.mrb[0].mxu0
    %v7732 = vadd.f32 %v7680, %v7731
    %v7733 = vpop.f32.mrb[0].mxu0
    %v7734 = vpop.f32.mrb[0].mxu0
    %v7735 = vadd.f32 %v7680, %v7734
    %v7736 = vpop.f32.mrb[0].mxu0
    %7737 = vdwg.mxu0
    %v7738 = vmul.f32 %v7732, 0.5
    %v7739 = vmul.f32 %v7735, 0.5
    %v7740 = vmul.f32 %v7732, 0.044715
    %v7741 = vmul.f32 %v7735, 0.044715
    %v7742 = vmul.f32 %v7740, %v7732
    %v7743 = vmul.f32 %v7741, %v7735
    %v7744 = vmul.f32 %v7742, %v7732
    %v7745 = vmul.f32 %v7743, %v7735
    %v7746 = vadd.f32 %v7732, %v7744
    %v7747 = vadd.f32 %v7735, %v7745
    %v7748 = vmul.f32 %v7746, 0.7978846
    %v7749 = vmul.f32 %v7747, 0.7978846
    %v7750 = vtanh.pop %v7748
    %v7751 = vtanh.pop %v7749
    %v7752 = vadd.f32 %v7750, 1.0
    %v7753 = vadd.f32 %v7751, 1.0
    %v7754 = vmul.f32 %v7738, %v7752
    %v7755 = vmul.f32 %v7739, %v7753
    %s7756 = scalar_lea.vmem %s13, 320
    %v7757 = vld [vmem:[%s7756] sm:$0xf]
    %v7758 = vld [vmem:[%s7756 + $0x4] sm:$0xf]
    %v7759 = vld [vmem:[%s7756 + $0x8] sm:$0xf]
    %v7760 = vld [vmem:[%s7756 + $0xc] sm:$0xf]
    %v7761 = vld [vmem:[%s7756 + $0x10] sm:$0xf]
    %v7762 = vld [vmem:[%s7756 + $0x14] sm:$0xf]
    %v7763 = vld [vmem:[%s7756 + $0x18] sm:$0xf]
    %v7764 = vld [vmem:[%s7756 + $0x1c] sm:$0xf]
    %v7765 = vld [vmem:[%s7756 + $0x20] sm:$0xf]
    %v7766 = vld [vmem:[%s7756 + $0x24] sm:$0xf]
    %v7767 = vld [vmem:[%s7756 + $0x28] sm:$0xf]
    %v7768 = vld [vmem:[%s7756 + $0x2c] sm:$0xf]
    %v7769 = vld [vmem:[%s7756 + $0x30] sm:$0xf]
    %v7770 = vld [vmem:[%s7756 + $0x34] sm:$0xf]
    %v7771 = vld [vmem:[%s7756 + $0x38] sm:$0xf]
    %v7772 = vld [vmem:[%s7756 + $0x3c] sm:$0xf]
    %v7773 = vpack.c.bf16 %v7755, %v7754
    %v7790 = vunpack.c.l.b16 %v7757
    %v7791 = vunpack.c.l.b16 %v7758
    %v7792 = vunpack.c.l.b16 %v7759
    %v7793 = vunpack.c.l.b16 %v7760
    %v7794 = vunpack.c.l.b16 %v7761
    %v7795 = vunpack.c.l.b16 %v7762
    %v7796 = vunpack.c.l.b16 %v7763
    %v7797 = vunpack.c.l.b16 %v7764
    %v7798 = vunpack.c.l.b16 %v7765
    %v7799 = vunpack.c.l.b16 %v7766
    %v7800 = vunpack.c.l.b16 %v7767
    %v7801 = vunpack.c.l.b16 %v7768
    %v7802 = vunpack.c.l.b16 %v7769
    %v7803 = vunpack.c.l.b16 %v7770
    %v7804 = vunpack.c.l.b16 %v7771
    %v7805 = vunpack.c.l.b16 %v7772
    %v7806 = vpack.c.b16 %v7791, %v7790
    %v7807 = vpack.c.b16 %v7793, %v7792
    %v7808 = vpack.c.b16 %v7795, %v7794
    %v7809 = vpack.c.b16 %v7797, %v7796
    %v7810 = vpack.c.b16 %v7799, %v7798
    %v7811 = vpack.c.b16 %v7801, %v7800
    %v7812 = vpack.c.b16 %v7803, %v7802
    %v7813 = vpack.c.b16 %v7805, %v7804
    %7822 = vmatprep.subr.bf16.mxu0 0
    %7823 = vmatpush1.bf16.msra.mxu0 %v7806
    %7824 = vmatprep.subr.bf16.mxu0 0
    %7825 = vmatpush1.bf16.msra.mxu0 %v7807
    %7826 = vmatprep.subr.bf16.mxu0 0
    %7827 = vmatpush1.bf16.msra.mxu0 %v7808
    %7828 = vmatprep.subr.bf16.mxu0 0
    %7829 = vmatpush1.bf16.msra.mxu0 %v7809
    %7830 = vmatprep.subr.bf16.mxu0 0
    %7831 = vmatpush1.bf16.msra.mxu0 %v7810
    %7832 = vmatprep.subr.bf16.mxu0 0
    %7833 = vmatpush1.bf16.msra.mxu0 %v7811
    %7834 = vmatprep.subr.bf16.mxu0 0
    %7835 = vmatpush1.bf16.msra.mxu0 %v7812
    %7836 = vmatprep.subr.bf16.mxu0 0
    %7837 = vmatpush1.bf16.msra.mxu0 %v7813
    %7838 = vmatprep.subr.bf16.mxu0 0
    %7839 = vmatpush1.bf16.msra.mxu0 0
    %7840 = vmatprep.subr.bf16.mxu0 0
    %7841 = vmatpush1.bf16.msra.mxu0 0
    %7842 = vmatprep.subr.bf16.mxu0 0
    %7843 = vmatpush1.bf16.msra.mxu0 0
    %7844 = vmatprep.subr.bf16.mxu0 0
    %7845 = vmatpush1.bf16.msra.mxu0 0
    %7846 = vmatprep.subr.bf16.mxu0 0
    %7847 = vmatpush1.bf16.msra.mxu0 0
    %7848 = vmatprep.subr.bf16.mxu0 0
    %7849 = vmatpush1.bf16.msra.mxu0 0
    %7850 = vmatprep.subr.bf16.mxu0 0
    %7851 = vmatpush1.bf16.msra.mxu0 0
    %7852 = vmatprep.subr.bf16.mxu0 0
    %7853 = vmatpush1.bf16.msra.mxu0 0
    %7854 = vmatprep.mubr.bf16.mxu0 0
    %7855 = vmatmul.mubr.bf16.gmra.mrb[0].mxu0 %v7773
    %v7856 = vpop.f32.mrb[0].mxu0
    %v7857 = vadd.f32 0.0, %v7856
    %v7858 = vpop.f32.mrb[0].mxu0
    %v7859 = vpop.f32.mrb[0].mxu0
    %v7860 = vadd.f32 0.0, %v7859
    %v7861 = vpop.f32.mrb[0].mxu0
    %7862 = vdwg.mxu0
    %v7863 = vadd.f32 %v7620, %v7857
    %v7864 = vadd.f32 %v7621, %v7860
    %s7865 = scalar_lea.vmem %s14, 5
    %v7866 = vld [vmem:[%s7865] sm:$0x1]
    %v7868 = vlaneseq
    %v7869 = vshrl.u32 %v7868, 7
    %v7870 = vsub.s32 0, %v7869
    %v7871 = vrot.slane %v7866, %v7870
    %v7873 = vadd.f32 %v7863, %v7871
    %v7874 = vadd.f32 %v7864, %v7871
    %7875 = vst.msk [vmem:[#allocation7] sm:$0xff] %vm136, %v7873
    %7876 = vst.msk [vmem:[#allocation7 + $0x8] sm:$0xff] %vm136, %v7874
    // Predicated region
    $region66: #{tpu_custom_call.1} parent=1 // pred_check
      _
    $region67: #{tpu_custom_call.1} parent=1 // pred_check_branch
      %7878 = sbr.rel (0) target = $region69
    $region68: #{tpu_custom_call.1} parent=1 // pred_region
      %s7880 = ssub.s32 256, 256
      %7881 = vsyncadd [#allocation5], %s7880
      %s7882 = sshll.u32 [#allocation7], 4
      %s7883 = int_to_ptr.vmem [resolvable:$true] %s7882
      %7888 = dma.vmem_to_hbm [thread:$0]  %s7883, 256, %s15, [#allocation5], 128, 128, 8
    $region69: #{tpu_custom_call.1} parent=1 // pred_fallthru
      _
    // Predicated region
    $region70: #{tpu_custom_call.1} parent=1 // pred_check
      _
    $region71: #{tpu_custom_call.1} parent=1 // pred_check_branch
      %7890 = sbr.rel (0) target = $region73
    $region72: #{tpu_custom_call.1} parent=1 // pred_region
      %7891 = dma.done [#allocation5], 256
    $region73: #{tpu_custom_call.1} parent=1 // pred_fallthru
      _
    %7892 = vsyncpa [#allocation5], 1
    %7893 = vsyncpa [#allocation6], 1

</llo_original>
